<compile_context>
chip_gen: v5e
topology: v5e:2x2
jax: 0.10.0
libtpu: 0.0.40
codegen_flags: <defaults>
</compile_context>

<pallas_src>
import functools

import jax
import jax.numpy as jnp
from jax.experimental import pallas as pl
from jax.experimental.pallas import tpu as pltpu

EPS = 1e-5
LANE = 128                       # TPU lane width: pad channel dims to this
TILE_M = 512                     # rows per grid step (multiple of 16 for bf16)
VMEM_LIMIT = 48 * 1024 * 1024    # safe on v7x (64 MiB), generous on v5e/v6e


# ---------------------------------------------------------------------------
# Pallas kernels
# ---------------------------------------------------------------------------
def matmul_stats_kernel(x_ref, w_ref, y_ref, stats_ref):
    """y = x @ w (bf16 in, f32 MXU acc, bf16 out) + per-tile channel sums."""
    y = jnp.dot(x_ref[...], w_ref[...], preferred_element_type=jnp.float32)
    y_ref[...] = y.astype(y_ref.dtype)
    stats_ref[0] = jnp.concatenate(
        [jnp.sum(y, axis=0, keepdims=True),
         jnp.sum(y * y, axis=0, keepdims=True)], axis=0)          # (2, C)


def tail_dual_matmul_kernel(y2_ref, s2_ref, b2_ref, w3_ref, xr_ref, wr_ref,
                            ya_ref, yb_ref, sa_ref, sb_ref,
                            *, m_real, need_mask):
    """Fused: BN+ReLU(y2) -> layer3 1x1 conv, residual 1x1 conv, all stats.

    Padded rows (>= m_real) are zero-masked so the per-channel statistics
    stay exact; padded residual rows are already zero so yb needs no mask.
    """
    a = y2_ref[...].astype(jnp.float32) * s2_ref[...] + b2_ref[...]
    a = jnp.maximum(a, 0.0)
    if need_mask:
        rows = (pl.program_id(0) * a.shape[0]
                + jax.lax.broadcasted_iota(jnp.int32, a.shape, 0))
        a = jnp.where(rows < m_real, a, 0.0)

    ya = jnp.dot(a.astype(jnp.bfloat16), w3_ref[...],
                 preferred_element_type=jnp.float32)
    ya_ref[...] = ya.astype(ya_ref.dtype)
    sa_ref[0] = jnp.concatenate(
        [jnp.sum(ya, axis=0, keepdims=True),
         jnp.sum(ya * ya, axis=0, keepdims=True)], axis=0)

    yb = jnp.dot(xr_ref[...], wr_ref[...], preferred_element_type=jnp.float32)
    yb_ref[...] = yb.astype(yb_ref.dtype)
    sb_ref[0] = jnp.concatenate(
        [jnp.sum(yb, axis=0, keepdims=True),
         jnp.sum(yb * yb, axis=0, keepdims=True)], axis=0)


def bn_apply_kernel(y_ref, scale_ref, bias_ref, out_ref, *, relu: bool):
    """Per-tile normalize: out = y*scale + bias (+ optional ReLU)."""
    out = y_ref[...].astype(jnp.float32) * scale_ref[...] + bias_ref[...]
    if relu:
        out = jnp.maximum(out, 0.0)
    out_ref[...] = out.astype(out_ref.dtype)


def bn_add_relu_kernel(ya_ref, yb_ref, sa_ref, ba_ref, sb_ref, bb_ref, out_ref):
    """Fused tail epilogue: BN(layer3) + ReLU(BN(residual)) -> add -> ReLU."""
    ya = ya_ref[...].astype(jnp.float32) * sa_ref[...] + ba_ref[...]
    yb = jnp.maximum(
        yb_ref[...].astype(jnp.float32) * sb_ref[...] + bb_ref[...], 0.0)
    out_ref[...] = jnp.maximum(ya + yb, 0.0).astype(out_ref.dtype)


# ---------------------------------------------------------------------------
# Pallas wrappers (M-tiled, parallel grid, explicit VMEM limit)
# ---------------------------------------------------------------------------
def _cparams():
    return pltpu.CompilerParams(dimension_semantics=("parallel",),
                                vmem_limit_bytes=VMEM_LIMIT)


def matmul_stats_pallas(x2d, w2d):
    """x2d: (M_pad, K) bf16, w2d: (K, C) bf16 -> (y bf16 (M_pad,C), stats (nt,2,C) f32)."""
    M, K = x2d.shape
    C = w2d.shape[1]
    nt = M // TILE_M
    return pl.pallas_call(
        matmul_stats_kernel,
        out_shape=(jax.ShapeDtypeStruct((M, C), jnp.bfloat16),
                   jax.ShapeDtypeStruct((nt, 2, C), jnp.float32)),
        grid=(nt,),
        in_specs=[pl.BlockSpec((TILE_M, K), lambda i: (i, 0)),
                  pl.BlockSpec((K, C), lambda i: (0, 0))],
        out_specs=(pl.BlockSpec((TILE_M, C), lambda i: (i, 0)),
                   pl.BlockSpec((1, 2, C), lambda i: (i, 0, 0))),
        compiler_params=_cparams(),
    )(x2d, w2d)


def tail_dual_matmul_pallas(y2, s2, b2, w3, xr, wr, *, m_real):
    M, Cm = y2.shape
    Cin = xr.shape[1]
    C = w3.shape[1]
    nt = M // TILE_M
    kernel = functools.partial(tail_dual_matmul_kernel,
                               m_real=m_real, need_mask=(m_real != M))
    return pl.pallas_call(
        kernel,
        out_shape=(jax.ShapeDtypeStruct((M, C), jnp.bfloat16),
                   jax.ShapeDtypeStruct((M, C), jnp.bfloat16),
                   jax.ShapeDtypeStruct((nt, 2, C), jnp.float32),
                   jax.ShapeDtypeStruct((nt, 2, C), jnp.float32)),
        grid=(nt,),
        in_specs=[pl.BlockSpec((TILE_M, Cm), lambda i: (i, 0)),
                  pl.BlockSpec((1, Cm), lambda i: (0, 0)),
                  pl.BlockSpec((1, Cm), lambda i: (0, 0)),
                  pl.BlockSpec((Cm, C), lambda i: (0, 0)),
                  pl.BlockSpec((TILE_M, Cin), lambda i: (i, 0)),
                  pl.BlockSpec((Cin, C), lambda i: (0, 0))],
        out_specs=(pl.BlockSpec((TILE_M, C), lambda i: (i, 0)),
                   pl.BlockSpec((TILE_M, C), lambda i: (i, 0)),
                   pl.BlockSpec((1, 2, C), lambda i: (i, 0, 0)),
                   pl.BlockSpec((1, 2, C), lambda i: (i, 0, 0))),
        compiler_params=_cparams(),
    )(y2, s2, b2, w3, xr, wr)


def bn_apply_pallas(y, scale, bias, *, relu, out_dtype):
    M, C = y.shape
    kernel = functools.partial(bn_apply_kernel, relu=relu)
    return pl.pallas_call(
        kernel,
        out_shape=jax.ShapeDtypeStruct((M, C), out_dtype),
        grid=(M // TILE_M,),
        in_specs=[pl.BlockSpec((TILE_M, C), lambda i: (i, 0)),
                  pl.BlockSpec((1, C), lambda i: (0, 0)),
                  pl.BlockSpec((1, C), lambda i: (0, 0))],
        out_specs=pl.BlockSpec((TILE_M, C), lambda i: (i, 0)),
        compiler_params=_cparams(),
    )(y, scale, bias)


def bn_add_relu_pallas(ya, yb, sa, ba, sb, bb):
    M, C = ya.shape
    return pl.pallas_call(
        bn_add_relu_kernel,
        out_shape=jax.ShapeDtypeStruct((M, C), jnp.float32),
        grid=(M // TILE_M,),
        in_specs=[pl.BlockSpec((TILE_M, C), lambda i: (i, 0)),
                  pl.BlockSpec((TILE_M, C), lambda i: (i, 0)),
                  pl.BlockSpec((1, C), lambda i: (0, 0)),
                  pl.BlockSpec((1, C), lambda i: (0, 0)),
                  pl.BlockSpec((1, C), lambda i: (0, 0)),
                  pl.BlockSpec((1, C), lambda i: (0, 0))],
        out_specs=pl.BlockSpec((TILE_M, C), lambda i: (i, 0)),
        compiler_params=_cparams(),
    )(ya, yb, sa, ba, sb, bb)


# ---------------------------------------------------------------------------
# Glue: padding helpers, im2col, BN stat reduction
# ---------------------------------------------------------------------------
def round_up(n, m):
    return ((n + m - 1) // m) * m


def pad_axis(x, axis, multiple):
    size = x.shape[axis]
    pad = (-size) % multiple
    if pad == 0:
        return x
    widths = [(0, 0)] * x.ndim
    widths[axis] = (0, pad)
    return jnp.pad(x, widths)


def im2col(x_nhwc, ksize, stride, dilation, padding):
    """x_nhwc already channel-padded, bf16. Column order: (tap, channel)."""
    N, H, W, C = x_nhwc.shape
    xp = jnp.pad(x_nhwc, ((0, 0), (padding, padding), (padding, padding), (0, 0)))
    Ho = (H + 2 * padding - dilation * (ksize - 1) - 1) // stride + 1
    Wo = (W + 2 * padding - dilation * (ksize - 1) - 1) // stride + 1
    taps = []
    for kh in range(ksize):
        for kw in range(ksize):
            taps.append(xp[:, kh * dilation: kh * dilation + (Ho - 1) * stride + 1: stride,
                              kw * dilation: kw * dilation + (Wo - 1) * stride + 1: stride, :])
    patches = jnp.stack(taps, axis=3)              # (N, Ho, Wo, K*K, C)
    return patches.reshape(N * Ho * Wo, ksize * ksize * C), Ho, Wo


def stats_to_scale_bias(stat_sum, stat_sq, m_real, gamma, beta):
    """Training-mode BatchNorm: biased variance over all m_real rows."""
    # TODO(synk): E[y^2]-mean^2 in f32 can cancel for large-mean activations;
    # a Welford-style tile combine would match PyTorch more tightly.
    mean = stat_sum / m_real
    var = jnp.maximum(stat_sq / m_real - mean * mean, 0.0)
    scale = gamma * jax.lax.rsqrt(var + EPS)
    bias = beta - mean * scale
    return scale, bias


# ---------------------------------------------------------------------------
# Parameter init (kaiming_normal_, fan_in over real channels, bias=False)
# Weights stored as channel-padded bf16 matmul matrices.
# ---------------------------------------------------------------------------
def kaiming_conv_weight_matrix(key, cout, cin, ksize, cin_pad, cout_pad):
    fan_in = cin * ksize * ksize
    std = (2.0 / fan_in) ** 0.5
    w = jax.random.normal(key, (cout, cin, ksize, ksize), jnp.float32) * std
    w = jnp.transpose(w, (2, 3, 1, 0)).reshape(ksize * ksize, cin, cout)  # (taps, Cin, Cout)
    wp = jnp.zeros((ksize * ksize, cin_pad, cout_pad), jnp.float32)
    wp = wp.at[:, :cin, :cout].set(w)
    return wp.reshape(ksize * ksize * cin_pad, cout_pad).astype(jnp.bfloat16)


def init_bottleneck_params(key, in_channels, mid_channels, out_channels):
    cin_p = round_up(in_channels, LANE)
    cmid_p = round_up(mid_channels, LANE)
    cout_p = round_up(out_channels, LANE)
    k1, k2, k3, kr = jax.random.split(key, 4)

    def bn(c_pad):
        return jnp.ones((1, c_pad), jnp.float32), jnp.zeros((1, c_pad), jnp.float32)

    g1, be1 = bn(cmid_p)
    g2, be2 = bn(cmid_p)
    g3, be3 = bn(cout_p)
    gr, ber = bn(cout_p)
    return {
        "w1": kaiming_conv_weight_matrix(k1, mid_channels, in_channels, 1, cin_p, cmid_p),
        "w2": kaiming_conv_weight_matrix(k2, mid_channels, mid_channels, 3, cmid_p, cmid_p),
        "w3": kaiming_conv_weight_matrix(k3, out_channels, mid_channels, 1, cmid_p, cout_p),
        "wr": kaiming_conv_weight_matrix(kr, out_channels, in_channels, 1, cin_p, cout_p),
        "g1": g1, "be1": be1, "g2": g2, "be2": be2,
        "g3": g3, "be3": be3, "gr": gr, "ber": ber,
    }


# ---------------------------------------------------------------------------
# BottleNeck forward
# ---------------------------------------------------------------------------
def bottleneck_forward(x_nchw, params, *, out_channels, stride=1, dilation=1):
    x = jnp.transpose(x_nchw, (0, 2, 3, 1)).astype(jnp.float32)      # NCHW -> NHWC
    N, H, W, Cin = x.shape
    x_p = pad_axis(x, 3, LANE).astype(jnp.bfloat16)                  # channel-pad, bf16
    cin_p = x_p.shape[3]
    cmid_p = params["w1"].shape[1]

    # ---- layer1: 1x1 conv + BN + ReLU -------------------------------------
    M1 = N * H * W
    a1 = pad_axis(x_p.reshape(M1, cin_p), 0, TILE_M)
    y1, st1 = matmul_stats_pallas(a1, params["w1"])
    tot1 = jnp.sum(st1, axis=0)                                      # (2, C)
    s1, b1 = stats_to_scale_bias(tot1[0:1], tot1[1:2], M1, params["g1"], params["be1"])
    f1 = bn_apply_pallas(y1, s1, b1, relu=True, out_dtype=jnp.bfloat16)[:M1]
    f1 = f1.reshape(N, H, W, cmid_p)

    # ---- layer2: 3x3 conv (pad=dilation, dilation, stride) ----------------
    # TODO(synk): im2col still goes through HBM (9x expansion of f1).
    cols, Ho, Wo = im2col(f1, 3, stride, dilation, dilation)         # bf16, (M2, 9*cmid_p)
    M2 = N * Ho * Wo
    a2 = pad_axis(cols, 0, TILE_M)
    y2, st2 = matmul_stats_pallas(a2, params["w2"])
    tot2 = jnp.sum(st2, axis=0)
    s2, b2 = stats_to_scale_bias(tot2[0:1], tot2[1:2], M2, params["g2"], params["be2"])

    # ---- fused tail: BN+ReLU(y2) -> layer3 1x1, residual 1x1, their stats --
    xr = x_p[:, ::stride, ::stride, :].reshape(M2, cin_p)
    ar = pad_axis(xr, 0, TILE_M)
    y3, yr, st3, str_ = tail_dual_matmul_pallas(
        y2, s2, b2, params["w3"], ar, params["wr"], m_real=M2)
    tot3 = jnp.sum(st3, axis=0)
    totr = jnp.sum(str_, axis=0)
    s3, b3 = stats_to_scale_bias(tot3[0:1], tot3[1:2], M2, params["g3"], params["be3"])
    sr, br = stats_to_scale_bias(totr[0:1], totr[1:2], M2, params["gr"], params["ber"])

    # ---- epilogue: BN(layer3) + ReLU(BN(residual)) -> add -> ReLU ----------
    out = bn_add_relu_pallas(y3, yr, s3, b3, sr, br)[:M2, :out_channels]
    out = out.reshape(N, Ho, Wo, out_channels)
    return jnp.transpose(out, (0, 3, 1, 2))                          # back to NCHW


# ---------------------------------------------------------------------------
if __name__ == "__main__":
    key = jax.random.PRNGKey(0)
    kx, kp = jax.random.split(key)

    N, Cin, H, W = 2, 4, 16, 16
    Cmid, Cout = 8, 16
    stride, dilation = 1, 1

    x = jax.random.normal(kx, (N, Cin, H, W), dtype=jnp.float32)
    params = init_bottleneck_params(kp, Cin, Cmid, Cout)

    fwd = jax.jit(functools.partial(bottleneck_forward, out_channels=Cout,
                                    stride=stride, dilation=dilation))
    out = fwd(x, params)
    out = jax.block_until_ready(out)

    Ho = (H - 1) // stride + 1
    Wo = (W - 1) // stride + 1
    assert out.shape == (N, Cout, Ho, Wo), out.shape
    assert bool(jnp.all(jnp.isfinite(out)))
    print("KERNEL_OK")
</pallas_src>

<mosaic_0001>
module attributes {stable_mosaic.version = 11 : i64} {
  func.func @matmul_stats_kernel(%arg0: i32, %arg1: memref<512x128xbf16, #tpu.memory_space<vmem>>, %arg2: memref<128x128xbf16, #tpu.memory_space<vmem>>, %arg3: memref<512x128xbf16, #tpu.memory_space<vmem>>, %arg4: memref<1x2x128xf32, #tpu.memory_space<vmem>>) attributes {dimension_semantics = [#tpu.dimension_semantics<parallel>], iteration_bounds = array<i64: 1>, scalar_prefetch = 0 : i64, scratch_operands = 0 : i64, tpu.core_type = #tpu.core_type<tc>, window_params = [{transform_indices = @transform_0, window_bounds = array<i64: 512, 128>}, {pipeline_mode = #tpu.pipeline_mode<synchronous>, transform_indices = @transform_1, window_bounds = array<i64: 128, 128>}, {transform_indices = @transform_2, window_bounds = array<i64: 512, 128>}, {transform_indices = @transform_3, window_bounds = array<i64: 1, 2, 128>}]} {
    %c0 = arith.constant 0 : index
    %c0_0 = arith.constant 0 : index
    %0 = vector.load %arg1[%c0, %c0_0] : memref<512x128xbf16, #tpu.memory_space<vmem>>, vector<512x128xbf16>
    %c0_1 = arith.constant 0 : index
    %c0_2 = arith.constant 0 : index
    %1 = vector.load %arg2[%c0_1, %c0_2] : memref<128x128xbf16, #tpu.memory_space<vmem>>, vector<128x128xbf16>
    %cst = arith.constant dense<0.000000e+00> : vector<512x128xf32>
    %2 = tpu.matmul %0, %1, %cst {dimension_numbers = #tpu.dot_dimension_numbers<[1], [0], [0], [1], [0, 0, 1, 1], [], []>} : vector<512x128xbf16>, vector<128x128xbf16>, vector<512x128xf32> -> vector<512x128xf32>
    %3 = arith.truncf %2 : vector<512x128xf32> to vector<512x128xbf16>
    %c0_3 = arith.constant 0 : index
    %c0_4 = arith.constant 0 : index
    %4 = vector.load %arg3[%c0_3, %c0_4] : memref<512x128xbf16, #tpu.memory_space<vmem>>, vector<512x128xbf16>
    tpu.vector_store %arg3[%c0_3, %c0_4], %3 {strides = array<i32>} : memref<512x128xbf16, #tpu.memory_space<vmem>>, vector<512x128xbf16>,
    %cst_5 = arith.constant dense<0.000000e+00> : vector<128xf32>
    %5 = vector.multi_reduction <add>, %2, %cst_5 [0] : vector<512x128xf32> to vector<128xf32>
    %6 = vector.shape_cast %5 : vector<128xf32> to vector<1x128xf32>
    %7 = arith.mulf %2, %2 : vector<512x128xf32>
    %cst_6 = arith.constant dense<0.000000e+00> : vector<128xf32>
    %8 = vector.multi_reduction <add>, %7, %cst_6 [0] : vector<512x128xf32> to vector<128xf32>
    %9 = vector.shape_cast %8 : vector<128xf32> to vector<1x128xf32>
    %10 = tpu.concatenate %6, %9 in 0 : vector<1x128xf32>, vector<1x128xf32> -> vector<2x128xf32>
    %c0_7 = arith.constant 0 : index
    %c0_8 = arith.constant 0 : index
    %c0_9 = arith.constant 0 : index
    %11 = vector.load %arg4[%c0_7, %c0_8, %c0_9] : memref<1x2x128xf32, #tpu.memory_space<vmem>>, vector<1x2x128xf32>
    %12 = vector.shape_cast %11 : vector<1x2x128xf32> to vector<2x128xf32>
    %13 = vector.shape_cast %10 : vector<2x128xf32> to vector<1x2x128xf32>
    tpu.vector_store %arg4[%c0_7, %c0_8, %c0_9], %13 {strides = array<i32>} : memref<1x2x128xf32, #tpu.memory_space<vmem>>, vector<1x2x128xf32>,
    return
  }
  func.func @transform_0(%arg0: i32) -> (i32, i32) {
    %c0_i32 = arith.constant 0 : i32
    %c0_i32_0 = arith.constant 0 : i32
    return %arg0, %c0_i32 : i32, i32
  }
  func.func @transform_1(%arg0: i32) -> (i32, i32) {
    %c0_i32 = arith.constant 0 : i32
    %c0_i32_0 = arith.constant 0 : i32
    %c0_i32_1 = arith.constant 0 : i32
    return %c0_i32, %c0_i32_0 : i32, i32
  }
  func.func @transform_2(%arg0: i32) -> (i32, i32) {
    %c0_i32 = arith.constant 0 : i32
    %c0_i32_0 = arith.constant 0 : i32
    return %arg0, %c0_i32 : i32, i32
  }
  func.func @transform_3(%arg0: i32) -> (i32, i32, i32) {
    %c0_i32 = arith.constant 0 : i32
    %c0_i32_0 = arith.constant 0 : i32
    %c0_i32_1 = arith.constant 0 : i32
    return %arg0, %c0_i32, %c0_i32_0 : i32, i32, i32
  }
}

module attributes {stable_mosaic.version = 11 : i64} {
  func.func @bn_apply_kernel(%arg0: i32, %arg1: memref<512x128xbf16, #tpu.memory_space<vmem>>, %arg2: memref<1x128xf32, #tpu.memory_space<vmem>>, %arg3: memref<1x128xf32, #tpu.memory_space<vmem>>, %arg4: memref<512x128xbf16, #tpu.memory_space<vmem>>) attributes {dimension_semantics = [#tpu.dimension_semantics<parallel>], iteration_bounds = array<i64: 1>, scalar_prefetch = 0 : i64, scratch_operands = 0 : i64, tpu.core_type = #tpu.core_type<tc>, window_params = [{transform_indices = @transform_0, window_bounds = array<i64: 512, 128>}, {pipeline_mode = #tpu.pipeline_mode<synchronous>, transform_indices = @transform_1, window_bounds = array<i64: 1, 128>}, {pipeline_mode = #tpu.pipeline_mode<synchronous>, transform_indices = @transform_2, window_bounds = array<i64: 1, 128>}, {transform_indices = @transform_3, window_bounds = array<i64: 512, 128>}]} {
    %c0 = arith.constant 0 : index
    %c0_0 = arith.constant 0 : index
    %0 = vector.load %arg1[%c0, %c0_0] : memref<512x128xbf16, #tpu.memory_space<vmem>>, vector<512x128xbf16>
    %1 = arith.extf %0 : vector<512x128xbf16> to vector<512x128xf32>
    %c0_1 = arith.constant 0 : index
    %c0_2 = arith.constant 0 : index
    %2 = vector.load %arg2[%c0_1, %c0_2] : memref<1x128xf32, #tpu.memory_space<vmem>>, vector<1x128xf32>
    %3 = vector.broadcast %2 : vector<1x128xf32> to vector<512x128xf32>
    %4 = arith.mulf %1, %3 : vector<512x128xf32>
    %c0_3 = arith.constant 0 : index
    %c0_4 = arith.constant 0 : index
    %5 = vector.load %arg3[%c0_3, %c0_4] : memref<1x128xf32, #tpu.memory_space<vmem>>, vector<1x128xf32>
    %6 = vector.broadcast %5 : vector<1x128xf32> to vector<512x128xf32>
    %7 = arith.addf %4, %6 : vector<512x128xf32>
    %cst = arith.constant 0.000000e+00 : f32
    %8 = vector.broadcast %cst : f32 to vector<512x128xf32>
    %9 = arith.maximumf %7, %8 : vector<512x128xf32>
    %10 = arith.truncf %9 : vector<512x128xf32> to vector<512x128xbf16>
    %c0_5 = arith.constant 0 : index
    %c0_6 = arith.constant 0 : index
    %11 = vector.load %arg4[%c0_5, %c0_6] : memref<512x128xbf16, #tpu.memory_space<vmem>>, vector<512x128xbf16>
    tpu.vector_store %arg4[%c0_5, %c0_6], %10 {strides = array<i32>} : memref<512x128xbf16, #tpu.memory_space<vmem>>, vector<512x128xbf16>,
    return
  }
  func.func @transform_0(%arg0: i32) -> (i32, i32) {
    %c0_i32 = arith.constant 0 : i32
    %c0_i32_0 = arith.constant 0 : i32
    return %arg0, %c0_i32 : i32, i32
  }
  func.func @transform_1(%arg0: i32) -> (i32, i32) {
    %c0_i32 = arith.constant 0 : i32
    %c0_i32_0 = arith.constant 0 : i32
    %c0_i32_1 = arith.constant 0 : i32
    return %c0_i32, %c0_i32_0 : i32, i32
  }
  func.func @transform_2(%arg0: i32) -> (i32, i32) {
    %c0_i32 = arith.constant 0 : i32
    %c0_i32_0 = arith.constant 0 : i32
    %c0_i32_1 = arith.constant 0 : i32
    return %c0_i32, %c0_i32_0 : i32, i32
  }
  func.func @transform_3(%arg0: i32) -> (i32, i32) {
    %c0_i32 = arith.constant 0 : i32
    %c0_i32_0 = arith.constant 0 : i32
    return %arg0, %c0_i32 : i32, i32
  }
}

module attributes {stable_mosaic.version = 11 : i64} {
  func.func @matmul_stats_kernel(%arg0: i32, %arg1: memref<512x1152xbf16, #tpu.memory_space<vmem>>, %arg2: memref<1152x128xbf16, #tpu.memory_space<vmem>>, %arg3: memref<512x128xbf16, #tpu.memory_space<vmem>>, %arg4: memref<1x2x128xf32, #tpu.memory_space<vmem>>) attributes {dimension_semantics = [#tpu.dimension_semantics<parallel>], iteration_bounds = array<i64: 1>, scalar_prefetch = 0 : i64, scratch_operands = 0 : i64, tpu.core_type = #tpu.core_type<tc>, window_params = [{transform_indices = @transform_0, window_bounds = array<i64: 512, 1152>}, {pipeline_mode = #tpu.pipeline_mode<synchronous>, transform_indices = @transform_1, window_bounds = array<i64: 1152, 128>}, {transform_indices = @transform_2, window_bounds = array<i64: 512, 128>}, {transform_indices = @transform_3, window_bounds = array<i64: 1, 2, 128>}]} {
    %c0 = arith.constant 0 : index
    %c0_0 = arith.constant 0 : index
    %0 = vector.load %arg1[%c0, %c0_0] : memref<512x1152xbf16, #tpu.memory_space<vmem>>, vector<512x1152xbf16>
    %c0_1 = arith.constant 0 : index
    %c0_2 = arith.constant 0 : index
    %1 = vector.load %arg2[%c0_1, %c0_2] : memref<1152x128xbf16, #tpu.memory_space<vmem>>, vector<1152x128xbf16>
    %cst = arith.constant dense<0.000000e+00> : vector<512x128xf32>
    %2 = tpu.matmul %0, %1, %cst {dimension_numbers = #tpu.dot_dimension_numbers<[1], [0], [0], [1], [0, 0, 1, 1], [], []>} : vector<512x1152xbf16>, vector<1152x128xbf16>, vector<512x128xf32> -> vector<512x128xf32>
    %3 = arith.truncf %2 : vector<512x128xf32> to vector<512x128xbf16>
    %c0_3 = arith.constant 0 : index
    %c0_4 = arith.constant 0 : index
    %4 = vector.load %arg3[%c0_3, %c0_4] : memref<512x128xbf16, #tpu.memory_space<vmem>>, vector<512x128xbf16>
    tpu.vector_store %arg3[%c0_3, %c0_4], %3 {strides = array<i32>} : memref<512x128xbf16, #tpu.memory_space<vmem>>, vector<512x128xbf16>,
    %cst_5 = arith.constant dense<0.000000e+00> : vector<128xf32>
    %5 = vector.multi_reduction <add>, %2, %cst_5 [0] : vector<512x128xf32> to vector<128xf32>
    %6 = vector.shape_cast %5 : vector<128xf32> to vector<1x128xf32>
    %7 = arith.mulf %2, %2 : vector<512x128xf32>
    %cst_6 = arith.constant dense<0.000000e+00> : vector<128xf32>
    %8 = vector.multi_reduction <add>, %7, %cst_6 [0] : vector<512x128xf32> to vector<128xf32>
    %9 = vector.shape_cast %8 : vector<128xf32> to vector<1x128xf32>
    %10 = tpu.concatenate %6, %9 in 0 : vector<1x128xf32>, vector<1x128xf32> -> vector<2x128xf32>
    %c0_7 = arith.constant 0 : index
    %c0_8 = arith.constant 0 : index
    %c0_9 = arith.constant 0 : index
    %11 = vector.load %arg4[%c0_7, %c0_8, %c0_9] : memref<1x2x128xf32, #tpu.memory_space<vmem>>, vector<1x2x128xf32>
    %12 = vector.shape_cast %11 : vector<1x2x128xf32> to vector<2x128xf32>
    %13 = vector.shape_cast %10 : vector<2x128xf32> to vector<1x2x128xf32>
    tpu.vector_store %arg4[%c0_7, %c0_8, %c0_9], %13 {strides = array<i32>} : memref<1x2x128xf32, #tpu.memory_space<vmem>>, vector<1x2x128xf32>,
    return
  }
  func.func @transform_0(%arg0: i32) -> (i32, i32) {
    %c0_i32 = arith.constant 0 : i32
    %c0_i32_0 = arith.constant 0 : i32
    return %arg0, %c0_i32 : i32, i32
  }
  func.func @transform_1(%arg0: i32) -> (i32, i32) {
    %c0_i32 = arith.constant 0 : i32
    %c0_i32_0 = arith.constant 0 : i32
    %c0_i32_1 = arith.constant 0 : i32
    return %c0_i32, %c0_i32_0 : i32, i32
  }
  func.func @transform_2(%arg0: i32) -> (i32, i32) {
    %c0_i32 = arith.constant 0 : i32
    %c0_i32_0 = arith.constant 0 : i32
    return %arg0, %c0_i32 : i32, i32
  }
  func.func @transform_3(%arg0: i32) -> (i32, i32, i32) {
    %c0_i32 = arith.constant 0 : i32
    %c0_i32_0 = arith.constant 0 : i32
    %c0_i32_1 = arith.constant 0 : i32
    return %arg0, %c0_i32, %c0_i32_0 : i32, i32, i32
  }
}

module attributes {stable_mosaic.version = 11 : i64} {
  func.func @tail_dual_matmul_kernel(%arg0: i32, %arg1: memref<512x128xbf16, #tpu.memory_space<vmem>>, %arg2: memref<1x128xf32, #tpu.memory_space<vmem>>, %arg3: memref<1x128xf32, #tpu.memory_space<vmem>>, %arg4: memref<128x128xbf16, #tpu.memory_space<vmem>>, %arg5: memref<512x128xbf16, #tpu.memory_space<vmem>>, %arg6: memref<128x128xbf16, #tpu.memory_space<vmem>>, %arg7: memref<512x128xbf16, #tpu.memory_space<vmem>>, %arg8: memref<512x128xbf16, #tpu.memory_space<vmem>>, %arg9: memref<1x2x128xf32, #tpu.memory_space<vmem>>, %arg10: memref<1x2x128xf32, #tpu.memory_space<vmem>>) attributes {dimension_semantics = [#tpu.dimension_semantics<parallel>], iteration_bounds = array<i64: 1>, scalar_prefetch = 0 : i64, scratch_operands = 0 : i64, tpu.core_type = #tpu.core_type<tc>, window_params = [{transform_indices = @transform_0, window_bounds = array<i64: 512, 128>}, {pipeline_mode = #tpu.pipeline_mode<synchronous>, transform_indices = @transform_1, window_bounds = array<i64: 1, 128>}, {pipeline_mode = #tpu.pipeline_mode<synchronous>, transform_indices = @transform_2, window_bounds = array<i64: 1, 128>}, {pipeline_mode = #tpu.pipeline_mode<synchronous>, transform_indices = @transform_3, window_bounds = array<i64: 128, 128>}, {transform_indices = @transform_4, window_bounds = array<i64: 512, 128>}, {pipeline_mode = #tpu.pipeline_mode<synchronous>, transform_indices = @transform_5, window_bounds = array<i64: 128, 128>}, {transform_indices = @transform_6, window_bounds = array<i64: 512, 128>}, {transform_indices = @transform_7, window_bounds = array<i64: 512, 128>}, {transform_indices = @transform_8, window_bounds = array<i64: 1, 2, 128>}, {transform_indices = @transform_9, window_bounds = array<i64: 1, 2, 128>}]} {
    %c0 = arith.constant 0 : index
    %c0_0 = arith.constant 0 : index
    %0 = vector.load %arg1[%c0, %c0_0] : memref<512x128xbf16, #tpu.memory_space<vmem>>, vector<512x128xbf16>
    %1 = arith.extf %0 : vector<512x128xbf16> to vector<512x128xf32>
    %c0_1 = arith.constant 0 : index
    %c0_2 = arith.constant 0 : index
    %2 = vector.load %arg2[%c0_1, %c0_2] : memref<1x128xf32, #tpu.memory_space<vmem>>, vector<1x128xf32>
    %3 = vector.broadcast %2 : vector<1x128xf32> to vector<512x128xf32>
    %4 = arith.mulf %1, %3 : vector<512x128xf32>
    %c0_3 = arith.constant 0 : index
    %c0_4 = arith.constant 0 : index
    %5 = vector.load %arg3[%c0_3, %c0_4] : memref<1x128xf32, #tpu.memory_space<vmem>>, vector<1x128xf32>
    %6 = vector.broadcast %5 : vector<1x128xf32> to vector<512x128xf32>
    %7 = arith.addf %4, %6 : vector<512x128xf32>
    %cst = arith.constant 0.000000e+00 : f32
    %8 = vector.broadcast %cst : f32 to vector<512x128xf32>
    %9 = arith.maximumf %7, %8 : vector<512x128xf32>
    %10 = arith.truncf %9 : vector<512x128xf32> to vector<512x128xbf16>
    %c0_5 = arith.constant 0 : index
    %c0_6 = arith.constant 0 : index
    %11 = vector.load %arg4[%c0_5, %c0_6] : memref<128x128xbf16, #tpu.memory_space<vmem>>, vector<128x128xbf16>
    %cst_7 = arith.constant dense<0.000000e+00> : vector<512x128xf32>
    %12 = tpu.matmul %10, %11, %cst_7 {dimension_numbers = #tpu.dot_dimension_numbers<[1], [0], [0], [1], [0, 0, 1, 1], [], []>} : vector<512x128xbf16>, vector<128x128xbf16>, vector<512x128xf32> -> vector<512x128xf32>
    %13 = arith.truncf %12 : vector<512x128xf32> to vector<512x128xbf16>
    %c0_8 = arith.constant 0 : index
    %c0_9 = arith.constant 0 : index
    %14 = vector.load %arg7[%c0_8, %c0_9] : memref<512x128xbf16, #tpu.memory_space<vmem>>, vector<512x128xbf16>
    tpu.vector_store %arg7[%c0_8, %c0_9], %13 {strides = array<i32>} : memref<512x128xbf16, #tpu.memory_space<vmem>>, vector<512x128xbf16>,
    %cst_10 = arith.constant dense<0.000000e+00> : vector<128xf32>
    %15 = vector.multi_reduction <add>, %12, %cst_10 [0] : vector<512x128xf32> to vector<128xf32>
    %16 = vector.shape_cast %15 : vector<128xf32> to vector<1x128xf32>
    %17 = arith.mulf %12, %12 : vector<512x128xf32>
    %cst_11 = arith.constant dense<0.000000e+00> : vector<128xf32>
    %18 = vector.multi_reduction <add>, %17, %cst_11 [0] : vector<512x128xf32> to vector<128xf32>
    %19 = vector.shape_cast %18 : vector<128xf32> to vector<1x128xf32>
    %20 = tpu.concatenate %16, %19 in 0 : vector<1x128xf32>, vector<1x128xf32> -> vector<2x128xf32>
    %c0_12 = arith.constant 0 : index
    %c0_13 = arith.constant 0 : index
    %c0_14 = arith.constant 0 : index
    %21 = vector.load %arg9[%c0_12, %c0_13, %c0_14] : memref<1x2x128xf32, #tpu.memory_space<vmem>>, vector<1x2x128xf32>
    %22 = vector.shape_cast %21 : vector<1x2x128xf32> to vector<2x128xf32>
    %23 = vector.shape_cast %20 : vector<2x128xf32> to vector<1x2x128xf32>
    tpu.vector_store %arg9[%c0_12, %c0_13, %c0_14], %23 {strides = array<i32>} : memref<1x2x128xf32, #tpu.memory_space<vmem>>, vector<1x2x128xf32>,
    %c0_15 = arith.constant 0 : index
    %c0_16 = arith.constant 0 : index
    %24 = vector.load %arg5[%c0_15, %c0_16] : memref<512x128xbf16, #tpu.memory_space<vmem>>, vector<512x128xbf16>
    %c0_17 = arith.constant 0 : index
    %c0_18 = arith.constant 0 : index
    %25 = vector.load %arg6[%c0_17, %c0_18] : memref<128x128xbf16, #tpu.memory_space<vmem>>, vector<128x128xbf16>
    %cst_19 = arith.constant dense<0.000000e+00> : vector<512x128xf32>
    %26 = tpu.matmul %24, %25, %cst_19 {dimension_numbers = #tpu.dot_dimension_numbers<[1], [0], [0], [1], [0, 0, 1, 1], [], []>} : vector<512x128xbf16>, vector<128x128xbf16>, vector<512x128xf32> -> vector<512x128xf32>
    %27 = arith.truncf %26 : vector<512x128xf32> to vector<512x128xbf16>
    %c0_20 = arith.constant 0 : index
    %c0_21 = arith.constant 0 : index
    %28 = vector.load %arg8[%c0_20, %c0_21] : memref<512x128xbf16, #tpu.memory_space<vmem>>, vector<512x128xbf16>
    tpu.vector_store %arg8[%c0_20, %c0_21], %27 {strides = array<i32>} : memref<512x128xbf16, #tpu.memory_space<vmem>>, vector<512x128xbf16>,
    %cst_22 = arith.constant dense<0.000000e+00> : vector<128xf32>
    %29 = vector.multi_reduction <add>, %26, %cst_22 [0] : vector<512x128xf32> to vector<128xf32>
    %30 = vector.shape_cast %29 : vector<128xf32> to vector<1x128xf32>
    %31 = arith.mulf %26, %26 : vector<512x128xf32>
    %cst_23 = arith.constant dense<0.000000e+00> : vector<128xf32>
    %32 = vector.multi_reduction <add>, %31, %cst_23 [0] : vector<512x128xf32> to vector<128xf32>
    %33 = vector.shape_cast %32 : vector<128xf32> to vector<1x128xf32>
    %34 = tpu.concatenate %30, %33 in 0 : vector<1x128xf32>, vector<1x128xf32> -> vector<2x128xf32>
    %c0_24 = arith.constant 0 : index
    %c0_25 = arith.constant 0 : index
    %c0_26 = arith.constant 0 : index
    %35 = vector.load %arg10[%c0_24, %c0_25, %c0_26] : memref<1x2x128xf32, #tpu.memory_space<vmem>>, vector<1x2x128xf32>
    %36 = vector.shape_cast %35 : vector<1x2x128xf32> to vector<2x128xf32>
    %37 = vector.shape_cast %34 : vector<2x128xf32> to vector<1x2x128xf32>
    tpu.vector_store %arg10[%c0_24, %c0_25, %c0_26], %37 {strides = array<i32>} : memref<1x2x128xf32, #tpu.memory_space<vmem>>, vector<1x2x128xf32>,
    return
  }
  func.func @transform_0(%arg0: i32) -> (i32, i32) {
    %c0_i32 = arith.constant 0 : i32
    %c0_i32_0 = arith.constant 0 : i32
    return %arg0, %c0_i32 : i32, i32
  }
  func.func @transform_1(%arg0: i32) -> (i32, i32) {
    %c0_i32 = arith.constant 0 : i32
    %c0_i32_0 = arith.constant 0 : i32
    %c0_i32_1 = arith.constant 0 : i32
    return %c0_i32, %c0_i32_0 : i32, i32
  }
  func.func @transform_2(%arg0: i32) -> (i32, i32) {
    %c0_i32 = arith.constant 0 : i32
    %c0_i32_0 = arith.constant 0 : i32
    %c0_i32_1 = arith.constant 0 : i32
    return %c0_i32, %c0_i32_0 : i32, i32
  }
  func.func @transform_3(%arg0: i32) -> (i32, i32) {
    %c0_i32 = arith.constant 0 : i32
    %c0_i32_0 = arith.constant 0 : i32
    %c0_i32_1 = arith.constant 0 : i32
    return %c0_i32, %c0_i32_0 : i32, i32
  }
  func.func @transform_4(%arg0: i32) -> (i32, i32) {
    %c0_i32 = arith.constant 0 : i32
    %c0_i32_0 = arith.constant 0 : i32
    return %arg0, %c0_i32 : i32, i32
  }
  func.func @transform_5(%arg0: i32) -> (i32, i32) {
    %c0_i32 = arith.constant 0 : i32
    %c0_i32_0 = arith.constant 0 : i32
    %c0_i32_1 = arith.constant 0 : i32
    return %c0_i32, %c0_i32_0 : i32, i32
  }
  func.func @transform_6(%arg0: i32) -> (i32, i32) {
    %c0_i32 = arith.constant 0 : i32
    %c0_i32_0 = arith.constant 0 : i32
    return %arg0, %c0_i32 : i32, i32
  }
  func.func @transform_7(%arg0: i32) -> (i32, i32) {
    %c0_i32 = arith.constant 0 : i32
    %c0_i32_0 = arith.constant 0 : i32
    return %arg0, %c0_i32 : i32, i32
  }
  func.func @transform_8(%arg0: i32) -> (i32, i32, i32) {
    %c0_i32 = arith.constant 0 : i32
    %c0_i32_0 = arith.constant 0 : i32
    %c0_i32_1 = arith.constant 0 : i32
    return %arg0, %c0_i32, %c0_i32_0 : i32, i32, i32
  }
  func.func @transform_9(%arg0: i32) -> (i32, i32, i32) {
    %c0_i32 = arith.constant 0 : i32
    %c0_i32_0 = arith.constant 0 : i32
    %c0_i32_1 = arith.constant 0 : i32
    return %arg0, %c0_i32, %c0_i32_0 : i32, i32, i32
  }
}

module attributes {stable_mosaic.version = 11 : i64} {
  func.func @bn_add_relu_kernel(%arg0: i32, %arg1: memref<512x128xbf16, #tpu.memory_space<vmem>>, %arg2: memref<512x128xbf16, #tpu.memory_space<vmem>>, %arg3: memref<1x128xf32, #tpu.memory_space<vmem>>, %arg4: memref<1x128xf32, #tpu.memory_space<vmem>>, %arg5: memref<1x128xf32, #tpu.memory_space<vmem>>, %arg6: memref<1x128xf32, #tpu.memory_space<vmem>>, %arg7: memref<512x128xf32, #tpu.memory_space<vmem>>) attributes {dimension_semantics = [#tpu.dimension_semantics<parallel>], iteration_bounds = array<i64: 1>, scalar_prefetch = 0 : i64, scratch_operands = 0 : i64, tpu.core_type = #tpu.core_type<tc>, window_params = [{transform_indices = @transform_0, window_bounds = array<i64: 512, 128>}, {transform_indices = @transform_1, window_bounds = array<i64: 512, 128>}, {pipeline_mode = #tpu.pipeline_mode<synchronous>, transform_indices = @transform_2, window_bounds = array<i64: 1, 128>}, {pipeline_mode = #tpu.pipeline_mode<synchronous>, transform_indices = @transform_3, window_bounds = array<i64: 1, 128>}, {pipeline_mode = #tpu.pipeline_mode<synchronous>, transform_indices = @transform_4, window_bounds = array<i64: 1, 128>}, {pipeline_mode = #tpu.pipeline_mode<synchronous>, transform_indices = @transform_5, window_bounds = array<i64: 1, 128>}, {transform_indices = @transform_6, window_bounds = array<i64: 512, 128>}]} {
    %c0 = arith.constant 0 : index
    %c0_0 = arith.constant 0 : index
    %0 = vector.load %arg1[%c0, %c0_0] : memref<512x128xbf16, #tpu.memory_space<vmem>>, vector<512x128xbf16>
    %1 = arith.extf %0 : vector<512x128xbf16> to vector<512x128xf32>
    %c0_1 = arith.constant 0 : index
    %c0_2 = arith.constant 0 : index
    %2 = vector.load %arg3[%c0_1, %c0_2] : memref<1x128xf32, #tpu.memory_space<vmem>>, vector<1x128xf32>
    %3 = vector.broadcast %2 : vector<1x128xf32> to vector<512x128xf32>
    %4 = arith.mulf %1, %3 : vector<512x128xf32>
    %c0_3 = arith.constant 0 : index
    %c0_4 = arith.constant 0 : index
    %5 = vector.load %arg4[%c0_3, %c0_4] : memref<1x128xf32, #tpu.memory_space<vmem>>, vector<1x128xf32>
    %6 = vector.broadcast %5 : vector<1x128xf32> to vector<512x128xf32>
    %7 = arith.addf %4, %6 : vector<512x128xf32>
    %c0_5 = arith.constant 0 : index
    %c0_6 = arith.constant 0 : index
    %8 = vector.load %arg2[%c0_5, %c0_6] : memref<512x128xbf16, #tpu.memory_space<vmem>>, vector<512x128xbf16>
    %9 = arith.extf %8 : vector<512x128xbf16> to vector<512x128xf32>
    %c0_7 = arith.constant 0 : index
    %c0_8 = arith.constant 0 : index
    %10 = vector.load %arg5[%c0_7, %c0_8] : memref<1x128xf32, #tpu.memory_space<vmem>>, vector<1x128xf32>
    %11 = vector.broadcast %10 : vector<1x128xf32> to vector<512x128xf32>
    %12 = arith.mulf %9, %11 : vector<512x128xf32>
    %c0_9 = arith.constant 0 : index
    %c0_10 = arith.constant 0 : index
    %13 = vector.load %arg6[%c0_9, %c0_10] : memref<1x128xf32, #tpu.memory_space<vmem>>, vector<1x128xf32>
    %14 = vector.broadcast %13 : vector<1x128xf32> to vector<512x128xf32>
    %15 = arith.addf %12, %14 : vector<512x128xf32>
    %cst = arith.constant 0.000000e+00 : f32
    %16 = vector.broadcast %cst : f32 to vector<512x128xf32>
    %17 = arith.maximumf %15, %16 : vector<512x128xf32>
    %18 = arith.addf %7, %17 : vector<512x128xf32>
    %cst_11 = arith.constant 0.000000e+00 : f32
    %19 = vector.broadcast %cst_11 : f32 to vector<512x128xf32>
    %20 = arith.maximumf %18, %19 : vector<512x128xf32>
    %c0_12 = arith.constant 0 : index
    %c0_13 = arith.constant 0 : index
    %21 = vector.load %arg7[%c0_12, %c0_13] : memref<512x128xf32, #tpu.memory_space<vmem>>, vector<512x128xf32>
    tpu.vector_store %arg7[%c0_12, %c0_13], %20 {strides = array<i32>} : memref<512x128xf32, #tpu.memory_space<vmem>>, vector<512x128xf32>,
    return
  }
  func.func @transform_0(%arg0: i32) -> (i32, i32) {
    %c0_i32 = arith.constant 0 : i32
    %c0_i32_0 = arith.constant 0 : i32
    return %arg0, %c0_i32 : i32, i32
  }
  func.func @transform_1(%arg0: i32) -> (i32, i32) {
    %c0_i32 = arith.constant 0 : i32
    %c0_i32_0 = arith.constant 0 : i32
    return %arg0, %c0_i32 : i32, i32
  }
  func.func @transform_2(%arg0: i32) -> (i32, i32) {
    %c0_i32 = arith.constant 0 : i32
    %c0_i32_0 = arith.constant 0 : i32
    %c0_i32_1 = arith.constant 0 : i32
    return %c0_i32, %c0_i32_0 : i32, i32
  }
  func.func @transform_3(%arg0: i32) -> (i32, i32) {
    %c0_i32 = arith.constant 0 : i32
    %c0_i32_0 = arith.constant 0 : i32
    %c0_i32_1 = arith.constant 0 : i32
    return %c0_i32, %c0_i32_0 : i32, i32
  }
  func.func @transform_4(%arg0: i32) -> (i32, i32) {
    %c0_i32 = arith.constant 0 : i32
    %c0_i32_0 = arith.constant 0 : i32
    %c0_i32_1 = arith.constant 0 : i32
    return %c0_i32, %c0_i32_0 : i32, i32
  }
  func.func @transform_5(%arg0: i32) -> (i32, i32) {
    %c0_i32 = arith.constant 0 : i32
    %c0_i32_0 = arith.constant 0 : i32
    %c0_i32_1 = arith.constant 0 : i32
    return %c0_i32, %c0_i32_0 : i32, i32
  }
  func.func @transform_6(%arg0: i32) -> (i32, i32) {
    %c0_i32 = arith.constant 0 : i32
    %c0_i32_0 = arith.constant 0 : i32
    return %arg0, %c0_i32 : i32, i32
  }
}

</mosaic_0001>

<llo_original>
// kernel: bottleneck_forward.5
$region0: #{bottleneck_forward.5}
  #allocation0 [shape = 'u32[]', space=smem, size = 0x4, offset = 0x4, fixed_abs, tag = 'smem constant byte address 0x4 - core index']
  #allocation1 [shape = 'u32[72,128]{1,0:T(1,128)}', space=vmem, size = 0x9000, scoped, tag = 'internal scratch']
  %s0 = inlined_call_operand.vmem [shape: bf16[512,128], index: 0, kind: input, shape index: {}]
  %s1 = inlined_call_operand.hbm [shape: bf16[128,128], index: 1, kind: input, shape index: {}]
  %s2 = inlined_call_operand.vmem [shape: bf16[512,128], index: 2, kind: output, shape index: {0}]
  %s3 = inlined_call_operand.vmem [shape: f32[1,2,128], index: 3, kind: output, shape index: {1}]
  %4 = xla_tuple %s2, %s3
  %s5 = sld [smem:[#allocation0]]
  $region30: #{bottleneck_forward.5} parent=0
    _
  %s7 = ssub.s32 1, %s5
  %s8 = scalar_select 0, %s7, %s5
  $region1: #{bottleneck_forward.5} parent=0
    #allocation2 [shape = 'u8[32768]{0}', space=vmem, size = 0x8000, scoped, tag = 'input window, operand 1, single buffered']
    #allocation3 [shape = 's32[1]{0}', space=sflag, size = 0x4, scoped, tag = 'scoped memory for bottleneck_forward.5']
    %9 = vsyncpa [#allocation3], 0
    // Predicated region
    $region2: #{bottleneck_forward.5} parent=1 // pred_check
      _
    $region3: #{bottleneck_forward.5} parent=1 // pred_check_branch
      %11 = sbr.rel (0) target = $region5
    $region4: #{bottleneck_forward.5} parent=1 // pred_region
      _
    $region5: #{bottleneck_forward.5} parent=1 // pred_fallthru
      _
    // Predicated region
    $region6: #{bottleneck_forward.5} parent=1 // pred_check
      _
    $region7: #{bottleneck_forward.5} parent=1 // pred_check_branch
      %13 = sbr.rel (0) target = $region9
    $region8: #{bottleneck_forward.5} parent=1 // pred_region
      %15 = vsyncadd [#allocation3], 0
      %s16 = sshll.u32 %s1, 4
      %s17 = int_to_ptr.hbm [resolvable:$true] %s16
      %s18 = sshll.u32 [#allocation2], 4
      %s19 = int_to_ptr.vmem [resolvable:$true] %s18
      %24 = dma.hbm_to_vmem [thread:$0]  %s17, 1024, %s19, [#allocation3], 64, 64, 4
    $region9: #{bottleneck_forward.5} parent=1 // pred_fallthru
      _
    // Predicated region
    $region10: #{bottleneck_forward.5} parent=1 // pred_check
      _
    $region11: #{bottleneck_forward.5} parent=1 // pred_check_branch
      %26 = sbr.rel (0) target = $region13
    $region12: #{bottleneck_forward.5} parent=1 // pred_region
      %28 = dma.done [#allocation3], 1024
    $region13: #{bottleneck_forward.5} parent=1 // pred_fallthru
      _
    %v29 = vld [vmem:[%s0] sm:$0xf]
    %v30 = vld [vmem:[%s0 + $0x4] sm:$0xf]
    %v31 = vld [vmem:[%s0 + $0x8] sm:$0xf]
    %v32 = vld [vmem:[%s0 + $0xc] sm:$0xf]
    %v33 = vld [vmem:[%s0 + $0x10] sm:$0xf]
    %v34 = vld [vmem:[%s0 + $0x14] sm:$0xf]
    %v35 = vld [vmem:[%s0 + $0x18] sm:$0xf]
    %v36 = vld [vmem:[%s0 + $0x1c] sm:$0xf]
    %v37 = vld [vmem:[%s0 + $0x20] sm:$0xf]
    %v38 = vld [vmem:[%s0 + $0x24] sm:$0xf]
    %v39 = vld [vmem:[%s0 + $0x28] sm:$0xf]
    %v40 = vld [vmem:[%s0 + $0x2c] sm:$0xf]
    %v41 = vld [vmem:[%s0 + $0x30] sm:$0xf]
    %v42 = vld [vmem:[%s0 + $0x34] sm:$0xf]
    %v43 = vld [vmem:[%s0 + $0x38] sm:$0xf]
    %v44 = vld [vmem:[%s0 + $0x3c] sm:$0xf]
    %v45 = vld [vmem:[%s0 + $0x40] sm:$0xf]
    %v46 = vld [vmem:[%s0 + $0x44] sm:$0xf]
    %v47 = vld [vmem:[%s0 + $0x48] sm:$0xf]
    %v48 = vld [vmem:[%s0 + $0x4c] sm:$0xf]
    %v49 = vld [vmem:[%s0 + $0x50] sm:$0xf]
    %v50 = vld [vmem:[%s0 + $0x54] sm:$0xf]
    %v51 = vld [vmem:[%s0 + $0x58] sm:$0xf]
    %v52 = vld [vmem:[%s0 + $0x5c] sm:$0xf]
    %v53 = vld [vmem:[%s0 + $0x60] sm:$0xf]
    %v54 = vld [vmem:[%s0 + $0x64] sm:$0xf]
    %v55 = vld [vmem:[%s0 + $0x68] sm:$0xf]
    %v56 = vld [vmem:[%s0 + $0x6c] sm:$0xf]
    %v57 = vld [vmem:[%s0 + $0x70] sm:$0xf]
    %v58 = vld [vmem:[%s0 + $0x74] sm:$0xf]
    %v59 = vld [vmem:[%s0 + $0x78] sm:$0xf]
    %v60 = vld [vmem:[%s0 + $0x7c] sm:$0xf]
    %v61 = vld [vmem:[%s0 + $0x80] sm:$0xf]
    %v62 = vld [vmem:[%s0 + $0x84] sm:$0xf]
    %v63 = vld [vmem:[%s0 + $0x88] sm:$0xf]
    %v64 = vld [vmem:[%s0 + $0x8c] sm:$0xf]
    %v65 = vld [vmem:[%s0 + $0x90] sm:$0xf]
    %v66 = vld [vmem:[%s0 + $0x94] sm:$0xf]
    %v67 = vld [vmem:[%s0 + $0x98] sm:$0xf]
    %v68 = vld [vmem:[%s0 + $0x9c] sm:$0xf]
    %v69 = vld [vmem:[%s0 + $0xa0] sm:$0xf]
    %v70 = vld [vmem:[%s0 + $0xa4] sm:$0xf]
    %v71 = vld [vmem:[%s0 + $0xa8] sm:$0xf]
    %v72 = vld [vmem:[%s0 + $0xac] sm:$0xf]
    %v73 = vld [vmem:[%s0 + $0xb0] sm:$0xf]
    %v74 = vld [vmem:[%s0 + $0xb4] sm:$0xf]
    %v75 = vld [vmem:[%s0 + $0xb8] sm:$0xf]
    %v76 = vld [vmem:[%s0 + $0xbc] sm:$0xf]
    %v77 = vld [vmem:[%s0 + $0xc0] sm:$0xf]
    %v78 = vld [vmem:[%s0 + $0xc4] sm:$0xf]
    %v79 = vld [vmem:[%s0 + $0xc8] sm:$0xf]
    %v80 = vld [vmem:[%s0 + $0xcc] sm:$0xf]
    %v81 = vld [vmem:[%s0 + $0xd0] sm:$0xf]
    %v82 = vld [vmem:[%s0 + $0xd4] sm:$0xf]
    %v83 = vld [vmem:[%s0 + $0xd8] sm:$0xf]
    %v84 = vld [vmem:[%s0 + $0xdc] sm:$0xf]
    %v85 = vld [vmem:[%s0 + $0xe0] sm:$0xf]
    %v86 = vld [vmem:[%s0 + $0xe4] sm:$0xf]
    %v87 = vld [vmem:[%s0 + $0xe8] sm:$0xf]
    %v88 = vld [vmem:[%s0 + $0xec] sm:$0xf]
    %v89 = vld [vmem:[%s0 + $0xf0] sm:$0xf]
    %v90 = vld [vmem:[%s0 + $0xf4] sm:$0xf]
    %v91 = vld [vmem:[%s0 + $0xf8] sm:$0xf]
    %v92 = vld [vmem:[%s0 + $0xfc] sm:$0xf]
    %v93 = vld [vmem:[#allocation2] sm:$0xf]
    %v94 = vld [vmem:[#allocation2 + $0x4] sm:$0xf]
    %v95 = vld [vmem:[#allocation2 + $0x8] sm:$0xf]
    %v96 = vld [vmem:[#allocation2 + $0xc] sm:$0xf]
    %v97 = vld [vmem:[#allocation2 + $0x10] sm:$0xf]
    %v98 = vld [vmem:[#allocation2 + $0x14] sm:$0xf]
    %v99 = vld [vmem:[#allocation2 + $0x18] sm:$0xf]
    %v100 = vld [vmem:[#allocation2 + $0x1c] sm:$0xf]
    %v101 = vld [vmem:[#allocation2 + $0x20] sm:$0xf]
    %v102 = vld [vmem:[#allocation2 + $0x24] sm:$0xf]
    %v103 = vld [vmem:[#allocation2 + $0x28] sm:$0xf]
    %v104 = vld [vmem:[#allocation2 + $0x2c] sm:$0xf]
    %v105 = vld [vmem:[#allocation2 + $0x30] sm:$0xf]
    %v106 = vld [vmem:[#allocation2 + $0x34] sm:$0xf]
    %v107 = vld [vmem:[#allocation2 + $0x38] sm:$0xf]
    %v108 = vld [vmem:[#allocation2 + $0x3c] sm:$0xf]
    %v173 = vunpack.c.l.b16 %v29
    %v174 = vunpack.c.l.b16 %v30
    %v175 = vunpack.c.l.b16 %v31
    %v176 = vunpack.c.l.b16 %v32
    %v177 = vunpack.c.l.b16 %v33
    %v178 = vunpack.c.l.b16 %v34
    %v179 = vunpack.c.l.b16 %v35
    %v180 = vunpack.c.l.b16 %v36
    %v181 = vunpack.c.l.b16 %v37
    %v182 = vunpack.c.l.b16 %v38
    %v183 = vunpack.c.l.b16 %v39
    %v184 = vunpack.c.l.b16 %v40
    %v185 = vunpack.c.l.b16 %v41
    %v186 = vunpack.c.l.b16 %v42
    %v187 = vunpack.c.l.b16 %v43
    %v188 = vunpack.c.l.b16 %v44
    %v189 = vunpack.c.l.b16 %v45
    %v190 = vunpack.c.l.b16 %v46
    %v191 = vunpack.c.l.b16 %v47
    %v192 = vunpack.c.l.b16 %v48
    %v193 = vunpack.c.l.b16 %v49
    %v194 = vunpack.c.l.b16 %v50
    %v195 = vunpack.c.l.b16 %v51
    %v196 = vunpack.c.l.b16 %v52
    %v197 = vunpack.c.l.b16 %v53
    %v198 = vunpack.c.l.b16 %v54
    %v199 = vunpack.c.l.b16 %v55
    %v200 = vunpack.c.l.b16 %v56
    %v201 = vunpack.c.l.b16 %v57
    %v202 = vunpack.c.l.b16 %v58
    %v203 = vunpack.c.l.b16 %v59
    %v204 = vunpack.c.l.b16 %v60
    %v205 = vunpack.c.l.b16 %v61
    %v206 = vunpack.c.l.b16 %v62
    %v207 = vunpack.c.l.b16 %v63
    %v208 = vunpack.c.l.b16 %v64
    %v209 = vunpack.c.l.b16 %v65
    %v210 = vunpack.c.l.b16 %v66
    %v211 = vunpack.c.l.b16 %v67
    %v212 = vunpack.c.l.b16 %v68
    %v213 = vunpack.c.l.b16 %v69
    %v214 = vunpack.c.l.b16 %v70
    %v215 = vunpack.c.l.b16 %v71
    %v216 = vunpack.c.l.b16 %v72
    %v217 = vunpack.c.l.b16 %v73
    %v218 = vunpack.c.l.b16 %v74
    %v219 = vunpack.c.l.b16 %v75
    %v220 = vunpack.c.l.b16 %v76
    %v221 = vunpack.c.l.b16 %v77
    %v222 = vunpack.c.l.b16 %v78
    %v223 = vunpack.c.l.b16 %v79
    %v224 = vunpack.c.l.b16 %v80
    %v225 = vunpack.c.l.b16 %v81
    %v226 = vunpack.c.l.b16 %v82
    %v227 = vunpack.c.l.b16 %v83
    %v228 = vunpack.c.l.b16 %v84
    %v229 = vunpack.c.l.b16 %v85
    %v230 = vunpack.c.l.b16 %v86
    %v231 = vunpack.c.l.b16 %v87
    %v232 = vunpack.c.l.b16 %v88
    %v233 = vunpack.c.l.b16 %v89
    %v234 = vunpack.c.l.b16 %v90
    %v235 = vunpack.c.l.b16 %v91
    %v236 = vunpack.c.l.b16 %v92
    %v237 = vpack.c.b16 %v174, %v173
    %v238 = vpack.c.b16 %v176, %v175
    %v239 = vpack.c.b16 %v178, %v177
    %v240 = vpack.c.b16 %v180, %v179
    %v241 = vpack.c.b16 %v182, %v181
    %v242 = vpack.c.b16 %v184, %v183
    %v243 = vpack.c.b16 %v186, %v185
    %v244 = vpack.c.b16 %v188, %v187
    %v245 = vpack.c.b16 %v190, %v189
    %v246 = vpack.c.b16 %v192, %v191
    %v247 = vpack.c.b16 %v194, %v193
    %v248 = vpack.c.b16 %v196, %v195
    %v249 = vpack.c.b16 %v198, %v197
    %v250 = vpack.c.b16 %v200, %v199
    %v251 = vpack.c.b16 %v202, %v201
    %v252 = vpack.c.b16 %v204, %v203
    %v253 = vpack.c.b16 %v206, %v205
    %v254 = vpack.c.b16 %v208, %v207
    %v255 = vpack.c.b16 %v210, %v209
    %v256 = vpack.c.b16 %v212, %v211
    %v257 = vpack.c.b16 %v214, %v213
    %v258 = vpack.c.b16 %v216, %v215
    %v259 = vpack.c.b16 %v218, %v217
    %v260 = vpack.c.b16 %v220, %v219
    %v261 = vpack.c.b16 %v222, %v221
    %v262 = vpack.c.b16 %v224, %v223
    %v263 = vpack.c.b16 %v226, %v225
    %v264 = vpack.c.b16 %v228, %v227
    %v265 = vpack.c.b16 %v230, %v229
    %v266 = vpack.c.b16 %v232, %v231
    %v267 = vpack.c.b16 %v234, %v233
    %v268 = vpack.c.b16 %v236, %v235
    %v317 = vunpack.c.l.b16 %v93
    %v318 = vunpack.c.l.b16 %v94
    %v319 = vunpack.c.l.b16 %v95
    %v320 = vunpack.c.l.b16 %v96
    %v321 = vunpack.c.l.b16 %v97
    %v322 = vunpack.c.l.b16 %v98
    %v323 = vunpack.c.l.b16 %v99
    %v324 = vunpack.c.l.b16 %v100
    %v325 = vunpack.c.l.b16 %v101
    %v326 = vunpack.c.l.b16 %v102
    %v327 = vunpack.c.l.b16 %v103
    %v328 = vunpack.c.l.b16 %v104
    %v329 = vunpack.c.l.b16 %v105
    %v330 = vunpack.c.l.b16 %v106
    %v331 = vunpack.c.l.b16 %v107
    %v332 = vunpack.c.l.b16 %v108
    %v333 = vpack.c.b16 %v318, %v317
    %v334 = vpack.c.b16 %v320, %v319
    %v335 = vpack.c.b16 %v322, %v321
    %v336 = vpack.c.b16 %v324, %v323
    %v337 = vpack.c.b16 %v326, %v325
    %v338 = vpack.c.b16 %v328, %v327
    %v339 = vpack.c.b16 %v330, %v329
    %v340 = vpack.c.b16 %v332, %v331
    %349 = vmatpush.bf16.msra.mxu0 %v340
    %350 = vmatpush.bf16.msra.mxu0 %v339
    %351 = vmatpush.bf16.msra.mxu0 %v338
    %352 = vmatpush.bf16.msra.mxu0 %v337
    %353 = vmatpush.bf16.msra.mxu0 %v336
    %354 = vmatpush.bf16.msra.mxu0 %v335
    %355 = vmatpush.bf16.msra.mxu0 %v334
    %356 = vmatpush.bf16.msra.mxu0 %v333
    %357 = vmatmul.bf16.gmra.mxu0 %v237
    %v358 = vpop.f32.mrf.mxu0
    %v359 = vadd.f32 0.0, %v358
    %v360 = vpop.f32.mrf.mxu0
    %v361 = vadd.f32 0.0, %v360
    %362 = vmatmul.bf16.gmra.mxu0 %v238
    %v363 = vpop.f32.mrf.mxu0
    %v364 = vadd.f32 0.0, %v363
    %v365 = vpop.f32.mrf.mxu0
    %v366 = vadd.f32 0.0, %v365
    %367 = vmatmul.bf16.gmra.mxu0 %v239
    %v368 = vpop.f32.mrf.mxu0
    %v369 = vadd.f32 0.0, %v368
    %v370 = vpop.f32.mrf.mxu0
    %v371 = vadd.f32 0.0, %v370
    %372 = vmatmul.bf16.gmra.mxu0 %v240
    %v373 = vpop.f32.mrf.mxu0
    %v374 = vadd.f32 0.0, %v373
    %v375 = vpop.f32.mrf.mxu0
    %v376 = vadd.f32 0.0, %v375
    %377 = vmatmul.bf16.gmra.mxu0 %v241
    %v378 = vpop.f32.mrf.mxu0
    %v379 = vadd.f32 0.0, %v378
    %v380 = vpop.f32.mrf.mxu0
    %v381 = vadd.f32 0.0, %v380
    %382 = vmatmul.bf16.gmra.mxu0 %v242
    %v383 = vpop.f32.mrf.mxu0
    %v384 = vadd.f32 0.0, %v383
    %v385 = vpop.f32.mrf.mxu0
    %v386 = vadd.f32 0.0, %v385
    %387 = vmatmul.bf16.gmra.mxu0 %v243
    %v388 = vpop.f32.mrf.mxu0
    %v389 = vadd.f32 0.0, %v388
    %v390 = vpop.f32.mrf.mxu0
    %v391 = vadd.f32 0.0, %v390
    %392 = vmatmul.bf16.gmra.mxu0 %v244
    %v393 = vpop.f32.mrf.mxu0
    %v394 = vadd.f32 0.0, %v393
    %v395 = vpop.f32.mrf.mxu0
    %v396 = vadd.f32 0.0, %v395
    %397 = vmatmul.bf16.gmra.mxu0 %v245
    %v398 = vpop.f32.mrf.mxu0
    %v399 = vadd.f32 0.0, %v398
    %v400 = vpop.f32.mrf.mxu0
    %v401 = vadd.f32 0.0, %v400
    %402 = vmatmul.bf16.gmra.mxu0 %v246
    %v403 = vpop.f32.mrf.mxu0
    %v404 = vadd.f32 0.0, %v403
    %v405 = vpop.f32.mrf.mxu0
    %v406 = vadd.f32 0.0, %v405
    %407 = vmatmul.bf16.gmra.mxu0 %v247
    %v408 = vpop.f32.mrf.mxu0
    %v409 = vadd.f32 0.0, %v408
    %v410 = vpop.f32.mrf.mxu0
    %v411 = vadd.f32 0.0, %v410
    %412 = vmatmul.bf16.gmra.mxu0 %v248
    %v413 = vpop.f32.mrf.mxu0
    %v414 = vadd.f32 0.0, %v413
    %v415 = vpop.f32.mrf.mxu0
    %v416 = vadd.f32 0.0, %v415
    %417 = vmatmul.bf16.gmra.mxu0 %v249
    %v418 = vpop.f32.mrf.mxu0
    %v419 = vadd.f32 0.0, %v418
    %v420 = vpop.f32.mrf.mxu0
    %v421 = vadd.f32 0.0, %v420
    %422 = vmatmul.bf16.gmra.mxu0 %v250
    %v423 = vpop.f32.mrf.mxu0
    %v424 = vadd.f32 0.0, %v423
    %v425 = vpop.f32.mrf.mxu0
    %v426 = vadd.f32 0.0, %v425
    %427 = vmatmul.bf16.gmra.mxu0 %v251
    %v428 = vpop.f32.mrf.mxu0
    %v429 = vadd.f32 0.0, %v428
    %v430 = vpop.f32.mrf.mxu0
    %v431 = vadd.f32 0.0, %v430
    %432 = vmatmul.bf16.gmra.mxu0 %v252
    %v433 = vpop.f32.mrf.mxu0
    %v434 = vadd.f32 0.0, %v433
    %v435 = vpop.f32.mrf.mxu0
    %v436 = vadd.f32 0.0, %v435
    %437 = vmatmul.bf16.gmra.mxu0 %v253
    %v438 = vpop.f32.mrf.mxu0
    %v439 = vadd.f32 0.0, %v438
    %v440 = vpop.f32.mrf.mxu0
    %v441 = vadd.f32 0.0, %v440
    %442 = vmatmul.bf16.gmra.mxu0 %v254
    %v443 = vpop.f32.mrf.mxu0
    %v444 = vadd.f32 0.0, %v443
    %v445 = vpop.f32.mrf.mxu0
    %v446 = vadd.f32 0.0, %v445
    %447 = vmatmul.bf16.gmra.mxu0 %v255
    %v448 = vpop.f32.mrf.mxu0
    %v449 = vadd.f32 0.0, %v448
    %v450 = vpop.f32.mrf.mxu0
    %v451 = vadd.f32 0.0, %v450
    %452 = vmatmul.bf16.gmra.mxu0 %v256
    %v453 = vpop.f32.mrf.mxu0
    %v454 = vadd.f32 0.0, %v453
    %v455 = vpop.f32.mrf.mxu0
    %v456 = vadd.f32 0.0, %v455
    %457 = vmatmul.bf16.gmra.mxu0 %v257
    %v458 = vpop.f32.mrf.mxu0
    %v459 = vadd.f32 0.0, %v458
    %v460 = vpop.f32.mrf.mxu0
    %v461 = vadd.f32 0.0, %v460
    %462 = vmatmul.bf16.gmra.mxu0 %v258
    %v463 = vpop.f32.mrf.mxu0
    %v464 = vadd.f32 0.0, %v463
    %v465 = vpop.f32.mrf.mxu0
    %v466 = vadd.f32 0.0, %v465
    %467 = vmatmul.bf16.gmra.mxu0 %v259
    %v468 = vpop.f32.mrf.mxu0
    %v469 = vadd.f32 0.0, %v468
    %v470 = vpop.f32.mrf.mxu0
    %v471 = vadd.f32 0.0, %v470
    %472 = vmatmul.bf16.gmra.mxu0 %v260
    %v473 = vpop.f32.mrf.mxu0
    %v474 = vadd.f32 0.0, %v473
    %v475 = vpop.f32.mrf.mxu0
    %v476 = vadd.f32 0.0, %v475
    %477 = vmatmul.bf16.gmra.mxu0 %v261
    %v478 = vpop.f32.mrf.mxu0
    %v479 = vadd.f32 0.0, %v478
    %v480 = vpop.f32.mrf.mxu0
    %v481 = vadd.f32 0.0, %v480
    %482 = vmatmul.bf16.gmra.mxu0 %v262
    %v483 = vpop.f32.mrf.mxu0
    %v484 = vadd.f32 0.0, %v483
    %v485 = vpop.f32.mrf.mxu0
    %v486 = vadd.f32 0.0, %v485
    %487 = vmatmul.bf16.gmra.mxu0 %v263
    %v488 = vpop.f32.mrf.mxu0
    %v489 = vadd.f32 0.0, %v488
    %v490 = vpop.f32.mrf.mxu0
    %v491 = vadd.f32 0.0, %v490
    %492 = vmatmul.bf16.gmra.mxu0 %v264
    %v493 = vpop.f32.mrf.mxu0
    %v494 = vadd.f32 0.0, %v493
    %v495 = vpop.f32.mrf.mxu0
    %v496 = vadd.f32 0.0, %v495
    %497 = vmatmul.bf16.gmra.mxu0 %v265
    %v498 = vpop.f32.mrf.mxu0
    %v499 = vadd.f32 0.0, %v498
    %v500 = vpop.f32.mrf.mxu0
    %v501 = vadd.f32 0.0, %v500
    %502 = vmatmul.bf16.gmra.mxu0 %v266
    %v503 = vpop.f32.mrf.mxu0
    %v504 = vadd.f32 0.0, %v503
    %v505 = vpop.f32.mrf.mxu0
    %v506 = vadd.f32 0.0, %v505
    %507 = vmatmul.bf16.gmra.mxu0 %v267
    %v508 = vpop.f32.mrf.mxu0
    %v509 = vadd.f32 0.0, %v508
    %v510 = vpop.f32.mrf.mxu0
    %v511 = vadd.f32 0.0, %v510
    %512 = vmatmul.bf16.gmra.mxu0 %v268
    %v513 = vpop.f32.mrf.mxu0
    %v514 = vadd.f32 0.0, %v513
    %v515 = vpop.f32.mrf.mxu0
    %v516 = vadd.f32 0.0, %v515
    %517 = vdwg.mxu0
    %v518 = vpack.c.bf16 %v359, %v359
    %v519 = vpack.c.bf16 %v361, %v361
    %v520 = vpack.c.bf16 %v364, %v364
    %v521 = vpack.c.bf16 %v366, %v366
    %v522 = vpack.c.bf16 %v369, %v369
    %v523 = vpack.c.bf16 %v371, %v371
    %v524 = vpack.c.bf16 %v374, %v374
    %v525 = vpack.c.bf16 %v376, %v376
    %v526 = vpack.c.bf16 %v379, %v379
    %v527 = vpack.c.bf16 %v381, %v381
    %v528 = vpack.c.bf16 %v384, %v384
    %v529 = vpack.c.bf16 %v386, %v386
    %v530 = vpack.c.bf16 %v389, %v389
    %v531 = vpack.c.bf16 %v391, %v391
    %v532 = vpack.c.bf16 %v394, %v394
    %v533 = vpack.c.bf16 %v396, %v396
    %v534 = vpack.c.bf16 %v399, %v399
    %v535 = vpack.c.bf16 %v401, %v401
    %v536 = vpack.c.bf16 %v404, %v404
    %v537 = vpack.c.bf16 %v406, %v406
    %v538 = vpack.c.bf16 %v409, %v409
    %v539 = vpack.c.bf16 %v411, %v411
    %v540 = vpack.c.bf16 %v414, %v414
    %v541 = vpack.c.bf16 %v416, %v416
    %v542 = vpack.c.bf16 %v419, %v419
    %v543 = vpack.c.bf16 %v421, %v421
    %v544 = vpack.c.bf16 %v424, %v424
    %v545 = vpack.c.bf16 %v426, %v426
    %v546 = vpack.c.bf16 %v429, %v429
    %v547 = vpack.c.bf16 %v431, %v431
    %v548 = vpack.c.bf16 %v434, %v434
    %v549 = vpack.c.bf16 %v436, %v436
    %v550 = vpack.c.bf16 %v439, %v439
    %v551 = vpack.c.bf16 %v441, %v441
    %v552 = vpack.c.bf16 %v444, %v444
    %v553 = vpack.c.bf16 %v446, %v446
    %v554 = vpack.c.bf16 %v449, %v449
    %v555 = vpack.c.bf16 %v451, %v451
    %v556 = vpack.c.bf16 %v454, %v454
    %v557 = vpack.c.bf16 %v456, %v456
    %v558 = vpack.c.bf16 %v459, %v459
    %v559 = vpack.c.bf16 %v461, %v461
    %v560 = vpack.c.bf16 %v464, %v464
    %v561 = vpack.c.bf16 %v466, %v466
    %v562 = vpack.c.bf16 %v469, %v469
    %v563 = vpack.c.bf16 %v471, %v471
    %v564 = vpack.c.bf16 %v474, %v474
    %v565 = vpack.c.bf16 %v476, %v476
    %v566 = vpack.c.bf16 %v479, %v479
    %v567 = vpack.c.bf16 %v481, %v481
    %v568 = vpack.c.bf16 %v484, %v484
    %v569 = vpack.c.bf16 %v486, %v486
    %v570 = vpack.c.bf16 %v489, %v489
    %v571 = vpack.c.bf16 %v491, %v491
    %v572 = vpack.c.bf16 %v494, %v494
    %v573 = vpack.c.bf16 %v496, %v496
    %v574 = vpack.c.bf16 %v499, %v499
    %v575 = vpack.c.bf16 %v501, %v501
    %v576 = vpack.c.bf16 %v504, %v504
    %v577 = vpack.c.bf16 %v506, %v506
    %v578 = vpack.c.bf16 %v509, %v509
    %v579 = vpack.c.bf16 %v511, %v511
    %v580 = vpack.c.bf16 %v514, %v514
    %v581 = vpack.c.bf16 %v516, %v516
    %582 = vst [vmem:[%s2] sm:$0xf] %v518
    %583 = vst [vmem:[%s2 + $0x4] sm:$0xf] %v519
    %584 = vst [vmem:[%s2 + $0x8] sm:$0xf] %v520
    %585 = vst [vmem:[%s2 + $0xc] sm:$0xf] %v521
    %586 = vst [vmem:[%s2 + $0x10] sm:$0xf] %v522
    %587 = vst [vmem:[%s2 + $0x14] sm:$0xf] %v523
    %588 = vst [vmem:[%s2 + $0x18] sm:$0xf] %v524
    %589 = vst [vmem:[%s2 + $0x1c] sm:$0xf] %v525
    %590 = vst [vmem:[%s2 + $0x20] sm:$0xf] %v526
    %591 = vst [vmem:[%s2 + $0x24] sm:$0xf] %v527
    %592 = vst [vmem:[%s2 + $0x28] sm:$0xf] %v528
    %593 = vst [vmem:[%s2 + $0x2c] sm:$0xf] %v529
    %594 = vst [vmem:[%s2 + $0x30] sm:$0xf] %v530
    %595 = vst [vmem:[%s2 + $0x34] sm:$0xf] %v531
    %596 = vst [vmem:[%s2 + $0x38] sm:$0xf] %v532
    %597 = vst [vmem:[%s2 + $0x3c] sm:$0xf] %v533
    %598 = vst [vmem:[%s2 + $0x40] sm:$0xf] %v534
    %599 = vst [vmem:[%s2 + $0x44] sm:$0xf] %v535
    %600 = vst [vmem:[%s2 + $0x48] sm:$0xf] %v536
    %601 = vst [vmem:[%s2 + $0x4c] sm:$0xf] %v537
    %602 = vst [vmem:[%s2 + $0x50] sm:$0xf] %v538
    %603 = vst [vmem:[%s2 + $0x54] sm:$0xf] %v539
    %604 = vst [vmem:[%s2 + $0x58] sm:$0xf] %v540
    %605 = vst [vmem:[%s2 + $0x5c] sm:$0xf] %v541
    %606 = vst [vmem:[%s2 + $0x60] sm:$0xf] %v542
    %607 = vst [vmem:[%s2 + $0x64] sm:$0xf] %v543
    %608 = vst [vmem:[%s2 + $0x68] sm:$0xf] %v544
    %609 = vst [vmem:[%s2 + $0x6c] sm:$0xf] %v545
    %610 = vst [vmem:[%s2 + $0x70] sm:$0xf] %v546
    %611 = vst [vmem:[%s2 + $0x74] sm:$0xf] %v547
    %612 = vst [vmem:[%s2 + $0x78] sm:$0xf] %v548
    %613 = vst [vmem:[%s2 + $0x7c] sm:$0xf] %v549
    %614 = vst [vmem:[%s2 + $0x80] sm:$0xf] %v550
    %615 = vst [vmem:[%s2 + $0x84] sm:$0xf] %v551
    %616 = vst [vmem:[%s2 + $0x88] sm:$0xf] %v552
    %617 = vst [vmem:[%s2 + $0x8c] sm:$0xf] %v553
    %618 = vst [vmem:[%s2 + $0x90] sm:$0xf] %v554
    %619 = vst [vmem:[%s2 + $0x94] sm:$0xf] %v555
    %620 = vst [vmem:[%s2 + $0x98] sm:$0xf] %v556
    %621 = vst [vmem:[%s2 + $0x9c] sm:$0xf] %v557
    %622 = vst [vmem:[%s2 + $0xa0] sm:$0xf] %v558
    %623 = vst [vmem:[%s2 + $0xa4] sm:$0xf] %v559
    %624 = vst [vmem:[%s2 + $0xa8] sm:$0xf] %v560
    %625 = vst [vmem:[%s2 + $0xac] sm:$0xf] %v561
    %626 = vst [vmem:[%s2 + $0xb0] sm:$0xf] %v562
    %627 = vst [vmem:[%s2 + $0xb4] sm:$0xf] %v563
    %628 = vst [vmem:[%s2 + $0xb8] sm:$0xf] %v564
    %629 = vst [vmem:[%s2 + $0xbc] sm:$0xf] %v565
    %630 = vst [vmem:[%s2 + $0xc0] sm:$0xf] %v566
    %631 = vst [vmem:[%s2 + $0xc4] sm:$0xf] %v567
    %632 = vst [vmem:[%s2 + $0xc8] sm:$0xf] %v568
    %633 = vst [vmem:[%s2 + $0xcc] sm:$0xf] %v569
    %634 = vst [vmem:[%s2 + $0xd0] sm:$0xf] %v570
    %635 = vst [vmem:[%s2 + $0xd4] sm:$0xf] %v571
    %636 = vst [vmem:[%s2 + $0xd8] sm:$0xf] %v572
    %637 = vst [vmem:[%s2 + $0xdc] sm:$0xf] %v573
    %638 = vst [vmem:[%s2 + $0xe0] sm:$0xf] %v574
    %639 = vst [vmem:[%s2 + $0xe4] sm:$0xf] %v575
    %640 = vst [vmem:[%s2 + $0xe8] sm:$0xf] %v576
    %641 = vst [vmem:[%s2 + $0xec] sm:$0xf] %v577
    %642 = vst [vmem:[%s2 + $0xf0] sm:$0xf] %v578
    %643 = vst [vmem:[%s2 + $0xf4] sm:$0xf] %v579
    %644 = vst [vmem:[%s2 + $0xf8] sm:$0xf] %v580
    %645 = vst [vmem:[%s2 + $0xfc] sm:$0xf] %v581
    %v646 = vadd.f32 %v359, %v361
    %v647 = vadd.f32 %v646, %v364
    %v648 = vadd.f32 %v647, %v366
    %v649 = vadd.f32 %v648, %v369
    %v650 = vadd.f32 %v649, %v371
    %v651 = vadd.f32 %v650, %v374
    %v652 = vadd.f32 %v651, %v376
    %v653 = vadd.f32 %v652, %v379
    %v654 = vadd.f32 %v653, %v381
    %v655 = vadd.f32 %v654, %v384
    %v656 = vadd.f32 %v655, %v386
    %v657 = vadd.f32 %v656, %v389
    %v658 = vadd.f32 %v657, %v391
    %v659 = vadd.f32 %v658, %v394
    %v660 = vadd.f32 %v659, %v396
    %v661 = vadd.f32 %v660, %v399
    %v662 = vadd.f32 %v661, %v401
    %v663 = vadd.f32 %v662, %v404
    %v664 = vadd.f32 %v663, %v406
    %v665 = vadd.f32 %v664, %v409
    %v666 = vadd.f32 %v665, %v411
    %v667 = vadd.f32 %v666, %v414
    %v668 = vadd.f32 %v667, %v416
    %v669 = vadd.f32 %v668, %v419
    %v670 = vadd.f32 %v669, %v421
    %v671 = vadd.f32 %v670, %v424
    %v672 = vadd.f32 %v671, %v426
    %v673 = vadd.f32 %v672, %v429
    %v674 = vadd.f32 %v673, %v431
    %v675 = vadd.f32 %v674, %v434
    %v676 = vadd.f32 %v675, %v436
    %v677 = vadd.f32 %v676, %v439
    %v678 = vadd.f32 %v677, %v441
    %v679 = vadd.f32 %v678, %v444
    %v680 = vadd.f32 %v679, %v446
    %v681 = vadd.f32 %v680, %v449
    %v682 = vadd.f32 %v681, %v451
    %v683 = vadd.f32 %v682, %v454
    %v684 = vadd.f32 %v683, %v456
    %v685 = vadd.f32 %v684, %v459
    %v686 = vadd.f32 %v685, %v461
    %v687 = vadd.f32 %v686, %v464
    %v688 = vadd.f32 %v687, %v466
    %v689 = vadd.f32 %v688, %v469
    %v690 = vadd.f32 %v689, %v471
    %v691 = vadd.f32 %v690, %v474
    %v692 = vadd.f32 %v691, %v476
    %v693 = vadd.f32 %v692, %v479
    %v694 = vadd.f32 %v693, %v481
    %v695 = vadd.f32 %v694, %v484
    %v696 = vadd.f32 %v695, %v486
    %v697 = vadd.f32 %v696, %v489
    %v698 = vadd.f32 %v697, %v491
    %v699 = vadd.f32 %v698, %v494
    %v700 = vadd.f32 %v699, %v496
    %v701 = vadd.f32 %v700, %v499
    %v702 = vadd.f32 %v701, %v501
    %v703 = vadd.f32 %v702, %v504
    %v704 = vadd.f32 %v703, %v506
    %v705 = vadd.f32 %v704, %v509
    %v706 = vadd.f32 %v705, %v511
    %v707 = vadd.f32 %v706, %v514
    %v708 = vadd.f32 %v707, %v516
    %v709 = vrot.slane %v708, 4
    %v710 = vadd.f32 %v708, %v709
    %v711 = vrot.slane %v710, 2
    %v712 = vadd.f32 %v710, %v711
    %v713 = vrot.slane %v712, 1
    %v714 = vadd.f32 %v712, %v713
    %v715 = vmul.f32 %v359, %v359
    %v716 = vmul.f32 %v361, %v361
    %v717 = vmul.f32 %v364, %v364
    %v718 = vmul.f32 %v366, %v366
    %v719 = vmul.f32 %v369, %v369
    %v720 = vmul.f32 %v371, %v371
    %v721 = vmul.f32 %v374, %v374
    %v722 = vmul.f32 %v376, %v376
    %v723 = vmul.f32 %v379, %v379
    %v724 = vmul.f32 %v381, %v381
    %v725 = vmul.f32 %v384, %v384
    %v726 = vmul.f32 %v386, %v386
    %v727 = vmul.f32 %v389, %v389
    %v728 = vmul.f32 %v391, %v391
    %v729 = vmul.f32 %v394, %v394
    %v730 = vmul.f32 %v396, %v396
    %v731 = vmul.f32 %v399, %v399
    %v732 = vmul.f32 %v401, %v401
    %v733 = vmul.f32 %v404, %v404
    %v734 = vmul.f32 %v406, %v406
    %v735 = vmul.f32 %v409, %v409
    %v736 = vmul.f32 %v411, %v411
    %v737 = vmul.f32 %v414, %v414
    %v738 = vmul.f32 %v416, %v416
    %v739 = vmul.f32 %v419, %v419
    %v740 = vmul.f32 %v421, %v421
    %v741 = vmul.f32 %v424, %v424
    %v742 = vmul.f32 %v426, %v426
    %v743 = vmul.f32 %v429, %v429
    %v744 = vmul.f32 %v431, %v431
    %v745 = vmul.f32 %v434, %v434
    %v746 = vmul.f32 %v436, %v436
    %v747 = vmul.f32 %v439, %v439
    %v748 = vmul.f32 %v441, %v441
    %v749 = vmul.f32 %v444, %v444
    %v750 = vmul.f32 %v446, %v446
    %v751 = vmul.f32 %v449, %v449
    %v752 = vmul.f32 %v451, %v451
    %v753 = vmul.f32 %v454, %v454
    %v754 = vmul.f32 %v456, %v456
    %v755 = vmul.f32 %v459, %v459
    %v756 = vmul.f32 %v461, %v461
    %v757 = vmul.f32 %v464, %v464
    %v758 = vmul.f32 %v466, %v466
    %v759 = vmul.f32 %v469, %v469
    %v760 = vmul.f32 %v471, %v471
    %v761 = vmul.f32 %v474, %v474
    %v762 = vmul.f32 %v476, %v476
    %v763 = vmul.f32 %v479, %v479
    %v764 = vmul.f32 %v481, %v481
    %v765 = vmul.f32 %v484, %v484
    %v766 = vmul.f32 %v486, %v486
    %v767 = vmul.f32 %v489, %v489
    %v768 = vmul.f32 %v491, %v491
    %v769 = vmul.f32 %v494, %v494
    %v770 = vmul.f32 %v496, %v496
    %v771 = vmul.f32 %v499, %v499
    %v772 = vmul.f32 %v501, %v501
    %v773 = vmul.f32 %v504, %v504
    %v774 = vmul.f32 %v506, %v506
    %v775 = vmul.f32 %v509, %v509
    %v776 = vmul.f32 %v511, %v511
    %v777 = vmul.f32 %v514, %v514
    %v778 = vmul.f32 %v516, %v516
    %v779 = vadd.f32 %v715, %v716
    %v780 = vadd.f32 %v779, %v717
    %v781 = vadd.f32 %v780, %v718
    %v782 = vadd.f32 %v781, %v719
    %v783 = vadd.f32 %v782, %v720
    %v784 = vadd.f32 %v783, %v721
    %v785 = vadd.f32 %v784, %v722
    %v786 = vadd.f32 %v785, %v723
    %v787 = vadd.f32 %v786, %v724
    %v788 = vadd.f32 %v787, %v725
    %v789 = vadd.f32 %v788, %v726
    %v790 = vadd.f32 %v789, %v727
    %v791 = vadd.f32 %v790, %v728
    %v792 = vadd.f32 %v791, %v729
    %v793 = vadd.f32 %v792, %v730
    %v794 = vadd.f32 %v793, %v731
    %v795 = vadd.f32 %v794, %v732
    %v796 = vadd.f32 %v795, %v733
    %v797 = vadd.f32 %v796, %v734
    %v798 = vadd.f32 %v797, %v735
    %v799 = vadd.f32 %v798, %v736
    %v800 = vadd.f32 %v799, %v737
    %v801 = vadd.f32 %v800, %v738
    %v802 = vadd.f32 %v801, %v739
    %v803 = vadd.f32 %v802, %v740
    %v804 = vadd.f32 %v803, %v741
    %v805 = vadd.f32 %v804, %v742
    %v806 = vadd.f32 %v805, %v743
    %v807 = vadd.f32 %v806, %v744
    %v808 = vadd.f32 %v807, %v745
    %v809 = vadd.f32 %v808, %v746
    %v810 = vadd.f32 %v809, %v747
    %v811 = vadd.f32 %v810, %v748
    %v812 = vadd.f32 %v811, %v749
    %v813 = vadd.f32 %v812, %v750
    %v814 = vadd.f32 %v813, %v751
    %v815 = vadd.f32 %v814, %v752
    %v816 = vadd.f32 %v815, %v753
    %v817 = vadd.f32 %v816, %v754
    %v818 = vadd.f32 %v817, %v755
    %v819 = vadd.f32 %v818, %v756
    %v820 = vadd.f32 %v819, %v757
    %v821 = vadd.f32 %v820, %v758
    %v822 = vadd.f32 %v821, %v759
    %v823 = vadd.f32 %v822, %v760
    %v824 = vadd.f32 %v823, %v761
    %v825 = vadd.f32 %v824, %v762
    %v826 = vadd.f32 %v825, %v763
    %v827 = vadd.f32 %v826, %v764
    %v828 = vadd.f32 %v827, %v765
    %v829 = vadd.f32 %v828, %v766
    %v830 = vadd.f32 %v829, %v767
    %v831 = vadd.f32 %v830, %v768
    %v832 = vadd.f32 %v831, %v769
    %v833 = vadd.f32 %v832, %v770
    %v834 = vadd.f32 %v833, %v771
    %v835 = vadd.f32 %v834, %v772
    %v836 = vadd.f32 %v835, %v773
    %v837 = vadd.f32 %v836, %v774
    %v838 = vadd.f32 %v837, %v775
    %v839 = vadd.f32 %v838, %v776
    %v840 = vadd.f32 %v839, %v777
    %v841 = vadd.f32 %v840, %v778
    %v842 = vrot.slane %v841, 4
    %v843 = vadd.f32 %v841, %v842
    %v844 = vrot.slane %v843, 2
    %v845 = vadd.f32 %v843, %v844
    %v846 = vrot.slane %v845, 1
    %v847 = vadd.f32 %v845, %v846
    %vm848 = vcmask 1040384
    %v849 = vsel %vm848, %v714, %v847
    %850 = vst [vmem:[%s3] sm:$0x3] %v849
    // Predicated region
    $region14: #{bottleneck_forward.5} parent=1 // pred_check
      _
    $region15: #{bottleneck_forward.5} parent=1 // pred_check_branch
      %852 = sbr.rel (0) target = $region17
    $region16: #{bottleneck_forward.5} parent=1 // pred_region
      _
    $region17: #{bottleneck_forward.5} parent=1 // pred_fallthru
      _
    // Predicated region
    $region18: #{bottleneck_forward.5} parent=1 // pred_check
      _
    $region19: #{bottleneck_forward.5} parent=1 // pred_check_branch
      %854 = sbr.rel (0) target = $region21
    $region20: #{bottleneck_forward.5} parent=1 // pred_region
      _
    $region21: #{bottleneck_forward.5} parent=1 // pred_fallthru
      _
    // Predicated region
    $region22: #{bottleneck_forward.5} parent=1 // pred_check
      _
    $region23: #{bottleneck_forward.5} parent=1 // pred_check_branch
      %856 = sbr.rel (0) target = $region25
    $region24: #{bottleneck_forward.5} parent=1 // pred_region
      _
    $region25: #{bottleneck_forward.5} parent=1 // pred_fallthru
      _
    // Predicated region
    $region26: #{bottleneck_forward.5} parent=1 // pred_check
      _
    $region27: #{bottleneck_forward.5} parent=1 // pred_check_branch
      %858 = sbr.rel (0) target = $region29
    $region28: #{bottleneck_forward.5} parent=1 // pred_region
      _
    $region29: #{bottleneck_forward.5} parent=1 // pred_fallthru
      _
    %859 = vsyncpa [#allocation3], 1

// kernel: bottleneck_forward.6
$region0: #{bottleneck_forward.6}
  #allocation0 [shape = 'u32[]', space=smem, size = 0x4, offset = 0x4, fixed_abs, tag = 'smem constant byte address 0x4 - core index']
  #allocation1 [shape = 'u32[72,128]{1,0:T(1,128)}', space=vmem, size = 0x9000, scoped, tag = 'internal scratch']
  %s0 = inlined_call_operand.vmem [shape: bf16[512,128], index: 0, kind: input, shape index: {}]
  %s1 = inlined_call_operand.vmem [shape: f32[1,128], index: 1, kind: input, shape index: {}]
  %s2 = inlined_call_operand.vmem [shape: f32[1,128], index: 2, kind: input, shape index: {}]
  %s3 = inlined_call_operand.vmem [shape: bf16[512,128], index: 3, kind: output, shape index: {}]
  %s4 = sld [smem:[#allocation0]]
  $region22: #{bottleneck_forward.6} parent=0
    _
  %s6 = ssub.s32 1, %s4
  %s7 = scalar_select 0, %s6, %s4
  // Predicated region
  $region2: #{bottleneck_forward.6} parent=0 // pred_check
    _
  $region3: #{bottleneck_forward.6} parent=0 // pred_check_branch
    %9 = sbr.rel (0) target = $region5
  $region4: #{bottleneck_forward.6} parent=0 // pred_region
    _
  $region5: #{bottleneck_forward.6} parent=0 // pred_fallthru
    _
  // Predicated region
  $region6: #{bottleneck_forward.6} parent=0 // pred_check
    _
  $region7: #{bottleneck_forward.6} parent=0 // pred_check_branch
    %11 = sbr.rel (0) target = $region9
  $region8: #{bottleneck_forward.6} parent=0 // pred_region
    _
  $region9: #{bottleneck_forward.6} parent=0 // pred_fallthru
    _
  // Predicated region
  $region10: #{bottleneck_forward.6} parent=0 // pred_check
    _
  $region11: #{bottleneck_forward.6} parent=0 // pred_check_branch
    %13 = sbr.rel (0) target = $region13
  $region12: #{bottleneck_forward.6} parent=0 // pred_region
    _
  $region13: #{bottleneck_forward.6} parent=0 // pred_fallthru
    _
  %v14 = vld [vmem:[%s0] sm:$0xf]
  %v15 = vld [vmem:[%s0 + $0x4] sm:$0xf]
  %v16 = vld [vmem:[%s0 + $0x8] sm:$0xf]
  %v17 = vld [vmem:[%s0 + $0xc] sm:$0xf]
  %v18 = vld [vmem:[%s0 + $0x10] sm:$0xf]
  %v19 = vld [vmem:[%s0 + $0x14] sm:$0xf]
  %v20 = vld [vmem:[%s0 + $0x18] sm:$0xf]
  %v21 = vld [vmem:[%s0 + $0x1c] sm:$0xf]
  %v22 = vld [vmem:[%s0 + $0x20] sm:$0xf]
  %v23 = vld [vmem:[%s0 + $0x24] sm:$0xf]
  %v24 = vld [vmem:[%s0 + $0x28] sm:$0xf]
  %v25 = vld [vmem:[%s0 + $0x2c] sm:$0xf]
  %v26 = vld [vmem:[%s0 + $0x30] sm:$0xf]
  %v27 = vld [vmem:[%s0 + $0x34] sm:$0xf]
  %v28 = vld [vmem:[%s0 + $0x38] sm:$0xf]
  %v29 = vld [vmem:[%s0 + $0x3c] sm:$0xf]
  %v30 = vld [vmem:[%s0 + $0x40] sm:$0xf]
  %v31 = vld [vmem:[%s0 + $0x44] sm:$0xf]
  %v32 = vld [vmem:[%s0 + $0x48] sm:$0xf]
  %v33 = vld [vmem:[%s0 + $0x4c] sm:$0xf]
  %v34 = vld [vmem:[%s0 + $0x50] sm:$0xf]
  %v35 = vld [vmem:[%s0 + $0x54] sm:$0xf]
  %v36 = vld [vmem:[%s0 + $0x58] sm:$0xf]
  %v37 = vld [vmem:[%s0 + $0x5c] sm:$0xf]
  %v38 = vld [vmem:[%s0 + $0x60] sm:$0xf]
  %v39 = vld [vmem:[%s0 + $0x64] sm:$0xf]
  %v40 = vld [vmem:[%s0 + $0x68] sm:$0xf]
  %v41 = vld [vmem:[%s0 + $0x6c] sm:$0xf]
  %v42 = vld [vmem:[%s0 + $0x70] sm:$0xf]
  %v43 = vld [vmem:[%s0 + $0x74] sm:$0xf]
  %v44 = vld [vmem:[%s0 + $0x78] sm:$0xf]
  %v45 = vld [vmem:[%s0 + $0x7c] sm:$0xf]
  %v46 = vld [vmem:[%s0 + $0x80] sm:$0xf]
  %v47 = vld [vmem:[%s0 + $0x84] sm:$0xf]
  %v48 = vld [vmem:[%s0 + $0x88] sm:$0xf]
  %v49 = vld [vmem:[%s0 + $0x8c] sm:$0xf]
  %v50 = vld [vmem:[%s0 + $0x90] sm:$0xf]
  %v51 = vld [vmem:[%s0 + $0x94] sm:$0xf]
  %v52 = vld [vmem:[%s0 + $0x98] sm:$0xf]
  %v53 = vld [vmem:[%s0 + $0x9c] sm:$0xf]
  %v54 = vld [vmem:[%s0 + $0xa0] sm:$0xf]
  %v55 = vld [vmem:[%s0 + $0xa4] sm:$0xf]
  %v56 = vld [vmem:[%s0 + $0xa8] sm:$0xf]
  %v57 = vld [vmem:[%s0 + $0xac] sm:$0xf]
  %v58 = vld [vmem:[%s0 + $0xb0] sm:$0xf]
  %v59 = vld [vmem:[%s0 + $0xb4] sm:$0xf]
  %v60 = vld [vmem:[%s0 + $0xb8] sm:$0xf]
  %v61 = vld [vmem:[%s0 + $0xbc] sm:$0xf]
  %v62 = vld [vmem:[%s0 + $0xc0] sm:$0xf]
  %v63 = vld [vmem:[%s0 + $0xc4] sm:$0xf]
  %v64 = vld [vmem:[%s0 + $0xc8] sm:$0xf]
  %v65 = vld [vmem:[%s0 + $0xcc] sm:$0xf]
  %v66 = vld [vmem:[%s0 + $0xd0] sm:$0xf]
  %v67 = vld [vmem:[%s0 + $0xd4] sm:$0xf]
  %v68 = vld [vmem:[%s0 + $0xd8] sm:$0xf]
  %v69 = vld [vmem:[%s0 + $0xdc] sm:$0xf]
  %v70 = vld [vmem:[%s0 + $0xe0] sm:$0xf]
  %v71 = vld [vmem:[%s0 + $0xe4] sm:$0xf]
  %v72 = vld [vmem:[%s0 + $0xe8] sm:$0xf]
  %v73 = vld [vmem:[%s0 + $0xec] sm:$0xf]
  %v74 = vld [vmem:[%s0 + $0xf0] sm:$0xf]
  %v75 = vld [vmem:[%s0 + $0xf4] sm:$0xf]
  %v76 = vld [vmem:[%s0 + $0xf8] sm:$0xf]
  %v77 = vld [vmem:[%s0 + $0xfc] sm:$0xf]
  %v78 = vunpack.c.l.bf16 %v14
  %v79 = vunpack.c.l.bf16 %v15
  %v80 = vunpack.c.l.bf16 %v16
  %v81 = vunpack.c.l.bf16 %v17
  %v82 = vunpack.c.l.bf16 %v18
  %v83 = vunpack.c.l.bf16 %v19
  %v84 = vunpack.c.l.bf16 %v20
  %v85 = vunpack.c.l.bf16 %v21
  %v86 = vunpack.c.l.bf16 %v22
  %v87 = vunpack.c.l.bf16 %v23
  %v88 = vunpack.c.l.bf16 %v24
  %v89 = vunpack.c.l.bf16 %v25
  %v90 = vunpack.c.l.bf16 %v26
  %v91 = vunpack.c.l.bf16 %v27
  %v92 = vunpack.c.l.bf16 %v28
  %v93 = vunpack.c.l.bf16 %v29
  %v94 = vunpack.c.l.bf16 %v30
  %v95 = vunpack.c.l.bf16 %v31
  %v96 = vunpack.c.l.bf16 %v32
  %v97 = vunpack.c.l.bf16 %v33
  %v98 = vunpack.c.l.bf16 %v34
  %v99 = vunpack.c.l.bf16 %v35
  %v100 = vunpack.c.l.bf16 %v36
  %v101 = vunpack.c.l.bf16 %v37
  %v102 = vunpack.c.l.bf16 %v38
  %v103 = vunpack.c.l.bf16 %v39
  %v104 = vunpack.c.l.bf16 %v40
  %v105 = vunpack.c.l.bf16 %v41
  %v106 = vunpack.c.l.bf16 %v42
  %v107 = vunpack.c.l.bf16 %v43
  %v108 = vunpack.c.l.bf16 %v44
  %v109 = vunpack.c.l.bf16 %v45
  %v110 = vunpack.c.l.bf16 %v46
  %v111 = vunpack.c.l.bf16 %v47
  %v112 = vunpack.c.l.bf16 %v48
  %v113 = vunpack.c.l.bf16 %v49
  %v114 = vunpack.c.l.bf16 %v50
  %v115 = vunpack.c.l.bf16 %v51
  %v116 = vunpack.c.l.bf16 %v52
  %v117 = vunpack.c.l.bf16 %v53
  %v118 = vunpack.c.l.bf16 %v54
  %v119 = vunpack.c.l.bf16 %v55
  %v120 = vunpack.c.l.bf16 %v56
  %v121 = vunpack.c.l.bf16 %v57
  %v122 = vunpack.c.l.bf16 %v58
  %v123 = vunpack.c.l.bf16 %v59
  %v124 = vunpack.c.l.bf16 %v60
  %v125 = vunpack.c.l.bf16 %v61
  %v126 = vunpack.c.l.bf16 %v62
  %v127 = vunpack.c.l.bf16 %v63
  %v128 = vunpack.c.l.bf16 %v64
  %v129 = vunpack.c.l.bf16 %v65
  %v130 = vunpack.c.l.bf16 %v66
  %v131 = vunpack.c.l.bf16 %v67
  %v132 = vunpack.c.l.bf16 %v68
  %v133 = vunpack.c.l.bf16 %v69
  %v134 = vunpack.c.l.bf16 %v70
  %v135 = vunpack.c.l.bf16 %v71
  %v136 = vunpack.c.l.bf16 %v72
  %v137 = vunpack.c.l.bf16 %v73
  %v138 = vunpack.c.l.bf16 %v74
  %v139 = vunpack.c.l.bf16 %v75
  %v140 = vunpack.c.l.bf16 %v76
  %v141 = vunpack.c.l.bf16 %v77
  %v142 = vld [vmem:[%s1] sm:$0x1]
  %v144 = vperm.slane %v142, 0
  %v146 = vmul.f32 %v78, %v144
  %v147 = vmul.f32 %v79, %v144
  %v148 = vmul.f32 %v80, %v144
  %v149 = vmul.f32 %v81, %v144
  %v150 = vmul.f32 %v82, %v144
  %v151 = vmul.f32 %v83, %v144
  %v152 = vmul.f32 %v84, %v144
  %v153 = vmul.f32 %v85, %v144
  %v154 = vmul.f32 %v86, %v144
  %v155 = vmul.f32 %v87, %v144
  %v156 = vmul.f32 %v88, %v144
  %v157 = vmul.f32 %v89, %v144
  %v158 = vmul.f32 %v90, %v144
  %v159 = vmul.f32 %v91, %v144
  %v160 = vmul.f32 %v92, %v144
  %v161 = vmul.f32 %v93, %v144
  %v162 = vmul.f32 %v94, %v144
  %v163 = vmul.f32 %v95, %v144
  %v164 = vmul.f32 %v96, %v144
  %v165 = vmul.f32 %v97, %v144
  %v166 = vmul.f32 %v98, %v144
  %v167 = vmul.f32 %v99, %v144
  %v168 = vmul.f32 %v100, %v144
  %v169 = vmul.f32 %v101, %v144
  %v170 = vmul.f32 %v102, %v144
  %v171 = vmul.f32 %v103, %v144
  %v172 = vmul.f32 %v104, %v144
  %v173 = vmul.f32 %v105, %v144
  %v174 = vmul.f32 %v106, %v144
  %v175 = vmul.f32 %v107, %v144
  %v176 = vmul.f32 %v108, %v144
  %v177 = vmul.f32 %v109, %v144
  %v178 = vmul.f32 %v110, %v144
  %v179 = vmul.f32 %v111, %v144
  %v180 = vmul.f32 %v112, %v144
  %v181 = vmul.f32 %v113, %v144
  %v182 = vmul.f32 %v114, %v144
  %v183 = vmul.f32 %v115, %v144
  %v184 = vmul.f32 %v116, %v144
  %v185 = vmul.f32 %v117, %v144
  %v186 = vmul.f32 %v118, %v144
  %v187 = vmul.f32 %v119, %v144
  %v188 = vmul.f32 %v120, %v144
  %v189 = vmul.f32 %v121, %v144
  %v190 = vmul.f32 %v122, %v144
  %v191 = vmul.f32 %v123, %v144
  %v192 = vmul.f32 %v124, %v144
  %v193 = vmul.f32 %v125, %v144
  %v194 = vmul.f32 %v126, %v144
  %v195 = vmul.f32 %v127, %v144
  %v196 = vmul.f32 %v128, %v144
  %v197 = vmul.f32 %v129, %v144
  %v198 = vmul.f32 %v130, %v144
  %v199 = vmul.f32 %v131, %v144
  %v200 = vmul.f32 %v132, %v144
  %v201 = vmul.f32 %v133, %v144
  %v202 = vmul.f32 %v134, %v144
  %v203 = vmul.f32 %v135, %v144
  %v204 = vmul.f32 %v136, %v144
  %v205 = vmul.f32 %v137, %v144
  %v206 = vmul.f32 %v138, %v144
  %v207 = vmul.f32 %v139, %v144
  %v208 = vmul.f32 %v140, %v144
  %v209 = vmul.f32 %v141, %v144
  %v210 = vld [vmem:[%s2] sm:$0x1]
  %v212 = vperm.slane %v210, 0
  %v214 = vadd.f32 %v146, %v212
  %v215 = vadd.f32 %v147, %v212
  %v216 = vadd.f32 %v148, %v212
  %v217 = vadd.f32 %v149, %v212
  %v218 = vadd.f32 %v150, %v212
  %v219 = vadd.f32 %v151, %v212
  %v220 = vadd.f32 %v152, %v212
  %v221 = vadd.f32 %v153, %v212
  %v222 = vadd.f32 %v154, %v212
  %v223 = vadd.f32 %v155, %v212
  %v224 = vadd.f32 %v156, %v212
  %v225 = vadd.f32 %v157, %v212
  %v226 = vadd.f32 %v158, %v212
  %v227 = vadd.f32 %v159, %v212
  %v228 = vadd.f32 %v160, %v212
  %v229 = vadd.f32 %v161, %v212
  %v230 = vadd.f32 %v162, %v212
  %v231 = vadd.f32 %v163, %v212
  %v232 = vadd.f32 %v164, %v212
  %v233 = vadd.f32 %v165, %v212
  %v234 = vadd.f32 %v166, %v212
  %v235 = vadd.f32 %v167, %v212
  %v236 = vadd.f32 %v168, %v212
  %v237 = vadd.f32 %v169, %v212
  %v238 = vadd.f32 %v170, %v212
  %v239 = vadd.f32 %v171, %v212
  %v240 = vadd.f32 %v172, %v212
  %v241 = vadd.f32 %v173, %v212
  %v242 = vadd.f32 %v174, %v212
  %v243 = vadd.f32 %v175, %v212
  %v244 = vadd.f32 %v176, %v212
  %v245 = vadd.f32 %v177, %v212
  %v246 = vadd.f32 %v178, %v212
  %v247 = vadd.f32 %v179, %v212
  %v248 = vadd.f32 %v180, %v212
  %v249 = vadd.f32 %v181, %v212
  %v250 = vadd.f32 %v182, %v212
  %v251 = vadd.f32 %v183, %v212
  %v252 = vadd.f32 %v184, %v212
  %v253 = vadd.f32 %v185, %v212
  %v254 = vadd.f32 %v186, %v212
  %v255 = vadd.f32 %v187, %v212
  %v256 = vadd.f32 %v188, %v212
  %v257 = vadd.f32 %v189, %v212
  %v258 = vadd.f32 %v190, %v212
  %v259 = vadd.f32 %v191, %v212
  %v260 = vadd.f32 %v192, %v212
  %v261 = vadd.f32 %v193, %v212
  %v262 = vadd.f32 %v194, %v212
  %v263 = vadd.f32 %v195, %v212
  %v264 = vadd.f32 %v196, %v212
  %v265 = vadd.f32 %v197, %v212
  %v266 = vadd.f32 %v198, %v212
  %v267 = vadd.f32 %v199, %v212
  %v268 = vadd.f32 %v200, %v212
  %v269 = vadd.f32 %v201, %v212
  %v270 = vadd.f32 %v202, %v212
  %v271 = vadd.f32 %v203, %v212
  %v272 = vadd.f32 %v204, %v212
  %v273 = vadd.f32 %v205, %v212
  %v274 = vadd.f32 %v206, %v212
  %v275 = vadd.f32 %v207, %v212
  %v276 = vadd.f32 %v208, %v212
  %v277 = vadd.f32 %v209, %v212
  %v278 = vmax.f32 %v214, 0.0
  %v279 = vmax.f32 %v215, 0.0
  %v280 = vmax.f32 %v216, 0.0
  %v281 = vmax.f32 %v217, 0.0
  %v282 = vmax.f32 %v218, 0.0
  %v283 = vmax.f32 %v219, 0.0
  %v284 = vmax.f32 %v220, 0.0
  %v285 = vmax.f32 %v221, 0.0
  %v286 = vmax.f32 %v222, 0.0
  %v287 = vmax.f32 %v223, 0.0
  %v288 = vmax.f32 %v224, 0.0
  %v289 = vmax.f32 %v225, 0.0
  %v290 = vmax.f32 %v226, 0.0
  %v291 = vmax.f32 %v227, 0.0
  %v292 = vmax.f32 %v228, 0.0
  %v293 = vmax.f32 %v229, 0.0
  %v294 = vmax.f32 %v230, 0.0
  %v295 = vmax.f32 %v231, 0.0
  %v296 = vmax.f32 %v232, 0.0
  %v297 = vmax.f32 %v233, 0.0
  %v298 = vmax.f32 %v234, 0.0
  %v299 = vmax.f32 %v235, 0.0
  %v300 = vmax.f32 %v236, 0.0
  %v301 = vmax.f32 %v237, 0.0
  %v302 = vmax.f32 %v238, 0.0
  %v303 = vmax.f32 %v239, 0.0
  %v304 = vmax.f32 %v240, 0.0
  %v305 = vmax.f32 %v241, 0.0
  %v306 = vmax.f32 %v242, 0.0
  %v307 = vmax.f32 %v243, 0.0
  %v308 = vmax.f32 %v244, 0.0
  %v309 = vmax.f32 %v245, 0.0
  %v310 = vmax.f32 %v246, 0.0
  %v311 = vmax.f32 %v247, 0.0
  %v312 = vmax.f32 %v248, 0.0
  %v313 = vmax.f32 %v249, 0.0
  %v314 = vmax.f32 %v250, 0.0
  %v315 = vmax.f32 %v251, 0.0
  %v316 = vmax.f32 %v252, 0.0
  %v317 = vmax.f32 %v253, 0.0
  %v318 = vmax.f32 %v254, 0.0
  %v319 = vmax.f32 %v255, 0.0
  %v320 = vmax.f32 %v256, 0.0
  %v321 = vmax.f32 %v257, 0.0
  %v322 = vmax.f32 %v258, 0.0
  %v323 = vmax.f32 %v259, 0.0
  %v324 = vmax.f32 %v260, 0.0
  %v325 = vmax.f32 %v261, 0.0
  %v326 = vmax.f32 %v262, 0.0
  %v327 = vmax.f32 %v263, 0.0
  %v328 = vmax.f32 %v264, 0.0
  %v329 = vmax.f32 %v265, 0.0
  %v330 = vmax.f32 %v266, 0.0
  %v331 = vmax.f32 %v267, 0.0
  %v332 = vmax.f32 %v268, 0.0
  %v333 = vmax.f32 %v269, 0.0
  %v334 = vmax.f32 %v270, 0.0
  %v335 = vmax.f32 %v271, 0.0
  %v336 = vmax.f32 %v272, 0.0
  %v337 = vmax.f32 %v273, 0.0
  %v338 = vmax.f32 %v274, 0.0
  %v339 = vmax.f32 %v275, 0.0
  %v340 = vmax.f32 %v276, 0.0
  %v341 = vmax.f32 %v277, 0.0
  %v342 = vpack.c.bf16 %v278, %v278
  %v343 = vpack.c.bf16 %v279, %v279
  %v344 = vpack.c.bf16 %v280, %v280
  %v345 = vpack.c.bf16 %v281, %v281
  %v346 = vpack.c.bf16 %v282, %v282
  %v347 = vpack.c.bf16 %v283, %v283
  %v348 = vpack.c.bf16 %v284, %v284
  %v349 = vpack.c.bf16 %v285, %v285
  %v350 = vpack.c.bf16 %v286, %v286
  %v351 = vpack.c.bf16 %v287, %v287
  %v352 = vpack.c.bf16 %v288, %v288
  %v353 = vpack.c.bf16 %v289, %v289
  %v354 = vpack.c.bf16 %v290, %v290
  %v355 = vpack.c.bf16 %v291, %v291
  %v356 = vpack.c.bf16 %v292, %v292
  %v357 = vpack.c.bf16 %v293, %v293
  %v358 = vpack.c.bf16 %v294, %v294
  %v359 = vpack.c.bf16 %v295, %v295
  %v360 = vpack.c.bf16 %v296, %v296
  %v361 = vpack.c.bf16 %v297, %v297
  %v362 = vpack.c.bf16 %v298, %v298
  %v363 = vpack.c.bf16 %v299, %v299
  %v364 = vpack.c.bf16 %v300, %v300
  %v365 = vpack.c.bf16 %v301, %v301
  %v366 = vpack.c.bf16 %v302, %v302
  %v367 = vpack.c.bf16 %v303, %v303
  %v368 = vpack.c.bf16 %v304, %v304
  %v369 = vpack.c.bf16 %v305, %v305
  %v370 = vpack.c.bf16 %v306, %v306
  %v371 = vpack.c.bf16 %v307, %v307
  %v372 = vpack.c.bf16 %v308, %v308
  %v373 = vpack.c.bf16 %v309, %v309
  %v374 = vpack.c.bf16 %v310, %v310
  %v375 = vpack.c.bf16 %v311, %v311
  %v376 = vpack.c.bf16 %v312, %v312
  %v377 = vpack.c.bf16 %v313, %v313
  %v378 = vpack.c.bf16 %v314, %v314
  %v379 = vpack.c.bf16 %v315, %v315
  %v380 = vpack.c.bf16 %v316, %v316
  %v381 = vpack.c.bf16 %v317, %v317
  %v382 = vpack.c.bf16 %v318, %v318
  %v383 = vpack.c.bf16 %v319, %v319
  %v384 = vpack.c.bf16 %v320, %v320
  %v385 = vpack.c.bf16 %v321, %v321
  %v386 = vpack.c.bf16 %v322, %v322
  %v387 = vpack.c.bf16 %v323, %v323
  %v388 = vpack.c.bf16 %v324, %v324
  %v389 = vpack.c.bf16 %v325, %v325
  %v390 = vpack.c.bf16 %v326, %v326
  %v391 = vpack.c.bf16 %v327, %v327
  %v392 = vpack.c.bf16 %v328, %v328
  %v393 = vpack.c.bf16 %v329, %v329
  %v394 = vpack.c.bf16 %v330, %v330
  %v395 = vpack.c.bf16 %v331, %v331
  %v396 = vpack.c.bf16 %v332, %v332
  %v397 = vpack.c.bf16 %v333, %v333
  %v398 = vpack.c.bf16 %v334, %v334
  %v399 = vpack.c.bf16 %v335, %v335
  %v400 = vpack.c.bf16 %v336, %v336
  %v401 = vpack.c.bf16 %v337, %v337
  %v402 = vpack.c.bf16 %v338, %v338
  %v403 = vpack.c.bf16 %v339, %v339
  %v404 = vpack.c.bf16 %v340, %v340
  %v405 = vpack.c.bf16 %v341, %v341
  %406 = vst [vmem:[%s3] sm:$0xf] %v342
  %407 = vst [vmem:[%s3 + $0x4] sm:$0xf] %v343
  %408 = vst [vmem:[%s3 + $0x8] sm:$0xf] %v344
  %409 = vst [vmem:[%s3 + $0xc] sm:$0xf] %v345
  %410 = vst [vmem:[%s3 + $0x10] sm:$0xf] %v346
  %411 = vst [vmem:[%s3 + $0x14] sm:$0xf] %v347
  %412 = vst [vmem:[%s3 + $0x18] sm:$0xf] %v348
  %413 = vst [vmem:[%s3 + $0x1c] sm:$0xf] %v349
  %414 = vst [vmem:[%s3 + $0x20] sm:$0xf] %v350
  %415 = vst [vmem:[%s3 + $0x24] sm:$0xf] %v351
  %416 = vst [vmem:[%s3 + $0x28] sm:$0xf] %v352
  %417 = vst [vmem:[%s3 + $0x2c] sm:$0xf] %v353
  %418 = vst [vmem:[%s3 + $0x30] sm:$0xf] %v354
  %419 = vst [vmem:[%s3 + $0x34] sm:$0xf] %v355
  %420 = vst [vmem:[%s3 + $0x38] sm:$0xf] %v356
  %421 = vst [vmem:[%s3 + $0x3c] sm:$0xf] %v357
  %422 = vst [vmem:[%s3 + $0x40] sm:$0xf] %v358
  %423 = vst [vmem:[%s3 + $0x44] sm:$0xf] %v359
  %424 = vst [vmem:[%s3 + $0x48] sm:$0xf] %v360
  %425 = vst [vmem:[%s3 + $0x4c] sm:$0xf] %v361
  %426 = vst [vmem:[%s3 + $0x50] sm:$0xf] %v362
  %427 = vst [vmem:[%s3 + $0x54] sm:$0xf] %v363
  %428 = vst [vmem:[%s3 + $0x58] sm:$0xf] %v364
  %429 = vst [vmem:[%s3 + $0x5c] sm:$0xf] %v365
  %430 = vst [vmem:[%s3 + $0x60] sm:$0xf] %v366
  %431 = vst [vmem:[%s3 + $0x64] sm:$0xf] %v367
  %432 = vst [vmem:[%s3 + $0x68] sm:$0xf] %v368
  %433 = vst [vmem:[%s3 + $0x6c] sm:$0xf] %v369
  %434 = vst [vmem:[%s3 + $0x70] sm:$0xf] %v370
  %435 = vst [vmem:[%s3 + $0x74] sm:$0xf] %v371
  %436 = vst [vmem:[%s3 + $0x78] sm:$0xf] %v372
  %437 = vst [vmem:[%s3 + $0x7c] sm:$0xf] %v373
  %438 = vst [vmem:[%s3 + $0x80] sm:$0xf] %v374
  %439 = vst [vmem:[%s3 + $0x84] sm:$0xf] %v375
  %440 = vst [vmem:[%s3 + $0x88] sm:$0xf] %v376
  %441 = vst [vmem:[%s3 + $0x8c] sm:$0xf] %v377
  %442 = vst [vmem:[%s3 + $0x90] sm:$0xf] %v378
  %443 = vst [vmem:[%s3 + $0x94] sm:$0xf] %v379
  %444 = vst [vmem:[%s3 + $0x98] sm:$0xf] %v380
  %445 = vst [vmem:[%s3 + $0x9c] sm:$0xf] %v381
  %446 = vst [vmem:[%s3 + $0xa0] sm:$0xf] %v382
  %447 = vst [vmem:[%s3 + $0xa4] sm:$0xf] %v383
  %448 = vst [vmem:[%s3 + $0xa8] sm:$0xf] %v384
  %449 = vst [vmem:[%s3 + $0xac] sm:$0xf] %v385
  %450 = vst [vmem:[%s3 + $0xb0] sm:$0xf] %v386
  %451 = vst [vmem:[%s3 + $0xb4] sm:$0xf] %v387
  %452 = vst [vmem:[%s3 + $0xb8] sm:$0xf] %v388
  %453 = vst [vmem:[%s3 + $0xbc] sm:$0xf] %v389
  %454 = vst [vmem:[%s3 + $0xc0] sm:$0xf] %v390
  %455 = vst [vmem:[%s3 + $0xc4] sm:$0xf] %v391
  %456 = vst [vmem:[%s3 + $0xc8] sm:$0xf] %v392
  %457 = vst [vmem:[%s3 + $0xcc] sm:$0xf] %v393
  %458 = vst [vmem:[%s3 + $0xd0] sm:$0xf] %v394
  %459 = vst [vmem:[%s3 + $0xd4] sm:$0xf] %v395
  %460 = vst [vmem:[%s3 + $0xd8] sm:$0xf] %v396
  %461 = vst [vmem:[%s3 + $0xdc] sm:$0xf] %v397
  %462 = vst [vmem:[%s3 + $0xe0] sm:$0xf] %v398
  %463 = vst [vmem:[%s3 + $0xe4] sm:$0xf] %v399
  %464 = vst [vmem:[%s3 + $0xe8] sm:$0xf] %v400
  %465 = vst [vmem:[%s3 + $0xec] sm:$0xf] %v401
  %466 = vst [vmem:[%s3 + $0xf0] sm:$0xf] %v402
  %467 = vst [vmem:[%s3 + $0xf4] sm:$0xf] %v403
  %468 = vst [vmem:[%s3 + $0xf8] sm:$0xf] %v404
  %469 = vst [vmem:[%s3 + $0xfc] sm:$0xf] %v405
  // Predicated region
  $region14: #{bottleneck_forward.6} parent=0 // pred_check
    _
  $region15: #{bottleneck_forward.6} parent=0 // pred_check_branch
    %471 = sbr.rel (0) target = $region17
  $region16: #{bottleneck_forward.6} parent=0 // pred_region
    _
  $region17: #{bottleneck_forward.6} parent=0 // pred_fallthru
    _
  // Predicated region
  $region18: #{bottleneck_forward.6} parent=0 // pred_check
    _
  $region19: #{bottleneck_forward.6} parent=0 // pred_check_branch
    %473 = sbr.rel (0) target = $region21
  $region20: #{bottleneck_forward.6} parent=0 // pred_region
    _
  $region21: #{bottleneck_forward.6} parent=0 // pred_fallthru
    _

// kernel: bottleneck_forward.8
$region0: #{bottleneck_forward.8}
  #allocation0 [shape = 'u32[]', space=smem, size = 0x4, offset = 0x4, fixed_abs, tag = 'smem constant byte address 0x4 - core index']
  #allocation1 [shape = 'u32[72,128]{1,0:T(1,128)}', space=vmem, size = 0x9000, scoped, tag = 'internal scratch']
  %s0 = inlined_call_operand.vmem [shape: bf16[512,128], index: 0, kind: input, shape index: {}]
  %s1 = inlined_call_operand.vmem [shape: f32[1,128], index: 1, kind: input, shape index: {}]
  %s2 = inlined_call_operand.vmem [shape: f32[1,128], index: 2, kind: input, shape index: {}]
  %s3 = inlined_call_operand.vmem [shape: bf16[128,128], index: 3, kind: input, shape index: {}]
  %s4 = inlined_call_operand.vmem [shape: bf16[512,128], index: 4, kind: input, shape index: {}]
  %s5 = inlined_call_operand.vmem [shape: bf16[128,128], index: 5, kind: input, shape index: {}]
  %s6 = inlined_call_operand.vmem [shape: bf16[512,128], index: 6, kind: output, shape index: {0}]
  %s7 = inlined_call_operand.vmem [shape: bf16[512,128], index: 7, kind: output, shape index: {1}]
  %s8 = inlined_call_operand.vmem [shape: f32[1,2,128], index: 8, kind: output, shape index: {2}]
  %s9 = inlined_call_operand.vmem [shape: f32[1,2,128], index: 9, kind: output, shape index: {3}]
  %10 = xla_tuple %s6, %s7, %s8, %s9
  %s11 = sld [smem:[#allocation0]]
  $region58: #{bottleneck_forward.8} parent=0
    _
  %s13 = ssub.s32 1, %s11
  %s14 = scalar_select 0, %s13, %s11
  // Predicated region
  $region2: #{bottleneck_forward.8} parent=0 // pred_check
    _
  $region3: #{bottleneck_forward.8} parent=0 // pred_check_branch
    %16 = sbr.rel (0) target = $region5
  $region4: #{bottleneck_forward.8} parent=0 // pred_region
    _
  $region5: #{bottleneck_forward.8} parent=0 // pred_fallthru
    _
  // Predicated region
  $region6: #{bottleneck_forward.8} parent=0 // pred_check
    _
  $region7: #{bottleneck_forward.8} parent=0 // pred_check_branch
    %18 = sbr.rel (0) target = $region9
  $region8: #{bottleneck_forward.8} parent=0 // pred_region
    _
  $region9: #{bottleneck_forward.8} parent=0 // pred_fallthru
    _
  // Predicated region
  $region10: #{bottleneck_forward.8} parent=0 // pred_check
    _
  $region11: #{bottleneck_forward.8} parent=0 // pred_check_branch
    %20 = sbr.rel (0) target = $region13
  $region12: #{bottleneck_forward.8} parent=0 // pred_region
    _
  $region13: #{bottleneck_forward.8} parent=0 // pred_fallthru
    _
  // Predicated region
  $region14: #{bottleneck_forward.8} parent=0 // pred_check
    _
  $region15: #{bottleneck_forward.8} parent=0 // pred_check_branch
    %22 = sbr.rel (0) target = $region17
  $region16: #{bottleneck_forward.8} parent=0 // pred_region
    _
  $region17: #{bottleneck_forward.8} parent=0 // pred_fallthru
    _
  // Predicated region
  $region18: #{bottleneck_forward.8} parent=0 // pred_check
    _
  $region19: #{bottleneck_forward.8} parent=0 // pred_check_branch
    %24 = sbr.rel (0) target = $region21
  $region20: #{bottleneck_forward.8} parent=0 // pred_region
    _
  $region21: #{bottleneck_forward.8} parent=0 // pred_fallthru
    _
  // Predicated region
  $region22: #{bottleneck_forward.8} parent=0 // pred_check
    _
  $region23: #{bottleneck_forward.8} parent=0 // pred_check_branch
    %26 = sbr.rel (0) target = $region25
  $region24: #{bottleneck_forward.8} parent=0 // pred_region
    _
  $region25: #{bottleneck_forward.8} parent=0 // pred_fallthru
    _
  %v27 = vld [vmem:[%s0] sm:$0xf]
  %v28 = vld [vmem:[%s0 + $0x4] sm:$0xf]
  %v29 = vld [vmem:[%s0 + $0x8] sm:$0xf]
  %v30 = vld [vmem:[%s0 + $0xc] sm:$0xf]
  %v31 = vld [vmem:[%s0 + $0x10] sm:$0xf]
  %v32 = vld [vmem:[%s0 + $0x14] sm:$0xf]
  %v33 = vld [vmem:[%s0 + $0x18] sm:$0xf]
  %v34 = vld [vmem:[%s0 + $0x1c] sm:$0xf]
  %v35 = vld [vmem:[%s0 + $0x20] sm:$0xf]
  %v36 = vld [vmem:[%s0 + $0x24] sm:$0xf]
  %v37 = vld [vmem:[%s0 + $0x28] sm:$0xf]
  %v38 = vld [vmem:[%s0 + $0x2c] sm:$0xf]
  %v39 = vld [vmem:[%s0 + $0x30] sm:$0xf]
  %v40 = vld [vmem:[%s0 + $0x34] sm:$0xf]
  %v41 = vld [vmem:[%s0 + $0x38] sm:$0xf]
  %v42 = vld [vmem:[%s0 + $0x3c] sm:$0xf]
  %v43 = vld [vmem:[%s0 + $0x40] sm:$0xf]
  %v44 = vld [vmem:[%s0 + $0x44] sm:$0xf]
  %v45 = vld [vmem:[%s0 + $0x48] sm:$0xf]
  %v46 = vld [vmem:[%s0 + $0x4c] sm:$0xf]
  %v47 = vld [vmem:[%s0 + $0x50] sm:$0xf]
  %v48 = vld [vmem:[%s0 + $0x54] sm:$0xf]
  %v49 = vld [vmem:[%s0 + $0x58] sm:$0xf]
  %v50 = vld [vmem:[%s0 + $0x5c] sm:$0xf]
  %v51 = vld [vmem:[%s0 + $0x60] sm:$0xf]
  %v52 = vld [vmem:[%s0 + $0x64] sm:$0xf]
  %v53 = vld [vmem:[%s0 + $0x68] sm:$0xf]
  %v54 = vld [vmem:[%s0 + $0x6c] sm:$0xf]
  %v55 = vld [vmem:[%s0 + $0x70] sm:$0xf]
  %v56 = vld [vmem:[%s0 + $0x74] sm:$0xf]
  %v57 = vld [vmem:[%s0 + $0x78] sm:$0xf]
  %v58 = vld [vmem:[%s0 + $0x7c] sm:$0xf]
  %v59 = vld [vmem:[%s0 + $0x80] sm:$0xf]
  %v60 = vld [vmem:[%s0 + $0x84] sm:$0xf]
  %v61 = vld [vmem:[%s0 + $0x88] sm:$0xf]
  %v62 = vld [vmem:[%s0 + $0x8c] sm:$0xf]
  %v63 = vld [vmem:[%s0 + $0x90] sm:$0xf]
  %v64 = vld [vmem:[%s0 + $0x94] sm:$0xf]
  %v65 = vld [vmem:[%s0 + $0x98] sm:$0xf]
  %v66 = vld [vmem:[%s0 + $0x9c] sm:$0xf]
  %v67 = vld [vmem:[%s0 + $0xa0] sm:$0xf]
  %v68 = vld [vmem:[%s0 + $0xa4] sm:$0xf]
  %v69 = vld [vmem:[%s0 + $0xa8] sm:$0xf]
  %v70 = vld [vmem:[%s0 + $0xac] sm:$0xf]
  %v71 = vld [vmem:[%s0 + $0xb0] sm:$0xf]
  %v72 = vld [vmem:[%s0 + $0xb4] sm:$0xf]
  %v73 = vld [vmem:[%s0 + $0xb8] sm:$0xf]
  %v74 = vld [vmem:[%s0 + $0xbc] sm:$0xf]
  %v75 = vld [vmem:[%s0 + $0xc0] sm:$0xf]
  %v76 = vld [vmem:[%s0 + $0xc4] sm:$0xf]
  %v77 = vld [vmem:[%s0 + $0xc8] sm:$0xf]
  %v78 = vld [vmem:[%s0 + $0xcc] sm:$0xf]
  %v79 = vld [vmem:[%s0 + $0xd0] sm:$0xf]
  %v80 = vld [vmem:[%s0 + $0xd4] sm:$0xf]
  %v81 = vld [vmem:[%s0 + $0xd8] sm:$0xf]
  %v82 = vld [vmem:[%s0 + $0xdc] sm:$0xf]
  %v83 = vld [vmem:[%s0 + $0xe0] sm:$0xf]
  %v84 = vld [vmem:[%s0 + $0xe4] sm:$0xf]
  %v85 = vld [vmem:[%s0 + $0xe8] sm:$0xf]
  %v86 = vld [vmem:[%s0 + $0xec] sm:$0xf]
  %v87 = vld [vmem:[%s0 + $0xf0] sm:$0xf]
  %v88 = vld [vmem:[%s0 + $0xf4] sm:$0xf]
  %v89 = vld [vmem:[%s0 + $0xf8] sm:$0xf]
  %v90 = vld [vmem:[%s0 + $0xfc] sm:$0xf]
  %v91 = vunpack.c.l.bf16 %v27
  %v92 = vunpack.c.l.bf16 %v28
  %v93 = vunpack.c.l.bf16 %v29
  %v94 = vunpack.c.l.bf16 %v30
  %v95 = vunpack.c.l.bf16 %v31
  %v96 = vunpack.c.l.bf16 %v32
  %v97 = vunpack.c.l.bf16 %v33
  %v98 = vunpack.c.l.bf16 %v34
  %v99 = vunpack.c.l.bf16 %v35
  %v100 = vunpack.c.l.bf16 %v36
  %v101 = vunpack.c.l.bf16 %v37
  %v102 = vunpack.c.l.bf16 %v38
  %v103 = vunpack.c.l.bf16 %v39
  %v104 = vunpack.c.l.bf16 %v40
  %v105 = vunpack.c.l.bf16 %v41
  %v106 = vunpack.c.l.bf16 %v42
  %v107 = vunpack.c.l.bf16 %v43
  %v108 = vunpack.c.l.bf16 %v44
  %v109 = vunpack.c.l.bf16 %v45
  %v110 = vunpack.c.l.bf16 %v46
  %v111 = vunpack.c.l.bf16 %v47
  %v112 = vunpack.c.l.bf16 %v48
  %v113 = vunpack.c.l.bf16 %v49
  %v114 = vunpack.c.l.bf16 %v50
  %v115 = vunpack.c.l.bf16 %v51
  %v116 = vunpack.c.l.bf16 %v52
  %v117 = vunpack.c.l.bf16 %v53
  %v118 = vunpack.c.l.bf16 %v54
  %v119 = vunpack.c.l.bf16 %v55
  %v120 = vunpack.c.l.bf16 %v56
  %v121 = vunpack.c.l.bf16 %v57
  %v122 = vunpack.c.l.bf16 %v58
  %v123 = vunpack.c.l.bf16 %v59
  %v124 = vunpack.c.l.bf16 %v60
  %v125 = vunpack.c.l.bf16 %v61
  %v126 = vunpack.c.l.bf16 %v62
  %v127 = vunpack.c.l.bf16 %v63
  %v128 = vunpack.c.l.bf16 %v64
  %v129 = vunpack.c.l.bf16 %v65
  %v130 = vunpack.c.l.bf16 %v66
  %v131 = vunpack.c.l.bf16 %v67
  %v132 = vunpack.c.l.bf16 %v68
  %v133 = vunpack.c.l.bf16 %v69
  %v134 = vunpack.c.l.bf16 %v70
  %v135 = vunpack.c.l.bf16 %v71
  %v136 = vunpack.c.l.bf16 %v72
  %v137 = vunpack.c.l.bf16 %v73
  %v138 = vunpack.c.l.bf16 %v74
  %v139 = vunpack.c.l.bf16 %v75
  %v140 = vunpack.c.l.bf16 %v76
  %v141 = vunpack.c.l.bf16 %v77
  %v142 = vunpack.c.l.bf16 %v78
  %v143 = vunpack.c.l.bf16 %v79
  %v144 = vunpack.c.l.bf16 %v80
  %v145 = vunpack.c.l.bf16 %v81
  %v146 = vunpack.c.l.bf16 %v82
  %v147 = vunpack.c.l.bf16 %v83
  %v148 = vunpack.c.l.bf16 %v84
  %v149 = vunpack.c.l.bf16 %v85
  %v150 = vunpack.c.l.bf16 %v86
  %v151 = vunpack.c.l.bf16 %v87
  %v152 = vunpack.c.l.bf16 %v88
  %v153 = vunpack.c.l.bf16 %v89
  %v154 = vunpack.c.l.bf16 %v90
  %v155 = vld [vmem:[%s1] sm:$0x1]
  %v157 = vperm.slane %v155, 0
  %v159 = vmul.f32 %v91, %v157
  %v160 = vmul.f32 %v92, %v157
  %v161 = vmul.f32 %v93, %v157
  %v162 = vmul.f32 %v94, %v157
  %v163 = vmul.f32 %v95, %v157
  %v164 = vmul.f32 %v96, %v157
  %v165 = vmul.f32 %v97, %v157
  %v166 = vmul.f32 %v98, %v157
  %v167 = vmul.f32 %v99, %v157
  %v168 = vmul.f32 %v100, %v157
  %v169 = vmul.f32 %v101, %v157
  %v170 = vmul.f32 %v102, %v157
  %v171 = vmul.f32 %v103, %v157
  %v172 = vmul.f32 %v104, %v157
  %v173 = vmul.f32 %v105, %v157
  %v174 = vmul.f32 %v106, %v157
  %v175 = vmul.f32 %v107, %v157
  %v176 = vmul.f32 %v108, %v157
  %v177 = vmul.f32 %v109, %v157
  %v178 = vmul.f32 %v110, %v157
  %v179 = vmul.f32 %v111, %v157
  %v180 = vmul.f32 %v112, %v157
  %v181 = vmul.f32 %v113, %v157
  %v182 = vmul.f32 %v114, %v157
  %v183 = vmul.f32 %v115, %v157
  %v184 = vmul.f32 %v116, %v157
  %v185 = vmul.f32 %v117, %v157
  %v186 = vmul.f32 %v118, %v157
  %v187 = vmul.f32 %v119, %v157
  %v188 = vmul.f32 %v120, %v157
  %v189 = vmul.f32 %v121, %v157
  %v190 = vmul.f32 %v122, %v157
  %v191 = vmul.f32 %v123, %v157
  %v192 = vmul.f32 %v124, %v157
  %v193 = vmul.f32 %v125, %v157
  %v194 = vmul.f32 %v126, %v157
  %v195 = vmul.f32 %v127, %v157
  %v196 = vmul.f32 %v128, %v157
  %v197 = vmul.f32 %v129, %v157
  %v198 = vmul.f32 %v130, %v157
  %v199 = vmul.f32 %v131, %v157
  %v200 = vmul.f32 %v132, %v157
  %v201 = vmul.f32 %v133, %v157
  %v202 = vmul.f32 %v134, %v157
  %v203 = vmul.f32 %v135, %v157
  %v204 = vmul.f32 %v136, %v157
  %v205 = vmul.f32 %v137, %v157
  %v206 = vmul.f32 %v138, %v157
  %v207 = vmul.f32 %v139, %v157
  %v208 = vmul.f32 %v140, %v157
  %v209 = vmul.f32 %v141, %v157
  %v210 = vmul.f32 %v142, %v157
  %v211 = vmul.f32 %v143, %v157
  %v212 = vmul.f32 %v144, %v157
  %v213 = vmul.f32 %v145, %v157
  %v214 = vmul.f32 %v146, %v157
  %v215 = vmul.f32 %v147, %v157
  %v216 = vmul.f32 %v148, %v157
  %v217 = vmul.f32 %v149, %v157
  %v218 = vmul.f32 %v150, %v157
  %v219 = vmul.f32 %v151, %v157
  %v220 = vmul.f32 %v152, %v157
  %v221 = vmul.f32 %v153, %v157
  %v222 = vmul.f32 %v154, %v157
  %v223 = vld [vmem:[%s2] sm:$0x1]
  %v225 = vperm.slane %v223, 0
  %v227 = vadd.f32 %v159, %v225
  %v228 = vadd.f32 %v160, %v225
  %v229 = vadd.f32 %v161, %v225
  %v230 = vadd.f32 %v162, %v225
  %v231 = vadd.f32 %v163, %v225
  %v232 = vadd.f32 %v164, %v225
  %v233 = vadd.f32 %v165, %v225
  %v234 = vadd.f32 %v166, %v225
  %v235 = vadd.f32 %v167, %v225
  %v236 = vadd.f32 %v168, %v225
  %v237 = vadd.f32 %v169, %v225
  %v238 = vadd.f32 %v170, %v225
  %v239 = vadd.f32 %v171, %v225
  %v240 = vadd.f32 %v172, %v225
  %v241 = vadd.f32 %v173, %v225
  %v242 = vadd.f32 %v174, %v225
  %v243 = vadd.f32 %v175, %v225
  %v244 = vadd.f32 %v176, %v225
  %v245 = vadd.f32 %v177, %v225
  %v246 = vadd.f32 %v178, %v225
  %v247 = vadd.f32 %v179, %v225
  %v248 = vadd.f32 %v180, %v225
  %v249 = vadd.f32 %v181, %v225
  %v250 = vadd.f32 %v182, %v225
  %v251 = vadd.f32 %v183, %v225
  %v252 = vadd.f32 %v184, %v225
  %v253 = vadd.f32 %v185, %v225
  %v254 = vadd.f32 %v186, %v225
  %v255 = vadd.f32 %v187, %v225
  %v256 = vadd.f32 %v188, %v225
  %v257 = vadd.f32 %v189, %v225
  %v258 = vadd.f32 %v190, %v225
  %v259 = vadd.f32 %v191, %v225
  %v260 = vadd.f32 %v192, %v225
  %v261 = vadd.f32 %v193, %v225
  %v262 = vadd.f32 %v194, %v225
  %v263 = vadd.f32 %v195, %v225
  %v264 = vadd.f32 %v196, %v225
  %v265 = vadd.f32 %v197, %v225
  %v266 = vadd.f32 %v198, %v225
  %v267 = vadd.f32 %v199, %v225
  %v268 = vadd.f32 %v200, %v225
  %v269 = vadd.f32 %v201, %v225
  %v270 = vadd.f32 %v202, %v225
  %v271 = vadd.f32 %v203, %v225
  %v272 = vadd.f32 %v204, %v225
  %v273 = vadd.f32 %v205, %v225
  %v274 = vadd.f32 %v206, %v225
  %v275 = vadd.f32 %v207, %v225
  %v276 = vadd.f32 %v208, %v225
  %v277 = vadd.f32 %v209, %v225
  %v278 = vadd.f32 %v210, %v225
  %v279 = vadd.f32 %v211, %v225
  %v280 = vadd.f32 %v212, %v225
  %v281 = vadd.f32 %v213, %v225
  %v282 = vadd.f32 %v214, %v225
  %v283 = vadd.f32 %v215, %v225
  %v284 = vadd.f32 %v216, %v225
  %v285 = vadd.f32 %v217, %v225
  %v286 = vadd.f32 %v218, %v225
  %v287 = vadd.f32 %v219, %v225
  %v288 = vadd.f32 %v220, %v225
  %v289 = vadd.f32 %v221, %v225
  %v290 = vadd.f32 %v222, %v225
  %v291 = vmax.f32 %v227, 0.0
  %v292 = vmax.f32 %v228, 0.0
  %v293 = vmax.f32 %v229, 0.0
  %v294 = vmax.f32 %v230, 0.0
  %v295 = vmax.f32 %v231, 0.0
  %v296 = vmax.f32 %v232, 0.0
  %v297 = vmax.f32 %v233, 0.0
  %v298 = vmax.f32 %v234, 0.0
  %v299 = vmax.f32 %v235, 0.0
  %v300 = vmax.f32 %v236, 0.0
  %v301 = vmax.f32 %v237, 0.0
  %v302 = vmax.f32 %v238, 0.0
  %v303 = vmax.f32 %v239, 0.0
  %v304 = vmax.f32 %v240, 0.0
  %v305 = vmax.f32 %v241, 0.0
  %v306 = vmax.f32 %v242, 0.0
  %v307 = vmax.f32 %v243, 0.0
  %v308 = vmax.f32 %v244, 0.0
  %v309 = vmax.f32 %v245, 0.0
  %v310 = vmax.f32 %v246, 0.0
  %v311 = vmax.f32 %v247, 0.0
  %v312 = vmax.f32 %v248, 0.0
  %v313 = vmax.f32 %v249, 0.0
  %v314 = vmax.f32 %v250, 0.0
  %v315 = vmax.f32 %v251, 0.0
  %v316 = vmax.f32 %v252, 0.0
  %v317 = vmax.f32 %v253, 0.0
  %v318 = vmax.f32 %v254, 0.0
  %v319 = vmax.f32 %v255, 0.0
  %v320 = vmax.f32 %v256, 0.0
  %v321 = vmax.f32 %v257, 0.0
  %v322 = vmax.f32 %v258, 0.0
  %v323 = vmax.f32 %v259, 0.0
  %v324 = vmax.f32 %v260, 0.0
  %v325 = vmax.f32 %v261, 0.0
  %v326 = vmax.f32 %v262, 0.0
  %v327 = vmax.f32 %v263, 0.0
  %v328 = vmax.f32 %v264, 0.0
  %v329 = vmax.f32 %v265, 0.0
  %v330 = vmax.f32 %v266, 0.0
  %v331 = vmax.f32 %v267, 0.0
  %v332 = vmax.f32 %v268, 0.0
  %v333 = vmax.f32 %v269, 0.0
  %v334 = vmax.f32 %v270, 0.0
  %v335 = vmax.f32 %v271, 0.0
  %v336 = vmax.f32 %v272, 0.0
  %v337 = vmax.f32 %v273, 0.0
  %v338 = vmax.f32 %v274, 0.0
  %v339 = vmax.f32 %v275, 0.0
  %v340 = vmax.f32 %v276, 0.0
  %v341 = vmax.f32 %v277, 0.0
  %v342 = vmax.f32 %v278, 0.0
  %v343 = vmax.f32 %v279, 0.0
  %v344 = vmax.f32 %v280, 0.0
  %v345 = vmax.f32 %v281, 0.0
  %v346 = vmax.f32 %v282, 0.0
  %v347 = vmax.f32 %v283, 0.0
  %v348 = vmax.f32 %v284, 0.0
  %v349 = vmax.f32 %v285, 0.0
  %v350 = vmax.f32 %v286, 0.0
  %v351 = vmax.f32 %v287, 0.0
  %v352 = vmax.f32 %v288, 0.0
  %v353 = vmax.f32 %v289, 0.0
  %v354 = vmax.f32 %v290, 0.0
  %v355 = vpack.c.bf16 %v292, %v291
  %v356 = vpack.c.bf16 %v294, %v293
  %v357 = vpack.c.bf16 %v296, %v295
  %v358 = vpack.c.bf16 %v298, %v297
  %v359 = vpack.c.bf16 %v300, %v299
  %v360 = vpack.c.bf16 %v302, %v301
  %v361 = vpack.c.bf16 %v304, %v303
  %v362 = vpack.c.bf16 %v306, %v305
  %v363 = vpack.c.bf16 %v308, %v307
  %v364 = vpack.c.bf16 %v310, %v309
  %v365 = vpack.c.bf16 %v312, %v311
  %v366 = vpack.c.bf16 %v314, %v313
  %v367 = vpack.c.bf16 %v316, %v315
  %v368 = vpack.c.bf16 %v318, %v317
  %v369 = vpack.c.bf16 %v320, %v319
  %v370 = vpack.c.bf16 %v322, %v321
  %v371 = vpack.c.bf16 %v324, %v323
  %v372 = vpack.c.bf16 %v326, %v325
  %v373 = vpack.c.bf16 %v328, %v327
  %v374 = vpack.c.bf16 %v330, %v329
  %v375 = vpack.c.bf16 %v332, %v331
  %v376 = vpack.c.bf16 %v334, %v333
  %v377 = vpack.c.bf16 %v336, %v335
  %v378 = vpack.c.bf16 %v338, %v337
  %v379 = vpack.c.bf16 %v340, %v339
  %v380 = vpack.c.bf16 %v342, %v341
  %v381 = vpack.c.bf16 %v344, %v343
  %v382 = vpack.c.bf16 %v346, %v345
  %v383 = vpack.c.bf16 %v348, %v347
  %v384 = vpack.c.bf16 %v350, %v349
  %v385 = vpack.c.bf16 %v352, %v351
  %v386 = vpack.c.bf16 %v354, %v353
  %v387 = vld [vmem:[%s3] sm:$0xf]
  %v388 = vld [vmem:[%s3 + $0x4] sm:$0xf]
  %v389 = vld [vmem:[%s3 + $0x8] sm:$0xf]
  %v390 = vld [vmem:[%s3 + $0xc] sm:$0xf]
  %v391 = vld [vmem:[%s3 + $0x10] sm:$0xf]
  %v392 = vld [vmem:[%s3 + $0x14] sm:$0xf]
  %v393 = vld [vmem:[%s3 + $0x18] sm:$0xf]
  %v394 = vld [vmem:[%s3 + $0x1c] sm:$0xf]
  %v395 = vld [vmem:[%s3 + $0x20] sm:$0xf]
  %v396 = vld [vmem:[%s3 + $0x24] sm:$0xf]
  %v397 = vld [vmem:[%s3 + $0x28] sm:$0xf]
  %v398 = vld [vmem:[%s3 + $0x2c] sm:$0xf]
  %v399 = vld [vmem:[%s3 + $0x30] sm:$0xf]
  %v400 = vld [vmem:[%s3 + $0x34] sm:$0xf]
  %v401 = vld [vmem:[%s3 + $0x38] sm:$0xf]
  %v402 = vld [vmem:[%s3 + $0x3c] sm:$0xf]
  %v419 = vunpack.c.l.b16 %v387
  %v420 = vunpack.c.l.b16 %v388
  %v421 = vunpack.c.l.b16 %v389
  %v422 = vunpack.c.l.b16 %v390
  %v423 = vunpack.c.l.b16 %v391
  %v424 = vunpack.c.l.b16 %v392
  %v425 = vunpack.c.l.b16 %v393
  %v426 = vunpack.c.l.b16 %v394
  %v427 = vunpack.c.l.b16 %v395
  %v428 = vunpack.c.l.b16 %v396
  %v429 = vunpack.c.l.b16 %v397
  %v430 = vunpack.c.l.b16 %v398
  %v431 = vunpack.c.l.b16 %v399
  %v432 = vunpack.c.l.b16 %v400
  %v433 = vunpack.c.l.b16 %v401
  %v434 = vunpack.c.l.b16 %v402
  %v435 = vpack.c.b16 %v420, %v419
  %v436 = vpack.c.b16 %v422, %v421
  %v437 = vpack.c.b16 %v424, %v423
  %v438 = vpack.c.b16 %v426, %v425
  %v439 = vpack.c.b16 %v428, %v427
  %v440 = vpack.c.b16 %v430, %v429
  %v441 = vpack.c.b16 %v432, %v431
  %v442 = vpack.c.b16 %v434, %v433
  %451 = vmatpush.bf16.msra.mxu0 %v442
  %452 = vmatpush.bf16.msra.mxu0 %v441
  %453 = vmatpush.bf16.msra.mxu0 %v440
  %454 = vmatpush.bf16.msra.mxu0 %v439
  %455 = vmatpush.bf16.msra.mxu0 %v438
  %456 = vmatpush.bf16.msra.mxu0 %v437
  %457 = vmatpush.bf16.msra.mxu0 %v436
  %458 = vmatpush.bf16.msra.mxu0 %v435
  %459 = vmatmul.bf16.gmra.mxu0 %v355
  %v460 = vpop.f32.mrf.mxu0
  %v461 = vadd.f32 0.0, %v460
  %v462 = vpop.f32.mrf.mxu0
  %v463 = vadd.f32 0.0, %v462
  %464 = vmatmul.bf16.gmra.mxu0 %v356
  %v465 = vpop.f32.mrf.mxu0
  %v466 = vadd.f32 0.0, %v465
  %v467 = vpop.f32.mrf.mxu0
  %v468 = vadd.f32 0.0, %v467
  %469 = vmatmul.bf16.gmra.mxu0 %v357
  %v470 = vpop.f32.mrf.mxu0
  %v471 = vadd.f32 0.0, %v470
  %v472 = vpop.f32.mrf.mxu0
  %v473 = vadd.f32 0.0, %v472
  %474 = vmatmul.bf16.gmra.mxu0 %v358
  %v475 = vpop.f32.mrf.mxu0
  %v476 = vadd.f32 0.0, %v475
  %v477 = vpop.f32.mrf.mxu0
  %v478 = vadd.f32 0.0, %v477
  %479 = vmatmul.bf16.gmra.mxu0 %v359
  %v480 = vpop.f32.mrf.mxu0
  %v481 = vadd.f32 0.0, %v480
  %v482 = vpop.f32.mrf.mxu0
  %v483 = vadd.f32 0.0, %v482
  %484 = vmatmul.bf16.gmra.mxu0 %v360
  %v485 = vpop.f32.mrf.mxu0
  %v486 = vadd.f32 0.0, %v485
  %v487 = vpop.f32.mrf.mxu0
  %v488 = vadd.f32 0.0, %v487
  %489 = vmatmul.bf16.gmra.mxu0 %v361
  %v490 = vpop.f32.mrf.mxu0
  %v491 = vadd.f32 0.0, %v490
  %v492 = vpop.f32.mrf.mxu0
  %v493 = vadd.f32 0.0, %v492
  %494 = vmatmul.bf16.gmra.mxu0 %v362
  %v495 = vpop.f32.mrf.mxu0
  %v496 = vadd.f32 0.0, %v495
  %v497 = vpop.f32.mrf.mxu0
  %v498 = vadd.f32 0.0, %v497
  %499 = vmatmul.bf16.gmra.mxu0 %v363
  %v500 = vpop.f32.mrf.mxu0
  %v501 = vadd.f32 0.0, %v500
  %v502 = vpop.f32.mrf.mxu0
  %v503 = vadd.f32 0.0, %v502
  %504 = vmatmul.bf16.gmra.mxu0 %v364
  %v505 = vpop.f32.mrf.mxu0
  %v506 = vadd.f32 0.0, %v505
  %v507 = vpop.f32.mrf.mxu0
  %v508 = vadd.f32 0.0, %v507
  %509 = vmatmul.bf16.gmra.mxu0 %v365
  %v510 = vpop.f32.mrf.mxu0
  %v511 = vadd.f32 0.0, %v510
  %v512 = vpop.f32.mrf.mxu0
  %v513 = vadd.f32 0.0, %v512
  %514 = vmatmul.bf16.gmra.mxu0 %v366
  %v515 = vpop.f32.mrf.mxu0
  %v516 = vadd.f32 0.0, %v515
  %v517 = vpop.f32.mrf.mxu0
  %v518 = vadd.f32 0.0, %v517
  %519 = vmatmul.bf16.gmra.mxu0 %v367
  %v520 = vpop.f32.mrf.mxu0
  %v521 = vadd.f32 0.0, %v520
  %v522 = vpop.f32.mrf.mxu0
  %v523 = vadd.f32 0.0, %v522
  %524 = vmatmul.bf16.gmra.mxu0 %v368
  %v525 = vpop.f32.mrf.mxu0
  %v526 = vadd.f32 0.0, %v525
  %v527 = vpop.f32.mrf.mxu0
  %v528 = vadd.f32 0.0, %v527
  %529 = vmatmul.bf16.gmra.mxu0 %v369
  %v530 = vpop.f32.mrf.mxu0
  %v531 = vadd.f32 0.0, %v530
  %v532 = vpop.f32.mrf.mxu0
  %v533 = vadd.f32 0.0, %v532
  %534 = vmatmul.bf16.gmra.mxu0 %v370
  %v535 = vpop.f32.mrf.mxu0
  %v536 = vadd.f32 0.0, %v535
  %v537 = vpop.f32.mrf.mxu0
  %v538 = vadd.f32 0.0, %v537
  %539 = vmatmul.bf16.gmra.mxu0 %v371
  %v540 = vpop.f32.mrf.mxu0
  %v541 = vadd.f32 0.0, %v540
  %v542 = vpop.f32.mrf.mxu0
  %v543 = vadd.f32 0.0, %v542
  %544 = vmatmul.bf16.gmra.mxu0 %v372
  %v545 = vpop.f32.mrf.mxu0
  %v546 = vadd.f32 0.0, %v545
  %v547 = vpop.f32.mrf.mxu0
  %v548 = vadd.f32 0.0, %v547
  %549 = vmatmul.bf16.gmra.mxu0 %v373
  %v550 = vpop.f32.mrf.mxu0
  %v551 = vadd.f32 0.0, %v550
  %v552 = vpop.f32.mrf.mxu0
  %v553 = vadd.f32 0.0, %v552
  %554 = vmatmul.bf16.gmra.mxu0 %v374
  %v555 = vpop.f32.mrf.mxu0
  %v556 = vadd.f32 0.0, %v555
  %v557 = vpop.f32.mrf.mxu0
  %v558 = vadd.f32 0.0, %v557
  %559 = vmatmul.bf16.gmra.mxu0 %v375
  %v560 = vpop.f32.mrf.mxu0
  %v561 = vadd.f32 0.0, %v560
  %v562 = vpop.f32.mrf.mxu0
  %v563 = vadd.f32 0.0, %v562
  %564 = vmatmul.bf16.gmra.mxu0 %v376
  %v565 = vpop.f32.mrf.mxu0
  %v566 = vadd.f32 0.0, %v565
  %v567 = vpop.f32.mrf.mxu0
  %v568 = vadd.f32 0.0, %v567
  %569 = vmatmul.bf16.gmra.mxu0 %v377
  %v570 = vpop.f32.mrf.mxu0
  %v571 = vadd.f32 0.0, %v570
  %v572 = vpop.f32.mrf.mxu0
  %v573 = vadd.f32 0.0, %v572
  %574 = vmatmul.bf16.gmra.mxu0 %v378
  %v575 = vpop.f32.mrf.mxu0
  %v576 = vadd.f32 0.0, %v575
  %v577 = vpop.f32.mrf.mxu0
  %v578 = vadd.f32 0.0, %v577
  %579 = vmatmul.bf16.gmra.mxu0 %v379
  %v580 = vpop.f32.mrf.mxu0
  %v581 = vadd.f32 0.0, %v580
  %v582 = vpop.f32.mrf.mxu0
  %v583 = vadd.f32 0.0, %v582
  %584 = vmatmul.bf16.gmra.mxu0 %v380
  %v585 = vpop.f32.mrf.mxu0
  %v586 = vadd.f32 0.0, %v585
  %v587 = vpop.f32.mrf.mxu0
  %v588 = vadd.f32 0.0, %v587
  %589 = vmatmul.bf16.gmra.mxu0 %v381
  %v590 = vpop.f32.mrf.mxu0
  %v591 = vadd.f32 0.0, %v590
  %v592 = vpop.f32.mrf.mxu0
  %v593 = vadd.f32 0.0, %v592
  %594 = vmatmul.bf16.gmra.mxu0 %v382
  %v595 = vpop.f32.mrf.mxu0
  %v596 = vadd.f32 0.0, %v595
  %v597 = vpop.f32.mrf.mxu0
  %v598 = vadd.f32 0.0, %v597
  %599 = vmatmul.bf16.gmra.mxu0 %v383
  %v600 = vpop.f32.mrf.mxu0
  %v601 = vadd.f32 0.0, %v600
  %v602 = vpop.f32.mrf.mxu0
  %v603 = vadd.f32 0.0, %v602
  %604 = vmatmul.bf16.gmra.mxu0 %v384
  %v605 = vpop.f32.mrf.mxu0
  %v606 = vadd.f32 0.0, %v605
  %v607 = vpop.f32.mrf.mxu0
  %v608 = vadd.f32 0.0, %v607
  %609 = vmatmul.bf16.gmra.mxu0 %v385
  %v610 = vpop.f32.mrf.mxu0
  %v611 = vadd.f32 0.0, %v610
  %v612 = vpop.f32.mrf.mxu0
  %v613 = vadd.f32 0.0, %v612
  %614 = vmatmul.bf16.gmra.mxu0 %v386
  %v615 = vpop.f32.mrf.mxu0
  %v616 = vadd.f32 0.0, %v615
  %v617 = vpop.f32.mrf.mxu0
  %v618 = vadd.f32 0.0, %v617
  %619 = vdwg.mxu0
  %v620 = vpack.c.bf16 %v461, %v461
  %v621 = vpack.c.bf16 %v463, %v463
  %v622 = vpack.c.bf16 %v466, %v466
  %v623 = vpack.c.bf16 %v468, %v468
  %v624 = vpack.c.bf16 %v471, %v471
  %v625 = vpack.c.bf16 %v473, %v473
  %v626 = vpack.c.bf16 %v476, %v476
  %v627 = vpack.c.bf16 %v478, %v478
  %v628 = vpack.c.bf16 %v481, %v481
  %v629 = vpack.c.bf16 %v483, %v483
  %v630 = vpack.c.bf16 %v486, %v486
  %v631 = vpack.c.bf16 %v488, %v488
  %v632 = vpack.c.bf16 %v491, %v491
  %v633 = vpack.c.bf16 %v493, %v493
  %v634 = vpack.c.bf16 %v496, %v496
  %v635 = vpack.c.bf16 %v498, %v498
  %v636 = vpack.c.bf16 %v501, %v501
  %v637 = vpack.c.bf16 %v503, %v503
  %v638 = vpack.c.bf16 %v506, %v506
  %v639 = vpack.c.bf16 %v508, %v508
  %v640 = vpack.c.bf16 %v511, %v511
  %v641 = vpack.c.bf16 %v513, %v513
  %v642 = vpack.c.bf16 %v516, %v516
  %v643 = vpack.c.bf16 %v518, %v518
  %v644 = vpack.c.bf16 %v521, %v521
  %v645 = vpack.c.bf16 %v523, %v523
  %v646 = vpack.c.bf16 %v526, %v526
  %v647 = vpack.c.bf16 %v528, %v528
  %v648 = vpack.c.bf16 %v531, %v531
  %v649 = vpack.c.bf16 %v533, %v533
  %v650 = vpack.c.bf16 %v536, %v536
  %v651 = vpack.c.bf16 %v538, %v538
  %v652 = vpack.c.bf16 %v541, %v541
  %v653 = vpack.c.bf16 %v543, %v543
  %v654 = vpack.c.bf16 %v546, %v546
  %v655 = vpack.c.bf16 %v548, %v548
  %v656 = vpack.c.bf16 %v551, %v551
  %v657 = vpack.c.bf16 %v553, %v553
  %v658 = vpack.c.bf16 %v556, %v556
  %v659 = vpack.c.bf16 %v558, %v558
  %v660 = vpack.c.bf16 %v561, %v561
  %v661 = vpack.c.bf16 %v563, %v563
  %v662 = vpack.c.bf16 %v566, %v566
  %v663 = vpack.c.bf16 %v568, %v568
  %v664 = vpack.c.bf16 %v571, %v571
  %v665 = vpack.c.bf16 %v573, %v573
  %v666 = vpack.c.bf16 %v576, %v576
  %v667 = vpack.c.bf16 %v578, %v578
  %v668 = vpack.c.bf16 %v581, %v581
  %v669 = vpack.c.bf16 %v583, %v583
  %v670 = vpack.c.bf16 %v586, %v586
  %v671 = vpack.c.bf16 %v588, %v588
  %v672 = vpack.c.bf16 %v591, %v591
  %v673 = vpack.c.bf16 %v593, %v593
  %v674 = vpack.c.bf16 %v596, %v596
  %v675 = vpack.c.bf16 %v598, %v598
  %v676 = vpack.c.bf16 %v601, %v601
  %v677 = vpack.c.bf16 %v603, %v603
  %v678 = vpack.c.bf16 %v606, %v606
  %v679 = vpack.c.bf16 %v608, %v608
  %v680 = vpack.c.bf16 %v611, %v611
  %v681 = vpack.c.bf16 %v613, %v613
  %v682 = vpack.c.bf16 %v616, %v616
  %v683 = vpack.c.bf16 %v618, %v618
  %684 = vst [vmem:[%s6] sm:$0xf] %v620
  %685 = vst [vmem:[%s6 + $0x4] sm:$0xf] %v621
  %686 = vst [vmem:[%s6 + $0x8] sm:$0xf] %v622
  %687 = vst [vmem:[%s6 + $0xc] sm:$0xf] %v623
  %688 = vst [vmem:[%s6 + $0x10] sm:$0xf] %v624
  %689 = vst [vmem:[%s6 + $0x14] sm:$0xf] %v625
  %690 = vst [vmem:[%s6 + $0x18] sm:$0xf] %v626
  %691 = vst [vmem:[%s6 + $0x1c] sm:$0xf] %v627
  %692 = vst [vmem:[%s6 + $0x20] sm:$0xf] %v628
  %693 = vst [vmem:[%s6 + $0x24] sm:$0xf] %v629
  %694 = vst [vmem:[%s6 + $0x28] sm:$0xf] %v630
  %695 = vst [vmem:[%s6 + $0x2c] sm:$0xf] %v631
  %696 = vst [vmem:[%s6 + $0x30] sm:$0xf] %v632
  %697 = vst [vmem:[%s6 + $0x34] sm:$0xf] %v633
  %698 = vst [vmem:[%s6 + $0x38] sm:$0xf] %v634
  %699 = vst [vmem:[%s6 + $0x3c] sm:$0xf] %v635
  %700 = vst [vmem:[%s6 + $0x40] sm:$0xf] %v636
  %701 = vst [vmem:[%s6 + $0x44] sm:$0xf] %v637
  %702 = vst [vmem:[%s6 + $0x48] sm:$0xf] %v638
  %703 = vst [vmem:[%s6 + $0x4c] sm:$0xf] %v639
  %704 = vst [vmem:[%s6 + $0x50] sm:$0xf] %v640
  %705 = vst [vmem:[%s6 + $0x54] sm:$0xf] %v641
  %706 = vst [vmem:[%s6 + $0x58] sm:$0xf] %v642
  %707 = vst [vmem:[%s6 + $0x5c] sm:$0xf] %v643
  %708 = vst [vmem:[%s6 + $0x60] sm:$0xf] %v644
  %709 = vst [vmem:[%s6 + $0x64] sm:$0xf] %v645
  %710 = vst [vmem:[%s6 + $0x68] sm:$0xf] %v646
  %711 = vst [vmem:[%s6 + $0x6c] sm:$0xf] %v647
  %712 = vst [vmem:[%s6 + $0x70] sm:$0xf] %v648
  %713 = vst [vmem:[%s6 + $0x74] sm:$0xf] %v649
  %714 = vst [vmem:[%s6 + $0x78] sm:$0xf] %v650
  %715 = vst [vmem:[%s6 + $0x7c] sm:$0xf] %v651
  %716 = vst [vmem:[%s6 + $0x80] sm:$0xf] %v652
  %717 = vst [vmem:[%s6 + $0x84] sm:$0xf] %v653
  %718 = vst [vmem:[%s6 + $0x88] sm:$0xf] %v654
  %719 = vst [vmem:[%s6 + $0x8c] sm:$0xf] %v655
  %720 = vst [vmem:[%s6 + $0x90] sm:$0xf] %v656
  %721 = vst [vmem:[%s6 + $0x94] sm:$0xf] %v657
  %722 = vst [vmem:[%s6 + $0x98] sm:$0xf] %v658
  %723 = vst [vmem:[%s6 + $0x9c] sm:$0xf] %v659
  %724 = vst [vmem:[%s6 + $0xa0] sm:$0xf] %v660
  %725 = vst [vmem:[%s6 + $0xa4] sm:$0xf] %v661
  %726 = vst [vmem:[%s6 + $0xa8] sm:$0xf] %v662
  %727 = vst [vmem:[%s6 + $0xac] sm:$0xf] %v663
  %728 = vst [vmem:[%s6 + $0xb0] sm:$0xf] %v664
  %729 = vst [vmem:[%s6 + $0xb4] sm:$0xf] %v665
  %730 = vst [vmem:[%s6 + $0xb8] sm:$0xf] %v666
  %731 = vst [vmem:[%s6 + $0xbc] sm:$0xf] %v667
  %732 = vst [vmem:[%s6 + $0xc0] sm:$0xf] %v668
  %733 = vst [vmem:[%s6 + $0xc4] sm:$0xf] %v669
  %734 = vst [vmem:[%s6 + $0xc8] sm:$0xf] %v670
  %735 = vst [vmem:[%s6 + $0xcc] sm:$0xf] %v671
  %736 = vst [vmem:[%s6 + $0xd0] sm:$0xf] %v672
  %737 = vst [vmem:[%s6 + $0xd4] sm:$0xf] %v673
  %738 = vst [vmem:[%s6 + $0xd8] sm:$0xf] %v674
  %739 = vst [vmem:[%s6 + $0xdc] sm:$0xf] %v675
  %740 = vst [vmem:[%s6 + $0xe0] sm:$0xf] %v676
  %741 = vst [vmem:[%s6 + $0xe4] sm:$0xf] %v677
  %742 = vst [vmem:[%s6 + $0xe8] sm:$0xf] %v678
  %743 = vst [vmem:[%s6 + $0xec] sm:$0xf] %v679
  %744 = vst [vmem:[%s6 + $0xf0] sm:$0xf] %v680
  %745 = vst [vmem:[%s6 + $0xf4] sm:$0xf] %v681
  %746 = vst [vmem:[%s6 + $0xf8] sm:$0xf] %v682
  %747 = vst [vmem:[%s6 + $0xfc] sm:$0xf] %v683
  %v748 = vadd.f32 %v461, %v463
  %v749 = vadd.f32 %v748, %v466
  %v750 = vadd.f32 %v749, %v468
  %v751 = vadd.f32 %v750, %v471
  %v752 = vadd.f32 %v751, %v473
  %v753 = vadd.f32 %v752, %v476
  %v754 = vadd.f32 %v753, %v478
  %v755 = vadd.f32 %v754, %v481
  %v756 = vadd.f32 %v755, %v483
  %v757 = vadd.f32 %v756, %v486
  %v758 = vadd.f32 %v757, %v488
  %v759 = vadd.f32 %v758, %v491
  %v760 = vadd.f32 %v759, %v493
  %v761 = vadd.f32 %v760, %v496
  %v762 = vadd.f32 %v761, %v498
  %v763 = vadd.f32 %v762, %v501
  %v764 = vadd.f32 %v763, %v503
  %v765 = vadd.f32 %v764, %v506
  %v766 = vadd.f32 %v765, %v508
  %v767 = vadd.f32 %v766, %v511
  %v768 = vadd.f32 %v767, %v513
  %v769 = vadd.f32 %v768, %v516
  %v770 = vadd.f32 %v769, %v518
  %v771 = vadd.f32 %v770, %v521
  %v772 = vadd.f32 %v771, %v523
  %v773 = vadd.f32 %v772, %v526
  %v774 = vadd.f32 %v773, %v528
  %v775 = vadd.f32 %v774, %v531
  %v776 = vadd.f32 %v775, %v533
  %v777 = vadd.f32 %v776, %v536
  %v778 = vadd.f32 %v777, %v538
  %v779 = vadd.f32 %v778, %v541
  %v780 = vadd.f32 %v779, %v543
  %v781 = vadd.f32 %v780, %v546
  %v782 = vadd.f32 %v781, %v548
  %v783 = vadd.f32 %v782, %v551
  %v784 = vadd.f32 %v783, %v553
  %v785 = vadd.f32 %v784, %v556
  %v786 = vadd.f32 %v785, %v558
  %v787 = vadd.f32 %v786, %v561
  %v788 = vadd.f32 %v787, %v563
  %v789 = vadd.f32 %v788, %v566
  %v790 = vadd.f32 %v789, %v568
  %v791 = vadd.f32 %v790, %v571
  %v792 = vadd.f32 %v791, %v573
  %v793 = vadd.f32 %v792, %v576
  %v794 = vadd.f32 %v793, %v578
  %v795 = vadd.f32 %v794, %v581
  %v796 = vadd.f32 %v795, %v583
  %v797 = vadd.f32 %v796, %v586
  %v798 = vadd.f32 %v797, %v588
  %v799 = vadd.f32 %v798, %v591
  %v800 = vadd.f32 %v799, %v593
  %v801 = vadd.f32 %v800, %v596
  %v802 = vadd.f32 %v801, %v598
  %v803 = vadd.f32 %v802, %v601
  %v804 = vadd.f32 %v803, %v603
  %v805 = vadd.f32 %v804, %v606
  %v806 = vadd.f32 %v805, %v608
  %v807 = vadd.f32 %v806, %v611
  %v808 = vadd.f32 %v807, %v613
  %v809 = vadd.f32 %v808, %v616
  %v810 = vadd.f32 %v809, %v618
  %v811 = vrot.slane %v810, 4
  %v812 = vadd.f32 %v810, %v811
  %v813 = vrot.slane %v812, 2
  %v814 = vadd.f32 %v812, %v813
  %v815 = vrot.slane %v814, 1
  %v816 = vadd.f32 %v814, %v815
  %v817 = vmul.f32 %v461, %v461
  %v818 = vmul.f32 %v463, %v463
  %v819 = vmul.f32 %v466, %v466
  %v820 = vmul.f32 %v468, %v468
  %v821 = vmul.f32 %v471, %v471
  %v822 = vmul.f32 %v473, %v473
  %v823 = vmul.f32 %v476, %v476
  %v824 = vmul.f32 %v478, %v478
  %v825 = vmul.f32 %v481, %v481
  %v826 = vmul.f32 %v483, %v483
  %v827 = vmul.f32 %v486, %v486
  %v828 = vmul.f32 %v488, %v488
  %v829 = vmul.f32 %v491, %v491
  %v830 = vmul.f32 %v493, %v493
  %v831 = vmul.f32 %v496, %v496
  %v832 = vmul.f32 %v498, %v498
  %v833 = vmul.f32 %v501, %v501
  %v834 = vmul.f32 %v503, %v503
  %v835 = vmul.f32 %v506, %v506
  %v836 = vmul.f32 %v508, %v508
  %v837 = vmul.f32 %v511, %v511
  %v838 = vmul.f32 %v513, %v513
  %v839 = vmul.f32 %v516, %v516
  %v840 = vmul.f32 %v518, %v518
  %v841 = vmul.f32 %v521, %v521
  %v842 = vmul.f32 %v523, %v523
  %v843 = vmul.f32 %v526, %v526
  %v844 = vmul.f32 %v528, %v528
  %v845 = vmul.f32 %v531, %v531
  %v846 = vmul.f32 %v533, %v533
  %v847 = vmul.f32 %v536, %v536
  %v848 = vmul.f32 %v538, %v538
  %v849 = vmul.f32 %v541, %v541
  %v850 = vmul.f32 %v543, %v543
  %v851 = vmul.f32 %v546, %v546
  %v852 = vmul.f32 %v548, %v548
  %v853 = vmul.f32 %v551, %v551
  %v854 = vmul.f32 %v553, %v553
  %v855 = vmul.f32 %v556, %v556
  %v856 = vmul.f32 %v558, %v558
  %v857 = vmul.f32 %v561, %v561
  %v858 = vmul.f32 %v563, %v563
  %v859 = vmul.f32 %v566, %v566
  %v860 = vmul.f32 %v568, %v568
  %v861 = vmul.f32 %v571, %v571
  %v862 = vmul.f32 %v573, %v573
  %v863 = vmul.f32 %v576, %v576
  %v864 = vmul.f32 %v578, %v578
  %v865 = vmul.f32 %v581, %v581
  %v866 = vmul.f32 %v583, %v583
  %v867 = vmul.f32 %v586, %v586
  %v868 = vmul.f32 %v588, %v588
  %v869 = vmul.f32 %v591, %v591
  %v870 = vmul.f32 %v593, %v593
  %v871 = vmul.f32 %v596, %v596
  %v872 = vmul.f32 %v598, %v598
  %v873 = vmul.f32 %v601, %v601
  %v874 = vmul.f32 %v603, %v603
  %v875 = vmul.f32 %v606, %v606
  %v876 = vmul.f32 %v608, %v608
  %v877 = vmul.f32 %v611, %v611
  %v878 = vmul.f32 %v613, %v613
  %v879 = vmul.f32 %v616, %v616
  %v880 = vmul.f32 %v618, %v618
  %v881 = vadd.f32 %v817, %v818
  %v882 = vadd.f32 %v881, %v819
  %v883 = vadd.f32 %v882, %v820
  %v884 = vadd.f32 %v883, %v821
  %v885 = vadd.f32 %v884, %v822
  %v886 = vadd.f32 %v885, %v823
  %v887 = vadd.f32 %v886, %v824
  %v888 = vadd.f32 %v887, %v825
  %v889 = vadd.f32 %v888, %v826
  %v890 = vadd.f32 %v889, %v827
  %v891 = vadd.f32 %v890, %v828
  %v892 = vadd.f32 %v891, %v829
  %v893 = vadd.f32 %v892, %v830
  %v894 = vadd.f32 %v893, %v831
  %v895 = vadd.f32 %v894, %v832
  %v896 = vadd.f32 %v895, %v833
  %v897 = vadd.f32 %v896, %v834
  %v898 = vadd.f32 %v897, %v835
  %v899 = vadd.f32 %v898, %v836
  %v900 = vadd.f32 %v899, %v837
  %v901 = vadd.f32 %v900, %v838
  %v902 = vadd.f32 %v901, %v839
  %v903 = vadd.f32 %v902, %v840
  %v904 = vadd.f32 %v903, %v841
  %v905 = vadd.f32 %v904, %v842
  %v906 = vadd.f32 %v905, %v843
  %v907 = vadd.f32 %v906, %v844
  %v908 = vadd.f32 %v907, %v845
  %v909 = vadd.f32 %v908, %v846
  %v910 = vadd.f32 %v909, %v847
  %v911 = vadd.f32 %v910, %v848
  %v912 = vadd.f32 %v911, %v849
  %v913 = vadd.f32 %v912, %v850
  %v914 = vadd.f32 %v913, %v851
  %v915 = vadd.f32 %v914, %v852
  %v916 = vadd.f32 %v915, %v853
  %v917 = vadd.f32 %v916, %v854
  %v918 = vadd.f32 %v917, %v855
  %v919 = vadd.f32 %v918, %v856
  %v920 = vadd.f32 %v919, %v857
  %v921 = vadd.f32 %v920, %v858
  %v922 = vadd.f32 %v921, %v859
  %v923 = vadd.f32 %v922, %v860
  %v924 = vadd.f32 %v923, %v861
  %v925 = vadd.f32 %v924, %v862
  %v926 = vadd.f32 %v925, %v863
  %v927 = vadd.f32 %v926, %v864
  %v928 = vadd.f32 %v927, %v865
  %v929 = vadd.f32 %v928, %v866
  %v930 = vadd.f32 %v929, %v867
  %v931 = vadd.f32 %v930, %v868
  %v932 = vadd.f32 %v931, %v869
  %v933 = vadd.f32 %v932, %v870
  %v934 = vadd.f32 %v933, %v871
  %v935 = vadd.f32 %v934, %v872
  %v936 = vadd.f32 %v935, %v873
  %v937 = vadd.f32 %v936, %v874
  %v938 = vadd.f32 %v937, %v875
  %v939 = vadd.f32 %v938, %v876
  %v940 = vadd.f32 %v939, %v877
  %v941 = vadd.f32 %v940, %v878
  %v942 = vadd.f32 %v941, %v879
  %v943 = vadd.f32 %v942, %v880
  %v944 = vrot.slane %v943, 4
  %v945 = vadd.f32 %v943, %v944
  %v946 = vrot.slane %v945, 2
  %v947 = vadd.f32 %v945, %v946
  %v948 = vrot.slane %v947, 1
  %v949 = vadd.f32 %v947, %v948
  %vm950 = vcmask 1040384
  %v951 = vsel %vm950, %v816, %v949
  %952 = vst [vmem:[%s8] sm:$0x3] %v951
  %v953 = vld [vmem:[%s4] sm:$0xf]
  %v954 = vld [vmem:[%s4 + $0x4] sm:$0xf]
  %v955 = vld [vmem:[%s4 + $0x8] sm:$0xf]
  %v956 = vld [vmem:[%s4 + $0xc] sm:$0xf]
  %v957 = vld [vmem:[%s4 + $0x10] sm:$0xf]
  %v958 = vld [vmem:[%s4 + $0x14] sm:$0xf]
  %v959 = vld [vmem:[%s4 + $0x18] sm:$0xf]
  %v960 = vld [vmem:[%s4 + $0x1c] sm:$0xf]
  %v961 = vld [vmem:[%s4 + $0x20] sm:$0xf]
  %v962 = vld [vmem:[%s4 + $0x24] sm:$0xf]
  %v963 = vld [vmem:[%s4 + $0x28] sm:$0xf]
  %v964 = vld [vmem:[%s4 + $0x2c] sm:$0xf]
  %v965 = vld [vmem:[%s4 + $0x30] sm:$0xf]
  %v966 = vld [vmem:[%s4 + $0x34] sm:$0xf]
  %v967 = vld [vmem:[%s4 + $0x38] sm:$0xf]
  %v968 = vld [vmem:[%s4 + $0x3c] sm:$0xf]
  %v969 = vld [vmem:[%s4 + $0x40] sm:$0xf]
  %v970 = vld [vmem:[%s4 + $0x44] sm:$0xf]
  %v971 = vld [vmem:[%s4 + $0x48] sm:$0xf]
  %v972 = vld [vmem:[%s4 + $0x4c] sm:$0xf]
  %v973 = vld [vmem:[%s4 + $0x50] sm:$0xf]
  %v974 = vld [vmem:[%s4 + $0x54] sm:$0xf]
  %v975 = vld [vmem:[%s4 + $0x58] sm:$0xf]
  %v976 = vld [vmem:[%s4 + $0x5c] sm:$0xf]
  %v977 = vld [vmem:[%s4 + $0x60] sm:$0xf]
  %v978 = vld [vmem:[%s4 + $0x64] sm:$0xf]
  %v979 = vld [vmem:[%s4 + $0x68] sm:$0xf]
  %v980 = vld [vmem:[%s4 + $0x6c] sm:$0xf]
  %v981 = vld [vmem:[%s4 + $0x70] sm:$0xf]
  %v982 = vld [vmem:[%s4 + $0x74] sm:$0xf]
  %v983 = vld [vmem:[%s4 + $0x78] sm:$0xf]
  %v984 = vld [vmem:[%s4 + $0x7c] sm:$0xf]
  %v985 = vld [vmem:[%s4 + $0x80] sm:$0xf]
  %v986 = vld [vmem:[%s4 + $0x84] sm:$0xf]
  %v987 = vld [vmem:[%s4 + $0x88] sm:$0xf]
  %v988 = vld [vmem:[%s4 + $0x8c] sm:$0xf]
  %v989 = vld [vmem:[%s4 + $0x90] sm:$0xf]
  %v990 = vld [vmem:[%s4 + $0x94] sm:$0xf]
  %v991 = vld [vmem:[%s4 + $0x98] sm:$0xf]
  %v992 = vld [vmem:[%s4 + $0x9c] sm:$0xf]
  %v993 = vld [vmem:[%s4 + $0xa0] sm:$0xf]
  %v994 = vld [vmem:[%s4 + $0xa4] sm:$0xf]
  %v995 = vld [vmem:[%s4 + $0xa8] sm:$0xf]
  %v996 = vld [vmem:[%s4 + $0xac] sm:$0xf]
  %v997 = vld [vmem:[%s4 + $0xb0] sm:$0xf]
  %v998 = vld [vmem:[%s4 + $0xb4] sm:$0xf]
  %v999 = vld [vmem:[%s4 + $0xb8] sm:$0xf]
  %v1000 = vld [vmem:[%s4 + $0xbc] sm:$0xf]
  %v1001 = vld [vmem:[%s4 + $0xc0] sm:$0xf]
  %v1002 = vld [vmem:[%s4 + $0xc4] sm:$0xf]
  %v1003 = vld [vmem:[%s4 + $0xc8] sm:$0xf]
  %v1004 = vld [vmem:[%s4 + $0xcc] sm:$0xf]
  %v1005 = vld [vmem:[%s4 + $0xd0] sm:$0xf]
  %v1006 = vld [vmem:[%s4 + $0xd4] sm:$0xf]
  %v1007 = vld [vmem:[%s4 + $0xd8] sm:$0xf]
  %v1008 = vld [vmem:[%s4 + $0xdc] sm:$0xf]
  %v1009 = vld [vmem:[%s4 + $0xe0] sm:$0xf]
  %v1010 = vld [vmem:[%s4 + $0xe4] sm:$0xf]
  %v1011 = vld [vmem:[%s4 + $0xe8] sm:$0xf]
  %v1012 = vld [vmem:[%s4 + $0xec] sm:$0xf]
  %v1013 = vld [vmem:[%s4 + $0xf0] sm:$0xf]
  %v1014 = vld [vmem:[%s4 + $0xf4] sm:$0xf]
  %v1015 = vld [vmem:[%s4 + $0xf8] sm:$0xf]
  %v1016 = vld [vmem:[%s4 + $0xfc] sm:$0xf]
  %v1017 = vld [vmem:[%s5] sm:$0xf]
  %v1018 = vld [vmem:[%s5 + $0x4] sm:$0xf]
  %v1019 = vld [vmem:[%s5 + $0x8] sm:$0xf]
  %v1020 = vld [vmem:[%s5 + $0xc] sm:$0xf]
  %v1021 = vld [vmem:[%s5 + $0x10] sm:$0xf]
  %v1022 = vld [vmem:[%s5 + $0x14] sm:$0xf]
  %v1023 = vld [vmem:[%s5 + $0x18] sm:$0xf]
  %v1024 = vld [vmem:[%s5 + $0x1c] sm:$0xf]
  %v1025 = vld [vmem:[%s5 + $0x20] sm:$0xf]
  %v1026 = vld [vmem:[%s5 + $0x24] sm:$0xf]
  %v1027 = vld [vmem:[%s5 + $0x28] sm:$0xf]
  %v1028 = vld [vmem:[%s5 + $0x2c] sm:$0xf]
  %v1029 = vld [vmem:[%s5 + $0x30] sm:$0xf]
  %v1030 = vld [vmem:[%s5 + $0x34] sm:$0xf]
  %v1031 = vld [vmem:[%s5 + $0x38] sm:$0xf]
  %v1032 = vld [vmem:[%s5 + $0x3c] sm:$0xf]
  %v1097 = vunpack.c.l.b16 %v953
  %v1098 = vunpack.c.l.b16 %v954
  %v1099 = vunpack.c.l.b16 %v955
  %v1100 = vunpack.c.l.b16 %v956
  %v1101 = vunpack.c.l.b16 %v957
  %v1102 = vunpack.c.l.b16 %v958
  %v1103 = vunpack.c.l.b16 %v959
  %v1104 = vunpack.c.l.b16 %v960
  %v1105 = vunpack.c.l.b16 %v961
  %v1106 = vunpack.c.l.b16 %v962
  %v1107 = vunpack.c.l.b16 %v963
  %v1108 = vunpack.c.l.b16 %v964
  %v1109 = vunpack.c.l.b16 %v965
  %v1110 = vunpack.c.l.b16 %v966
  %v1111 = vunpack.c.l.b16 %v967
  %v1112 = vunpack.c.l.b16 %v968
  %v1113 = vunpack.c.l.b16 %v969
  %v1114 = vunpack.c.l.b16 %v970
  %v1115 = vunpack.c.l.b16 %v971
  %v1116 = vunpack.c.l.b16 %v972
  %v1117 = vunpack.c.l.b16 %v973
  %v1118 = vunpack.c.l.b16 %v974
  %v1119 = vunpack.c.l.b16 %v975
  %v1120 = vunpack.c.l.b16 %v976
  %v1121 = vunpack.c.l.b16 %v977
  %v1122 = vunpack.c.l.b16 %v978
  %v1123 = vunpack.c.l.b16 %v979
  %v1124 = vunpack.c.l.b16 %v980
  %v1125 = vunpack.c.l.b16 %v981
  %v1126 = vunpack.c.l.b16 %v982
  %v1127 = vunpack.c.l.b16 %v983
  %v1128 = vunpack.c.l.b16 %v984
  %v1129 = vunpack.c.l.b16 %v985
  %v1130 = vunpack.c.l.b16 %v986
  %v1131 = vunpack.c.l.b16 %v987
  %v1132 = vunpack.c.l.b16 %v988
  %v1133 = vunpack.c.l.b16 %v989
  %v1134 = vunpack.c.l.b16 %v990
  %v1135 = vunpack.c.l.b16 %v991
  %v1136 = vunpack.c.l.b16 %v992
  %v1137 = vunpack.c.l.b16 %v993
  %v1138 = vunpack.c.l.b16 %v994
  %v1139 = vunpack.c.l.b16 %v995
  %v1140 = vunpack.c.l.b16 %v996
  %v1141 = vunpack.c.l.b16 %v997
  %v1142 = vunpack.c.l.b16 %v998
  %v1143 = vunpack.c.l.b16 %v999
  %v1144 = vunpack.c.l.b16 %v1000
  %v1145 = vunpack.c.l.b16 %v1001
  %v1146 = vunpack.c.l.b16 %v1002
  %v1147 = vunpack.c.l.b16 %v1003
  %v1148 = vunpack.c.l.b16 %v1004
  %v1149 = vunpack.c.l.b16 %v1005
  %v1150 = vunpack.c.l.b16 %v1006
  %v1151 = vunpack.c.l.b16 %v1007
  %v1152 = vunpack.c.l.b16 %v1008
  %v1153 = vunpack.c.l.b16 %v1009
  %v1154 = vunpack.c.l.b16 %v1010
  %v1155 = vunpack.c.l.b16 %v1011
  %v1156 = vunpack.c.l.b16 %v1012
  %v1157 = vunpack.c.l.b16 %v1013
  %v1158 = vunpack.c.l.b16 %v1014
  %v1159 = vunpack.c.l.b16 %v1015
  %v1160 = vunpack.c.l.b16 %v1016
  %v1161 = vpack.c.b16 %v1098, %v1097
  %v1162 = vpack.c.b16 %v1100, %v1099
  %v1163 = vpack.c.b16 %v1102, %v1101
  %v1164 = vpack.c.b16 %v1104, %v1103
  %v1165 = vpack.c.b16 %v1106, %v1105
  %v1166 = vpack.c.b16 %v1108, %v1107
  %v1167 = vpack.c.b16 %v1110, %v1109
  %v1168 = vpack.c.b16 %v1112, %v1111
  %v1169 = vpack.c.b16 %v1114, %v1113
  %v1170 = vpack.c.b16 %v1116, %v1115
  %v1171 = vpack.c.b16 %v1118, %v1117
  %v1172 = vpack.c.b16 %v1120, %v1119
  %v1173 = vpack.c.b16 %v1122, %v1121
  %v1174 = vpack.c.b16 %v1124, %v1123
  %v1175 = vpack.c.b16 %v1126, %v1125
  %v1176 = vpack.c.b16 %v1128, %v1127
  %v1177 = vpack.c.b16 %v1130, %v1129
  %v1178 = vpack.c.b16 %v1132, %v1131
  %v1179 = vpack.c.b16 %v1134, %v1133
  %v1180 = vpack.c.b16 %v1136, %v1135
  %v1181 = vpack.c.b16 %v1138, %v1137
  %v1182 = vpack.c.b16 %v1140, %v1139
  %v1183 = vpack.c.b16 %v1142, %v1141
  %v1184 = vpack.c.b16 %v1144, %v1143
  %v1185 = vpack.c.b16 %v1146, %v1145
  %v1186 = vpack.c.b16 %v1148, %v1147
  %v1187 = vpack.c.b16 %v1150, %v1149
  %v1188 = vpack.c.b16 %v1152, %v1151
  %v1189 = vpack.c.b16 %v1154, %v1153
  %v1190 = vpack.c.b16 %v1156, %v1155
  %v1191 = vpack.c.b16 %v1158, %v1157
  %v1192 = vpack.c.b16 %v1160, %v1159
  %v1241 = vunpack.c.l.b16 %v1017
  %v1242 = vunpack.c.l.b16 %v1018
  %v1243 = vunpack.c.l.b16 %v1019
  %v1244 = vunpack.c.l.b16 %v1020
  %v1245 = vunpack.c.l.b16 %v1021
  %v1246 = vunpack.c.l.b16 %v1022
  %v1247 = vunpack.c.l.b16 %v1023
  %v1248 = vunpack.c.l.b16 %v1024
  %v1249 = vunpack.c.l.b16 %v1025
  %v1250 = vunpack.c.l.b16 %v1026
  %v1251 = vunpack.c.l.b16 %v1027
  %v1252 = vunpack.c.l.b16 %v1028
  %v1253 = vunpack.c.l.b16 %v1029
  %v1254 = vunpack.c.l.b16 %v1030
  %v1255 = vunpack.c.l.b16 %v1031
  %v1256 = vunpack.c.l.b16 %v1032
  %v1257 = vpack.c.b16 %v1242, %v1241
  %v1258 = vpack.c.b16 %v1244, %v1243
  %v1259 = vpack.c.b16 %v1246, %v1245
  %v1260 = vpack.c.b16 %v1248, %v1247
  %v1261 = vpack.c.b16 %v1250, %v1249
  %v1262 = vpack.c.b16 %v1252, %v1251
  %v1263 = vpack.c.b16 %v1254, %v1253
  %v1264 = vpack.c.b16 %v1256, %v1255
  %1273 = vmatpush.bf16.msra.mxu0 %v1264
  %1274 = vmatpush.bf16.msra.mxu0 %v1263
  %1275 = vmatpush.bf16.msra.mxu0 %v1262
  %1276 = vmatpush.bf16.msra.mxu0 %v1261
  %1277 = vmatpush.bf16.msra.mxu0 %v1260
  %1278 = vmatpush.bf16.msra.mxu0 %v1259
  %1279 = vmatpush.bf16.msra.mxu0 %v1258
  %1280 = vmatpush.bf16.msra.mxu0 %v1257
  %1281 = vmatmul.bf16.gmra.mxu0 %v1161
  %v1282 = vpop.f32.mrf.mxu0
  %v1283 = vadd.f32 0.0, %v1282
  %v1284 = vpop.f32.mrf.mxu0
  %v1285 = vadd.f32 0.0, %v1284
  %1286 = vmatmul.bf16.gmra.mxu0 %v1162
  %v1287 = vpop.f32.mrf.mxu0
  %v1288 = vadd.f32 0.0, %v1287
  %v1289 = vpop.f32.mrf.mxu0
  %v1290 = vadd.f32 0.0, %v1289
  %1291 = vmatmul.bf16.gmra.mxu0 %v1163
  %v1292 = vpop.f32.mrf.mxu0
  %v1293 = vadd.f32 0.0, %v1292
  %v1294 = vpop.f32.mrf.mxu0
  %v1295 = vadd.f32 0.0, %v1294
  %1296 = vmatmul.bf16.gmra.mxu0 %v1164
  %v1297 = vpop.f32.mrf.mxu0
  %v1298 = vadd.f32 0.0, %v1297
  %v1299 = vpop.f32.mrf.mxu0
  %v1300 = vadd.f32 0.0, %v1299
  %1301 = vmatmul.bf16.gmra.mxu0 %v1165
  %v1302 = vpop.f32.mrf.mxu0
  %v1303 = vadd.f32 0.0, %v1302
  %v1304 = vpop.f32.mrf.mxu0
  %v1305 = vadd.f32 0.0, %v1304
  %1306 = vmatmul.bf16.gmra.mxu0 %v1166
  %v1307 = vpop.f32.mrf.mxu0
  %v1308 = vadd.f32 0.0, %v1307
  %v1309 = vpop.f32.mrf.mxu0
  %v1310 = vadd.f32 0.0, %v1309
  %1311 = vmatmul.bf16.gmra.mxu0 %v1167
  %v1312 = vpop.f32.mrf.mxu0
  %v1313 = vadd.f32 0.0, %v1312
  %v1314 = vpop.f32.mrf.mxu0
  %v1315 = vadd.f32 0.0, %v1314
  %1316 = vmatmul.bf16.gmra.mxu0 %v1168
  %v1317 = vpop.f32.mrf.mxu0
  %v1318 = vadd.f32 0.0, %v1317
  %v1319 = vpop.f32.mrf.mxu0
  %v1320 = vadd.f32 0.0, %v1319
  %1321 = vmatmul.bf16.gmra.mxu0 %v1169
  %v1322 = vpop.f32.mrf.mxu0
  %v1323 = vadd.f32 0.0, %v1322
  %v1324 = vpop.f32.mrf.mxu0
  %v1325 = vadd.f32 0.0, %v1324
  %1326 = vmatmul.bf16.gmra.mxu0 %v1170
  %v1327 = vpop.f32.mrf.mxu0
  %v1328 = vadd.f32 0.0, %v1327
  %v1329 = vpop.f32.mrf.mxu0
  %v1330 = vadd.f32 0.0, %v1329
  %1331 = vmatmul.bf16.gmra.mxu0 %v1171
  %v1332 = vpop.f32.mrf.mxu0
  %v1333 = vadd.f32 0.0, %v1332
  %v1334 = vpop.f32.mrf.mxu0
  %v1335 = vadd.f32 0.0, %v1334
  %1336 = vmatmul.bf16.gmra.mxu0 %v1172
  %v1337 = vpop.f32.mrf.mxu0
  %v1338 = vadd.f32 0.0, %v1337
  %v1339 = vpop.f32.mrf.mxu0
  %v1340 = vadd.f32 0.0, %v1339
  %1341 = vmatmul.bf16.gmra.mxu0 %v1173
  %v1342 = vpop.f32.mrf.mxu0
  %v1343 = vadd.f32 0.0, %v1342
  %v1344 = vpop.f32.mrf.mxu0
  %v1345 = vadd.f32 0.0, %v1344
  %1346 = vmatmul.bf16.gmra.mxu0 %v1174
  %v1347 = vpop.f32.mrf.mxu0
  %v1348 = vadd.f32 0.0, %v1347
  %v1349 = vpop.f32.mrf.mxu0
  %v1350 = vadd.f32 0.0, %v1349
  %1351 = vmatmul.bf16.gmra.mxu0 %v1175
  %v1352 = vpop.f32.mrf.mxu0
  %v1353 = vadd.f32 0.0, %v1352
  %v1354 = vpop.f32.mrf.mxu0
  %v1355 = vadd.f32 0.0, %v1354
  %1356 = vmatmul.bf16.gmra.mxu0 %v1176
  %v1357 = vpop.f32.mrf.mxu0
  %v1358 = vadd.f32 0.0, %v1357
  %v1359 = vpop.f32.mrf.mxu0
  %v1360 = vadd.f32 0.0, %v1359
  %1361 = vmatmul.bf16.gmra.mxu0 %v1177
  %v1362 = vpop.f32.mrf.mxu0
  %v1363 = vadd.f32 0.0, %v1362
  %v1364 = vpop.f32.mrf.mxu0
  %v1365 = vadd.f32 0.0, %v1364
  %1366 = vmatmul.bf16.gmra.mxu0 %v1178
  %v1367 = vpop.f32.mrf.mxu0
  %v1368 = vadd.f32 0.0, %v1367
  %v1369 = vpop.f32.mrf.mxu0
  %v1370 = vadd.f32 0.0, %v1369
  %1371 = vmatmul.bf16.gmra.mxu0 %v1179
  %v1372 = vpop.f32.mrf.mxu0
  %v1373 = vadd.f32 0.0, %v1372
  %v1374 = vpop.f32.mrf.mxu0
  %v1375 = vadd.f32 0.0, %v1374
  %1376 = vmatmul.bf16.gmra.mxu0 %v1180
  %v1377 = vpop.f32.mrf.mxu0
  %v1378 = vadd.f32 0.0, %v1377
  %v1379 = vpop.f32.mrf.mxu0
  %v1380 = vadd.f32 0.0, %v1379
  %1381 = vmatmul.bf16.gmra.mxu0 %v1181
  %v1382 = vpop.f32.mrf.mxu0
  %v1383 = vadd.f32 0.0, %v1382
  %v1384 = vpop.f32.mrf.mxu0
  %v1385 = vadd.f32 0.0, %v1384
  %1386 = vmatmul.bf16.gmra.mxu0 %v1182
  %v1387 = vpop.f32.mrf.mxu0
  %v1388 = vadd.f32 0.0, %v1387
  %v1389 = vpop.f32.mrf.mxu0
  %v1390 = vadd.f32 0.0, %v1389
  %1391 = vmatmul.bf16.gmra.mxu0 %v1183
  %v1392 = vpop.f32.mrf.mxu0
  %v1393 = vadd.f32 0.0, %v1392
  %v1394 = vpop.f32.mrf.mxu0
  %v1395 = vadd.f32 0.0, %v1394
  %1396 = vmatmul.bf16.gmra.mxu0 %v1184
  %v1397 = vpop.f32.mrf.mxu0
  %v1398 = vadd.f32 0.0, %v1397
  %v1399 = vpop.f32.mrf.mxu0
  %v1400 = vadd.f32 0.0, %v1399
  %1401 = vmatmul.bf16.gmra.mxu0 %v1185
  %v1402 = vpop.f32.mrf.mxu0
  %v1403 = vadd.f32 0.0, %v1402
  %v1404 = vpop.f32.mrf.mxu0
  %v1405 = vadd.f32 0.0, %v1404
  %1406 = vmatmul.bf16.gmra.mxu0 %v1186
  %v1407 = vpop.f32.mrf.mxu0
  %v1408 = vadd.f32 0.0, %v1407
  %v1409 = vpop.f32.mrf.mxu0
  %v1410 = vadd.f32 0.0, %v1409
  %1411 = vmatmul.bf16.gmra.mxu0 %v1187
  %v1412 = vpop.f32.mrf.mxu0
  %v1413 = vadd.f32 0.0, %v1412
  %v1414 = vpop.f32.mrf.mxu0
  %v1415 = vadd.f32 0.0, %v1414
  %1416 = vmatmul.bf16.gmra.mxu0 %v1188
  %v1417 = vpop.f32.mrf.mxu0
  %v1418 = vadd.f32 0.0, %v1417
  %v1419 = vpop.f32.mrf.mxu0
  %v1420 = vadd.f32 0.0, %v1419
  %1421 = vmatmul.bf16.gmra.mxu0 %v1189
  %v1422 = vpop.f32.mrf.mxu0
  %v1423 = vadd.f32 0.0, %v1422
  %v1424 = vpop.f32.mrf.mxu0
  %v1425 = vadd.f32 0.0, %v1424
  %1426 = vmatmul.bf16.gmra.mxu0 %v1190
  %v1427 = vpop.f32.mrf.mxu0
  %v1428 = vadd.f32 0.0, %v1427
  %v1429 = vpop.f32.mrf.mxu0
  %v1430 = vadd.f32 0.0, %v1429
  %1431 = vmatmul.bf16.gmra.mxu0 %v1191
  %v1432 = vpop.f32.mrf.mxu0
  %v1433 = vadd.f32 0.0, %v1432
  %v1434 = vpop.f32.mrf.mxu0
  %v1435 = vadd.f32 0.0, %v1434
  %1436 = vmatmul.bf16.gmra.mxu0 %v1192
  %v1437 = vpop.f32.mrf.mxu0
  %v1438 = vadd.f32 0.0, %v1437
  %v1439 = vpop.f32.mrf.mxu0
  %v1440 = vadd.f32 0.0, %v1439
  %1441 = vdwg.mxu0
  %v1442 = vpack.c.bf16 %v1283, %v1283
  %v1443 = vpack.c.bf16 %v1285, %v1285
  %v1444 = vpack.c.bf16 %v1288, %v1288
  %v1445 = vpack.c.bf16 %v1290, %v1290
  %v1446 = vpack.c.bf16 %v1293, %v1293
  %v1447 = vpack.c.bf16 %v1295, %v1295
  %v1448 = vpack.c.bf16 %v1298, %v1298
  %v1449 = vpack.c.bf16 %v1300, %v1300
  %v1450 = vpack.c.bf16 %v1303, %v1303
  %v1451 = vpack.c.bf16 %v1305, %v1305
  %v1452 = vpack.c.bf16 %v1308, %v1308
  %v1453 = vpack.c.bf16 %v1310, %v1310
  %v1454 = vpack.c.bf16 %v1313, %v1313
  %v1455 = vpack.c.bf16 %v1315, %v1315
  %v1456 = vpack.c.bf16 %v1318, %v1318
  %v1457 = vpack.c.bf16 %v1320, %v1320
  %v1458 = vpack.c.bf16 %v1323, %v1323
  %v1459 = vpack.c.bf16 %v1325, %v1325
  %v1460 = vpack.c.bf16 %v1328, %v1328
  %v1461 = vpack.c.bf16 %v1330, %v1330
  %v1462 = vpack.c.bf16 %v1333, %v1333
  %v1463 = vpack.c.bf16 %v1335, %v1335
  %v1464 = vpack.c.bf16 %v1338, %v1338
  %v1465 = vpack.c.bf16 %v1340, %v1340
  %v1466 = vpack.c.bf16 %v1343, %v1343
  %v1467 = vpack.c.bf16 %v1345, %v1345
  %v1468 = vpack.c.bf16 %v1348, %v1348
  %v1469 = vpack.c.bf16 %v1350, %v1350
  %v1470 = vpack.c.bf16 %v1353, %v1353
  %v1471 = vpack.c.bf16 %v1355, %v1355
  %v1472 = vpack.c.bf16 %v1358, %v1358
  %v1473 = vpack.c.bf16 %v1360, %v1360
  %v1474 = vpack.c.bf16 %v1363, %v1363
  %v1475 = vpack.c.bf16 %v1365, %v1365
  %v1476 = vpack.c.bf16 %v1368, %v1368
  %v1477 = vpack.c.bf16 %v1370, %v1370
  %v1478 = vpack.c.bf16 %v1373, %v1373
  %v1479 = vpack.c.bf16 %v1375, %v1375
  %v1480 = vpack.c.bf16 %v1378, %v1378
  %v1481 = vpack.c.bf16 %v1380, %v1380
  %v1482 = vpack.c.bf16 %v1383, %v1383
  %v1483 = vpack.c.bf16 %v1385, %v1385
  %v1484 = vpack.c.bf16 %v1388, %v1388
  %v1485 = vpack.c.bf16 %v1390, %v1390
  %v1486 = vpack.c.bf16 %v1393, %v1393
  %v1487 = vpack.c.bf16 %v1395, %v1395
  %v1488 = vpack.c.bf16 %v1398, %v1398
  %v1489 = vpack.c.bf16 %v1400, %v1400
  %v1490 = vpack.c.bf16 %v1403, %v1403
  %v1491 = vpack.c.bf16 %v1405, %v1405
  %v1492 = vpack.c.bf16 %v1408, %v1408
  %v1493 = vpack.c.bf16 %v1410, %v1410
  %v1494 = vpack.c.bf16 %v1413, %v1413
  %v1495 = vpack.c.bf16 %v1415, %v1415
  %v1496 = vpack.c.bf16 %v1418, %v1418
  %v1497 = vpack.c.bf16 %v1420, %v1420
  %v1498 = vpack.c.bf16 %v1423, %v1423
  %v1499 = vpack.c.bf16 %v1425, %v1425
  %v1500 = vpack.c.bf16 %v1428, %v1428
  %v1501 = vpack.c.bf16 %v1430, %v1430
  %v1502 = vpack.c.bf16 %v1433, %v1433
  %v1503 = vpack.c.bf16 %v1435, %v1435
  %v1504 = vpack.c.bf16 %v1438, %v1438
  %v1505 = vpack.c.bf16 %v1440, %v1440
  %1506 = vst [vmem:[%s7] sm:$0xf] %v1442
  %1507 = vst [vmem:[%s7 + $0x4] sm:$0xf] %v1443
  %1508 = vst [vmem:[%s7 + $0x8] sm:$0xf] %v1444
  %1509 = vst [vmem:[%s7 + $0xc] sm:$0xf] %v1445
  %1510 = vst [vmem:[%s7 + $0x10] sm:$0xf] %v1446
  %1511 = vst [vmem:[%s7 + $0x14] sm:$0xf] %v1447
  %1512 = vst [vmem:[%s7 + $0x18] sm:$0xf] %v1448
  %1513 = vst [vmem:[%s7 + $0x1c] sm:$0xf] %v1449
  %1514 = vst [vmem:[%s7 + $0x20] sm:$0xf] %v1450
  %1515 = vst [vmem:[%s7 + $0x24] sm:$0xf] %v1451
  %1516 = vst [vmem:[%s7 + $0x28] sm:$0xf] %v1452
  %1517 = vst [vmem:[%s7 + $0x2c] sm:$0xf] %v1453
  %1518 = vst [vmem:[%s7 + $0x30] sm:$0xf] %v1454
  %1519 = vst [vmem:[%s7 + $0x34] sm:$0xf] %v1455
  %1520 = vst [vmem:[%s7 + $0x38] sm:$0xf] %v1456
  %1521 = vst [vmem:[%s7 + $0x3c] sm:$0xf] %v1457
  %1522 = vst [vmem:[%s7 + $0x40] sm:$0xf] %v1458
  %1523 = vst [vmem:[%s7 + $0x44] sm:$0xf] %v1459
  %1524 = vst [vmem:[%s7 + $0x48] sm:$0xf] %v1460
  %1525 = vst [vmem:[%s7 + $0x4c] sm:$0xf] %v1461
  %1526 = vst [vmem:[%s7 + $0x50] sm:$0xf] %v1462
  %1527 = vst [vmem:[%s7 + $0x54] sm:$0xf] %v1463
  %1528 = vst [vmem:[%s7 + $0x58] sm:$0xf] %v1464
  %1529 = vst [vmem:[%s7 + $0x5c] sm:$0xf] %v1465
  %1530 = vst [vmem:[%s7 + $0x60] sm:$0xf] %v1466
  %1531 = vst [vmem:[%s7 + $0x64] sm:$0xf] %v1467
  %1532 = vst [vmem:[%s7 + $0x68] sm:$0xf] %v1468
  %1533 = vst [vmem:[%s7 + $0x6c] sm:$0xf] %v1469
  %1534 = vst [vmem:[%s7 + $0x70] sm:$0xf] %v1470
  %1535 = vst [vmem:[%s7 + $0x74] sm:$0xf] %v1471
  %1536 = vst [vmem:[%s7 + $0x78] sm:$0xf] %v1472
  %1537 = vst [vmem:[%s7 + $0x7c] sm:$0xf] %v1473
  %1538 = vst [vmem:[%s7 + $0x80] sm:$0xf] %v1474
  %1539 = vst [vmem:[%s7 + $0x84] sm:$0xf] %v1475
  %1540 = vst [vmem:[%s7 + $0x88] sm:$0xf] %v1476
  %1541 = vst [vmem:[%s7 + $0x8c] sm:$0xf] %v1477
  %1542 = vst [vmem:[%s7 + $0x90] sm:$0xf] %v1478
  %1543 = vst [vmem:[%s7 + $0x94] sm:$0xf] %v1479
  %1544 = vst [vmem:[%s7 + $0x98] sm:$0xf] %v1480
  %1545 = vst [vmem:[%s7 + $0x9c] sm:$0xf] %v1481
  %1546 = vst [vmem:[%s7 + $0xa0] sm:$0xf] %v1482
  %1547 = vst [vmem:[%s7 + $0xa4] sm:$0xf] %v1483
  %1548 = vst [vmem:[%s7 + $0xa8] sm:$0xf] %v1484
  %1549 = vst [vmem:[%s7 + $0xac] sm:$0xf] %v1485
  %1550 = vst [vmem:[%s7 + $0xb0] sm:$0xf] %v1486
  %1551 = vst [vmem:[%s7 + $0xb4] sm:$0xf] %v1487
  %1552 = vst [vmem:[%s7 + $0xb8] sm:$0xf] %v1488
  %1553 = vst [vmem:[%s7 + $0xbc] sm:$0xf] %v1489
  %1554 = vst [vmem:[%s7 + $0xc0] sm:$0xf] %v1490
  %1555 = vst [vmem:[%s7 + $0xc4] sm:$0xf] %v1491
  %1556 = vst [vmem:[%s7 + $0xc8] sm:$0xf] %v1492
  %1557 = vst [vmem:[%s7 + $0xcc] sm:$0xf] %v1493
  %1558 = vst [vmem:[%s7 + $0xd0] sm:$0xf] %v1494
  %1559 = vst [vmem:[%s7 + $0xd4] sm:$0xf] %v1495
  %1560 = vst [vmem:[%s7 + $0xd8] sm:$0xf] %v1496
  %1561 = vst [vmem:[%s7 + $0xdc] sm:$0xf] %v1497
  %1562 = vst [vmem:[%s7 + $0xe0] sm:$0xf] %v1498
  %1563 = vst [vmem:[%s7 + $0xe4] sm:$0xf] %v1499
  %1564 = vst [vmem:[%s7 + $0xe8] sm:$0xf] %v1500
  %1565 = vst [vmem:[%s7 + $0xec] sm:$0xf] %v1501
  %1566 = vst [vmem:[%s7 + $0xf0] sm:$0xf] %v1502
  %1567 = vst [vmem:[%s7 + $0xf4] sm:$0xf] %v1503
  %1568 = vst [vmem:[%s7 + $0xf8] sm:$0xf] %v1504
  %1569 = vst [vmem:[%s7 + $0xfc] sm:$0xf] %v1505
  %v1570 = vadd.f32 %v1283, %v1285
  %v1571 = vadd.f32 %v1570, %v1288
  %v1572 = vadd.f32 %v1571, %v1290
  %v1573 = vadd.f32 %v1572, %v1293
  %v1574 = vadd.f32 %v1573, %v1295
  %v1575 = vadd.f32 %v1574, %v1298
  %v1576 = vadd.f32 %v1575, %v1300
  %v1577 = vadd.f32 %v1576, %v1303
  %v1578 = vadd.f32 %v1577, %v1305
  %v1579 = vadd.f32 %v1578, %v1308
  %v1580 = vadd.f32 %v1579, %v1310
  %v1581 = vadd.f32 %v1580, %v1313
  %v1582 = vadd.f32 %v1581, %v1315
  %v1583 = vadd.f32 %v1582, %v1318
  %v1584 = vadd.f32 %v1583, %v1320
  %v1585 = vadd.f32 %v1584, %v1323
  %v1586 = vadd.f32 %v1585, %v1325
  %v1587 = vadd.f32 %v1586, %v1328
  %v1588 = vadd.f32 %v1587, %v1330
  %v1589 = vadd.f32 %v1588, %v1333
  %v1590 = vadd.f32 %v1589, %v1335
  %v1591 = vadd.f32 %v1590, %v1338
  %v1592 = vadd.f32 %v1591, %v1340
  %v1593 = vadd.f32 %v1592, %v1343
  %v1594 = vadd.f32 %v1593, %v1345
  %v1595 = vadd.f32 %v1594, %v1348
  %v1596 = vadd.f32 %v1595, %v1350
  %v1597 = vadd.f32 %v1596, %v1353
  %v1598 = vadd.f32 %v1597, %v1355
  %v1599 = vadd.f32 %v1598, %v1358
  %v1600 = vadd.f32 %v1599, %v1360
  %v1601 = vadd.f32 %v1600, %v1363
  %v1602 = vadd.f32 %v1601, %v1365
  %v1603 = vadd.f32 %v1602, %v1368
  %v1604 = vadd.f32 %v1603, %v1370
  %v1605 = vadd.f32 %v1604, %v1373
  %v1606 = vadd.f32 %v1605, %v1375
  %v1607 = vadd.f32 %v1606, %v1378
  %v1608 = vadd.f32 %v1607, %v1380
  %v1609 = vadd.f32 %v1608, %v1383
  %v1610 = vadd.f32 %v1609, %v1385
  %v1611 = vadd.f32 %v1610, %v1388
  %v1612 = vadd.f32 %v1611, %v1390
  %v1613 = vadd.f32 %v1612, %v1393
  %v1614 = vadd.f32 %v1613, %v1395
  %v1615 = vadd.f32 %v1614, %v1398
  %v1616 = vadd.f32 %v1615, %v1400
  %v1617 = vadd.f32 %v1616, %v1403
  %v1618 = vadd.f32 %v1617, %v1405
  %v1619 = vadd.f32 %v1618, %v1408
  %v1620 = vadd.f32 %v1619, %v1410
  %v1621 = vadd.f32 %v1620, %v1413
  %v1622 = vadd.f32 %v1621, %v1415
  %v1623 = vadd.f32 %v1622, %v1418
  %v1624 = vadd.f32 %v1623, %v1420
  %v1625 = vadd.f32 %v1624, %v1423
  %v1626 = vadd.f32 %v1625, %v1425
  %v1627 = vadd.f32 %v1626, %v1428
  %v1628 = vadd.f32 %v1627, %v1430
  %v1629 = vadd.f32 %v1628, %v1433
  %v1630 = vadd.f32 %v1629, %v1435
  %v1631 = vadd.f32 %v1630, %v1438
  %v1632 = vadd.f32 %v1631, %v1440
  %v1633 = vrot.slane %v1632, 4
  %v1634 = vadd.f32 %v1632, %v1633
  %v1635 = vrot.slane %v1634, 2
  %v1636 = vadd.f32 %v1634, %v1635
  %v1637 = vrot.slane %v1636, 1
  %v1638 = vadd.f32 %v1636, %v1637
  %v1639 = vmul.f32 %v1283, %v1283
  %v1640 = vmul.f32 %v1285, %v1285
  %v1641 = vmul.f32 %v1288, %v1288
  %v1642 = vmul.f32 %v1290, %v1290
  %v1643 = vmul.f32 %v1293, %v1293
  %v1644 = vmul.f32 %v1295, %v1295
  %v1645 = vmul.f32 %v1298, %v1298
  %v1646 = vmul.f32 %v1300, %v1300
  %v1647 = vmul.f32 %v1303, %v1303
  %v1648 = vmul.f32 %v1305, %v1305
  %v1649 = vmul.f32 %v1308, %v1308
  %v1650 = vmul.f32 %v1310, %v1310
  %v1651 = vmul.f32 %v1313, %v1313
  %v1652 = vmul.f32 %v1315, %v1315
  %v1653 = vmul.f32 %v1318, %v1318
  %v1654 = vmul.f32 %v1320, %v1320
  %v1655 = vmul.f32 %v1323, %v1323
  %v1656 = vmul.f32 %v1325, %v1325
  %v1657 = vmul.f32 %v1328, %v1328
  %v1658 = vmul.f32 %v1330, %v1330
  %v1659 = vmul.f32 %v1333, %v1333
  %v1660 = vmul.f32 %v1335, %v1335
  %v1661 = vmul.f32 %v1338, %v1338
  %v1662 = vmul.f32 %v1340, %v1340
  %v1663 = vmul.f32 %v1343, %v1343
  %v1664 = vmul.f32 %v1345, %v1345
  %v1665 = vmul.f32 %v1348, %v1348
  %v1666 = vmul.f32 %v1350, %v1350
  %v1667 = vmul.f32 %v1353, %v1353
  %v1668 = vmul.f32 %v1355, %v1355
  %v1669 = vmul.f32 %v1358, %v1358
  %v1670 = vmul.f32 %v1360, %v1360
  %v1671 = vmul.f32 %v1363, %v1363
  %v1672 = vmul.f32 %v1365, %v1365
  %v1673 = vmul.f32 %v1368, %v1368
  %v1674 = vmul.f32 %v1370, %v1370
  %v1675 = vmul.f32 %v1373, %v1373
  %v1676 = vmul.f32 %v1375, %v1375
  %v1677 = vmul.f32 %v1378, %v1378
  %v1678 = vmul.f32 %v1380, %v1380
  %v1679 = vmul.f32 %v1383, %v1383
  %v1680 = vmul.f32 %v1385, %v1385
  %v1681 = vmul.f32 %v1388, %v1388
  %v1682 = vmul.f32 %v1390, %v1390
  %v1683 = vmul.f32 %v1393, %v1393
  %v1684 = vmul.f32 %v1395, %v1395
  %v1685 = vmul.f32 %v1398, %v1398
  %v1686 = vmul.f32 %v1400, %v1400
  %v1687 = vmul.f32 %v1403, %v1403
  %v1688 = vmul.f32 %v1405, %v1405
  %v1689 = vmul.f32 %v1408, %v1408
  %v1690 = vmul.f32 %v1410, %v1410
  %v1691 = vmul.f32 %v1413, %v1413
  %v1692 = vmul.f32 %v1415, %v1415
  %v1693 = vmul.f32 %v1418, %v1418
  %v1694 = vmul.f32 %v1420, %v1420
  %v1695 = vmul.f32 %v1423, %v1423
  %v1696 = vmul.f32 %v1425, %v1425
  %v1697 = vmul.f32 %v1428, %v1428
  %v1698 = vmul.f32 %v1430, %v1430
  %v1699 = vmul.f32 %v1433, %v1433
  %v1700 = vmul.f32 %v1435, %v1435
  %v1701 = vmul.f32 %v1438, %v1438
  %v1702 = vmul.f32 %v1440, %v1440
  %v1703 = vadd.f32 %v1639, %v1640
  %v1704 = vadd.f32 %v1703, %v1641
  %v1705 = vadd.f32 %v1704, %v1642
  %v1706 = vadd.f32 %v1705, %v1643
  %v1707 = vadd.f32 %v1706, %v1644
  %v1708 = vadd.f32 %v1707, %v1645
  %v1709 = vadd.f32 %v1708, %v1646
  %v1710 = vadd.f32 %v1709, %v1647
  %v1711 = vadd.f32 %v1710, %v1648
  %v1712 = vadd.f32 %v1711, %v1649
  %v1713 = vadd.f32 %v1712, %v1650
  %v1714 = vadd.f32 %v1713, %v1651
  %v1715 = vadd.f32 %v1714, %v1652
  %v1716 = vadd.f32 %v1715, %v1653
  %v1717 = vadd.f32 %v1716, %v1654
  %v1718 = vadd.f32 %v1717, %v1655
  %v1719 = vadd.f32 %v1718, %v1656
  %v1720 = vadd.f32 %v1719, %v1657
  %v1721 = vadd.f32 %v1720, %v1658
  %v1722 = vadd.f32 %v1721, %v1659
  %v1723 = vadd.f32 %v1722, %v1660
  %v1724 = vadd.f32 %v1723, %v1661
  %v1725 = vadd.f32 %v1724, %v1662
  %v1726 = vadd.f32 %v1725, %v1663
  %v1727 = vadd.f32 %v1726, %v1664
  %v1728 = vadd.f32 %v1727, %v1665
  %v1729 = vadd.f32 %v1728, %v1666
  %v1730 = vadd.f32 %v1729, %v1667
  %v1731 = vadd.f32 %v1730, %v1668
  %v1732 = vadd.f32 %v1731, %v1669
  %v1733 = vadd.f32 %v1732, %v1670
  %v1734 = vadd.f32 %v1733, %v1671
  %v1735 = vadd.f32 %v1734, %v1672
  %v1736 = vadd.f32 %v1735, %v1673
  %v1737 = vadd.f32 %v1736, %v1674
  %v1738 = vadd.f32 %v1737, %v1675
  %v1739 = vadd.f32 %v1738, %v1676
  %v1740 = vadd.f32 %v1739, %v1677
  %v1741 = vadd.f32 %v1740, %v1678
  %v1742 = vadd.f32 %v1741, %v1679
  %v1743 = vadd.f32 %v1742, %v1680
  %v1744 = vadd.f32 %v1743, %v1681
  %v1745 = vadd.f32 %v1744, %v1682
  %v1746 = vadd.f32 %v1745, %v1683
  %v1747 = vadd.f32 %v1746, %v1684
  %v1748 = vadd.f32 %v1747, %v1685
  %v1749 = vadd.f32 %v1748, %v1686
  %v1750 = vadd.f32 %v1749, %v1687
  %v1751 = vadd.f32 %v1750, %v1688
  %v1752 = vadd.f32 %v1751, %v1689
  %v1753 = vadd.f32 %v1752, %v1690
  %v1754 = vadd.f32 %v1753, %v1691
  %v1755 = vadd.f32 %v1754, %v1692
  %v1756 = vadd.f32 %v1755, %v1693
  %v1757 = vadd.f32 %v1756, %v1694
  %v1758 = vadd.f32 %v1757, %v1695
  %v1759 = vadd.f32 %v1758, %v1696
  %v1760 = vadd.f32 %v1759, %v1697
  %v1761 = vadd.f32 %v1760, %v1698
  %v1762 = vadd.f32 %v1761, %v1699
  %v1763 = vadd.f32 %v1762, %v1700
  %v1764 = vadd.f32 %v1763, %v1701
  %v1765 = vadd.f32 %v1764, %v1702
  %v1766 = vrot.slane %v1765, 4
  %v1767 = vadd.f32 %v1765, %v1766
  %v1768 = vrot.slane %v1767, 2
  %v1769 = vadd.f32 %v1767, %v1768
  %v1770 = vrot.slane %v1769, 1
  %v1771 = vadd.f32 %v1769, %v1770
  %v1772 = vsel %vm950, %v1638, %v1771
  %1773 = vst [vmem:[%s9] sm:$0x3] %v1772
  // Predicated region
  $region26: #{bottleneck_forward.8} parent=0 // pred_check
    _
  $region27: #{bottleneck_forward.8} parent=0 // pred_check_branch
    %1775 = sbr.rel (0) target = $region29
  $region28: #{bottleneck_forward.8} parent=0 // pred_region
    _
  $region29: #{bottleneck_forward.8} parent=0 // pred_fallthru
    _
  // Predicated region
  $region30: #{bottleneck_forward.8} parent=0 // pred_check
    _
  $region31: #{bottleneck_forward.8} parent=0 // pred_check_branch
    %1777 = sbr.rel (0) target = $region33
  $region32: #{bottleneck_forward.8} parent=0 // pred_region
    _
  $region33: #{bottleneck_forward.8} parent=0 // pred_fallthru
    _
  // Predicated region
  $region34: #{bottleneck_forward.8} parent=0 // pred_check
    _
  $region35: #{bottleneck_forward.8} parent=0 // pred_check_branch
    %1779 = sbr.rel (0) target = $region37
  $region36: #{bottleneck_forward.8} parent=0 // pred_region
    _
  $region37: #{bottleneck_forward.8} parent=0 // pred_fallthru
    _
  // Predicated region
  $region38: #{bottleneck_forward.8} parent=0 // pred_check
    _
  $region39: #{bottleneck_forward.8} parent=0 // pred_check_branch
    %1781 = sbr.rel (0) target = $region41
  $region40: #{bottleneck_forward.8} parent=0 // pred_region
    _
  $region41: #{bottleneck_forward.8} parent=0 // pred_fallthru
    _
  // Predicated region
  $region42: #{bottleneck_forward.8} parent=0 // pred_check
    _
  $region43: #{bottleneck_forward.8} parent=0 // pred_check_branch
    %1783 = sbr.rel (0) target = $region45
  $region44: #{bottleneck_forward.8} parent=0 // pred_region
    _
  $region45: #{bottleneck_forward.8} parent=0 // pred_fallthru
    _
  // Predicated region
  $region46: #{bottleneck_forward.8} parent=0 // pred_check
    _
  $region47: #{bottleneck_forward.8} parent=0 // pred_check_branch
    %1785 = sbr.rel (0) target = $region49
  $region48: #{bottleneck_forward.8} parent=0 // pred_region
    _
  $region49: #{bottleneck_forward.8} parent=0 // pred_fallthru
    _
  // Predicated region
  $region50: #{bottleneck_forward.8} parent=0 // pred_check
    _
  $region51: #{bottleneck_forward.8} parent=0 // pred_check_branch
    %1787 = sbr.rel (0) target = $region53
  $region52: #{bottleneck_forward.8} parent=0 // pred_region
    _
  $region53: #{bottleneck_forward.8} parent=0 // pred_fallthru
    _
  // Predicated region
  $region54: #{bottleneck_forward.8} parent=0 // pred_check
    _
  $region55: #{bottleneck_forward.8} parent=0 // pred_check_branch
    %1789 = sbr.rel (0) target = $region57
  $region56: #{bottleneck_forward.8} parent=0 // pred_region
    _
  $region57: #{bottleneck_forward.8} parent=0 // pred_fallthru
    _

// kernel: bottleneck_forward.7
$region0: #{bottleneck_forward.7}
  #allocation0 [shape = 'u32[]', space=smem, size = 0x4, offset = 0x4, fixed_abs, tag = 'smem constant byte address 0x4 - core index']
  #allocation1 [shape = 'u32[72,128]{1,0:T(1,128)}', space=vmem, size = 0x9000, scoped, tag = 'internal scratch']
  %s0 = inlined_call_operand.vmem [shape: bf16[512,1152], index: 0, kind: input, shape index: {}]
  %s1 = inlined_call_operand.vmem [shape: bf16[1152,128], index: 1, kind: input, shape index: {}]
  %s2 = inlined_call_operand.vmem [shape: bf16[512,128], index: 2, kind: output, shape index: {0}]
  %s3 = inlined_call_operand.vmem [shape: f32[1,2,128], index: 3, kind: output, shape index: {1}]
  %4 = xla_tuple %s2, %s3
  %s5 = sld [smem:[#allocation0]]
  $region26: #{bottleneck_forward.7} parent=0
    _
  %s7 = ssub.s32 1, %s5
  %s8 = scalar_select 0, %s7, %s5
  // Predicated region
  $region2: #{bottleneck_forward.7} parent=0 // pred_check
    _
  $region3: #{bottleneck_forward.7} parent=0 // pred_check_branch
    %10 = sbr.rel (0) target = $region5
  $region4: #{bottleneck_forward.7} parent=0 // pred_region
    _
  $region5: #{bottleneck_forward.7} parent=0 // pred_fallthru
    _
  // Predicated region
  $region6: #{bottleneck_forward.7} parent=0 // pred_check
    _
  $region7: #{bottleneck_forward.7} parent=0 // pred_check_branch
    %12 = sbr.rel (0) target = $region9
  $region8: #{bottleneck_forward.7} parent=0 // pred_region
    _
  $region9: #{bottleneck_forward.7} parent=0 // pred_fallthru
    _
  %v13 = vld [vmem:[%s0] sm:$0xff]
  %v14 = vld [vmem:[%s0 + $0x8] sm:$0xff]
  %v15 = vld [vmem:[%s0 + $0x10] sm:$0xff]
  %v16 = vld [vmem:[%s0 + $0x18] sm:$0xff]
  %v17 = vld [vmem:[%s0 + $0x20] sm:$0xf]
  %v18 = vld [vmem:[%s0 + $0x24] sm:$0xff]
  %v19 = vld [vmem:[%s0 + $0x2c] sm:$0xff]
  %v20 = vld [vmem:[%s0 + $0x34] sm:$0xff]
  %v21 = vld [vmem:[%s0 + $0x3c] sm:$0xff]
  %v22 = vld [vmem:[%s0 + $0x44] sm:$0xf]
  %v23 = vld [vmem:[%s0 + $0x48] sm:$0xff]
  %v24 = vld [vmem:[%s0 + $0x50] sm:$0xff]
  %v25 = vld [vmem:[%s0 + $0x58] sm:$0xff]
  %v26 = vld [vmem:[%s0 + $0x60] sm:$0xff]
  %v27 = vld [vmem:[%s0 + $0x68] sm:$0xf]
  %v28 = vld [vmem:[%s0 + $0x6c] sm:$0xff]
  %v29 = vld [vmem:[%s0 + $0x74] sm:$0xff]
  %v30 = vld [vmem:[%s0 + $0x7c] sm:$0xff]
  %v31 = vld [vmem:[%s0 + $0x84] sm:$0xff]
  %v32 = vld [vmem:[%s0 + $0x8c] sm:$0xf]
  %v33 = vld [vmem:[%s0 + $0x90] sm:$0xff]
  %v34 = vld [vmem:[%s0 + $0x98] sm:$0xff]
  %v35 = vld [vmem:[%s0 + $0xa0] sm:$0xff]
  %v36 = vld [vmem:[%s0 + $0xa8] sm:$0xff]
  %v37 = vld [vmem:[%s0 + $0xb0] sm:$0xf]
  %v38 = vld [vmem:[%s0 + $0xb4] sm:$0xff]
  %v39 = vld [vmem:[%s0 + $0xbc] sm:$0xff]
  %v40 = vld [vmem:[%s0 + $0xc4] sm:$0xff]
  %v41 = vld [vmem:[%s0 + $0xcc] sm:$0xff]
  %v42 = vld [vmem:[%s0 + $0xd4] sm:$0xf]
  %v43 = vld [vmem:[%s0 + $0xd8] sm:$0xff]
  %v44 = vld [vmem:[%s0 + $0xe0] sm:$0xff]
  %v45 = vld [vmem:[%s0 + $0xe8] sm:$0xff]
  %v46 = vld [vmem:[%s0 + $0xf0] sm:$0xff]
  %v47 = vld [vmem:[%s0 + $0xf8] sm:$0xf]
  %v48 = vld [vmem:[%s0 + $0xfc] sm:$0xff]
  %v49 = vld [vmem:[%s0 + $0x104] sm:$0xff]
  %v50 = vld [vmem:[%s0 + $0x10c] sm:$0xff]
  %v51 = vld [vmem:[%s0 + $0x114] sm:$0xff]
  %v52 = vld [vmem:[%s0 + $0x11c] sm:$0xf]
  %v53 = vld [vmem:[%s0 + $0x120] sm:$0xff]
  %v54 = vld [vmem:[%s0 + $0x128] sm:$0xff]
  %v55 = vld [vmem:[%s0 + $0x130] sm:$0xff]
  %v56 = vld [vmem:[%s0 + $0x138] sm:$0xff]
  %v57 = vld [vmem:[%s0 + $0x140] sm:$0xf]
  %v58 = vld [vmem:[%s0 + $0x144] sm:$0xff]
  %v59 = vld [vmem:[%s0 + $0x14c] sm:$0xff]
  %v60 = vld [vmem:[%s0 + $0x154] sm:$0xff]
  %v61 = vld [vmem:[%s0 + $0x15c] sm:$0xff]
  %v62 = vld [vmem:[%s0 + $0x164] sm:$0xf]
  %v63 = vld [vmem:[%s0 + $0x168] sm:$0xff]
  %v64 = vld [vmem:[%s0 + $0x170] sm:$0xff]
  %v65 = vld [vmem:[%s0 + $0x178] sm:$0xff]
  %v66 = vld [vmem:[%s0 + $0x180] sm:$0xff]
  %v67 = vld [vmem:[%s0 + $0x188] sm:$0xf]
  %v68 = vld [vmem:[%s0 + $0x18c] sm:$0xff]
  %v69 = vld [vmem:[%s0 + $0x194] sm:$0xff]
  %v70 = vld [vmem:[%s0 + $0x19c] sm:$0xff]
  %v71 = vld [vmem:[%s0 + $0x1a4] sm:$0xff]
  %v72 = vld [vmem:[%s0 + $0x1ac] sm:$0xf]
  %v73 = vld [vmem:[%s0 + $0x1b0] sm:$0xff]
  %v74 = vld [vmem:[%s0 + $0x1b8] sm:$0xff]
  %v75 = vld [vmem:[%s0 + $0x1c0] sm:$0xff]
  %v76 = vld [vmem:[%s0 + $0x1c8] sm:$0xff]
  %v77 = vld [vmem:[%s0 + $0x1d0] sm:$0xf]
  %v78 = vld [vmem:[%s0 + $0x1d4] sm:$0xff]
  %v79 = vld [vmem:[%s0 + $0x1dc] sm:$0xff]
  %v80 = vld [vmem:[%s0 + $0x1e4] sm:$0xff]
  %v81 = vld [vmem:[%s0 + $0x1ec] sm:$0xff]
  %v82 = vld [vmem:[%s0 + $0x1f4] sm:$0xf]
  %v83 = vld [vmem:[%s0 + $0x1f8] sm:$0xff]
  %v84 = vld [vmem:[%s0 + $0x200] sm:$0xff]
  %v85 = vld [vmem:[%s0 + $0x208] sm:$0xff]
  %v86 = vld [vmem:[%s0 + $0x210] sm:$0xff]
  %v87 = vld [vmem:[%s0 + $0x218] sm:$0xf]
  %v88 = vld [vmem:[%s0 + $0x21c] sm:$0xff]
  %v89 = vld [vmem:[%s0 + $0x224] sm:$0xff]
  %v90 = vld [vmem:[%s0 + $0x22c] sm:$0xff]
  %v91 = vld [vmem:[%s0 + $0x234] sm:$0xff]
  %v92 = vld [vmem:[%s0 + $0x23c] sm:$0xf]
  %v93 = vld [vmem:[%s0 + $0x240] sm:$0xff]
  %v94 = vld [vmem:[%s0 + $0x248] sm:$0xff]
  %v95 = vld [vmem:[%s0 + $0x250] sm:$0xff]
  %v96 = vld [vmem:[%s0 + $0x258] sm:$0xff]
  %v97 = vld [vmem:[%s0 + $0x260] sm:$0xf]
  %v98 = vld [vmem:[%s0 + $0x264] sm:$0xff]
  %v99 = vld [vmem:[%s0 + $0x26c] sm:$0xff]
  %v100 = vld [vmem:[%s0 + $0x274] sm:$0xff]
  %v101 = vld [vmem:[%s0 + $0x27c] sm:$0xff]
  %v102 = vld [vmem:[%s0 + $0x284] sm:$0xf]
  %v103 = vld [vmem:[%s0 + $0x288] sm:$0xff]
  %v104 = vld [vmem:[%s0 + $0x290] sm:$0xff]
  %v105 = vld [vmem:[%s0 + $0x298] sm:$0xff]
  %v106 = vld [vmem:[%s0 + $0x2a0] sm:$0xff]
  %v107 = vld [vmem:[%s0 + $0x2a8] sm:$0xf]
  %v108 = vld [vmem:[%s0 + $0x2ac] sm:$0xff]
  %v109 = vld [vmem:[%s0 + $0x2b4] sm:$0xff]
  %v110 = vld [vmem:[%s0 + $0x2bc] sm:$0xff]
  %v111 = vld [vmem:[%s0 + $0x2c4] sm:$0xff]
  %v112 = vld [vmem:[%s0 + $0x2cc] sm:$0xf]
  %v113 = vld [vmem:[%s0 + $0x2d0] sm:$0xff]
  %v114 = vld [vmem:[%s0 + $0x2d8] sm:$0xff]
  %v115 = vld [vmem:[%s0 + $0x2e0] sm:$0xff]
  %v116 = vld [vmem:[%s0 + $0x2e8] sm:$0xff]
  %v117 = vld [vmem:[%s0 + $0x2f0] sm:$0xf]
  %v118 = vld [vmem:[%s0 + $0x2f4] sm:$0xff]
  %v119 = vld [vmem:[%s0 + $0x2fc] sm:$0xff]
  %v120 = vld [vmem:[%s0 + $0x304] sm:$0xff]
  %v121 = vld [vmem:[%s0 + $0x30c] sm:$0xff]
  %v122 = vld [vmem:[%s0 + $0x314] sm:$0xf]
  %v123 = vld [vmem:[%s0 + $0x318] sm:$0xff]
  %v124 = vld [vmem:[%s0 + $0x320] sm:$0xff]
  %v125 = vld [vmem:[%s0 + $0x328] sm:$0xff]
  %v126 = vld [vmem:[%s0 + $0x330] sm:$0xff]
  %v127 = vld [vmem:[%s0 + $0x338] sm:$0xf]
  %v128 = vld [vmem:[%s0 + $0x33c] sm:$0xff]
  %v129 = vld [vmem:[%s0 + $0x344] sm:$0xff]
  %v130 = vld [vmem:[%s0 + $0x34c] sm:$0xff]
  %v131 = vld [vmem:[%s0 + $0x354] sm:$0xff]
  %v132 = vld [vmem:[%s0 + $0x35c] sm:$0xf]
  %v133 = vld [vmem:[%s0 + $0x360] sm:$0xff]
  %v134 = vld [vmem:[%s0 + $0x368] sm:$0xff]
  %v135 = vld [vmem:[%s0 + $0x370] sm:$0xff]
  %v136 = vld [vmem:[%s0 + $0x378] sm:$0xff]
  %v137 = vld [vmem:[%s0 + $0x380] sm:$0xf]
  %v138 = vld [vmem:[%s0 + $0x384] sm:$0xff]
  %v139 = vld [vmem:[%s0 + $0x38c] sm:$0xff]
  %v140 = vld [vmem:[%s0 + $0x394] sm:$0xff]
  %v141 = vld [vmem:[%s0 + $0x39c] sm:$0xff]
  %v142 = vld [vmem:[%s0 + $0x3a4] sm:$0xf]
  %v143 = vld [vmem:[%s0 + $0x3a8] sm:$0xff]
  %v144 = vld [vmem:[%s0 + $0x3b0] sm:$0xff]
  %v145 = vld [vmem:[%s0 + $0x3b8] sm:$0xff]
  %v146 = vld [vmem:[%s0 + $0x3c0] sm:$0xff]
  %v147 = vld [vmem:[%s0 + $0x3c8] sm:$0xf]
  %v148 = vld [vmem:[%s0 + $0x3cc] sm:$0xff]
  %v149 = vld [vmem:[%s0 + $0x3d4] sm:$0xff]
  %v150 = vld [vmem:[%s0 + $0x3dc] sm:$0xff]
  %v151 = vld [vmem:[%s0 + $0x3e4] sm:$0xff]
  %v152 = vld [vmem:[%s0 + $0x3ec] sm:$0xf]
  %v153 = vld [vmem:[%s0 + $0x3f0] sm:$0xff]
  %v154 = vld [vmem:[%s0 + $0x3f8] sm:$0xff]
  %v155 = vld [vmem:[%s0 + $0x400] sm:$0xff]
  %v156 = vld [vmem:[%s0 + $0x408] sm:$0xff]
  %v157 = vld [vmem:[%s0 + $0x410] sm:$0xf]
  %v158 = vld [vmem:[%s0 + $0x414] sm:$0xff]
  %v159 = vld [vmem:[%s0 + $0x41c] sm:$0xff]
  %v160 = vld [vmem:[%s0 + $0x424] sm:$0xff]
  %v161 = vld [vmem:[%s0 + $0x42c] sm:$0xff]
  %v162 = vld [vmem:[%s0 + $0x434] sm:$0xf]
  %v163 = vld [vmem:[%s0 + $0x438] sm:$0xff]
  %v164 = vld [vmem:[%s0 + $0x440] sm:$0xff]
  %v165 = vld [vmem:[%s0 + $0x448] sm:$0xff]
  %v166 = vld [vmem:[%s0 + $0x450] sm:$0xff]
  %v167 = vld [vmem:[%s0 + $0x458] sm:$0xf]
  %v168 = vld [vmem:[%s0 + $0x45c] sm:$0xff]
  %v169 = vld [vmem:[%s0 + $0x464] sm:$0xff]
  %v170 = vld [vmem:[%s0 + $0x46c] sm:$0xff]
  %v171 = vld [vmem:[%s0 + $0x474] sm:$0xff]
  %v172 = vld [vmem:[%s0 + $0x47c] sm:$0xf]
  %v173 = vld [vmem:[%s0 + $0x480] sm:$0xff]
  %v174 = vld [vmem:[%s0 + $0x488] sm:$0xff]
  %v175 = vld [vmem:[%s0 + $0x490] sm:$0xff]
  %v176 = vld [vmem:[%s0 + $0x498] sm:$0xff]
  %v177 = vld [vmem:[%s0 + $0x4a0] sm:$0xf]
  %v178 = vld [vmem:[%s0 + $0x4a4] sm:$0xff]
  %v179 = vld [vmem:[%s0 + $0x4ac] sm:$0xff]
  %v180 = vld [vmem:[%s0 + $0x4b4] sm:$0xff]
  %v181 = vld [vmem:[%s0 + $0x4bc] sm:$0xff]
  %v182 = vld [vmem:[%s0 + $0x4c4] sm:$0xf]
  %v183 = vld [vmem:[%s0 + $0x4c8] sm:$0xff]
  %v184 = vld [vmem:[%s0 + $0x4d0] sm:$0xff]
  %v185 = vld [vmem:[%s0 + $0x4d8] sm:$0xff]
  %v186 = vld [vmem:[%s0 + $0x4e0] sm:$0xff]
  %v187 = vld [vmem:[%s0 + $0x4e8] sm:$0xf]
  %v188 = vld [vmem:[%s0 + $0x4ec] sm:$0xff]
  %v189 = vld [vmem:[%s0 + $0x4f4] sm:$0xff]
  %v190 = vld [vmem:[%s0 + $0x4fc] sm:$0xff]
  %v191 = vld [vmem:[%s0 + $0x504] sm:$0xff]
  %v192 = vld [vmem:[%s0 + $0x50c] sm:$0xf]
  %v193 = vld [vmem:[%s0 + $0x510] sm:$0xff]
  %v194 = vld [vmem:[%s0 + $0x518] sm:$0xff]
  %v195 = vld [vmem:[%s0 + $0x520] sm:$0xff]
  %v196 = vld [vmem:[%s0 + $0x528] sm:$0xff]
  %v197 = vld [vmem:[%s0 + $0x530] sm:$0xf]
  %v198 = vld [vmem:[%s0 + $0x534] sm:$0xff]
  %v199 = vld [vmem:[%s0 + $0x53c] sm:$0xff]
  %v200 = vld [vmem:[%s0 + $0x544] sm:$0xff]
  %v201 = vld [vmem:[%s0 + $0x54c] sm:$0xff]
  %v202 = vld [vmem:[%s0 + $0x554] sm:$0xf]
  %v203 = vld [vmem:[%s0 + $0x558] sm:$0xff]
  %v204 = vld [vmem:[%s0 + $0x560] sm:$0xff]
  %v205 = vld [vmem:[%s0 + $0x568] sm:$0xff]
  %v206 = vld [vmem:[%s0 + $0x570] sm:$0xff]
  %v207 = vld [vmem:[%s0 + $0x578] sm:$0xf]
  %v208 = vld [vmem:[%s0 + $0x57c] sm:$0xff]
  %v209 = vld [vmem:[%s0 + $0x584] sm:$0xff]
  %v210 = vld [vmem:[%s0 + $0x58c] sm:$0xff]
  %v211 = vld [vmem:[%s0 + $0x594] sm:$0xff]
  %v212 = vld [vmem:[%s0 + $0x59c] sm:$0xf]
  %v213 = vld [vmem:[%s0 + $0x5a0] sm:$0xff]
  %v214 = vld [vmem:[%s0 + $0x5a8] sm:$0xff]
  %v215 = vld [vmem:[%s0 + $0x5b0] sm:$0xff]
  %v216 = vld [vmem:[%s0 + $0x5b8] sm:$0xff]
  %v217 = vld [vmem:[%s0 + $0x5c0] sm:$0xf]
  %v218 = vld [vmem:[%s0 + $0x5c4] sm:$0xff]
  %v219 = vld [vmem:[%s0 + $0x5cc] sm:$0xff]
  %v220 = vld [vmem:[%s0 + $0x5d4] sm:$0xff]
  %v221 = vld [vmem:[%s0 + $0x5dc] sm:$0xff]
  %v222 = vld [vmem:[%s0 + $0x5e4] sm:$0xf]
  %v223 = vld [vmem:[%s0 + $0x5e8] sm:$0xff]
  %v224 = vld [vmem:[%s0 + $0x5f0] sm:$0xff]
  %v225 = vld [vmem:[%s0 + $0x5f8] sm:$0xff]
  %v226 = vld [vmem:[%s0 + $0x600] sm:$0xff]
  %v227 = vld [vmem:[%s0 + $0x608] sm:$0xf]
  %v228 = vld [vmem:[%s0 + $0x60c] sm:$0xff]
  %v229 = vld [vmem:[%s0 + $0x614] sm:$0xff]
  %v230 = vld [vmem:[%s0 + $0x61c] sm:$0xff]
  %v231 = vld [vmem:[%s0 + $0x624] sm:$0xff]
  %v232 = vld [vmem:[%s0 + $0x62c] sm:$0xf]
  %v233 = vld [vmem:[%s0 + $0x630] sm:$0xff]
  %v234 = vld [vmem:[%s0 + $0x638] sm:$0xff]
  %v235 = vld [vmem:[%s0 + $0x640] sm:$0xff]
  %v236 = vld [vmem:[%s0 + $0x648] sm:$0xff]
  %v237 = vld [vmem:[%s0 + $0x650] sm:$0xf]
  %v238 = vld [vmem:[%s0 + $0x654] sm:$0xff]
  %v239 = vld [vmem:[%s0 + $0x65c] sm:$0xff]
  %v240 = vld [vmem:[%s0 + $0x664] sm:$0xff]
  %v241 = vld [vmem:[%s0 + $0x66c] sm:$0xff]
  %v242 = vld [vmem:[%s0 + $0x674] sm:$0xf]
  %v243 = vld [vmem:[%s0 + $0x678] sm:$0xff]
  %v244 = vld [vmem:[%s0 + $0x680] sm:$0xff]
  %v245 = vld [vmem:[%s0 + $0x688] sm:$0xff]
  %v246 = vld [vmem:[%s0 + $0x690] sm:$0xff]
  %v247 = vld [vmem:[%s0 + $0x698] sm:$0xf]
  %v248 = vld [vmem:[%s0 + $0x69c] sm:$0xff]
  %v249 = vld [vmem:[%s0 + $0x6a4] sm:$0xff]
  %v250 = vld [vmem:[%s0 + $0x6ac] sm:$0xff]
  %v251 = vld [vmem:[%s0 + $0x6b4] sm:$0xff]
  %v252 = vld [vmem:[%s0 + $0x6bc] sm:$0xf]
  %v253 = vld [vmem:[%s0 + $0x6c0] sm:$0xff]
  %v254 = vld [vmem:[%s0 + $0x6c8] sm:$0xff]
  %v255 = vld [vmem:[%s0 + $0x6d0] sm:$0xff]
  %v256 = vld [vmem:[%s0 + $0x6d8] sm:$0xff]
  %v257 = vld [vmem:[%s0 + $0x6e0] sm:$0xf]
  %v258 = vld [vmem:[%s0 + $0x6e4] sm:$0xff]
  %v259 = vld [vmem:[%s0 + $0x6ec] sm:$0xff]
  %v260 = vld [vmem:[%s0 + $0x6f4] sm:$0xff]
  %v261 = vld [vmem:[%s0 + $0x6fc] sm:$0xff]
  %v262 = vld [vmem:[%s0 + $0x704] sm:$0xf]
  %v263 = vld [vmem:[%s0 + $0x708] sm:$0xff]
  %v264 = vld [vmem:[%s0 + $0x710] sm:$0xff]
  %v265 = vld [vmem:[%s0 + $0x718] sm:$0xff]
  %v266 = vld [vmem:[%s0 + $0x720] sm:$0xff]
  %v267 = vld [vmem:[%s0 + $0x728] sm:$0xf]
  %v268 = vld [vmem:[%s0 + $0x72c] sm:$0xff]
  %v269 = vld [vmem:[%s0 + $0x734] sm:$0xff]
  %v270 = vld [vmem:[%s0 + $0x73c] sm:$0xff]
  %v271 = vld [vmem:[%s0 + $0x744] sm:$0xff]
  %v272 = vld [vmem:[%s0 + $0x74c] sm:$0xf]
  %v273 = vld [vmem:[%s0 + $0x750] sm:$0xff]
  %v274 = vld [vmem:[%s0 + $0x758] sm:$0xff]
  %v275 = vld [vmem:[%s0 + $0x760] sm:$0xff]
  %v276 = vld [vmem:[%s0 + $0x768] sm:$0xff]
  %v277 = vld [vmem:[%s0 + $0x770] sm:$0xf]
  %v278 = vld [vmem:[%s0 + $0x774] sm:$0xff]
  %v279 = vld [vmem:[%s0 + $0x77c] sm:$0xff]
  %v280 = vld [vmem:[%s0 + $0x784] sm:$0xff]
  %v281 = vld [vmem:[%s0 + $0x78c] sm:$0xff]
  %v282 = vld [vmem:[%s0 + $0x794] sm:$0xf]
  %v283 = vld [vmem:[%s0 + $0x798] sm:$0xff]
  %v284 = vld [vmem:[%s0 + $0x7a0] sm:$0xff]
  %v285 = vld [vmem:[%s0 + $0x7a8] sm:$0xff]
  %v286 = vld [vmem:[%s0 + $0x7b0] sm:$0xff]
  %v287 = vld [vmem:[%s0 + $0x7b8] sm:$0xf]
  %v288 = vld [vmem:[%s0 + $0x7bc] sm:$0xff]
  %v289 = vld [vmem:[%s0 + $0x7c4] sm:$0xff]
  %v290 = vld [vmem:[%s0 + $0x7cc] sm:$0xff]
  %v291 = vld [vmem:[%s0 + $0x7d4] sm:$0xff]
  %v292 = vld [vmem:[%s0 + $0x7dc] sm:$0xf]
  %v293 = vld [vmem:[%s0 + $0x7e0] sm:$0xff]
  %v294 = vld [vmem:[%s0 + $0x7e8] sm:$0xff]
  %v295 = vld [vmem:[%s0 + $0x7f0] sm:$0xff]
  %v296 = vld [vmem:[%s0 + $0x7f8] sm:$0xff]
  %v297 = vld [vmem:[%s0 + $0x800] sm:$0xf]
  %v298 = vld [vmem:[%s0 + $0x804] sm:$0xff]
  %v299 = vld [vmem:[%s0 + $0x80c] sm:$0xff]
  %v300 = vld [vmem:[%s0 + $0x814] sm:$0xff]
  %v301 = vld [vmem:[%s0 + $0x81c] sm:$0xff]
  %v302 = vld [vmem:[%s0 + $0x824] sm:$0xf]
  %v303 = vld [vmem:[%s0 + $0x828] sm:$0xff]
  %v304 = vld [vmem:[%s0 + $0x830] sm:$0xff]
  %v305 = vld [vmem:[%s0 + $0x838] sm:$0xff]
  %v306 = vld [vmem:[%s0 + $0x840] sm:$0xff]
  %v307 = vld [vmem:[%s0 + $0x848] sm:$0xf]
  %v308 = vld [vmem:[%s0 + $0x84c] sm:$0xff]
  %v309 = vld [vmem:[%s0 + $0x854] sm:$0xff]
  %v310 = vld [vmem:[%s0 + $0x85c] sm:$0xff]
  %v311 = vld [vmem:[%s0 + $0x864] sm:$0xff]
  %v312 = vld [vmem:[%s0 + $0x86c] sm:$0xf]
  %v313 = vld [vmem:[%s0 + $0x870] sm:$0xff]
  %v314 = vld [vmem:[%s0 + $0x878] sm:$0xff]
  %v315 = vld [vmem:[%s0 + $0x880] sm:$0xff]
  %v316 = vld [vmem:[%s0 + $0x888] sm:$0xff]
  %v317 = vld [vmem:[%s0 + $0x890] sm:$0xf]
  %v318 = vld [vmem:[%s0 + $0x894] sm:$0xff]
  %v319 = vld [vmem:[%s0 + $0x89c] sm:$0xff]
  %v320 = vld [vmem:[%s0 + $0x8a4] sm:$0xff]
  %v321 = vld [vmem:[%s0 + $0x8ac] sm:$0xff]
  %v322 = vld [vmem:[%s0 + $0x8b4] sm:$0xf]
  %v323 = vld [vmem:[%s0 + $0x8b8] sm:$0xff]
  %v324 = vld [vmem:[%s0 + $0x8c0] sm:$0xff]
  %v325 = vld [vmem:[%s0 + $0x8c8] sm:$0xff]
  %v326 = vld [vmem:[%s0 + $0x8d0] sm:$0xff]
  %v327 = vld [vmem:[%s0 + $0x8d8] sm:$0xf]
  %v328 = vld [vmem:[%s0 + $0x8dc] sm:$0xff]
  %v329 = vld [vmem:[%s0 + $0x8e4] sm:$0xff]
  %v330 = vld [vmem:[%s0 + $0x8ec] sm:$0xff]
  %v331 = vld [vmem:[%s0 + $0x8f4] sm:$0xff]
  %v332 = vld [vmem:[%s0 + $0x8fc] sm:$0xf]
  %v333 = vld [vmem:[%s1] sm:$0xf]
  %v334 = vld [vmem:[%s1 + $0x4] sm:$0xf]
  %v335 = vld [vmem:[%s1 + $0x8] sm:$0xf]
  %v336 = vld [vmem:[%s1 + $0xc] sm:$0xf]
  %v337 = vld [vmem:[%s1 + $0x10] sm:$0xf]
  %v338 = vld [vmem:[%s1 + $0x14] sm:$0xf]
  %v339 = vld [vmem:[%s1 + $0x18] sm:$0xf]
  %v340 = vld [vmem:[%s1 + $0x1c] sm:$0xf]
  %v341 = vld [vmem:[%s1 + $0x20] sm:$0xf]
  %v342 = vld [vmem:[%s1 + $0x24] sm:$0xf]
  %v343 = vld [vmem:[%s1 + $0x28] sm:$0xf]
  %v344 = vld [vmem:[%s1 + $0x2c] sm:$0xf]
  %v345 = vld [vmem:[%s1 + $0x30] sm:$0xf]
  %v346 = vld [vmem:[%s1 + $0x34] sm:$0xf]
  %v347 = vld [vmem:[%s1 + $0x38] sm:$0xf]
  %v348 = vld [vmem:[%s1 + $0x3c] sm:$0xf]
  %v349 = vld [vmem:[%s1 + $0x40] sm:$0xf]
  %v350 = vld [vmem:[%s1 + $0x44] sm:$0xf]
  %v351 = vld [vmem:[%s1 + $0x48] sm:$0xf]
  %v352 = vld [vmem:[%s1 + $0x4c] sm:$0xf]
  %v353 = vld [vmem:[%s1 + $0x50] sm:$0xf]
  %v354 = vld [vmem:[%s1 + $0x54] sm:$0xf]
  %v355 = vld [vmem:[%s1 + $0x58] sm:$0xf]
  %v356 = vld [vmem:[%s1 + $0x5c] sm:$0xf]
  %v357 = vld [vmem:[%s1 + $0x60] sm:$0xf]
  %v358 = vld [vmem:[%s1 + $0x64] sm:$0xf]
  %v359 = vld [vmem:[%s1 + $0x68] sm:$0xf]
  %v360 = vld [vmem:[%s1 + $0x6c] sm:$0xf]
  %v361 = vld [vmem:[%s1 + $0x70] sm:$0xf]
  %v362 = vld [vmem:[%s1 + $0x74] sm:$0xf]
  %v363 = vld [vmem:[%s1 + $0x78] sm:$0xf]
  %v364 = vld [vmem:[%s1 + $0x7c] sm:$0xf]
  %v365 = vld [vmem:[%s1 + $0x80] sm:$0xf]
  %v366 = vld [vmem:[%s1 + $0x84] sm:$0xf]
  %v367 = vld [vmem:[%s1 + $0x88] sm:$0xf]
  %v368 = vld [vmem:[%s1 + $0x8c] sm:$0xf]
  %v369 = vld [vmem:[%s1 + $0x90] sm:$0xf]
  %v370 = vld [vmem:[%s1 + $0x94] sm:$0xf]
  %v371 = vld [vmem:[%s1 + $0x98] sm:$0xf]
  %v372 = vld [vmem:[%s1 + $0x9c] sm:$0xf]
  %v373 = vld [vmem:[%s1 + $0xa0] sm:$0xf]
  %v374 = vld [vmem:[%s1 + $0xa4] sm:$0xf]
  %v375 = vld [vmem:[%s1 + $0xa8] sm:$0xf]
  %v376 = vld [vmem:[%s1 + $0xac] sm:$0xf]
  %v377 = vld [vmem:[%s1 + $0xb0] sm:$0xf]
  %v378 = vld [vmem:[%s1 + $0xb4] sm:$0xf]
  %v379 = vld [vmem:[%s1 + $0xb8] sm:$0xf]
  %v380 = vld [vmem:[%s1 + $0xbc] sm:$0xf]
  %v381 = vld [vmem:[%s1 + $0xc0] sm:$0xf]
  %v382 = vld [vmem:[%s1 + $0xc4] sm:$0xf]
  %v383 = vld [vmem:[%s1 + $0xc8] sm:$0xf]
  %v384 = vld [vmem:[%s1 + $0xcc] sm:$0xf]
  %v385 = vld [vmem:[%s1 + $0xd0] sm:$0xf]
  %v386 = vld [vmem:[%s1 + $0xd4] sm:$0xf]
  %v387 = vld [vmem:[%s1 + $0xd8] sm:$0xf]
  %v388 = vld [vmem:[%s1 + $0xdc] sm:$0xf]
  %v389 = vld [vmem:[%s1 + $0xe0] sm:$0xf]
  %v390 = vld [vmem:[%s1 + $0xe4] sm:$0xf]
  %v391 = vld [vmem:[%s1 + $0xe8] sm:$0xf]
  %v392 = vld [vmem:[%s1 + $0xec] sm:$0xf]
  %v393 = vld [vmem:[%s1 + $0xf0] sm:$0xf]
  %v394 = vld [vmem:[%s1 + $0xf4] sm:$0xf]
  %v395 = vld [vmem:[%s1 + $0xf8] sm:$0xf]
  %v396 = vld [vmem:[%s1 + $0xfc] sm:$0xf]
  %v397 = vld [vmem:[%s1 + $0x100] sm:$0xf]
  %v398 = vld [vmem:[%s1 + $0x104] sm:$0xf]
  %v399 = vld [vmem:[%s1 + $0x108] sm:$0xf]
  %v400 = vld [vmem:[%s1 + $0x10c] sm:$0xf]
  %v401 = vld [vmem:[%s1 + $0x110] sm:$0xf]
  %v402 = vld [vmem:[%s1 + $0x114] sm:$0xf]
  %v403 = vld [vmem:[%s1 + $0x118] sm:$0xf]
  %v404 = vld [vmem:[%s1 + $0x11c] sm:$0xf]
  %v405 = vld [vmem:[%s1 + $0x120] sm:$0xf]
  %v406 = vld [vmem:[%s1 + $0x124] sm:$0xf]
  %v407 = vld [vmem:[%s1 + $0x128] sm:$0xf]
  %v408 = vld [vmem:[%s1 + $0x12c] sm:$0xf]
  %v409 = vld [vmem:[%s1 + $0x130] sm:$0xf]
  %v410 = vld [vmem:[%s1 + $0x134] sm:$0xf]
  %v411 = vld [vmem:[%s1 + $0x138] sm:$0xf]
  %v412 = vld [vmem:[%s1 + $0x13c] sm:$0xf]
  %v413 = vld [vmem:[%s1 + $0x140] sm:$0xf]
  %v414 = vld [vmem:[%s1 + $0x144] sm:$0xf]
  %v415 = vld [vmem:[%s1 + $0x148] sm:$0xf]
  %v416 = vld [vmem:[%s1 + $0x14c] sm:$0xf]
  %v417 = vld [vmem:[%s1 + $0x150] sm:$0xf]
  %v418 = vld [vmem:[%s1 + $0x154] sm:$0xf]
  %v419 = vld [vmem:[%s1 + $0x158] sm:$0xf]
  %v420 = vld [vmem:[%s1 + $0x15c] sm:$0xf]
  %v421 = vld [vmem:[%s1 + $0x160] sm:$0xf]
  %v422 = vld [vmem:[%s1 + $0x164] sm:$0xf]
  %v423 = vld [vmem:[%s1 + $0x168] sm:$0xf]
  %v424 = vld [vmem:[%s1 + $0x16c] sm:$0xf]
  %v425 = vld [vmem:[%s1 + $0x170] sm:$0xf]
  %v426 = vld [vmem:[%s1 + $0x174] sm:$0xf]
  %v427 = vld [vmem:[%s1 + $0x178] sm:$0xf]
  %v428 = vld [vmem:[%s1 + $0x17c] sm:$0xf]
  %v429 = vld [vmem:[%s1 + $0x180] sm:$0xf]
  %v430 = vld [vmem:[%s1 + $0x184] sm:$0xf]
  %v431 = vld [vmem:[%s1 + $0x188] sm:$0xf]
  %v432 = vld [vmem:[%s1 + $0x18c] sm:$0xf]
  %v433 = vld [vmem:[%s1 + $0x190] sm:$0xf]
  %v434 = vld [vmem:[%s1 + $0x194] sm:$0xf]
  %v435 = vld [vmem:[%s1 + $0x198] sm:$0xf]
  %v436 = vld [vmem:[%s1 + $0x19c] sm:$0xf]
  %v437 = vld [vmem:[%s1 + $0x1a0] sm:$0xf]
  %v438 = vld [vmem:[%s1 + $0x1a4] sm:$0xf]
  %v439 = vld [vmem:[%s1 + $0x1a8] sm:$0xf]
  %v440 = vld [vmem:[%s1 + $0x1ac] sm:$0xf]
  %v441 = vld [vmem:[%s1 + $0x1b0] sm:$0xf]
  %v442 = vld [vmem:[%s1 + $0x1b4] sm:$0xf]
  %v443 = vld [vmem:[%s1 + $0x1b8] sm:$0xf]
  %v444 = vld [vmem:[%s1 + $0x1bc] sm:$0xf]
  %v445 = vld [vmem:[%s1 + $0x1c0] sm:$0xf]
  %v446 = vld [vmem:[%s1 + $0x1c4] sm:$0xf]
  %v447 = vld [vmem:[%s1 + $0x1c8] sm:$0xf]
  %v448 = vld [vmem:[%s1 + $0x1cc] sm:$0xf]
  %v449 = vld [vmem:[%s1 + $0x1d0] sm:$0xf]
  %v450 = vld [vmem:[%s1 + $0x1d4] sm:$0xf]
  %v451 = vld [vmem:[%s1 + $0x1d8] sm:$0xf]
  %v452 = vld [vmem:[%s1 + $0x1dc] sm:$0xf]
  %v453 = vld [vmem:[%s1 + $0x1e0] sm:$0xf]
  %v454 = vld [vmem:[%s1 + $0x1e4] sm:$0xf]
  %v455 = vld [vmem:[%s1 + $0x1e8] sm:$0xf]
  %v456 = vld [vmem:[%s1 + $0x1ec] sm:$0xf]
  %v457 = vld [vmem:[%s1 + $0x1f0] sm:$0xf]
  %v458 = vld [vmem:[%s1 + $0x1f4] sm:$0xf]
  %v459 = vld [vmem:[%s1 + $0x1f8] sm:$0xf]
  %v460 = vld [vmem:[%s1 + $0x1fc] sm:$0xf]
  %v461 = vld [vmem:[%s1 + $0x200] sm:$0xf]
  %v462 = vld [vmem:[%s1 + $0x204] sm:$0xf]
  %v463 = vld [vmem:[%s1 + $0x208] sm:$0xf]
  %v464 = vld [vmem:[%s1 + $0x20c] sm:$0xf]
  %v465 = vld [vmem:[%s1 + $0x210] sm:$0xf]
  %v466 = vld [vmem:[%s1 + $0x214] sm:$0xf]
  %v467 = vld [vmem:[%s1 + $0x218] sm:$0xf]
  %v468 = vld [vmem:[%s1 + $0x21c] sm:$0xf]
  %v469 = vld [vmem:[%s1 + $0x220] sm:$0xf]
  %v470 = vld [vmem:[%s1 + $0x224] sm:$0xf]
  %v471 = vld [vmem:[%s1 + $0x228] sm:$0xf]
  %v472 = vld [vmem:[%s1 + $0x22c] sm:$0xf]
  %v473 = vld [vmem:[%s1 + $0x230] sm:$0xf]
  %v474 = vld [vmem:[%s1 + $0x234] sm:$0xf]
  %v475 = vld [vmem:[%s1 + $0x238] sm:$0xf]
  %v476 = vld [vmem:[%s1 + $0x23c] sm:$0xf]
  %v797 = vunpack.c.l.b16 %v13
  %v798 = vunpack.c.h.b16 %v13
  %v799 = vunpack.c.l.b16 %v14
  %v800 = vunpack.c.h.b16 %v14
  %v801 = vunpack.c.l.b16 %v15
  %v802 = vunpack.c.h.b16 %v15
  %v803 = vunpack.c.l.b16 %v16
  %v804 = vunpack.c.h.b16 %v16
  %v805 = vunpack.c.l.b16 %v17
  %v806 = vunpack.c.l.b16 %v18
  %v807 = vunpack.c.h.b16 %v18
  %v808 = vunpack.c.l.b16 %v19
  %v809 = vunpack.c.h.b16 %v19
  %v810 = vunpack.c.l.b16 %v20
  %v811 = vunpack.c.h.b16 %v20
  %v812 = vunpack.c.l.b16 %v21
  %v813 = vunpack.c.h.b16 %v21
  %v814 = vunpack.c.l.b16 %v22
  %v815 = vunpack.c.l.b16 %v23
  %v816 = vunpack.c.h.b16 %v23
  %v817 = vunpack.c.l.b16 %v24
  %v818 = vunpack.c.h.b16 %v24
  %v819 = vunpack.c.l.b16 %v25
  %v820 = vunpack.c.h.b16 %v25
  %v821 = vunpack.c.l.b16 %v26
  %v822 = vunpack.c.h.b16 %v26
  %v823 = vunpack.c.l.b16 %v27
  %v824 = vunpack.c.l.b16 %v28
  %v825 = vunpack.c.h.b16 %v28
  %v826 = vunpack.c.l.b16 %v29
  %v827 = vunpack.c.h.b16 %v29
  %v828 = vunpack.c.l.b16 %v30
  %v829 = vunpack.c.h.b16 %v30
  %v830 = vunpack.c.l.b16 %v31
  %v831 = vunpack.c.h.b16 %v31
  %v832 = vunpack.c.l.b16 %v32
  %v833 = vunpack.c.l.b16 %v33
  %v834 = vunpack.c.h.b16 %v33
  %v835 = vunpack.c.l.b16 %v34
  %v836 = vunpack.c.h.b16 %v34
  %v837 = vunpack.c.l.b16 %v35
  %v838 = vunpack.c.h.b16 %v35
  %v839 = vunpack.c.l.b16 %v36
  %v840 = vunpack.c.h.b16 %v36
  %v841 = vunpack.c.l.b16 %v37
  %v842 = vunpack.c.l.b16 %v38
  %v843 = vunpack.c.h.b16 %v38
  %v844 = vunpack.c.l.b16 %v39
  %v845 = vunpack.c.h.b16 %v39
  %v846 = vunpack.c.l.b16 %v40
  %v847 = vunpack.c.h.b16 %v40
  %v848 = vunpack.c.l.b16 %v41
  %v849 = vunpack.c.h.b16 %v41
  %v850 = vunpack.c.l.b16 %v42
  %v851 = vunpack.c.l.b16 %v43
  %v852 = vunpack.c.h.b16 %v43
  %v853 = vunpack.c.l.b16 %v44
  %v854 = vunpack.c.h.b16 %v44
  %v855 = vunpack.c.l.b16 %v45
  %v856 = vunpack.c.h.b16 %v45
  %v857 = vunpack.c.l.b16 %v46
  %v858 = vunpack.c.h.b16 %v46
  %v859 = vunpack.c.l.b16 %v47
  %v860 = vunpack.c.l.b16 %v48
  %v861 = vunpack.c.h.b16 %v48
  %v862 = vunpack.c.l.b16 %v49
  %v863 = vunpack.c.h.b16 %v49
  %v864 = vunpack.c.l.b16 %v50
  %v865 = vunpack.c.h.b16 %v50
  %v866 = vunpack.c.l.b16 %v51
  %v867 = vunpack.c.h.b16 %v51
  %v868 = vunpack.c.l.b16 %v52
  %v869 = vunpack.c.l.b16 %v53
  %v870 = vunpack.c.h.b16 %v53
  %v871 = vunpack.c.l.b16 %v54
  %v872 = vunpack.c.h.b16 %v54
  %v873 = vunpack.c.l.b16 %v55
  %v874 = vunpack.c.h.b16 %v55
  %v875 = vunpack.c.l.b16 %v56
  %v876 = vunpack.c.h.b16 %v56
  %v877 = vunpack.c.l.b16 %v57
  %v878 = vunpack.c.l.b16 %v58
  %v879 = vunpack.c.h.b16 %v58
  %v880 = vunpack.c.l.b16 %v59
  %v881 = vunpack.c.h.b16 %v59
  %v882 = vunpack.c.l.b16 %v60
  %v883 = vunpack.c.h.b16 %v60
  %v884 = vunpack.c.l.b16 %v61
  %v885 = vunpack.c.h.b16 %v61
  %v886 = vunpack.c.l.b16 %v62
  %v887 = vunpack.c.l.b16 %v63
  %v888 = vunpack.c.h.b16 %v63
  %v889 = vunpack.c.l.b16 %v64
  %v890 = vunpack.c.h.b16 %v64
  %v891 = vunpack.c.l.b16 %v65
  %v892 = vunpack.c.h.b16 %v65
  %v893 = vunpack.c.l.b16 %v66
  %v894 = vunpack.c.h.b16 %v66
  %v895 = vunpack.c.l.b16 %v67
  %v896 = vunpack.c.l.b16 %v68
  %v897 = vunpack.c.h.b16 %v68
  %v898 = vunpack.c.l.b16 %v69
  %v899 = vunpack.c.h.b16 %v69
  %v900 = vunpack.c.l.b16 %v70
  %v901 = vunpack.c.h.b16 %v70
  %v902 = vunpack.c.l.b16 %v71
  %v903 = vunpack.c.h.b16 %v71
  %v904 = vunpack.c.l.b16 %v72
  %v905 = vunpack.c.l.b16 %v73
  %v906 = vunpack.c.h.b16 %v73
  %v907 = vunpack.c.l.b16 %v74
  %v908 = vunpack.c.h.b16 %v74
  %v909 = vunpack.c.l.b16 %v75
  %v910 = vunpack.c.h.b16 %v75
  %v911 = vunpack.c.l.b16 %v76
  %v912 = vunpack.c.h.b16 %v76
  %v913 = vunpack.c.l.b16 %v77
  %v914 = vunpack.c.l.b16 %v78
  %v915 = vunpack.c.h.b16 %v78
  %v916 = vunpack.c.l.b16 %v79
  %v917 = vunpack.c.h.b16 %v79
  %v918 = vunpack.c.l.b16 %v80
  %v919 = vunpack.c.h.b16 %v80
  %v920 = vunpack.c.l.b16 %v81
  %v921 = vunpack.c.h.b16 %v81
  %v922 = vunpack.c.l.b16 %v82
  %v923 = vunpack.c.l.b16 %v83
  %v924 = vunpack.c.h.b16 %v83
  %v925 = vunpack.c.l.b16 %v84
  %v926 = vunpack.c.h.b16 %v84
  %v927 = vunpack.c.l.b16 %v85
  %v928 = vunpack.c.h.b16 %v85
  %v929 = vunpack.c.l.b16 %v86
  %v930 = vunpack.c.h.b16 %v86
  %v931 = vunpack.c.l.b16 %v87
  %v932 = vunpack.c.l.b16 %v88
  %v933 = vunpack.c.h.b16 %v88
  %v934 = vunpack.c.l.b16 %v89
  %v935 = vunpack.c.h.b16 %v89
  %v936 = vunpack.c.l.b16 %v90
  %v937 = vunpack.c.h.b16 %v90
  %v938 = vunpack.c.l.b16 %v91
  %v939 = vunpack.c.h.b16 %v91
  %v940 = vunpack.c.l.b16 %v92
  %v941 = vunpack.c.l.b16 %v93
  %v942 = vunpack.c.h.b16 %v93
  %v943 = vunpack.c.l.b16 %v94
  %v944 = vunpack.c.h.b16 %v94
  %v945 = vunpack.c.l.b16 %v95
  %v946 = vunpack.c.h.b16 %v95
  %v947 = vunpack.c.l.b16 %v96
  %v948 = vunpack.c.h.b16 %v96
  %v949 = vunpack.c.l.b16 %v97
  %v950 = vunpack.c.l.b16 %v98
  %v951 = vunpack.c.h.b16 %v98
  %v952 = vunpack.c.l.b16 %v99
  %v953 = vunpack.c.h.b16 %v99
  %v954 = vunpack.c.l.b16 %v100
  %v955 = vunpack.c.h.b16 %v100
  %v956 = vunpack.c.l.b16 %v101
  %v957 = vunpack.c.h.b16 %v101
  %v958 = vunpack.c.l.b16 %v102
  %v959 = vunpack.c.l.b16 %v103
  %v960 = vunpack.c.h.b16 %v103
  %v961 = vunpack.c.l.b16 %v104
  %v962 = vunpack.c.h.b16 %v104
  %v963 = vunpack.c.l.b16 %v105
  %v964 = vunpack.c.h.b16 %v105
  %v965 = vunpack.c.l.b16 %v106
  %v966 = vunpack.c.h.b16 %v106
  %v967 = vunpack.c.l.b16 %v107
  %v968 = vunpack.c.l.b16 %v108
  %v969 = vunpack.c.h.b16 %v108
  %v970 = vunpack.c.l.b16 %v109
  %v971 = vunpack.c.h.b16 %v109
  %v972 = vunpack.c.l.b16 %v110
  %v973 = vunpack.c.h.b16 %v110
  %v974 = vunpack.c.l.b16 %v111
  %v975 = vunpack.c.h.b16 %v111
  %v976 = vunpack.c.l.b16 %v112
  %v977 = vunpack.c.l.b16 %v113
  %v978 = vunpack.c.h.b16 %v113
  %v979 = vunpack.c.l.b16 %v114
  %v980 = vunpack.c.h.b16 %v114
  %v981 = vunpack.c.l.b16 %v115
  %v982 = vunpack.c.h.b16 %v115
  %v983 = vunpack.c.l.b16 %v116
  %v984 = vunpack.c.h.b16 %v116
  %v985 = vunpack.c.l.b16 %v117
  %v986 = vunpack.c.l.b16 %v118
  %v987 = vunpack.c.h.b16 %v118
  %v988 = vunpack.c.l.b16 %v119
  %v989 = vunpack.c.h.b16 %v119
  %v990 = vunpack.c.l.b16 %v120
  %v991 = vunpack.c.h.b16 %v120
  %v992 = vunpack.c.l.b16 %v121
  %v993 = vunpack.c.h.b16 %v121
  %v994 = vunpack.c.l.b16 %v122
  %v995 = vunpack.c.l.b16 %v123
  %v996 = vunpack.c.h.b16 %v123
  %v997 = vunpack.c.l.b16 %v124
  %v998 = vunpack.c.h.b16 %v124
  %v999 = vunpack.c.l.b16 %v125
  %v1000 = vunpack.c.h.b16 %v125
  %v1001 = vunpack.c.l.b16 %v126
  %v1002 = vunpack.c.h.b16 %v126
  %v1003 = vunpack.c.l.b16 %v127
  %v1004 = vunpack.c.l.b16 %v128
  %v1005 = vunpack.c.h.b16 %v128
  %v1006 = vunpack.c.l.b16 %v129
  %v1007 = vunpack.c.h.b16 %v129
  %v1008 = vunpack.c.l.b16 %v130
  %v1009 = vunpack.c.h.b16 %v130
  %v1010 = vunpack.c.l.b16 %v131
  %v1011 = vunpack.c.h.b16 %v131
  %v1012 = vunpack.c.l.b16 %v132
  %v1013 = vunpack.c.l.b16 %v133
  %v1014 = vunpack.c.h.b16 %v133
  %v1015 = vunpack.c.l.b16 %v134
  %v1016 = vunpack.c.h.b16 %v134
  %v1017 = vunpack.c.l.b16 %v135
  %v1018 = vunpack.c.h.b16 %v135
  %v1019 = vunpack.c.l.b16 %v136
  %v1020 = vunpack.c.h.b16 %v136
  %v1021 = vunpack.c.l.b16 %v137
  %v1022 = vunpack.c.l.b16 %v138
  %v1023 = vunpack.c.h.b16 %v138
  %v1024 = vunpack.c.l.b16 %v139
  %v1025 = vunpack.c.h.b16 %v139
  %v1026 = vunpack.c.l.b16 %v140
  %v1027 = vunpack.c.h.b16 %v140
  %v1028 = vunpack.c.l.b16 %v141
  %v1029 = vunpack.c.h.b16 %v141
  %v1030 = vunpack.c.l.b16 %v142
  %v1031 = vunpack.c.l.b16 %v143
  %v1032 = vunpack.c.h.b16 %v143
  %v1033 = vunpack.c.l.b16 %v144
  %v1034 = vunpack.c.h.b16 %v144
  %v1035 = vunpack.c.l.b16 %v145
  %v1036 = vunpack.c.h.b16 %v145
  %v1037 = vunpack.c.l.b16 %v146
  %v1038 = vunpack.c.h.b16 %v146
  %v1039 = vunpack.c.l.b16 %v147
  %v1040 = vunpack.c.l.b16 %v148
  %v1041 = vunpack.c.h.b16 %v148
  %v1042 = vunpack.c.l.b16 %v149
  %v1043 = vunpack.c.h.b16 %v149
  %v1044 = vunpack.c.l.b16 %v150
  %v1045 = vunpack.c.h.b16 %v150
  %v1046 = vunpack.c.l.b16 %v151
  %v1047 = vunpack.c.h.b16 %v151
  %v1048 = vunpack.c.l.b16 %v152
  %v1049 = vunpack.c.l.b16 %v153
  %v1050 = vunpack.c.h.b16 %v153
  %v1051 = vunpack.c.l.b16 %v154
  %v1052 = vunpack.c.h.b16 %v154
  %v1053 = vunpack.c.l.b16 %v155
  %v1054 = vunpack.c.h.b16 %v155
  %v1055 = vunpack.c.l.b16 %v156
  %v1056 = vunpack.c.h.b16 %v156
  %v1057 = vunpack.c.l.b16 %v157
  %v1058 = vunpack.c.l.b16 %v158
  %v1059 = vunpack.c.h.b16 %v158
  %v1060 = vunpack.c.l.b16 %v159
  %v1061 = vunpack.c.h.b16 %v159
  %v1062 = vunpack.c.l.b16 %v160
  %v1063 = vunpack.c.h.b16 %v160
  %v1064 = vunpack.c.l.b16 %v161
  %v1065 = vunpack.c.h.b16 %v161
  %v1066 = vunpack.c.l.b16 %v162
  %v1067 = vunpack.c.l.b16 %v163
  %v1068 = vunpack.c.h.b16 %v163
  %v1069 = vunpack.c.l.b16 %v164
  %v1070 = vunpack.c.h.b16 %v164
  %v1071 = vunpack.c.l.b16 %v165
  %v1072 = vunpack.c.h.b16 %v165
  %v1073 = vunpack.c.l.b16 %v166
  %v1074 = vunpack.c.h.b16 %v166
  %v1075 = vunpack.c.l.b16 %v167
  %v1076 = vunpack.c.l.b16 %v168
  %v1077 = vunpack.c.h.b16 %v168
  %v1078 = vunpack.c.l.b16 %v169
  %v1079 = vunpack.c.h.b16 %v169
  %v1080 = vunpack.c.l.b16 %v170
  %v1081 = vunpack.c.h.b16 %v170
  %v1082 = vunpack.c.l.b16 %v171
  %v1083 = vunpack.c.h.b16 %v171
  %v1084 = vunpack.c.l.b16 %v172
  %v1085 = vunpack.c.l.b16 %v173
  %v1086 = vunpack.c.h.b16 %v173
  %v1087 = vunpack.c.l.b16 %v174
  %v1088 = vunpack.c.h.b16 %v174
  %v1089 = vunpack.c.l.b16 %v175
  %v1090 = vunpack.c.h.b16 %v175
  %v1091 = vunpack.c.l.b16 %v176
  %v1092 = vunpack.c.h.b16 %v176
  %v1093 = vunpack.c.l.b16 %v177
  %v1094 = vunpack.c.l.b16 %v178
  %v1095 = vunpack.c.h.b16 %v178
  %v1096 = vunpack.c.l.b16 %v179
  %v1097 = vunpack.c.h.b16 %v179
  %v1098 = vunpack.c.l.b16 %v180
  %v1099 = vunpack.c.h.b16 %v180
  %v1100 = vunpack.c.l.b16 %v181
  %v1101 = vunpack.c.h.b16 %v181
  %v1102 = vunpack.c.l.b16 %v182
  %v1103 = vunpack.c.l.b16 %v183
  %v1104 = vunpack.c.h.b16 %v183
  %v1105 = vunpack.c.l.b16 %v184
  %v1106 = vunpack.c.h.b16 %v184
  %v1107 = vunpack.c.l.b16 %v185
  %v1108 = vunpack.c.h.b16 %v185
  %v1109 = vunpack.c.l.b16 %v186
  %v1110 = vunpack.c.h.b16 %v186
  %v1111 = vunpack.c.l.b16 %v187
  %v1112 = vunpack.c.l.b16 %v188
  %v1113 = vunpack.c.h.b16 %v188
  %v1114 = vunpack.c.l.b16 %v189
  %v1115 = vunpack.c.h.b16 %v189
  %v1116 = vunpack.c.l.b16 %v190
  %v1117 = vunpack.c.h.b16 %v190
  %v1118 = vunpack.c.l.b16 %v191
  %v1119 = vunpack.c.h.b16 %v191
  %v1120 = vunpack.c.l.b16 %v192
  %v1121 = vunpack.c.l.b16 %v193
  %v1122 = vunpack.c.h.b16 %v193
  %v1123 = vunpack.c.l.b16 %v194
  %v1124 = vunpack.c.h.b16 %v194
  %v1125 = vunpack.c.l.b16 %v195
  %v1126 = vunpack.c.h.b16 %v195
  %v1127 = vunpack.c.l.b16 %v196
  %v1128 = vunpack.c.h.b16 %v196
  %v1129 = vunpack.c.l.b16 %v197
  %v1130 = vunpack.c.l.b16 %v198
  %v1131 = vunpack.c.h.b16 %v198
  %v1132 = vunpack.c.l.b16 %v199
  %v1133 = vunpack.c.h.b16 %v199
  %v1134 = vunpack.c.l.b16 %v200
  %v1135 = vunpack.c.h.b16 %v200
  %v1136 = vunpack.c.l.b16 %v201
  %v1137 = vunpack.c.h.b16 %v201
  %v1138 = vunpack.c.l.b16 %v202
  %v1139 = vunpack.c.l.b16 %v203
  %v1140 = vunpack.c.h.b16 %v203
  %v1141 = vunpack.c.l.b16 %v204
  %v1142 = vunpack.c.h.b16 %v204
  %v1143 = vunpack.c.l.b16 %v205
  %v1144 = vunpack.c.h.b16 %v205
  %v1145 = vunpack.c.l.b16 %v206
  %v1146 = vunpack.c.h.b16 %v206
  %v1147 = vunpack.c.l.b16 %v207
  %v1148 = vunpack.c.l.b16 %v208
  %v1149 = vunpack.c.h.b16 %v208
  %v1150 = vunpack.c.l.b16 %v209
  %v1151 = vunpack.c.h.b16 %v209
  %v1152 = vunpack.c.l.b16 %v210
  %v1153 = vunpack.c.h.b16 %v210
  %v1154 = vunpack.c.l.b16 %v211
  %v1155 = vunpack.c.h.b16 %v211
  %v1156 = vunpack.c.l.b16 %v212
  %v1157 = vunpack.c.l.b16 %v213
  %v1158 = vunpack.c.h.b16 %v213
  %v1159 = vunpack.c.l.b16 %v214
  %v1160 = vunpack.c.h.b16 %v214
  %v1161 = vunpack.c.l.b16 %v215
  %v1162 = vunpack.c.h.b16 %v215
  %v1163 = vunpack.c.l.b16 %v216
  %v1164 = vunpack.c.h.b16 %v216
  %v1165 = vunpack.c.l.b16 %v217
  %v1166 = vunpack.c.l.b16 %v218
  %v1167 = vunpack.c.h.b16 %v218
  %v1168 = vunpack.c.l.b16 %v219
  %v1169 = vunpack.c.h.b16 %v219
  %v1170 = vunpack.c.l.b16 %v220
  %v1171 = vunpack.c.h.b16 %v220
  %v1172 = vunpack.c.l.b16 %v221
  %v1173 = vunpack.c.h.b16 %v221
  %v1174 = vunpack.c.l.b16 %v222
  %v1175 = vunpack.c.l.b16 %v223
  %v1176 = vunpack.c.h.b16 %v223
  %v1177 = vunpack.c.l.b16 %v224
  %v1178 = vunpack.c.h.b16 %v224
  %v1179 = vunpack.c.l.b16 %v225
  %v1180 = vunpack.c.h.b16 %v225
  %v1181 = vunpack.c.l.b16 %v226
  %v1182 = vunpack.c.h.b16 %v226
  %v1183 = vunpack.c.l.b16 %v227
  %v1184 = vunpack.c.l.b16 %v228
  %v1185 = vunpack.c.h.b16 %v228
  %v1186 = vunpack.c.l.b16 %v229
  %v1187 = vunpack.c.h.b16 %v229
  %v1188 = vunpack.c.l.b16 %v230
  %v1189 = vunpack.c.h.b16 %v230
  %v1190 = vunpack.c.l.b16 %v231
  %v1191 = vunpack.c.h.b16 %v231
  %v1192 = vunpack.c.l.b16 %v232
  %v1193 = vunpack.c.l.b16 %v233
  %v1194 = vunpack.c.h.b16 %v233
  %v1195 = vunpack.c.l.b16 %v234
  %v1196 = vunpack.c.h.b16 %v234
  %v1197 = vunpack.c.l.b16 %v235
  %v1198 = vunpack.c.h.b16 %v235
  %v1199 = vunpack.c.l.b16 %v236
  %v1200 = vunpack.c.h.b16 %v236
  %v1201 = vunpack.c.l.b16 %v237
  %v1202 = vunpack.c.l.b16 %v238
  %v1203 = vunpack.c.h.b16 %v238
  %v1204 = vunpack.c.l.b16 %v239
  %v1205 = vunpack.c.h.b16 %v239
  %v1206 = vunpack.c.l.b16 %v240
  %v1207 = vunpack.c.h.b16 %v240
  %v1208 = vunpack.c.l.b16 %v241
  %v1209 = vunpack.c.h.b16 %v241
  %v1210 = vunpack.c.l.b16 %v242
  %v1211 = vunpack.c.l.b16 %v243
  %v1212 = vunpack.c.h.b16 %v243
  %v1213 = vunpack.c.l.b16 %v244
  %v1214 = vunpack.c.h.b16 %v244
  %v1215 = vunpack.c.l.b16 %v245
  %v1216 = vunpack.c.h.b16 %v245
  %v1217 = vunpack.c.l.b16 %v246
  %v1218 = vunpack.c.h.b16 %v246
  %v1219 = vunpack.c.l.b16 %v247
  %v1220 = vunpack.c.l.b16 %v248
  %v1221 = vunpack.c.h.b16 %v248
  %v1222 = vunpack.c.l.b16 %v249
  %v1223 = vunpack.c.h.b16 %v249
  %v1224 = vunpack.c.l.b16 %v250
  %v1225 = vunpack.c.h.b16 %v250
  %v1226 = vunpack.c.l.b16 %v251
  %v1227 = vunpack.c.h.b16 %v251
  %v1228 = vunpack.c.l.b16 %v252
  %v1229 = vunpack.c.l.b16 %v253
  %v1230 = vunpack.c.h.b16 %v253
  %v1231 = vunpack.c.l.b16 %v254
  %v1232 = vunpack.c.h.b16 %v254
  %v1233 = vunpack.c.l.b16 %v255
  %v1234 = vunpack.c.h.b16 %v255
  %v1235 = vunpack.c.l.b16 %v256
  %v1236 = vunpack.c.h.b16 %v256
  %v1237 = vunpack.c.l.b16 %v257
  %v1238 = vunpack.c.l.b16 %v258
  %v1239 = vunpack.c.h.b16 %v258
  %v1240 = vunpack.c.l.b16 %v259
  %v1241 = vunpack.c.h.b16 %v259
  %v1242 = vunpack.c.l.b16 %v260
  %v1243 = vunpack.c.h.b16 %v260
  %v1244 = vunpack.c.l.b16 %v261
  %v1245 = vunpack.c.h.b16 %v261
  %v1246 = vunpack.c.l.b16 %v262
  %v1247 = vunpack.c.l.b16 %v263
  %v1248 = vunpack.c.h.b16 %v263
  %v1249 = vunpack.c.l.b16 %v264
  %v1250 = vunpack.c.h.b16 %v264
  %v1251 = vunpack.c.l.b16 %v265
  %v1252 = vunpack.c.h.b16 %v265
  %v1253 = vunpack.c.l.b16 %v266
  %v1254 = vunpack.c.h.b16 %v266
  %v1255 = vunpack.c.l.b16 %v267
  %v1256 = vunpack.c.l.b16 %v268
  %v1257 = vunpack.c.h.b16 %v268
  %v1258 = vunpack.c.l.b16 %v269
  %v1259 = vunpack.c.h.b16 %v269
  %v1260 = vunpack.c.l.b16 %v270
  %v1261 = vunpack.c.h.b16 %v270
  %v1262 = vunpack.c.l.b16 %v271
  %v1263 = vunpack.c.h.b16 %v271
  %v1264 = vunpack.c.l.b16 %v272
  %v1265 = vunpack.c.l.b16 %v273
  %v1266 = vunpack.c.h.b16 %v273
  %v1267 = vunpack.c.l.b16 %v274
  %v1268 = vunpack.c.h.b16 %v274
  %v1269 = vunpack.c.l.b16 %v275
  %v1270 = vunpack.c.h.b16 %v275
  %v1271 = vunpack.c.l.b16 %v276
  %v1272 = vunpack.c.h.b16 %v276
  %v1273 = vunpack.c.l.b16 %v277
  %v1274 = vunpack.c.l.b16 %v278
  %v1275 = vunpack.c.h.b16 %v278
  %v1276 = vunpack.c.l.b16 %v279
  %v1277 = vunpack.c.h.b16 %v279
  %v1278 = vunpack.c.l.b16 %v280
  %v1279 = vunpack.c.h.b16 %v280
  %v1280 = vunpack.c.l.b16 %v281
  %v1281 = vunpack.c.h.b16 %v281
  %v1282 = vunpack.c.l.b16 %v282
  %v1283 = vunpack.c.l.b16 %v283
  %v1284 = vunpack.c.h.b16 %v283
  %v1285 = vunpack.c.l.b16 %v284
  %v1286 = vunpack.c.h.b16 %v284
  %v1287 = vunpack.c.l.b16 %v285
  %v1288 = vunpack.c.h.b16 %v285
  %v1289 = vunpack.c.l.b16 %v286
  %v1290 = vunpack.c.h.b16 %v286
  %v1291 = vunpack.c.l.b16 %v287
  %v1292 = vunpack.c.l.b16 %v288
  %v1293 = vunpack.c.h.b16 %v288
  %v1294 = vunpack.c.l.b16 %v289
  %v1295 = vunpack.c.h.b16 %v289
  %v1296 = vunpack.c.l.b16 %v290
  %v1297 = vunpack.c.h.b16 %v290
  %v1298 = vunpack.c.l.b16 %v291
  %v1299 = vunpack.c.h.b16 %v291
  %v1300 = vunpack.c.l.b16 %v292
  %v1301 = vunpack.c.l.b16 %v293
  %v1302 = vunpack.c.h.b16 %v293
  %v1303 = vunpack.c.l.b16 %v294
  %v1304 = vunpack.c.h.b16 %v294
  %v1305 = vunpack.c.l.b16 %v295
  %v1306 = vunpack.c.h.b16 %v295
  %v1307 = vunpack.c.l.b16 %v296
  %v1308 = vunpack.c.h.b16 %v296
  %v1309 = vunpack.c.l.b16 %v297
  %v1310 = vunpack.c.l.b16 %v298
  %v1311 = vunpack.c.h.b16 %v298
  %v1312 = vunpack.c.l.b16 %v299
  %v1313 = vunpack.c.h.b16 %v299
  %v1314 = vunpack.c.l.b16 %v300
  %v1315 = vunpack.c.h.b16 %v300
  %v1316 = vunpack.c.l.b16 %v301
  %v1317 = vunpack.c.h.b16 %v301
  %v1318 = vunpack.c.l.b16 %v302
  %v1319 = vunpack.c.l.b16 %v303
  %v1320 = vunpack.c.h.b16 %v303
  %v1321 = vunpack.c.l.b16 %v304
  %v1322 = vunpack.c.h.b16 %v304
  %v1323 = vunpack.c.l.b16 %v305
  %v1324 = vunpack.c.h.b16 %v305
  %v1325 = vunpack.c.l.b16 %v306
  %v1326 = vunpack.c.h.b16 %v306
  %v1327 = vunpack.c.l.b16 %v307
  %v1328 = vunpack.c.l.b16 %v308
  %v1329 = vunpack.c.h.b16 %v308
  %v1330 = vunpack.c.l.b16 %v309
  %v1331 = vunpack.c.h.b16 %v309
  %v1332 = vunpack.c.l.b16 %v310
  %v1333 = vunpack.c.h.b16 %v310
  %v1334 = vunpack.c.l.b16 %v311
  %v1335 = vunpack.c.h.b16 %v311
  %v1336 = vunpack.c.l.b16 %v312
  %v1337 = vunpack.c.l.b16 %v313
  %v1338 = vunpack.c.h.b16 %v313
  %v1339 = vunpack.c.l.b16 %v314
  %v1340 = vunpack.c.h.b16 %v314
  %v1341 = vunpack.c.l.b16 %v315
  %v1342 = vunpack.c.h.b16 %v315
  %v1343 = vunpack.c.l.b16 %v316
  %v1344 = vunpack.c.h.b16 %v316
  %v1345 = vunpack.c.l.b16 %v317
  %v1346 = vunpack.c.l.b16 %v318
  %v1347 = vunpack.c.h.b16 %v318
  %v1348 = vunpack.c.l.b16 %v319
  %v1349 = vunpack.c.h.b16 %v319
  %v1350 = vunpack.c.l.b16 %v320
  %v1351 = vunpack.c.h.b16 %v320
  %v1352 = vunpack.c.l.b16 %v321
  %v1353 = vunpack.c.h.b16 %v321
  %v1354 = vunpack.c.l.b16 %v322
  %v1355 = vunpack.c.l.b16 %v323
  %v1356 = vunpack.c.h.b16 %v323
  %v1357 = vunpack.c.l.b16 %v324
  %v1358 = vunpack.c.h.b16 %v324
  %v1359 = vunpack.c.l.b16 %v325
  %v1360 = vunpack.c.h.b16 %v325
  %v1361 = vunpack.c.l.b16 %v326
  %v1362 = vunpack.c.h.b16 %v326
  %v1363 = vunpack.c.l.b16 %v327
  %v1364 = vunpack.c.l.b16 %v328
  %v1365 = vunpack.c.h.b16 %v328
  %v1366 = vunpack.c.l.b16 %v329
  %v1367 = vunpack.c.h.b16 %v329
  %v1368 = vunpack.c.l.b16 %v330
  %v1369 = vunpack.c.h.b16 %v330
  %v1370 = vunpack.c.l.b16 %v331
  %v1371 = vunpack.c.h.b16 %v331
  %v1372 = vunpack.c.l.b16 %v332
  %v1373 = vpack.c.b16 %v806, %v797
  %v1374 = vpack.c.b16 %v807, %v798
  %v1375 = vpack.c.b16 %v808, %v799
  %v1376 = vpack.c.b16 %v809, %v800
  %v1377 = vpack.c.b16 %v810, %v801
  %v1378 = vpack.c.b16 %v811, %v802
  %v1379 = vpack.c.b16 %v812, %v803
  %v1380 = vpack.c.b16 %v813, %v804
  %v1381 = vpack.c.b16 %v814, %v805
  %v1382 = vpack.c.b16 %v824, %v815
  %v1383 = vpack.c.b16 %v825, %v816
  %v1384 = vpack.c.b16 %v826, %v817
  %v1385 = vpack.c.b16 %v827, %v818
  %v1386 = vpack.c.b16 %v828, %v819
  %v1387 = vpack.c.b16 %v829, %v820
  %v1388 = vpack.c.b16 %v830, %v821
  %v1389 = vpack.c.b16 %v831, %v822
  %v1390 = vpack.c.b16 %v832, %v823
  %v1391 = vpack.c.b16 %v842, %v833
  %v1392 = vpack.c.b16 %v843, %v834
  %v1393 = vpack.c.b16 %v844, %v835
  %v1394 = vpack.c.b16 %v845, %v836
  %v1395 = vpack.c.b16 %v846, %v837
  %v1396 = vpack.c.b16 %v847, %v838
  %v1397 = vpack.c.b16 %v848, %v839
  %v1398 = vpack.c.b16 %v849, %v840
  %v1399 = vpack.c.b16 %v850, %v841
  %v1400 = vpack.c.b16 %v860, %v851
  %v1401 = vpack.c.b16 %v861, %v852
  %v1402 = vpack.c.b16 %v862, %v853
  %v1403 = vpack.c.b16 %v863, %v854
  %v1404 = vpack.c.b16 %v864, %v855
  %v1405 = vpack.c.b16 %v865, %v856
  %v1406 = vpack.c.b16 %v866, %v857
  %v1407 = vpack.c.b16 %v867, %v858
  %v1408 = vpack.c.b16 %v868, %v859
  %v1409 = vpack.c.b16 %v878, %v869
  %v1410 = vpack.c.b16 %v879, %v870
  %v1411 = vpack.c.b16 %v880, %v871
  %v1412 = vpack.c.b16 %v881, %v872
  %v1413 = vpack.c.b16 %v882, %v873
  %v1414 = vpack.c.b16 %v883, %v874
  %v1415 = vpack.c.b16 %v884, %v875
  %v1416 = vpack.c.b16 %v885, %v876
  %v1417 = vpack.c.b16 %v886, %v877
  %v1418 = vpack.c.b16 %v896, %v887
  %v1419 = vpack.c.b16 %v897, %v888
  %v1420 = vpack.c.b16 %v898, %v889
  %v1421 = vpack.c.b16 %v899, %v890
  %v1422 = vpack.c.b16 %v900, %v891
  %v1423 = vpack.c.b16 %v901, %v892
  %v1424 = vpack.c.b16 %v902, %v893
  %v1425 = vpack.c.b16 %v903, %v894
  %v1426 = vpack.c.b16 %v904, %v895
  %v1427 = vpack.c.b16 %v914, %v905
  %v1428 = vpack.c.b16 %v915, %v906
  %v1429 = vpack.c.b16 %v916, %v907
  %v1430 = vpack.c.b16 %v917, %v908
  %v1431 = vpack.c.b16 %v918, %v909
  %v1432 = vpack.c.b16 %v919, %v910
  %v1433 = vpack.c.b16 %v920, %v911
  %v1434 = vpack.c.b16 %v921, %v912
  %v1435 = vpack.c.b16 %v922, %v913
  %v1436 = vpack.c.b16 %v932, %v923
  %v1437 = vpack.c.b16 %v933, %v924
  %v1438 = vpack.c.b16 %v934, %v925
  %v1439 = vpack.c.b16 %v935, %v926
  %v1440 = vpack.c.b16 %v936, %v927
  %v1441 = vpack.c.b16 %v937, %v928
  %v1442 = vpack.c.b16 %v938, %v929
  %v1443 = vpack.c.b16 %v939, %v930
  %v1444 = vpack.c.b16 %v940, %v931
  %v1445 = vpack.c.b16 %v950, %v941
  %v1446 = vpack.c.b16 %v951, %v942
  %v1447 = vpack.c.b16 %v952, %v943
  %v1448 = vpack.c.b16 %v953, %v944
  %v1449 = vpack.c.b16 %v954, %v945
  %v1450 = vpack.c.b16 %v955, %v946
  %v1451 = vpack.c.b16 %v956, %v947
  %v1452 = vpack.c.b16 %v957, %v948
  %v1453 = vpack.c.b16 %v958, %v949
  %v1454 = vpack.c.b16 %v968, %v959
  %v1455 = vpack.c.b16 %v969, %v960
  %v1456 = vpack.c.b16 %v970, %v961
  %v1457 = vpack.c.b16 %v971, %v962
  %v1458 = vpack.c.b16 %v972, %v963
  %v1459 = vpack.c.b16 %v973, %v964
  %v1460 = vpack.c.b16 %v974, %v965
  %v1461 = vpack.c.b16 %v975, %v966
  %v1462 = vpack.c.b16 %v976, %v967
  %v1463 = vpack.c.b16 %v986, %v977
  %v1464 = vpack.c.b16 %v987, %v978
  %v1465 = vpack.c.b16 %v988, %v979
  %v1466 = vpack.c.b16 %v989, %v980
  %v1467 = vpack.c.b16 %v990, %v981
  %v1468 = vpack.c.b16 %v991, %v982
  %v1469 = vpack.c.b16 %v992, %v983
  %v1470 = vpack.c.b16 %v993, %v984
  %v1471 = vpack.c.b16 %v994, %v985
  %v1472 = vpack.c.b16 %v1004, %v995
  %v1473 = vpack.c.b16 %v1005, %v996
  %v1474 = vpack.c.b16 %v1006, %v997
  %v1475 = vpack.c.b16 %v1007, %v998
  %v1476 = vpack.c.b16 %v1008, %v999
  %v1477 = vpack.c.b16 %v1009, %v1000
  %v1478 = vpack.c.b16 %v1010, %v1001
  %v1479 = vpack.c.b16 %v1011, %v1002
  %v1480 = vpack.c.b16 %v1012, %v1003
  %v1481 = vpack.c.b16 %v1022, %v1013
  %v1482 = vpack.c.b16 %v1023, %v1014
  %v1483 = vpack.c.b16 %v1024, %v1015
  %v1484 = vpack.c.b16 %v1025, %v1016
  %v1485 = vpack.c.b16 %v1026, %v1017
  %v1486 = vpack.c.b16 %v1027, %v1018
  %v1487 = vpack.c.b16 %v1028, %v1019
  %v1488 = vpack.c.b16 %v1029, %v1020
  %v1489 = vpack.c.b16 %v1030, %v1021
  %v1490 = vpack.c.b16 %v1040, %v1031
  %v1491 = vpack.c.b16 %v1041, %v1032
  %v1492 = vpack.c.b16 %v1042, %v1033
  %v1493 = vpack.c.b16 %v1043, %v1034
  %v1494 = vpack.c.b16 %v1044, %v1035
  %v1495 = vpack.c.b16 %v1045, %v1036
  %v1496 = vpack.c.b16 %v1046, %v1037
  %v1497 = vpack.c.b16 %v1047, %v1038
  %v1498 = vpack.c.b16 %v1048, %v1039
  %v1499 = vpack.c.b16 %v1058, %v1049
  %v1500 = vpack.c.b16 %v1059, %v1050
  %v1501 = vpack.c.b16 %v1060, %v1051
  %v1502 = vpack.c.b16 %v1061, %v1052
  %v1503 = vpack.c.b16 %v1062, %v1053
  %v1504 = vpack.c.b16 %v1063, %v1054
  %v1505 = vpack.c.b16 %v1064, %v1055
  %v1506 = vpack.c.b16 %v1065, %v1056
  %v1507 = vpack.c.b16 %v1066, %v1057
  %v1508 = vpack.c.b16 %v1076, %v1067
  %v1509 = vpack.c.b16 %v1077, %v1068
  %v1510 = vpack.c.b16 %v1078, %v1069
  %v1511 = vpack.c.b16 %v1079, %v1070
  %v1512 = vpack.c.b16 %v1080, %v1071
  %v1513 = vpack.c.b16 %v1081, %v1072
  %v1514 = vpack.c.b16 %v1082, %v1073
  %v1515 = vpack.c.b16 %v1083, %v1074
  %v1516 = vpack.c.b16 %v1084, %v1075
  %v1517 = vpack.c.b16 %v1094, %v1085
  %v1518 = vpack.c.b16 %v1095, %v1086
  %v1519 = vpack.c.b16 %v1096, %v1087
  %v1520 = vpack.c.b16 %v1097, %v1088
  %v1521 = vpack.c.b16 %v1098, %v1089
  %v1522 = vpack.c.b16 %v1099, %v1090
  %v1523 = vpack.c.b16 %v1100, %v1091
  %v1524 = vpack.c.b16 %v1101, %v1092
  %v1525 = vpack.c.b16 %v1102, %v1093
  %v1526 = vpack.c.b16 %v1112, %v1103
  %v1527 = vpack.c.b16 %v1113, %v1104
  %v1528 = vpack.c.b16 %v1114, %v1105
  %v1529 = vpack.c.b16 %v1115, %v1106
  %v1530 = vpack.c.b16 %v1116, %v1107
  %v1531 = vpack.c.b16 %v1117, %v1108
  %v1532 = vpack.c.b16 %v1118, %v1109
  %v1533 = vpack.c.b16 %v1119, %v1110
  %v1534 = vpack.c.b16 %v1120, %v1111
  %v1535 = vpack.c.b16 %v1130, %v1121
  %v1536 = vpack.c.b16 %v1131, %v1122
  %v1537 = vpack.c.b16 %v1132, %v1123
  %v1538 = vpack.c.b16 %v1133, %v1124
  %v1539 = vpack.c.b16 %v1134, %v1125
  %v1540 = vpack.c.b16 %v1135, %v1126
  %v1541 = vpack.c.b16 %v1136, %v1127
  %v1542 = vpack.c.b16 %v1137, %v1128
  %v1543 = vpack.c.b16 %v1138, %v1129
  %v1544 = vpack.c.b16 %v1148, %v1139
  %v1545 = vpack.c.b16 %v1149, %v1140
  %v1546 = vpack.c.b16 %v1150, %v1141
  %v1547 = vpack.c.b16 %v1151, %v1142
  %v1548 = vpack.c.b16 %v1152, %v1143
  %v1549 = vpack.c.b16 %v1153, %v1144
  %v1550 = vpack.c.b16 %v1154, %v1145
  %v1551 = vpack.c.b16 %v1155, %v1146
  %v1552 = vpack.c.b16 %v1156, %v1147
  %v1553 = vpack.c.b16 %v1166, %v1157
  %v1554 = vpack.c.b16 %v1167, %v1158
  %v1555 = vpack.c.b16 %v1168, %v1159
  %v1556 = vpack.c.b16 %v1169, %v1160
  %v1557 = vpack.c.b16 %v1170, %v1161
  %v1558 = vpack.c.b16 %v1171, %v1162
  %v1559 = vpack.c.b16 %v1172, %v1163
  %v1560 = vpack.c.b16 %v1173, %v1164
  %v1561 = vpack.c.b16 %v1174, %v1165
  %v1562 = vpack.c.b16 %v1184, %v1175
  %v1563 = vpack.c.b16 %v1185, %v1176
  %v1564 = vpack.c.b16 %v1186, %v1177
  %v1565 = vpack.c.b16 %v1187, %v1178
  %v1566 = vpack.c.b16 %v1188, %v1179
  %v1567 = vpack.c.b16 %v1189, %v1180
  %v1568 = vpack.c.b16 %v1190, %v1181
  %v1569 = vpack.c.b16 %v1191, %v1182
  %v1570 = vpack.c.b16 %v1192, %v1183
  %v1571 = vpack.c.b16 %v1202, %v1193
  %v1572 = vpack.c.b16 %v1203, %v1194
  %v1573 = vpack.c.b16 %v1204, %v1195
  %v1574 = vpack.c.b16 %v1205, %v1196
  %v1575 = vpack.c.b16 %v1206, %v1197
  %v1576 = vpack.c.b16 %v1207, %v1198
  %v1577 = vpack.c.b16 %v1208, %v1199
  %v1578 = vpack.c.b16 %v1209, %v1200
  %v1579 = vpack.c.b16 %v1210, %v1201
  %v1580 = vpack.c.b16 %v1220, %v1211
  %v1581 = vpack.c.b16 %v1221, %v1212
  %v1582 = vpack.c.b16 %v1222, %v1213
  %v1583 = vpack.c.b16 %v1223, %v1214
  %v1584 = vpack.c.b16 %v1224, %v1215
  %v1585 = vpack.c.b16 %v1225, %v1216
  %v1586 = vpack.c.b16 %v1226, %v1217
  %v1587 = vpack.c.b16 %v1227, %v1218
  %v1588 = vpack.c.b16 %v1228, %v1219
  %v1589 = vpack.c.b16 %v1238, %v1229
  %v1590 = vpack.c.b16 %v1239, %v1230
  %v1591 = vpack.c.b16 %v1240, %v1231
  %v1592 = vpack.c.b16 %v1241, %v1232
  %v1593 = vpack.c.b16 %v1242, %v1233
  %v1594 = vpack.c.b16 %v1243, %v1234
  %v1595 = vpack.c.b16 %v1244, %v1235
  %v1596 = vpack.c.b16 %v1245, %v1236
  %v1597 = vpack.c.b16 %v1246, %v1237
  %v1598 = vpack.c.b16 %v1256, %v1247
  %v1599 = vpack.c.b16 %v1257, %v1248
  %v1600 = vpack.c.b16 %v1258, %v1249
  %v1601 = vpack.c.b16 %v1259, %v1250
  %v1602 = vpack.c.b16 %v1260, %v1251
  %v1603 = vpack.c.b16 %v1261, %v1252
  %v1604 = vpack.c.b16 %v1262, %v1253
  %v1605 = vpack.c.b16 %v1263, %v1254
  %v1606 = vpack.c.b16 %v1264, %v1255
  %v1607 = vpack.c.b16 %v1274, %v1265
  %v1608 = vpack.c.b16 %v1275, %v1266
  %v1609 = vpack.c.b16 %v1276, %v1267
  %v1610 = vpack.c.b16 %v1277, %v1268
  %v1611 = vpack.c.b16 %v1278, %v1269
  %v1612 = vpack.c.b16 %v1279, %v1270
  %v1613 = vpack.c.b16 %v1280, %v1271
  %v1614 = vpack.c.b16 %v1281, %v1272
  %v1615 = vpack.c.b16 %v1282, %v1273
  %v1616 = vpack.c.b16 %v1292, %v1283
  %v1617 = vpack.c.b16 %v1293, %v1284
  %v1618 = vpack.c.b16 %v1294, %v1285
  %v1619 = vpack.c.b16 %v1295, %v1286
  %v1620 = vpack.c.b16 %v1296, %v1287
  %v1621 = vpack.c.b16 %v1297, %v1288
  %v1622 = vpack.c.b16 %v1298, %v1289
  %v1623 = vpack.c.b16 %v1299, %v1290
  %v1624 = vpack.c.b16 %v1300, %v1291
  %v1625 = vpack.c.b16 %v1310, %v1301
  %v1626 = vpack.c.b16 %v1311, %v1302
  %v1627 = vpack.c.b16 %v1312, %v1303
  %v1628 = vpack.c.b16 %v1313, %v1304
  %v1629 = vpack.c.b16 %v1314, %v1305
  %v1630 = vpack.c.b16 %v1315, %v1306
  %v1631 = vpack.c.b16 %v1316, %v1307
  %v1632 = vpack.c.b16 %v1317, %v1308
  %v1633 = vpack.c.b16 %v1318, %v1309
  %v1634 = vpack.c.b16 %v1328, %v1319
  %v1635 = vpack.c.b16 %v1329, %v1320
  %v1636 = vpack.c.b16 %v1330, %v1321
  %v1637 = vpack.c.b16 %v1331, %v1322
  %v1638 = vpack.c.b16 %v1332, %v1323
  %v1639 = vpack.c.b16 %v1333, %v1324
  %v1640 = vpack.c.b16 %v1334, %v1325
  %v1641 = vpack.c.b16 %v1335, %v1326
  %v1642 = vpack.c.b16 %v1336, %v1327
  %v1643 = vpack.c.b16 %v1346, %v1337
  %v1644 = vpack.c.b16 %v1347, %v1338
  %v1645 = vpack.c.b16 %v1348, %v1339
  %v1646 = vpack.c.b16 %v1349, %v1340
  %v1647 = vpack.c.b16 %v1350, %v1341
  %v1648 = vpack.c.b16 %v1351, %v1342
  %v1649 = vpack.c.b16 %v1352, %v1343
  %v1650 = vpack.c.b16 %v1353, %v1344
  %v1651 = vpack.c.b16 %v1354, %v1345
  %v1652 = vpack.c.b16 %v1364, %v1355
  %v1653 = vpack.c.b16 %v1365, %v1356
  %v1654 = vpack.c.b16 %v1366, %v1357
  %v1655 = vpack.c.b16 %v1367, %v1358
  %v1656 = vpack.c.b16 %v1368, %v1359
  %v1657 = vpack.c.b16 %v1369, %v1360
  %v1658 = vpack.c.b16 %v1370, %v1361
  %v1659 = vpack.c.b16 %v1371, %v1362
  %v1660 = vpack.c.b16 %v1372, %v1363
  %v2093 = vunpack.c.l.b16 %v333
  %v2094 = vunpack.c.l.b16 %v334
  %v2095 = vunpack.c.l.b16 %v335
  %v2096 = vunpack.c.l.b16 %v336
  %v2097 = vunpack.c.l.b16 %v337
  %v2098 = vunpack.c.l.b16 %v338
  %v2099 = vunpack.c.l.b16 %v339
  %v2100 = vunpack.c.l.b16 %v340
  %v2101 = vunpack.c.l.b16 %v341
  %v2102 = vunpack.c.l.b16 %v342
  %v2103 = vunpack.c.l.b16 %v343
  %v2104 = vunpack.c.l.b16 %v344
  %v2105 = vunpack.c.l.b16 %v345
  %v2106 = vunpack.c.l.b16 %v346
  %v2107 = vunpack.c.l.b16 %v347
  %v2108 = vunpack.c.l.b16 %v348
  %v2109 = vunpack.c.l.b16 %v349
  %v2110 = vunpack.c.l.b16 %v350
  %v2111 = vunpack.c.l.b16 %v351
  %v2112 = vunpack.c.l.b16 %v352
  %v2113 = vunpack.c.l.b16 %v353
  %v2114 = vunpack.c.l.b16 %v354
  %v2115 = vunpack.c.l.b16 %v355
  %v2116 = vunpack.c.l.b16 %v356
  %v2117 = vunpack.c.l.b16 %v357
  %v2118 = vunpack.c.l.b16 %v358
  %v2119 = vunpack.c.l.b16 %v359
  %v2120 = vunpack.c.l.b16 %v360
  %v2121 = vunpack.c.l.b16 %v361
  %v2122 = vunpack.c.l.b16 %v362
  %v2123 = vunpack.c.l.b16 %v363
  %v2124 = vunpack.c.l.b16 %v364
  %v2125 = vunpack.c.l.b16 %v365
  %v2126 = vunpack.c.l.b16 %v366
  %v2127 = vunpack.c.l.b16 %v367
  %v2128 = vunpack.c.l.b16 %v368
  %v2129 = vunpack.c.l.b16 %v369
  %v2130 = vunpack.c.l.b16 %v370
  %v2131 = vunpack.c.l.b16 %v371
  %v2132 = vunpack.c.l.b16 %v372
  %v2133 = vunpack.c.l.b16 %v373
  %v2134 = vunpack.c.l.b16 %v374
  %v2135 = vunpack.c.l.b16 %v375
  %v2136 = vunpack.c.l.b16 %v376
  %v2137 = vunpack.c.l.b16 %v377
  %v2138 = vunpack.c.l.b16 %v378
  %v2139 = vunpack.c.l.b16 %v379
  %v2140 = vunpack.c.l.b16 %v380
  %v2141 = vunpack.c.l.b16 %v381
  %v2142 = vunpack.c.l.b16 %v382
  %v2143 = vunpack.c.l.b16 %v383
  %v2144 = vunpack.c.l.b16 %v384
  %v2145 = vunpack.c.l.b16 %v385
  %v2146 = vunpack.c.l.b16 %v386
  %v2147 = vunpack.c.l.b16 %v387
  %v2148 = vunpack.c.l.b16 %v388
  %v2149 = vunpack.c.l.b16 %v389
  %v2150 = vunpack.c.l.b16 %v390
  %v2151 = vunpack.c.l.b16 %v391
  %v2152 = vunpack.c.l.b16 %v392
  %v2153 = vunpack.c.l.b16 %v393
  %v2154 = vunpack.c.l.b16 %v394
  %v2155 = vunpack.c.l.b16 %v395
  %v2156 = vunpack.c.l.b16 %v396
  %v2157 = vunpack.c.l.b16 %v397
  %v2158 = vunpack.c.l.b16 %v398
  %v2159 = vunpack.c.l.b16 %v399
  %v2160 = vunpack.c.l.b16 %v400
  %v2161 = vunpack.c.l.b16 %v401
  %v2162 = vunpack.c.l.b16 %v402
  %v2163 = vunpack.c.l.b16 %v403
  %v2164 = vunpack.c.l.b16 %v404
  %v2165 = vunpack.c.l.b16 %v405
  %v2166 = vunpack.c.l.b16 %v406
  %v2167 = vunpack.c.l.b16 %v407
  %v2168 = vunpack.c.l.b16 %v408
  %v2169 = vunpack.c.l.b16 %v409
  %v2170 = vunpack.c.l.b16 %v410
  %v2171 = vunpack.c.l.b16 %v411
  %v2172 = vunpack.c.l.b16 %v412
  %v2173 = vunpack.c.l.b16 %v413
  %v2174 = vunpack.c.l.b16 %v414
  %v2175 = vunpack.c.l.b16 %v415
  %v2176 = vunpack.c.l.b16 %v416
  %v2177 = vunpack.c.l.b16 %v417
  %v2178 = vunpack.c.l.b16 %v418
  %v2179 = vunpack.c.l.b16 %v419
  %v2180 = vunpack.c.l.b16 %v420
  %v2181 = vunpack.c.l.b16 %v421
  %v2182 = vunpack.c.l.b16 %v422
  %v2183 = vunpack.c.l.b16 %v423
  %v2184 = vunpack.c.l.b16 %v424
  %v2185 = vunpack.c.l.b16 %v425
  %v2186 = vunpack.c.l.b16 %v426
  %v2187 = vunpack.c.l.b16 %v427
  %v2188 = vunpack.c.l.b16 %v428
  %v2189 = vunpack.c.l.b16 %v429
  %v2190 = vunpack.c.l.b16 %v430
  %v2191 = vunpack.c.l.b16 %v431
  %v2192 = vunpack.c.l.b16 %v432
  %v2193 = vunpack.c.l.b16 %v433
  %v2194 = vunpack.c.l.b16 %v434
  %v2195 = vunpack.c.l.b16 %v435
  %v2196 = vunpack.c.l.b16 %v436
  %v2197 = vunpack.c.l.b16 %v437
  %v2198 = vunpack.c.l.b16 %v438
  %v2199 = vunpack.c.l.b16 %v439
  %v2200 = vunpack.c.l.b16 %v440
  %v2201 = vunpack.c.l.b16 %v441
  %v2202 = vunpack.c.l.b16 %v442
  %v2203 = vunpack.c.l.b16 %v443
  %v2204 = vunpack.c.l.b16 %v444
  %v2205 = vunpack.c.l.b16 %v445
  %v2206 = vunpack.c.l.b16 %v446
  %v2207 = vunpack.c.l.b16 %v447
  %v2208 = vunpack.c.l.b16 %v448
  %v2209 = vunpack.c.l.b16 %v449
  %v2210 = vunpack.c.l.b16 %v450
  %v2211 = vunpack.c.l.b16 %v451
  %v2212 = vunpack.c.l.b16 %v452
  %v2213 = vunpack.c.l.b16 %v453
  %v2214 = vunpack.c.l.b16 %v454
  %v2215 = vunpack.c.l.b16 %v455
  %v2216 = vunpack.c.l.b16 %v456
  %v2217 = vunpack.c.l.b16 %v457
  %v2218 = vunpack.c.l.b16 %v458
  %v2219 = vunpack.c.l.b16 %v459
  %v2220 = vunpack.c.l.b16 %v460
  %v2221 = vunpack.c.l.b16 %v461
  %v2222 = vunpack.c.l.b16 %v462
  %v2223 = vunpack.c.l.b16 %v463
  %v2224 = vunpack.c.l.b16 %v464
  %v2225 = vunpack.c.l.b16 %v465
  %v2226 = vunpack.c.l.b16 %v466
  %v2227 = vunpack.c.l.b16 %v467
  %v2228 = vunpack.c.l.b16 %v468
  %v2229 = vunpack.c.l.b16 %v469
  %v2230 = vunpack.c.l.b16 %v470
  %v2231 = vunpack.c.l.b16 %v471
  %v2232 = vunpack.c.l.b16 %v472
  %v2233 = vunpack.c.l.b16 %v473
  %v2234 = vunpack.c.l.b16 %v474
  %v2235 = vunpack.c.l.b16 %v475
  %v2236 = vunpack.c.l.b16 %v476
  %v2237 = vpack.c.b16 %v2094, %v2093
  %v2238 = vpack.c.b16 %v2096, %v2095
  %v2239 = vpack.c.b16 %v2098, %v2097
  %v2240 = vpack.c.b16 %v2100, %v2099
  %v2241 = vpack.c.b16 %v2102, %v2101
  %v2242 = vpack.c.b16 %v2104, %v2103
  %v2243 = vpack.c.b16 %v2106, %v2105
  %v2244 = vpack.c.b16 %v2108, %v2107
  %v2245 = vpack.c.b16 %v2110, %v2109
  %v2246 = vpack.c.b16 %v2112, %v2111
  %v2247 = vpack.c.b16 %v2114, %v2113
  %v2248 = vpack.c.b16 %v2116, %v2115
  %v2249 = vpack.c.b16 %v2118, %v2117
  %v2250 = vpack.c.b16 %v2120, %v2119
  %v2251 = vpack.c.b16 %v2122, %v2121
  %v2252 = vpack.c.b16 %v2124, %v2123
  %v2253 = vpack.c.b16 %v2126, %v2125
  %v2254 = vpack.c.b16 %v2128, %v2127
  %v2255 = vpack.c.b16 %v2130, %v2129
  %v2256 = vpack.c.b16 %v2132, %v2131
  %v2257 = vpack.c.b16 %v2134, %v2133
  %v2258 = vpack.c.b16 %v2136, %v2135
  %v2259 = vpack.c.b16 %v2138, %v2137
  %v2260 = vpack.c.b16 %v2140, %v2139
  %v2261 = vpack.c.b16 %v2142, %v2141
  %v2262 = vpack.c.b16 %v2144, %v2143
  %v2263 = vpack.c.b16 %v2146, %v2145
  %v2264 = vpack.c.b16 %v2148, %v2147
  %v2265 = vpack.c.b16 %v2150, %v2149
  %v2266 = vpack.c.b16 %v2152, %v2151
  %v2267 = vpack.c.b16 %v2154, %v2153
  %v2268 = vpack.c.b16 %v2156, %v2155
  %v2269 = vpack.c.b16 %v2158, %v2157
  %v2270 = vpack.c.b16 %v2160, %v2159
  %v2271 = vpack.c.b16 %v2162, %v2161
  %v2272 = vpack.c.b16 %v2164, %v2163
  %v2273 = vpack.c.b16 %v2166, %v2165
  %v2274 = vpack.c.b16 %v2168, %v2167
  %v2275 = vpack.c.b16 %v2170, %v2169
  %v2276 = vpack.c.b16 %v2172, %v2171
  %v2277 = vpack.c.b16 %v2174, %v2173
  %v2278 = vpack.c.b16 %v2176, %v2175
  %v2279 = vpack.c.b16 %v2178, %v2177
  %v2280 = vpack.c.b16 %v2180, %v2179
  %v2281 = vpack.c.b16 %v2182, %v2181
  %v2282 = vpack.c.b16 %v2184, %v2183
  %v2283 = vpack.c.b16 %v2186, %v2185
  %v2284 = vpack.c.b16 %v2188, %v2187
  %v2285 = vpack.c.b16 %v2190, %v2189
  %v2286 = vpack.c.b16 %v2192, %v2191
  %v2287 = vpack.c.b16 %v2194, %v2193
  %v2288 = vpack.c.b16 %v2196, %v2195
  %v2289 = vpack.c.b16 %v2198, %v2197
  %v2290 = vpack.c.b16 %v2200, %v2199
  %v2291 = vpack.c.b16 %v2202, %v2201
  %v2292 = vpack.c.b16 %v2204, %v2203
  %v2293 = vpack.c.b16 %v2206, %v2205
  %v2294 = vpack.c.b16 %v2208, %v2207
  %v2295 = vpack.c.b16 %v2210, %v2209
  %v2296 = vpack.c.b16 %v2212, %v2211
  %v2297 = vpack.c.b16 %v2214, %v2213
  %v2298 = vpack.c.b16 %v2216, %v2215
  %v2299 = vpack.c.b16 %v2218, %v2217
  %v2300 = vpack.c.b16 %v2220, %v2219
  %v2301 = vpack.c.b16 %v2222, %v2221
  %v2302 = vpack.c.b16 %v2224, %v2223
  %v2303 = vpack.c.b16 %v2226, %v2225
  %v2304 = vpack.c.b16 %v2228, %v2227
  %v2305 = vpack.c.b16 %v2230, %v2229
  %v2306 = vpack.c.b16 %v2232, %v2231
  %v2307 = vpack.c.b16 %v2234, %v2233
  %v2308 = vpack.c.b16 %v2236, %v2235
  %2381 = vmatpush.bf16.msra.mxu0 %v2244
  %2382 = vmatpush.bf16.msra.mxu0 %v2243
  %2383 = vmatpush.bf16.msra.mxu0 %v2242
  %2384 = vmatpush.bf16.msra.mxu0 %v2241
  %2385 = vmatpush.bf16.msra.mxu0 %v2240
  %2386 = vmatpush.bf16.msra.mxu0 %v2239
  %2387 = vmatpush.bf16.msra.mxu0 %v2238
  %2388 = vmatpush.bf16.msra.mxu0 %v2237
  %2389 = vmatmul.bf16.gmra.mxu0 %v1373
  %v2390 = vpop.f32.mrf.mxu0
  %v2391 = vadd.f32 0.0, %v2390
  %v2392 = vpop.f32.mrf.mxu0
  %v2393 = vadd.f32 0.0, %v2392
  %2394 = vmatmul.bf16.gmra.mxu0 %v1382
  %v2395 = vpop.f32.mrf.mxu0
  %v2396 = vadd.f32 0.0, %v2395
  %v2397 = vpop.f32.mrf.mxu0
  %v2398 = vadd.f32 0.0, %v2397
  %2399 = vmatmul.bf16.gmra.mxu0 %v1391
  %v2400 = vpop.f32.mrf.mxu0
  %v2401 = vadd.f32 0.0, %v2400
  %v2402 = vpop.f32.mrf.mxu0
  %v2403 = vadd.f32 0.0, %v2402
  %2404 = vmatmul.bf16.gmra.mxu0 %v1400
  %v2405 = vpop.f32.mrf.mxu0
  %v2406 = vadd.f32 0.0, %v2405
  %v2407 = vpop.f32.mrf.mxu0
  %v2408 = vadd.f32 0.0, %v2407
  %2409 = vmatmul.bf16.gmra.mxu0 %v1409
  %v2410 = vpop.f32.mrf.mxu0
  %v2411 = vadd.f32 0.0, %v2410
  %v2412 = vpop.f32.mrf.mxu0
  %v2413 = vadd.f32 0.0, %v2412
  %2414 = vmatmul.bf16.gmra.mxu0 %v1418
  %v2415 = vpop.f32.mrf.mxu0
  %v2416 = vadd.f32 0.0, %v2415
  %v2417 = vpop.f32.mrf.mxu0
  %v2418 = vadd.f32 0.0, %v2417
  %2419 = vmatmul.bf16.gmra.mxu0 %v1427
  %v2420 = vpop.f32.mrf.mxu0
  %v2421 = vadd.f32 0.0, %v2420
  %v2422 = vpop.f32.mrf.mxu0
  %v2423 = vadd.f32 0.0, %v2422
  %2424 = vmatmul.bf16.gmra.mxu0 %v1436
  %v2425 = vpop.f32.mrf.mxu0
  %v2426 = vadd.f32 0.0, %v2425
  %v2427 = vpop.f32.mrf.mxu0
  %v2428 = vadd.f32 0.0, %v2427
  %2429 = vmatmul.bf16.gmra.mxu0 %v1445
  %v2430 = vpop.f32.mrf.mxu0
  %v2431 = vadd.f32 0.0, %v2430
  %v2432 = vpop.f32.mrf.mxu0
  %v2433 = vadd.f32 0.0, %v2432
  %2434 = vmatmul.bf16.gmra.mxu0 %v1454
  %v2435 = vpop.f32.mrf.mxu0
  %v2436 = vadd.f32 0.0, %v2435
  %v2437 = vpop.f32.mrf.mxu0
  %v2438 = vadd.f32 0.0, %v2437
  %2439 = vmatmul.bf16.gmra.mxu0 %v1463
  %v2440 = vpop.f32.mrf.mxu0
  %v2441 = vadd.f32 0.0, %v2440
  %v2442 = vpop.f32.mrf.mxu0
  %v2443 = vadd.f32 0.0, %v2442
  %2444 = vmatmul.bf16.gmra.mxu0 %v1472
  %v2445 = vpop.f32.mrf.mxu0
  %v2446 = vadd.f32 0.0, %v2445
  %v2447 = vpop.f32.mrf.mxu0
  %v2448 = vadd.f32 0.0, %v2447
  %2449 = vmatmul.bf16.gmra.mxu0 %v1481
  %v2450 = vpop.f32.mrf.mxu0
  %v2451 = vadd.f32 0.0, %v2450
  %v2452 = vpop.f32.mrf.mxu0
  %v2453 = vadd.f32 0.0, %v2452
  %2454 = vmatmul.bf16.gmra.mxu0 %v1490
  %v2455 = vpop.f32.mrf.mxu0
  %v2456 = vadd.f32 0.0, %v2455
  %v2457 = vpop.f32.mrf.mxu0
  %v2458 = vadd.f32 0.0, %v2457
  %2459 = vmatmul.bf16.gmra.mxu0 %v1499
  %v2460 = vpop.f32.mrf.mxu0
  %v2461 = vadd.f32 0.0, %v2460
  %v2462 = vpop.f32.mrf.mxu0
  %v2463 = vadd.f32 0.0, %v2462
  %2464 = vmatmul.bf16.gmra.mxu0 %v1508
  %v2465 = vpop.f32.mrf.mxu0
  %v2466 = vadd.f32 0.0, %v2465
  %v2467 = vpop.f32.mrf.mxu0
  %v2468 = vadd.f32 0.0, %v2467
  %2469 = vmatmul.bf16.gmra.mxu0 %v1517
  %v2470 = vpop.f32.mrf.mxu0
  %v2471 = vadd.f32 0.0, %v2470
  %v2472 = vpop.f32.mrf.mxu0
  %v2473 = vadd.f32 0.0, %v2472
  %2474 = vmatmul.bf16.gmra.mxu0 %v1526
  %v2475 = vpop.f32.mrf.mxu0
  %v2476 = vadd.f32 0.0, %v2475
  %v2477 = vpop.f32.mrf.mxu0
  %v2478 = vadd.f32 0.0, %v2477
  %2479 = vmatmul.bf16.gmra.mxu0 %v1535
  %v2480 = vpop.f32.mrf.mxu0
  %v2481 = vadd.f32 0.0, %v2480
  %v2482 = vpop.f32.mrf.mxu0
  %v2483 = vadd.f32 0.0, %v2482
  %2484 = vmatmul.bf16.gmra.mxu0 %v1544
  %v2485 = vpop.f32.mrf.mxu0
  %v2486 = vadd.f32 0.0, %v2485
  %v2487 = vpop.f32.mrf.mxu0
  %v2488 = vadd.f32 0.0, %v2487
  %2489 = vmatmul.bf16.gmra.mxu0 %v1553
  %v2490 = vpop.f32.mrf.mxu0
  %v2491 = vadd.f32 0.0, %v2490
  %v2492 = vpop.f32.mrf.mxu0
  %v2493 = vadd.f32 0.0, %v2492
  %2494 = vmatmul.bf16.gmra.mxu0 %v1562
  %v2495 = vpop.f32.mrf.mxu0
  %v2496 = vadd.f32 0.0, %v2495
  %v2497 = vpop.f32.mrf.mxu0
  %v2498 = vadd.f32 0.0, %v2497
  %2499 = vmatmul.bf16.gmra.mxu0 %v1571
  %v2500 = vpop.f32.mrf.mxu0
  %v2501 = vadd.f32 0.0, %v2500
  %v2502 = vpop.f32.mrf.mxu0
  %v2503 = vadd.f32 0.0, %v2502
  %2504 = vmatmul.bf16.gmra.mxu0 %v1580
  %v2505 = vpop.f32.mrf.mxu0
  %v2506 = vadd.f32 0.0, %v2505
  %v2507 = vpop.f32.mrf.mxu0
  %v2508 = vadd.f32 0.0, %v2507
  %2509 = vmatmul.bf16.gmra.mxu0 %v1589
  %v2510 = vpop.f32.mrf.mxu0
  %v2511 = vadd.f32 0.0, %v2510
  %v2512 = vpop.f32.mrf.mxu0
  %v2513 = vadd.f32 0.0, %v2512
  %2514 = vmatmul.bf16.gmra.mxu0 %v1598
  %v2515 = vpop.f32.mrf.mxu0
  %v2516 = vadd.f32 0.0, %v2515
  %v2517 = vpop.f32.mrf.mxu0
  %v2518 = vadd.f32 0.0, %v2517
  %2519 = vmatmul.bf16.gmra.mxu0 %v1607
  %v2520 = vpop.f32.mrf.mxu0
  %v2521 = vadd.f32 0.0, %v2520
  %v2522 = vpop.f32.mrf.mxu0
  %v2523 = vadd.f32 0.0, %v2522
  %2524 = vmatmul.bf16.gmra.mxu0 %v1616
  %v2525 = vpop.f32.mrf.mxu0
  %v2526 = vadd.f32 0.0, %v2525
  %v2527 = vpop.f32.mrf.mxu0
  %v2528 = vadd.f32 0.0, %v2527
  %2529 = vmatmul.bf16.gmra.mxu0 %v1625
  %v2530 = vpop.f32.mrf.mxu0
  %v2531 = vadd.f32 0.0, %v2530
  %v2532 = vpop.f32.mrf.mxu0
  %v2533 = vadd.f32 0.0, %v2532
  %2534 = vmatmul.bf16.gmra.mxu0 %v1634
  %v2535 = vpop.f32.mrf.mxu0
  %v2536 = vadd.f32 0.0, %v2535
  %v2537 = vpop.f32.mrf.mxu0
  %v2538 = vadd.f32 0.0, %v2537
  %2539 = vmatmul.bf16.gmra.mxu0 %v1643
  %v2540 = vpop.f32.mrf.mxu0
  %v2541 = vadd.f32 0.0, %v2540
  %v2542 = vpop.f32.mrf.mxu0
  %v2543 = vadd.f32 0.0, %v2542
  %2544 = vmatmul.bf16.gmra.mxu0 %v1652
  %v2545 = vpop.f32.mrf.mxu0
  %v2546 = vadd.f32 0.0, %v2545
  %v2547 = vpop.f32.mrf.mxu0
  %v2548 = vadd.f32 0.0, %v2547
  %2549 = vdwg.mxu0
  %2550 = vmatpush.bf16.msra.mxu0 %v2252
  %2551 = vmatpush.bf16.msra.mxu0 %v2251
  %2552 = vmatpush.bf16.msra.mxu0 %v2250
  %2553 = vmatpush.bf16.msra.mxu0 %v2249
  %2554 = vmatpush.bf16.msra.mxu0 %v2248
  %2555 = vmatpush.bf16.msra.mxu0 %v2247
  %2556 = vmatpush.bf16.msra.mxu0 %v2246
  %2557 = vmatpush.bf16.msra.mxu0 %v2245
  %2558 = vmatmul.bf16.gmra.mxu0 %v1374
  %v2559 = vpop.f32.mrf.mxu0
  %v2560 = vadd.f32 %v2391, %v2559
  %v2561 = vpop.f32.mrf.mxu0
  %v2562 = vadd.f32 %v2393, %v2561
  %2563 = vmatmul.bf16.gmra.mxu0 %v1383
  %v2564 = vpop.f32.mrf.mxu0
  %v2565 = vadd.f32 %v2396, %v2564
  %v2566 = vpop.f32.mrf.mxu0
  %v2567 = vadd.f32 %v2398, %v2566
  %2568 = vmatmul.bf16.gmra.mxu0 %v1392
  %v2569 = vpop.f32.mrf.mxu0
  %v2570 = vadd.f32 %v2401, %v2569
  %v2571 = vpop.f32.mrf.mxu0
  %v2572 = vadd.f32 %v2403, %v2571
  %2573 = vmatmul.bf16.gmra.mxu0 %v1401
  %v2574 = vpop.f32.mrf.mxu0
  %v2575 = vadd.f32 %v2406, %v2574
  %v2576 = vpop.f32.mrf.mxu0
  %v2577 = vadd.f32 %v2408, %v2576
  %2578 = vmatmul.bf16.gmra.mxu0 %v1410
  %v2579 = vpop.f32.mrf.mxu0
  %v2580 = vadd.f32 %v2411, %v2579
  %v2581 = vpop.f32.mrf.mxu0
  %v2582 = vadd.f32 %v2413, %v2581
  %2583 = vmatmul.bf16.gmra.mxu0 %v1419
  %v2584 = vpop.f32.mrf.mxu0
  %v2585 = vadd.f32 %v2416, %v2584
  %v2586 = vpop.f32.mrf.mxu0
  %v2587 = vadd.f32 %v2418, %v2586
  %2588 = vmatmul.bf16.gmra.mxu0 %v1428
  %v2589 = vpop.f32.mrf.mxu0
  %v2590 = vadd.f32 %v2421, %v2589
  %v2591 = vpop.f32.mrf.mxu0
  %v2592 = vadd.f32 %v2423, %v2591
  %2593 = vmatmul.bf16.gmra.mxu0 %v1437
  %v2594 = vpop.f32.mrf.mxu0
  %v2595 = vadd.f32 %v2426, %v2594
  %v2596 = vpop.f32.mrf.mxu0
  %v2597 = vadd.f32 %v2428, %v2596
  %2598 = vmatmul.bf16.gmra.mxu0 %v1446
  %v2599 = vpop.f32.mrf.mxu0
  %v2600 = vadd.f32 %v2431, %v2599
  %v2601 = vpop.f32.mrf.mxu0
  %v2602 = vadd.f32 %v2433, %v2601
  %2603 = vmatmul.bf16.gmra.mxu0 %v1455
  %v2604 = vpop.f32.mrf.mxu0
  %v2605 = vadd.f32 %v2436, %v2604
  %v2606 = vpop.f32.mrf.mxu0
  %v2607 = vadd.f32 %v2438, %v2606
  %2608 = vmatmul.bf16.gmra.mxu0 %v1464
  %v2609 = vpop.f32.mrf.mxu0
  %v2610 = vadd.f32 %v2441, %v2609
  %v2611 = vpop.f32.mrf.mxu0
  %v2612 = vadd.f32 %v2443, %v2611
  %2613 = vmatmul.bf16.gmra.mxu0 %v1473
  %v2614 = vpop.f32.mrf.mxu0
  %v2615 = vadd.f32 %v2446, %v2614
  %v2616 = vpop.f32.mrf.mxu0
  %v2617 = vadd.f32 %v2448, %v2616
  %2618 = vmatmul.bf16.gmra.mxu0 %v1482
  %v2619 = vpop.f32.mrf.mxu0
  %v2620 = vadd.f32 %v2451, %v2619
  %v2621 = vpop.f32.mrf.mxu0
  %v2622 = vadd.f32 %v2453, %v2621
  %2623 = vmatmul.bf16.gmra.mxu0 %v1491
  %v2624 = vpop.f32.mrf.mxu0
  %v2625 = vadd.f32 %v2456, %v2624
  %v2626 = vpop.f32.mrf.mxu0
  %v2627 = vadd.f32 %v2458, %v2626
  %2628 = vmatmul.bf16.gmra.mxu0 %v1500
  %v2629 = vpop.f32.mrf.mxu0
  %v2630 = vadd.f32 %v2461, %v2629
  %v2631 = vpop.f32.mrf.mxu0
  %v2632 = vadd.f32 %v2463, %v2631
  %2633 = vmatmul.bf16.gmra.mxu0 %v1509
  %v2634 = vpop.f32.mrf.mxu0
  %v2635 = vadd.f32 %v2466, %v2634
  %v2636 = vpop.f32.mrf.mxu0
  %v2637 = vadd.f32 %v2468, %v2636
  %2638 = vmatmul.bf16.gmra.mxu0 %v1518
  %v2639 = vpop.f32.mrf.mxu0
  %v2640 = vadd.f32 %v2471, %v2639
  %v2641 = vpop.f32.mrf.mxu0
  %v2642 = vadd.f32 %v2473, %v2641
  %2643 = vmatmul.bf16.gmra.mxu0 %v1527
  %v2644 = vpop.f32.mrf.mxu0
  %v2645 = vadd.f32 %v2476, %v2644
  %v2646 = vpop.f32.mrf.mxu0
  %v2647 = vadd.f32 %v2478, %v2646
  %2648 = vmatmul.bf16.gmra.mxu0 %v1536
  %v2649 = vpop.f32.mrf.mxu0
  %v2650 = vadd.f32 %v2481, %v2649
  %v2651 = vpop.f32.mrf.mxu0
  %v2652 = vadd.f32 %v2483, %v2651
  %2653 = vmatmul.bf16.gmra.mxu0 %v1545
  %v2654 = vpop.f32.mrf.mxu0
  %v2655 = vadd.f32 %v2486, %v2654
  %v2656 = vpop.f32.mrf.mxu0
  %v2657 = vadd.f32 %v2488, %v2656
  %2658 = vmatmul.bf16.gmra.mxu0 %v1554
  %v2659 = vpop.f32.mrf.mxu0
  %v2660 = vadd.f32 %v2491, %v2659
  %v2661 = vpop.f32.mrf.mxu0
  %v2662 = vadd.f32 %v2493, %v2661
  %2663 = vmatmul.bf16.gmra.mxu0 %v1563
  %v2664 = vpop.f32.mrf.mxu0
  %v2665 = vadd.f32 %v2496, %v2664
  %v2666 = vpop.f32.mrf.mxu0
  %v2667 = vadd.f32 %v2498, %v2666
  %2668 = vmatmul.bf16.gmra.mxu0 %v1572
  %v2669 = vpop.f32.mrf.mxu0
  %v2670 = vadd.f32 %v2501, %v2669
  %v2671 = vpop.f32.mrf.mxu0
  %v2672 = vadd.f32 %v2503, %v2671
  %2673 = vmatmul.bf16.gmra.mxu0 %v1581
  %v2674 = vpop.f32.mrf.mxu0
  %v2675 = vadd.f32 %v2506, %v2674
  %v2676 = vpop.f32.mrf.mxu0
  %v2677 = vadd.f32 %v2508, %v2676
  %2678 = vmatmul.bf16.gmra.mxu0 %v1590
  %v2679 = vpop.f32.mrf.mxu0
  %v2680 = vadd.f32 %v2511, %v2679
  %v2681 = vpop.f32.mrf.mxu0
  %v2682 = vadd.f32 %v2513, %v2681
  %2683 = vmatmul.bf16.gmra.mxu0 %v1599
  %v2684 = vpop.f32.mrf.mxu0
  %v2685 = vadd.f32 %v2516, %v2684
  %v2686 = vpop.f32.mrf.mxu0
  %v2687 = vadd.f32 %v2518, %v2686
  %2688 = vmatmul.bf16.gmra.mxu0 %v1608
  %v2689 = vpop.f32.mrf.mxu0
  %v2690 = vadd.f32 %v2521, %v2689
  %v2691 = vpop.f32.mrf.mxu0
  %v2692 = vadd.f32 %v2523, %v2691
  %2693 = vmatmul.bf16.gmra.mxu0 %v1617
  %v2694 = vpop.f32.mrf.mxu0
  %v2695 = vadd.f32 %v2526, %v2694
  %v2696 = vpop.f32.mrf.mxu0
  %v2697 = vadd.f32 %v2528, %v2696
  %2698 = vmatmul.bf16.gmra.mxu0 %v1626
  %v2699 = vpop.f32.mrf.mxu0
  %v2700 = vadd.f32 %v2531, %v2699
  %v2701 = vpop.f32.mrf.mxu0
  %v2702 = vadd.f32 %v2533, %v2701
  %2703 = vmatmul.bf16.gmra.mxu0 %v1635
  %v2704 = vpop.f32.mrf.mxu0
  %v2705 = vadd.f32 %v2536, %v2704
  %v2706 = vpop.f32.mrf.mxu0
  %v2707 = vadd.f32 %v2538, %v2706
  %2708 = vmatmul.bf16.gmra.mxu0 %v1644
  %v2709 = vpop.f32.mrf.mxu0
  %v2710 = vadd.f32 %v2541, %v2709
  %v2711 = vpop.f32.mrf.mxu0
  %v2712 = vadd.f32 %v2543, %v2711
  %2713 = vmatmul.bf16.gmra.mxu0 %v1653
  %v2714 = vpop.f32.mrf.mxu0
  %v2715 = vadd.f32 %v2546, %v2714
  %v2716 = vpop.f32.mrf.mxu0
  %v2717 = vadd.f32 %v2548, %v2716
  %2718 = vdwg.mxu0
  %2719 = vmatpush.bf16.msra.mxu0 %v2260
  %2720 = vmatpush.bf16.msra.mxu0 %v2259
  %2721 = vmatpush.bf16.msra.mxu0 %v2258
  %2722 = vmatpush.bf16.msra.mxu0 %v2257
  %2723 = vmatpush.bf16.msra.mxu0 %v2256
  %2724 = vmatpush.bf16.msra.mxu0 %v2255
  %2725 = vmatpush.bf16.msra.mxu0 %v2254
  %2726 = vmatpush.bf16.msra.mxu0 %v2253
  %2727 = vmatmul.bf16.gmra.mxu0 %v1375
  %v2728 = vpop.f32.mrf.mxu0
  %v2729 = vadd.f32 %v2560, %v2728
  %v2730 = vpop.f32.mrf.mxu0
  %v2731 = vadd.f32 %v2562, %v2730
  %2732 = vmatmul.bf16.gmra.mxu0 %v1384
  %v2733 = vpop.f32.mrf.mxu0
  %v2734 = vadd.f32 %v2565, %v2733
  %v2735 = vpop.f32.mrf.mxu0
  %v2736 = vadd.f32 %v2567, %v2735
  %2737 = vmatmul.bf16.gmra.mxu0 %v1393
  %v2738 = vpop.f32.mrf.mxu0
  %v2739 = vadd.f32 %v2570, %v2738
  %v2740 = vpop.f32.mrf.mxu0
  %v2741 = vadd.f32 %v2572, %v2740
  %2742 = vmatmul.bf16.gmra.mxu0 %v1402
  %v2743 = vpop.f32.mrf.mxu0
  %v2744 = vadd.f32 %v2575, %v2743
  %v2745 = vpop.f32.mrf.mxu0
  %v2746 = vadd.f32 %v2577, %v2745
  %2747 = vmatmul.bf16.gmra.mxu0 %v1411
  %v2748 = vpop.f32.mrf.mxu0
  %v2749 = vadd.f32 %v2580, %v2748
  %v2750 = vpop.f32.mrf.mxu0
  %v2751 = vadd.f32 %v2582, %v2750
  %2752 = vmatmul.bf16.gmra.mxu0 %v1420
  %v2753 = vpop.f32.mrf.mxu0
  %v2754 = vadd.f32 %v2585, %v2753
  %v2755 = vpop.f32.mrf.mxu0
  %v2756 = vadd.f32 %v2587, %v2755
  %2757 = vmatmul.bf16.gmra.mxu0 %v1429
  %v2758 = vpop.f32.mrf.mxu0
  %v2759 = vadd.f32 %v2590, %v2758
  %v2760 = vpop.f32.mrf.mxu0
  %v2761 = vadd.f32 %v2592, %v2760
  %2762 = vmatmul.bf16.gmra.mxu0 %v1438
  %v2763 = vpop.f32.mrf.mxu0
  %v2764 = vadd.f32 %v2595, %v2763
  %v2765 = vpop.f32.mrf.mxu0
  %v2766 = vadd.f32 %v2597, %v2765
  %2767 = vmatmul.bf16.gmra.mxu0 %v1447
  %v2768 = vpop.f32.mrf.mxu0
  %v2769 = vadd.f32 %v2600, %v2768
  %v2770 = vpop.f32.mrf.mxu0
  %v2771 = vadd.f32 %v2602, %v2770
  %2772 = vmatmul.bf16.gmra.mxu0 %v1456
  %v2773 = vpop.f32.mrf.mxu0
  %v2774 = vadd.f32 %v2605, %v2773
  %v2775 = vpop.f32.mrf.mxu0
  %v2776 = vadd.f32 %v2607, %v2775
  %2777 = vmatmul.bf16.gmra.mxu0 %v1465
  %v2778 = vpop.f32.mrf.mxu0
  %v2779 = vadd.f32 %v2610, %v2778
  %v2780 = vpop.f32.mrf.mxu0
  %v2781 = vadd.f32 %v2612, %v2780
  %2782 = vmatmul.bf16.gmra.mxu0 %v1474
  %v2783 = vpop.f32.mrf.mxu0
  %v2784 = vadd.f32 %v2615, %v2783
  %v2785 = vpop.f32.mrf.mxu0
  %v2786 = vadd.f32 %v2617, %v2785
  %2787 = vmatmul.bf16.gmra.mxu0 %v1483
  %v2788 = vpop.f32.mrf.mxu0
  %v2789 = vadd.f32 %v2620, %v2788
  %v2790 = vpop.f32.mrf.mxu0
  %v2791 = vadd.f32 %v2622, %v2790
  %2792 = vmatmul.bf16.gmra.mxu0 %v1492
  %v2793 = vpop.f32.mrf.mxu0
  %v2794 = vadd.f32 %v2625, %v2793
  %v2795 = vpop.f32.mrf.mxu0
  %v2796 = vadd.f32 %v2627, %v2795
  %2797 = vmatmul.bf16.gmra.mxu0 %v1501
  %v2798 = vpop.f32.mrf.mxu0
  %v2799 = vadd.f32 %v2630, %v2798
  %v2800 = vpop.f32.mrf.mxu0
  %v2801 = vadd.f32 %v2632, %v2800
  %2802 = vmatmul.bf16.gmra.mxu0 %v1510
  %v2803 = vpop.f32.mrf.mxu0
  %v2804 = vadd.f32 %v2635, %v2803
  %v2805 = vpop.f32.mrf.mxu0
  %v2806 = vadd.f32 %v2637, %v2805
  %2807 = vmatmul.bf16.gmra.mxu0 %v1519
  %v2808 = vpop.f32.mrf.mxu0
  %v2809 = vadd.f32 %v2640, %v2808
  %v2810 = vpop.f32.mrf.mxu0
  %v2811 = vadd.f32 %v2642, %v2810
  %2812 = vmatmul.bf16.gmra.mxu0 %v1528
  %v2813 = vpop.f32.mrf.mxu0
  %v2814 = vadd.f32 %v2645, %v2813
  %v2815 = vpop.f32.mrf.mxu0
  %v2816 = vadd.f32 %v2647, %v2815
  %2817 = vmatmul.bf16.gmra.mxu0 %v1537
  %v2818 = vpop.f32.mrf.mxu0
  %v2819 = vadd.f32 %v2650, %v2818
  %v2820 = vpop.f32.mrf.mxu0
  %v2821 = vadd.f32 %v2652, %v2820
  %2822 = vmatmul.bf16.gmra.mxu0 %v1546
  %v2823 = vpop.f32.mrf.mxu0
  %v2824 = vadd.f32 %v2655, %v2823
  %v2825 = vpop.f32.mrf.mxu0
  %v2826 = vadd.f32 %v2657, %v2825
  %2827 = vmatmul.bf16.gmra.mxu0 %v1555
  %v2828 = vpop.f32.mrf.mxu0
  %v2829 = vadd.f32 %v2660, %v2828
  %v2830 = vpop.f32.mrf.mxu0
  %v2831 = vadd.f32 %v2662, %v2830
  %2832 = vmatmul.bf16.gmra.mxu0 %v1564
  %v2833 = vpop.f32.mrf.mxu0
  %v2834 = vadd.f32 %v2665, %v2833
  %v2835 = vpop.f32.mrf.mxu0
  %v2836 = vadd.f32 %v2667, %v2835
  %2837 = vmatmul.bf16.gmra.mxu0 %v1573
  %v2838 = vpop.f32.mrf.mxu0
  %v2839 = vadd.f32 %v2670, %v2838
  %v2840 = vpop.f32.mrf.mxu0
  %v2841 = vadd.f32 %v2672, %v2840
  %2842 = vmatmul.bf16.gmra.mxu0 %v1582
  %v2843 = vpop.f32.mrf.mxu0
  %v2844 = vadd.f32 %v2675, %v2843
  %v2845 = vpop.f32.mrf.mxu0
  %v2846 = vadd.f32 %v2677, %v2845
  %2847 = vmatmul.bf16.gmra.mxu0 %v1591
  %v2848 = vpop.f32.mrf.mxu0
  %v2849 = vadd.f32 %v2680, %v2848
  %v2850 = vpop.f32.mrf.mxu0
  %v2851 = vadd.f32 %v2682, %v2850
  %2852 = vmatmul.bf16.gmra.mxu0 %v1600
  %v2853 = vpop.f32.mrf.mxu0
  %v2854 = vadd.f32 %v2685, %v2853
  %v2855 = vpop.f32.mrf.mxu0
  %v2856 = vadd.f32 %v2687, %v2855
  %2857 = vmatmul.bf16.gmra.mxu0 %v1609
  %v2858 = vpop.f32.mrf.mxu0
  %v2859 = vadd.f32 %v2690, %v2858
  %v2860 = vpop.f32.mrf.mxu0
  %v2861 = vadd.f32 %v2692, %v2860
  %2862 = vmatmul.bf16.gmra.mxu0 %v1618
  %v2863 = vpop.f32.mrf.mxu0
  %v2864 = vadd.f32 %v2695, %v2863
  %v2865 = vpop.f32.mrf.mxu0
  %v2866 = vadd.f32 %v2697, %v2865
  %2867 = vmatmul.bf16.gmra.mxu0 %v1627
  %v2868 = vpop.f32.mrf.mxu0
  %v2869 = vadd.f32 %v2700, %v2868
  %v2870 = vpop.f32.mrf.mxu0
  %v2871 = vadd.f32 %v2702, %v2870
  %2872 = vmatmul.bf16.gmra.mxu0 %v1636
  %v2873 = vpop.f32.mrf.mxu0
  %v2874 = vadd.f32 %v2705, %v2873
  %v2875 = vpop.f32.mrf.mxu0
  %v2876 = vadd.f32 %v2707, %v2875
  %2877 = vmatmul.bf16.gmra.mxu0 %v1645
  %v2878 = vpop.f32.mrf.mxu0
  %v2879 = vadd.f32 %v2710, %v2878
  %v2880 = vpop.f32.mrf.mxu0
  %v2881 = vadd.f32 %v2712, %v2880
  %2882 = vmatmul.bf16.gmra.mxu0 %v1654
  %v2883 = vpop.f32.mrf.mxu0
  %v2884 = vadd.f32 %v2715, %v2883
  %v2885 = vpop.f32.mrf.mxu0
  %v2886 = vadd.f32 %v2717, %v2885
  %2887 = vdwg.mxu0
  %2888 = vmatpush.bf16.msra.mxu0 %v2268
  %2889 = vmatpush.bf16.msra.mxu0 %v2267
  %2890 = vmatpush.bf16.msra.mxu0 %v2266
  %2891 = vmatpush.bf16.msra.mxu0 %v2265
  %2892 = vmatpush.bf16.msra.mxu0 %v2264
  %2893 = vmatpush.bf16.msra.mxu0 %v2263
  %2894 = vmatpush.bf16.msra.mxu0 %v2262
  %2895 = vmatpush.bf16.msra.mxu0 %v2261
  %2896 = vmatmul.bf16.gmra.mxu0 %v1376
  %v2897 = vpop.f32.mrf.mxu0
  %v2898 = vadd.f32 %v2729, %v2897
  %v2899 = vpop.f32.mrf.mxu0
  %v2900 = vadd.f32 %v2731, %v2899
  %2901 = vmatmul.bf16.gmra.mxu0 %v1385
  %v2902 = vpop.f32.mrf.mxu0
  %v2903 = vadd.f32 %v2734, %v2902
  %v2904 = vpop.f32.mrf.mxu0
  %v2905 = vadd.f32 %v2736, %v2904
  %2906 = vmatmul.bf16.gmra.mxu0 %v1394
  %v2907 = vpop.f32.mrf.mxu0
  %v2908 = vadd.f32 %v2739, %v2907
  %v2909 = vpop.f32.mrf.mxu0
  %v2910 = vadd.f32 %v2741, %v2909
  %2911 = vmatmul.bf16.gmra.mxu0 %v1403
  %v2912 = vpop.f32.mrf.mxu0
  %v2913 = vadd.f32 %v2744, %v2912
  %v2914 = vpop.f32.mrf.mxu0
  %v2915 = vadd.f32 %v2746, %v2914
  %2916 = vmatmul.bf16.gmra.mxu0 %v1412
  %v2917 = vpop.f32.mrf.mxu0
  %v2918 = vadd.f32 %v2749, %v2917
  %v2919 = vpop.f32.mrf.mxu0
  %v2920 = vadd.f32 %v2751, %v2919
  %2921 = vmatmul.bf16.gmra.mxu0 %v1421
  %v2922 = vpop.f32.mrf.mxu0
  %v2923 = vadd.f32 %v2754, %v2922
  %v2924 = vpop.f32.mrf.mxu0
  %v2925 = vadd.f32 %v2756, %v2924
  %2926 = vmatmul.bf16.gmra.mxu0 %v1430
  %v2927 = vpop.f32.mrf.mxu0
  %v2928 = vadd.f32 %v2759, %v2927
  %v2929 = vpop.f32.mrf.mxu0
  %v2930 = vadd.f32 %v2761, %v2929
  %2931 = vmatmul.bf16.gmra.mxu0 %v1439
  %v2932 = vpop.f32.mrf.mxu0
  %v2933 = vadd.f32 %v2764, %v2932
  %v2934 = vpop.f32.mrf.mxu0
  %v2935 = vadd.f32 %v2766, %v2934
  %2936 = vmatmul.bf16.gmra.mxu0 %v1448
  %v2937 = vpop.f32.mrf.mxu0
  %v2938 = vadd.f32 %v2769, %v2937
  %v2939 = vpop.f32.mrf.mxu0
  %v2940 = vadd.f32 %v2771, %v2939
  %2941 = vmatmul.bf16.gmra.mxu0 %v1457
  %v2942 = vpop.f32.mrf.mxu0
  %v2943 = vadd.f32 %v2774, %v2942
  %v2944 = vpop.f32.mrf.mxu0
  %v2945 = vadd.f32 %v2776, %v2944
  %2946 = vmatmul.bf16.gmra.mxu0 %v1466
  %v2947 = vpop.f32.mrf.mxu0
  %v2948 = vadd.f32 %v2779, %v2947
  %v2949 = vpop.f32.mrf.mxu0
  %v2950 = vadd.f32 %v2781, %v2949
  %2951 = vmatmul.bf16.gmra.mxu0 %v1475
  %v2952 = vpop.f32.mrf.mxu0
  %v2953 = vadd.f32 %v2784, %v2952
  %v2954 = vpop.f32.mrf.mxu0
  %v2955 = vadd.f32 %v2786, %v2954
  %2956 = vmatmul.bf16.gmra.mxu0 %v1484
  %v2957 = vpop.f32.mrf.mxu0
  %v2958 = vadd.f32 %v2789, %v2957
  %v2959 = vpop.f32.mrf.mxu0
  %v2960 = vadd.f32 %v2791, %v2959
  %2961 = vmatmul.bf16.gmra.mxu0 %v1493
  %v2962 = vpop.f32.mrf.mxu0
  %v2963 = vadd.f32 %v2794, %v2962
  %v2964 = vpop.f32.mrf.mxu0
  %v2965 = vadd.f32 %v2796, %v2964
  %2966 = vmatmul.bf16.gmra.mxu0 %v1502
  %v2967 = vpop.f32.mrf.mxu0
  %v2968 = vadd.f32 %v2799, %v2967
  %v2969 = vpop.f32.mrf.mxu0
  %v2970 = vadd.f32 %v2801, %v2969
  %2971 = vmatmul.bf16.gmra.mxu0 %v1511
  %v2972 = vpop.f32.mrf.mxu0
  %v2973 = vadd.f32 %v2804, %v2972
  %v2974 = vpop.f32.mrf.mxu0
  %v2975 = vadd.f32 %v2806, %v2974
  %2976 = vmatmul.bf16.gmra.mxu0 %v1520
  %v2977 = vpop.f32.mrf.mxu0
  %v2978 = vadd.f32 %v2809, %v2977
  %v2979 = vpop.f32.mrf.mxu0
  %v2980 = vadd.f32 %v2811, %v2979
  %2981 = vmatmul.bf16.gmra.mxu0 %v1529
  %v2982 = vpop.f32.mrf.mxu0
  %v2983 = vadd.f32 %v2814, %v2982
  %v2984 = vpop.f32.mrf.mxu0
  %v2985 = vadd.f32 %v2816, %v2984
  %2986 = vmatmul.bf16.gmra.mxu0 %v1538
  %v2987 = vpop.f32.mrf.mxu0
  %v2988 = vadd.f32 %v2819, %v2987
  %v2989 = vpop.f32.mrf.mxu0
  %v2990 = vadd.f32 %v2821, %v2989
  %2991 = vmatmul.bf16.gmra.mxu0 %v1547
  %v2992 = vpop.f32.mrf.mxu0
  %v2993 = vadd.f32 %v2824, %v2992
  %v2994 = vpop.f32.mrf.mxu0
  %v2995 = vadd.f32 %v2826, %v2994
  %2996 = vmatmul.bf16.gmra.mxu0 %v1556
  %v2997 = vpop.f32.mrf.mxu0
  %v2998 = vadd.f32 %v2829, %v2997
  %v2999 = vpop.f32.mrf.mxu0
  %v3000 = vadd.f32 %v2831, %v2999
  %3001 = vmatmul.bf16.gmra.mxu0 %v1565
  %v3002 = vpop.f32.mrf.mxu0
  %v3003 = vadd.f32 %v2834, %v3002
  %v3004 = vpop.f32.mrf.mxu0
  %v3005 = vadd.f32 %v2836, %v3004
  %3006 = vmatmul.bf16.gmra.mxu0 %v1574
  %v3007 = vpop.f32.mrf.mxu0
  %v3008 = vadd.f32 %v2839, %v3007
  %v3009 = vpop.f32.mrf.mxu0
  %v3010 = vadd.f32 %v2841, %v3009
  %3011 = vmatmul.bf16.gmra.mxu0 %v1583
  %v3012 = vpop.f32.mrf.mxu0
  %v3013 = vadd.f32 %v2844, %v3012
  %v3014 = vpop.f32.mrf.mxu0
  %v3015 = vadd.f32 %v2846, %v3014
  %3016 = vmatmul.bf16.gmra.mxu0 %v1592
  %v3017 = vpop.f32.mrf.mxu0
  %v3018 = vadd.f32 %v2849, %v3017
  %v3019 = vpop.f32.mrf.mxu0
  %v3020 = vadd.f32 %v2851, %v3019
  %3021 = vmatmul.bf16.gmra.mxu0 %v1601
  %v3022 = vpop.f32.mrf.mxu0
  %v3023 = vadd.f32 %v2854, %v3022
  %v3024 = vpop.f32.mrf.mxu0
  %v3025 = vadd.f32 %v2856, %v3024
  %3026 = vmatmul.bf16.gmra.mxu0 %v1610
  %v3027 = vpop.f32.mrf.mxu0
  %v3028 = vadd.f32 %v2859, %v3027
  %v3029 = vpop.f32.mrf.mxu0
  %v3030 = vadd.f32 %v2861, %v3029
  %3031 = vmatmul.bf16.gmra.mxu0 %v1619
  %v3032 = vpop.f32.mrf.mxu0
  %v3033 = vadd.f32 %v2864, %v3032
  %v3034 = vpop.f32.mrf.mxu0
  %v3035 = vadd.f32 %v2866, %v3034
  %3036 = vmatmul.bf16.gmra.mxu0 %v1628
  %v3037 = vpop.f32.mrf.mxu0
  %v3038 = vadd.f32 %v2869, %v3037
  %v3039 = vpop.f32.mrf.mxu0
  %v3040 = vadd.f32 %v2871, %v3039
  %3041 = vmatmul.bf16.gmra.mxu0 %v1637
  %v3042 = vpop.f32.mrf.mxu0
  %v3043 = vadd.f32 %v2874, %v3042
  %v3044 = vpop.f32.mrf.mxu0
  %v3045 = vadd.f32 %v2876, %v3044
  %3046 = vmatmul.bf16.gmra.mxu0 %v1646
  %v3047 = vpop.f32.mrf.mxu0
  %v3048 = vadd.f32 %v2879, %v3047
  %v3049 = vpop.f32.mrf.mxu0
  %v3050 = vadd.f32 %v2881, %v3049
  %3051 = vmatmul.bf16.gmra.mxu0 %v1655
  %v3052 = vpop.f32.mrf.mxu0
  %v3053 = vadd.f32 %v2884, %v3052
  %v3054 = vpop.f32.mrf.mxu0
  %v3055 = vadd.f32 %v2886, %v3054
  %3056 = vdwg.mxu0
  %3057 = vmatpush.bf16.msra.mxu0 %v2276
  %3058 = vmatpush.bf16.msra.mxu0 %v2275
  %3059 = vmatpush.bf16.msra.mxu0 %v2274
  %3060 = vmatpush.bf16.msra.mxu0 %v2273
  %3061 = vmatpush.bf16.msra.mxu0 %v2272
  %3062 = vmatpush.bf16.msra.mxu0 %v2271
  %3063 = vmatpush.bf16.msra.mxu0 %v2270
  %3064 = vmatpush.bf16.msra.mxu0 %v2269
  %3065 = vmatmul.bf16.gmra.mxu0 %v1377
  %v3066 = vpop.f32.mrf.mxu0
  %v3067 = vadd.f32 %v2898, %v3066
  %v3068 = vpop.f32.mrf.mxu0
  %v3069 = vadd.f32 %v2900, %v3068
  %3070 = vmatmul.bf16.gmra.mxu0 %v1386
  %v3071 = vpop.f32.mrf.mxu0
  %v3072 = vadd.f32 %v2903, %v3071
  %v3073 = vpop.f32.mrf.mxu0
  %v3074 = vadd.f32 %v2905, %v3073
  %3075 = vmatmul.bf16.gmra.mxu0 %v1395
  %v3076 = vpop.f32.mrf.mxu0
  %v3077 = vadd.f32 %v2908, %v3076
  %v3078 = vpop.f32.mrf.mxu0
  %v3079 = vadd.f32 %v2910, %v3078
  %3080 = vmatmul.bf16.gmra.mxu0 %v1404
  %v3081 = vpop.f32.mrf.mxu0
  %v3082 = vadd.f32 %v2913, %v3081
  %v3083 = vpop.f32.mrf.mxu0
  %v3084 = vadd.f32 %v2915, %v3083
  %3085 = vmatmul.bf16.gmra.mxu0 %v1413
  %v3086 = vpop.f32.mrf.mxu0
  %v3087 = vadd.f32 %v2918, %v3086
  %v3088 = vpop.f32.mrf.mxu0
  %v3089 = vadd.f32 %v2920, %v3088
  %3090 = vmatmul.bf16.gmra.mxu0 %v1422
  %v3091 = vpop.f32.mrf.mxu0
  %v3092 = vadd.f32 %v2923, %v3091
  %v3093 = vpop.f32.mrf.mxu0
  %v3094 = vadd.f32 %v2925, %v3093
  %3095 = vmatmul.bf16.gmra.mxu0 %v1431
  %v3096 = vpop.f32.mrf.mxu0
  %v3097 = vadd.f32 %v2928, %v3096
  %v3098 = vpop.f32.mrf.mxu0
  %v3099 = vadd.f32 %v2930, %v3098
  %3100 = vmatmul.bf16.gmra.mxu0 %v1440
  %v3101 = vpop.f32.mrf.mxu0
  %v3102 = vadd.f32 %v2933, %v3101
  %v3103 = vpop.f32.mrf.mxu0
  %v3104 = vadd.f32 %v2935, %v3103
  %3105 = vmatmul.bf16.gmra.mxu0 %v1449
  %v3106 = vpop.f32.mrf.mxu0
  %v3107 = vadd.f32 %v2938, %v3106
  %v3108 = vpop.f32.mrf.mxu0
  %v3109 = vadd.f32 %v2940, %v3108
  %3110 = vmatmul.bf16.gmra.mxu0 %v1458
  %v3111 = vpop.f32.mrf.mxu0
  %v3112 = vadd.f32 %v2943, %v3111
  %v3113 = vpop.f32.mrf.mxu0
  %v3114 = vadd.f32 %v2945, %v3113
  %3115 = vmatmul.bf16.gmra.mxu0 %v1467
  %v3116 = vpop.f32.mrf.mxu0
  %v3117 = vadd.f32 %v2948, %v3116
  %v3118 = vpop.f32.mrf.mxu0
  %v3119 = vadd.f32 %v2950, %v3118
  %3120 = vmatmul.bf16.gmra.mxu0 %v1476
  %v3121 = vpop.f32.mrf.mxu0
  %v3122 = vadd.f32 %v2953, %v3121
  %v3123 = vpop.f32.mrf.mxu0
  %v3124 = vadd.f32 %v2955, %v3123
  %3125 = vmatmul.bf16.gmra.mxu0 %v1485
  %v3126 = vpop.f32.mrf.mxu0
  %v3127 = vadd.f32 %v2958, %v3126
  %v3128 = vpop.f32.mrf.mxu0
  %v3129 = vadd.f32 %v2960, %v3128
  %3130 = vmatmul.bf16.gmra.mxu0 %v1494
  %v3131 = vpop.f32.mrf.mxu0
  %v3132 = vadd.f32 %v2963, %v3131
  %v3133 = vpop.f32.mrf.mxu0
  %v3134 = vadd.f32 %v2965, %v3133
  %3135 = vmatmul.bf16.gmra.mxu0 %v1503
  %v3136 = vpop.f32.mrf.mxu0
  %v3137 = vadd.f32 %v2968, %v3136
  %v3138 = vpop.f32.mrf.mxu0
  %v3139 = vadd.f32 %v2970, %v3138
  %3140 = vmatmul.bf16.gmra.mxu0 %v1512
  %v3141 = vpop.f32.mrf.mxu0
  %v3142 = vadd.f32 %v2973, %v3141
  %v3143 = vpop.f32.mrf.mxu0
  %v3144 = vadd.f32 %v2975, %v3143
  %3145 = vmatmul.bf16.gmra.mxu0 %v1521
  %v3146 = vpop.f32.mrf.mxu0
  %v3147 = vadd.f32 %v2978, %v3146
  %v3148 = vpop.f32.mrf.mxu0
  %v3149 = vadd.f32 %v2980, %v3148
  %3150 = vmatmul.bf16.gmra.mxu0 %v1530
  %v3151 = vpop.f32.mrf.mxu0
  %v3152 = vadd.f32 %v2983, %v3151
  %v3153 = vpop.f32.mrf.mxu0
  %v3154 = vadd.f32 %v2985, %v3153
  %3155 = vmatmul.bf16.gmra.mxu0 %v1539
  %v3156 = vpop.f32.mrf.mxu0
  %v3157 = vadd.f32 %v2988, %v3156
  %v3158 = vpop.f32.mrf.mxu0
  %v3159 = vadd.f32 %v2990, %v3158
  %3160 = vmatmul.bf16.gmra.mxu0 %v1548
  %v3161 = vpop.f32.mrf.mxu0
  %v3162 = vadd.f32 %v2993, %v3161
  %v3163 = vpop.f32.mrf.mxu0
  %v3164 = vadd.f32 %v2995, %v3163
  %3165 = vmatmul.bf16.gmra.mxu0 %v1557
  %v3166 = vpop.f32.mrf.mxu0
  %v3167 = vadd.f32 %v2998, %v3166
  %v3168 = vpop.f32.mrf.mxu0
  %v3169 = vadd.f32 %v3000, %v3168
  %3170 = vmatmul.bf16.gmra.mxu0 %v1566
  %v3171 = vpop.f32.mrf.mxu0
  %v3172 = vadd.f32 %v3003, %v3171
  %v3173 = vpop.f32.mrf.mxu0
  %v3174 = vadd.f32 %v3005, %v3173
  %3175 = vmatmul.bf16.gmra.mxu0 %v1575
  %v3176 = vpop.f32.mrf.mxu0
  %v3177 = vadd.f32 %v3008, %v3176
  %v3178 = vpop.f32.mrf.mxu0
  %v3179 = vadd.f32 %v3010, %v3178
  %3180 = vmatmul.bf16.gmra.mxu0 %v1584
  %v3181 = vpop.f32.mrf.mxu0
  %v3182 = vadd.f32 %v3013, %v3181
  %v3183 = vpop.f32.mrf.mxu0
  %v3184 = vadd.f32 %v3015, %v3183
  %3185 = vmatmul.bf16.gmra.mxu0 %v1593
  %v3186 = vpop.f32.mrf.mxu0
  %v3187 = vadd.f32 %v3018, %v3186
  %v3188 = vpop.f32.mrf.mxu0
  %v3189 = vadd.f32 %v3020, %v3188
  %3190 = vmatmul.bf16.gmra.mxu0 %v1602
  %v3191 = vpop.f32.mrf.mxu0
  %v3192 = vadd.f32 %v3023, %v3191
  %v3193 = vpop.f32.mrf.mxu0
  %v3194 = vadd.f32 %v3025, %v3193
  %3195 = vmatmul.bf16.gmra.mxu0 %v1611
  %v3196 = vpop.f32.mrf.mxu0
  %v3197 = vadd.f32 %v3028, %v3196
  %v3198 = vpop.f32.mrf.mxu0
  %v3199 = vadd.f32 %v3030, %v3198
  %3200 = vmatmul.bf16.gmra.mxu0 %v1620
  %v3201 = vpop.f32.mrf.mxu0
  %v3202 = vadd.f32 %v3033, %v3201
  %v3203 = vpop.f32.mrf.mxu0
  %v3204 = vadd.f32 %v3035, %v3203
  %3205 = vmatmul.bf16.gmra.mxu0 %v1629
  %v3206 = vpop.f32.mrf.mxu0
  %v3207 = vadd.f32 %v3038, %v3206
  %v3208 = vpop.f32.mrf.mxu0
  %v3209 = vadd.f32 %v3040, %v3208
  %3210 = vmatmul.bf16.gmra.mxu0 %v1638
  %v3211 = vpop.f32.mrf.mxu0
  %v3212 = vadd.f32 %v3043, %v3211
  %v3213 = vpop.f32.mrf.mxu0
  %v3214 = vadd.f32 %v3045, %v3213
  %3215 = vmatmul.bf16.gmra.mxu0 %v1647
  %v3216 = vpop.f32.mrf.mxu0
  %v3217 = vadd.f32 %v3048, %v3216
  %v3218 = vpop.f32.mrf.mxu0
  %v3219 = vadd.f32 %v3050, %v3218
  %3220 = vmatmul.bf16.gmra.mxu0 %v1656
  %v3221 = vpop.f32.mrf.mxu0
  %v3222 = vadd.f32 %v3053, %v3221
  %v3223 = vpop.f32.mrf.mxu0
  %v3224 = vadd.f32 %v3055, %v3223
  %3225 = vdwg.mxu0
  %3226 = vmatpush.bf16.msra.mxu0 %v2284
  %3227 = vmatpush.bf16.msra.mxu0 %v2283
  %3228 = vmatpush.bf16.msra.mxu0 %v2282
  %3229 = vmatpush.bf16.msra.mxu0 %v2281
  %3230 = vmatpush.bf16.msra.mxu0 %v2280
  %3231 = vmatpush.bf16.msra.mxu0 %v2279
  %3232 = vmatpush.bf16.msra.mxu0 %v2278
  %3233 = vmatpush.bf16.msra.mxu0 %v2277
  %3234 = vmatmul.bf16.gmra.mxu0 %v1378
  %v3235 = vpop.f32.mrf.mxu0
  %v3236 = vadd.f32 %v3067, %v3235
  %v3237 = vpop.f32.mrf.mxu0
  %v3238 = vadd.f32 %v3069, %v3237
  %3239 = vmatmul.bf16.gmra.mxu0 %v1387
  %v3240 = vpop.f32.mrf.mxu0
  %v3241 = vadd.f32 %v3072, %v3240
  %v3242 = vpop.f32.mrf.mxu0
  %v3243 = vadd.f32 %v3074, %v3242
  %3244 = vmatmul.bf16.gmra.mxu0 %v1396
  %v3245 = vpop.f32.mrf.mxu0
  %v3246 = vadd.f32 %v3077, %v3245
  %v3247 = vpop.f32.mrf.mxu0
  %v3248 = vadd.f32 %v3079, %v3247
  %3249 = vmatmul.bf16.gmra.mxu0 %v1405
  %v3250 = vpop.f32.mrf.mxu0
  %v3251 = vadd.f32 %v3082, %v3250
  %v3252 = vpop.f32.mrf.mxu0
  %v3253 = vadd.f32 %v3084, %v3252
  %3254 = vmatmul.bf16.gmra.mxu0 %v1414
  %v3255 = vpop.f32.mrf.mxu0
  %v3256 = vadd.f32 %v3087, %v3255
  %v3257 = vpop.f32.mrf.mxu0
  %v3258 = vadd.f32 %v3089, %v3257
  %3259 = vmatmul.bf16.gmra.mxu0 %v1423
  %v3260 = vpop.f32.mrf.mxu0
  %v3261 = vadd.f32 %v3092, %v3260
  %v3262 = vpop.f32.mrf.mxu0
  %v3263 = vadd.f32 %v3094, %v3262
  %3264 = vmatmul.bf16.gmra.mxu0 %v1432
  %v3265 = vpop.f32.mrf.mxu0
  %v3266 = vadd.f32 %v3097, %v3265
  %v3267 = vpop.f32.mrf.mxu0
  %v3268 = vadd.f32 %v3099, %v3267
  %3269 = vmatmul.bf16.gmra.mxu0 %v1441
  %v3270 = vpop.f32.mrf.mxu0
  %v3271 = vadd.f32 %v3102, %v3270
  %v3272 = vpop.f32.mrf.mxu0
  %v3273 = vadd.f32 %v3104, %v3272
  %3274 = vmatmul.bf16.gmra.mxu0 %v1450
  %v3275 = vpop.f32.mrf.mxu0
  %v3276 = vadd.f32 %v3107, %v3275
  %v3277 = vpop.f32.mrf.mxu0
  %v3278 = vadd.f32 %v3109, %v3277
  %3279 = vmatmul.bf16.gmra.mxu0 %v1459
  %v3280 = vpop.f32.mrf.mxu0
  %v3281 = vadd.f32 %v3112, %v3280
  %v3282 = vpop.f32.mrf.mxu0
  %v3283 = vadd.f32 %v3114, %v3282
  %3284 = vmatmul.bf16.gmra.mxu0 %v1468
  %v3285 = vpop.f32.mrf.mxu0
  %v3286 = vadd.f32 %v3117, %v3285
  %v3287 = vpop.f32.mrf.mxu0
  %v3288 = vadd.f32 %v3119, %v3287
  %3289 = vmatmul.bf16.gmra.mxu0 %v1477
  %v3290 = vpop.f32.mrf.mxu0
  %v3291 = vadd.f32 %v3122, %v3290
  %v3292 = vpop.f32.mrf.mxu0
  %v3293 = vadd.f32 %v3124, %v3292
  %3294 = vmatmul.bf16.gmra.mxu0 %v1486
  %v3295 = vpop.f32.mrf.mxu0
  %v3296 = vadd.f32 %v3127, %v3295
  %v3297 = vpop.f32.mrf.mxu0
  %v3298 = vadd.f32 %v3129, %v3297
  %3299 = vmatmul.bf16.gmra.mxu0 %v1495
  %v3300 = vpop.f32.mrf.mxu0
  %v3301 = vadd.f32 %v3132, %v3300
  %v3302 = vpop.f32.mrf.mxu0
  %v3303 = vadd.f32 %v3134, %v3302
  %3304 = vmatmul.bf16.gmra.mxu0 %v1504
  %v3305 = vpop.f32.mrf.mxu0
  %v3306 = vadd.f32 %v3137, %v3305
  %v3307 = vpop.f32.mrf.mxu0
  %v3308 = vadd.f32 %v3139, %v3307
  %3309 = vmatmul.bf16.gmra.mxu0 %v1513
  %v3310 = vpop.f32.mrf.mxu0
  %v3311 = vadd.f32 %v3142, %v3310
  %v3312 = vpop.f32.mrf.mxu0
  %v3313 = vadd.f32 %v3144, %v3312
  %3314 = vmatmul.bf16.gmra.mxu0 %v1522
  %v3315 = vpop.f32.mrf.mxu0
  %v3316 = vadd.f32 %v3147, %v3315
  %v3317 = vpop.f32.mrf.mxu0
  %v3318 = vadd.f32 %v3149, %v3317
  %3319 = vmatmul.bf16.gmra.mxu0 %v1531
  %v3320 = vpop.f32.mrf.mxu0
  %v3321 = vadd.f32 %v3152, %v3320
  %v3322 = vpop.f32.mrf.mxu0
  %v3323 = vadd.f32 %v3154, %v3322
  %3324 = vmatmul.bf16.gmra.mxu0 %v1540
  %v3325 = vpop.f32.mrf.mxu0
  %v3326 = vadd.f32 %v3157, %v3325
  %v3327 = vpop.f32.mrf.mxu0
  %v3328 = vadd.f32 %v3159, %v3327
  %3329 = vmatmul.bf16.gmra.mxu0 %v1549
  %v3330 = vpop.f32.mrf.mxu0
  %v3331 = vadd.f32 %v3162, %v3330
  %v3332 = vpop.f32.mrf.mxu0
  %v3333 = vadd.f32 %v3164, %v3332
  %3334 = vmatmul.bf16.gmra.mxu0 %v1558
  %v3335 = vpop.f32.mrf.mxu0
  %v3336 = vadd.f32 %v3167, %v3335
  %v3337 = vpop.f32.mrf.mxu0
  %v3338 = vadd.f32 %v3169, %v3337
  %3339 = vmatmul.bf16.gmra.mxu0 %v1567
  %v3340 = vpop.f32.mrf.mxu0
  %v3341 = vadd.f32 %v3172, %v3340
  %v3342 = vpop.f32.mrf.mxu0
  %v3343 = vadd.f32 %v3174, %v3342
  %3344 = vmatmul.bf16.gmra.mxu0 %v1576
  %v3345 = vpop.f32.mrf.mxu0
  %v3346 = vadd.f32 %v3177, %v3345
  %v3347 = vpop.f32.mrf.mxu0
  %v3348 = vadd.f32 %v3179, %v3347
  %3349 = vmatmul.bf16.gmra.mxu0 %v1585
  %v3350 = vpop.f32.mrf.mxu0
  %v3351 = vadd.f32 %v3182, %v3350
  %v3352 = vpop.f32.mrf.mxu0
  %v3353 = vadd.f32 %v3184, %v3352
  %3354 = vmatmul.bf16.gmra.mxu0 %v1594
  %v3355 = vpop.f32.mrf.mxu0
  %v3356 = vadd.f32 %v3187, %v3355
  %v3357 = vpop.f32.mrf.mxu0
  %v3358 = vadd.f32 %v3189, %v3357
  %3359 = vmatmul.bf16.gmra.mxu0 %v1603
  %v3360 = vpop.f32.mrf.mxu0
  %v3361 = vadd.f32 %v3192, %v3360
  %v3362 = vpop.f32.mrf.mxu0
  %v3363 = vadd.f32 %v3194, %v3362
  %3364 = vmatmul.bf16.gmra.mxu0 %v1612
  %v3365 = vpop.f32.mrf.mxu0
  %v3366 = vadd.f32 %v3197, %v3365
  %v3367 = vpop.f32.mrf.mxu0
  %v3368 = vadd.f32 %v3199, %v3367
  %3369 = vmatmul.bf16.gmra.mxu0 %v1621
  %v3370 = vpop.f32.mrf.mxu0
  %v3371 = vadd.f32 %v3202, %v3370
  %v3372 = vpop.f32.mrf.mxu0
  %v3373 = vadd.f32 %v3204, %v3372
  %3374 = vmatmul.bf16.gmra.mxu0 %v1630
  %v3375 = vpop.f32.mrf.mxu0
  %v3376 = vadd.f32 %v3207, %v3375
  %v3377 = vpop.f32.mrf.mxu0
  %v3378 = vadd.f32 %v3209, %v3377
  %3379 = vmatmul.bf16.gmra.mxu0 %v1639
  %v3380 = vpop.f32.mrf.mxu0
  %v3381 = vadd.f32 %v3212, %v3380
  %v3382 = vpop.f32.mrf.mxu0
  %v3383 = vadd.f32 %v3214, %v3382
  %3384 = vmatmul.bf16.gmra.mxu0 %v1648
  %v3385 = vpop.f32.mrf.mxu0
  %v3386 = vadd.f32 %v3217, %v3385
  %v3387 = vpop.f32.mrf.mxu0
  %v3388 = vadd.f32 %v3219, %v3387
  %3389 = vmatmul.bf16.gmra.mxu0 %v1657
  %v3390 = vpop.f32.mrf.mxu0
  %v3391 = vadd.f32 %v3222, %v3390
  %v3392 = vpop.f32.mrf.mxu0
  %v3393 = vadd.f32 %v3224, %v3392
  %3394 = vdwg.mxu0
  %3395 = vmatpush.bf16.msra.mxu0 %v2292
  %3396 = vmatpush.bf16.msra.mxu0 %v2291
  %3397 = vmatpush.bf16.msra.mxu0 %v2290
  %3398 = vmatpush.bf16.msra.mxu0 %v2289
  %3399 = vmatpush.bf16.msra.mxu0 %v2288
  %3400 = vmatpush.bf16.msra.mxu0 %v2287
  %3401 = vmatpush.bf16.msra.mxu0 %v2286
  %3402 = vmatpush.bf16.msra.mxu0 %v2285
  %3403 = vmatmul.bf16.gmra.mxu0 %v1379
  %v3404 = vpop.f32.mrf.mxu0
  %v3405 = vadd.f32 %v3236, %v3404
  %v3406 = vpop.f32.mrf.mxu0
  %v3407 = vadd.f32 %v3238, %v3406
  %3408 = vmatmul.bf16.gmra.mxu0 %v1388
  %v3409 = vpop.f32.mrf.mxu0
  %v3410 = vadd.f32 %v3241, %v3409
  %v3411 = vpop.f32.mrf.mxu0
  %v3412 = vadd.f32 %v3243, %v3411
  %3413 = vmatmul.bf16.gmra.mxu0 %v1397
  %v3414 = vpop.f32.mrf.mxu0
  %v3415 = vadd.f32 %v3246, %v3414
  %v3416 = vpop.f32.mrf.mxu0
  %v3417 = vadd.f32 %v3248, %v3416
  %3418 = vmatmul.bf16.gmra.mxu0 %v1406
  %v3419 = vpop.f32.mrf.mxu0
  %v3420 = vadd.f32 %v3251, %v3419
  %v3421 = vpop.f32.mrf.mxu0
  %v3422 = vadd.f32 %v3253, %v3421
  %3423 = vmatmul.bf16.gmra.mxu0 %v1415
  %v3424 = vpop.f32.mrf.mxu0
  %v3425 = vadd.f32 %v3256, %v3424
  %v3426 = vpop.f32.mrf.mxu0
  %v3427 = vadd.f32 %v3258, %v3426
  %3428 = vmatmul.bf16.gmra.mxu0 %v1424
  %v3429 = vpop.f32.mrf.mxu0
  %v3430 = vadd.f32 %v3261, %v3429
  %v3431 = vpop.f32.mrf.mxu0
  %v3432 = vadd.f32 %v3263, %v3431
  %3433 = vmatmul.bf16.gmra.mxu0 %v1433
  %v3434 = vpop.f32.mrf.mxu0
  %v3435 = vadd.f32 %v3266, %v3434
  %v3436 = vpop.f32.mrf.mxu0
  %v3437 = vadd.f32 %v3268, %v3436
  %3438 = vmatmul.bf16.gmra.mxu0 %v1442
  %v3439 = vpop.f32.mrf.mxu0
  %v3440 = vadd.f32 %v3271, %v3439
  %v3441 = vpop.f32.mrf.mxu0
  %v3442 = vadd.f32 %v3273, %v3441
  %3443 = vmatmul.bf16.gmra.mxu0 %v1451
  %v3444 = vpop.f32.mrf.mxu0
  %v3445 = vadd.f32 %v3276, %v3444
  %v3446 = vpop.f32.mrf.mxu0
  %v3447 = vadd.f32 %v3278, %v3446
  %3448 = vmatmul.bf16.gmra.mxu0 %v1460
  %v3449 = vpop.f32.mrf.mxu0
  %v3450 = vadd.f32 %v3281, %v3449
  %v3451 = vpop.f32.mrf.mxu0
  %v3452 = vadd.f32 %v3283, %v3451
  %3453 = vmatmul.bf16.gmra.mxu0 %v1469
  %v3454 = vpop.f32.mrf.mxu0
  %v3455 = vadd.f32 %v3286, %v3454
  %v3456 = vpop.f32.mrf.mxu0
  %v3457 = vadd.f32 %v3288, %v3456
  %3458 = vmatmul.bf16.gmra.mxu0 %v1478
  %v3459 = vpop.f32.mrf.mxu0
  %v3460 = vadd.f32 %v3291, %v3459
  %v3461 = vpop.f32.mrf.mxu0
  %v3462 = vadd.f32 %v3293, %v3461
  %3463 = vmatmul.bf16.gmra.mxu0 %v1487
  %v3464 = vpop.f32.mrf.mxu0
  %v3465 = vadd.f32 %v3296, %v3464
  %v3466 = vpop.f32.mrf.mxu0
  %v3467 = vadd.f32 %v3298, %v3466
  %3468 = vmatmul.bf16.gmra.mxu0 %v1496
  %v3469 = vpop.f32.mrf.mxu0
  %v3470 = vadd.f32 %v3301, %v3469
  %v3471 = vpop.f32.mrf.mxu0
  %v3472 = vadd.f32 %v3303, %v3471
  %3473 = vmatmul.bf16.gmra.mxu0 %v1505
  %v3474 = vpop.f32.mrf.mxu0
  %v3475 = vadd.f32 %v3306, %v3474
  %v3476 = vpop.f32.mrf.mxu0
  %v3477 = vadd.f32 %v3308, %v3476
  %3478 = vmatmul.bf16.gmra.mxu0 %v1514
  %v3479 = vpop.f32.mrf.mxu0
  %v3480 = vadd.f32 %v3311, %v3479
  %v3481 = vpop.f32.mrf.mxu0
  %v3482 = vadd.f32 %v3313, %v3481
  %3483 = vmatmul.bf16.gmra.mxu0 %v1523
  %v3484 = vpop.f32.mrf.mxu0
  %v3485 = vadd.f32 %v3316, %v3484
  %v3486 = vpop.f32.mrf.mxu0
  %v3487 = vadd.f32 %v3318, %v3486
  %3488 = vmatmul.bf16.gmra.mxu0 %v1532
  %v3489 = vpop.f32.mrf.mxu0
  %v3490 = vadd.f32 %v3321, %v3489
  %v3491 = vpop.f32.mrf.mxu0
  %v3492 = vadd.f32 %v3323, %v3491
  %3493 = vmatmul.bf16.gmra.mxu0 %v1541
  %v3494 = vpop.f32.mrf.mxu0
  %v3495 = vadd.f32 %v3326, %v3494
  %v3496 = vpop.f32.mrf.mxu0
  %v3497 = vadd.f32 %v3328, %v3496
  %3498 = vmatmul.bf16.gmra.mxu0 %v1550
  %v3499 = vpop.f32.mrf.mxu0
  %v3500 = vadd.f32 %v3331, %v3499
  %v3501 = vpop.f32.mrf.mxu0
  %v3502 = vadd.f32 %v3333, %v3501
  %3503 = vmatmul.bf16.gmra.mxu0 %v1559
  %v3504 = vpop.f32.mrf.mxu0
  %v3505 = vadd.f32 %v3336, %v3504
  %v3506 = vpop.f32.mrf.mxu0
  %v3507 = vadd.f32 %v3338, %v3506
  %3508 = vmatmul.bf16.gmra.mxu0 %v1568
  %v3509 = vpop.f32.mrf.mxu0
  %v3510 = vadd.f32 %v3341, %v3509
  %v3511 = vpop.f32.mrf.mxu0
  %v3512 = vadd.f32 %v3343, %v3511
  %3513 = vmatmul.bf16.gmra.mxu0 %v1577
  %v3514 = vpop.f32.mrf.mxu0
  %v3515 = vadd.f32 %v3346, %v3514
  %v3516 = vpop.f32.mrf.mxu0
  %v3517 = vadd.f32 %v3348, %v3516
  %3518 = vmatmul.bf16.gmra.mxu0 %v1586
  %v3519 = vpop.f32.mrf.mxu0
  %v3520 = vadd.f32 %v3351, %v3519
  %v3521 = vpop.f32.mrf.mxu0
  %v3522 = vadd.f32 %v3353, %v3521
  %3523 = vmatmul.bf16.gmra.mxu0 %v1595
  %v3524 = vpop.f32.mrf.mxu0
  %v3525 = vadd.f32 %v3356, %v3524
  %v3526 = vpop.f32.mrf.mxu0
  %v3527 = vadd.f32 %v3358, %v3526
  %3528 = vmatmul.bf16.gmra.mxu0 %v1604
  %v3529 = vpop.f32.mrf.mxu0
  %v3530 = vadd.f32 %v3361, %v3529
  %v3531 = vpop.f32.mrf.mxu0
  %v3532 = vadd.f32 %v3363, %v3531
  %3533 = vmatmul.bf16.gmra.mxu0 %v1613
  %v3534 = vpop.f32.mrf.mxu0
  %v3535 = vadd.f32 %v3366, %v3534
  %v3536 = vpop.f32.mrf.mxu0
  %v3537 = vadd.f32 %v3368, %v3536
  %3538 = vmatmul.bf16.gmra.mxu0 %v1622
  %v3539 = vpop.f32.mrf.mxu0
  %v3540 = vadd.f32 %v3371, %v3539
  %v3541 = vpop.f32.mrf.mxu0
  %v3542 = vadd.f32 %v3373, %v3541
  %3543 = vmatmul.bf16.gmra.mxu0 %v1631
  %v3544 = vpop.f32.mrf.mxu0
  %v3545 = vadd.f32 %v3376, %v3544
  %v3546 = vpop.f32.mrf.mxu0
  %v3547 = vadd.f32 %v3378, %v3546
  %3548 = vmatmul.bf16.gmra.mxu0 %v1640
  %v3549 = vpop.f32.mrf.mxu0
  %v3550 = vadd.f32 %v3381, %v3549
  %v3551 = vpop.f32.mrf.mxu0
  %v3552 = vadd.f32 %v3383, %v3551
  %3553 = vmatmul.bf16.gmra.mxu0 %v1649
  %v3554 = vpop.f32.mrf.mxu0
  %v3555 = vadd.f32 %v3386, %v3554
  %v3556 = vpop.f32.mrf.mxu0
  %v3557 = vadd.f32 %v3388, %v3556
  %3558 = vmatmul.bf16.gmra.mxu0 %v1658
  %v3559 = vpop.f32.mrf.mxu0
  %v3560 = vadd.f32 %v3391, %v3559
  %v3561 = vpop.f32.mrf.mxu0
  %v3562 = vadd.f32 %v3393, %v3561
  %3563 = vdwg.mxu0
  %3564 = vmatpush.bf16.msra.mxu0 %v2300
  %3565 = vmatpush.bf16.msra.mxu0 %v2299
  %3566 = vmatpush.bf16.msra.mxu0 %v2298
  %3567 = vmatpush.bf16.msra.mxu0 %v2297
  %3568 = vmatpush.bf16.msra.mxu0 %v2296
  %3569 = vmatpush.bf16.msra.mxu0 %v2295
  %3570 = vmatpush.bf16.msra.mxu0 %v2294
  %3571 = vmatpush.bf16.msra.mxu0 %v2293
  %3572 = vmatmul.bf16.gmra.mxu0 %v1380
  %v3573 = vpop.f32.mrf.mxu0
  %v3574 = vadd.f32 %v3405, %v3573
  %v3575 = vpop.f32.mrf.mxu0
  %v3576 = vadd.f32 %v3407, %v3575
  %3577 = vmatmul.bf16.gmra.mxu0 %v1389
  %v3578 = vpop.f32.mrf.mxu0
  %v3579 = vadd.f32 %v3410, %v3578
  %v3580 = vpop.f32.mrf.mxu0
  %v3581 = vadd.f32 %v3412, %v3580
  %3582 = vmatmul.bf16.gmra.mxu0 %v1398
  %v3583 = vpop.f32.mrf.mxu0
  %v3584 = vadd.f32 %v3415, %v3583
  %v3585 = vpop.f32.mrf.mxu0
  %v3586 = vadd.f32 %v3417, %v3585
  %3587 = vmatmul.bf16.gmra.mxu0 %v1407
  %v3588 = vpop.f32.mrf.mxu0
  %v3589 = vadd.f32 %v3420, %v3588
  %v3590 = vpop.f32.mrf.mxu0
  %v3591 = vadd.f32 %v3422, %v3590
  %3592 = vmatmul.bf16.gmra.mxu0 %v1416
  %v3593 = vpop.f32.mrf.mxu0
  %v3594 = vadd.f32 %v3425, %v3593
  %v3595 = vpop.f32.mrf.mxu0
  %v3596 = vadd.f32 %v3427, %v3595
  %3597 = vmatmul.bf16.gmra.mxu0 %v1425
  %v3598 = vpop.f32.mrf.mxu0
  %v3599 = vadd.f32 %v3430, %v3598
  %v3600 = vpop.f32.mrf.mxu0
  %v3601 = vadd.f32 %v3432, %v3600
  %3602 = vmatmul.bf16.gmra.mxu0 %v1434
  %v3603 = vpop.f32.mrf.mxu0
  %v3604 = vadd.f32 %v3435, %v3603
  %v3605 = vpop.f32.mrf.mxu0
  %v3606 = vadd.f32 %v3437, %v3605
  %3607 = vmatmul.bf16.gmra.mxu0 %v1443
  %v3608 = vpop.f32.mrf.mxu0
  %v3609 = vadd.f32 %v3440, %v3608
  %v3610 = vpop.f32.mrf.mxu0
  %v3611 = vadd.f32 %v3442, %v3610
  %3612 = vmatmul.bf16.gmra.mxu0 %v1452
  %v3613 = vpop.f32.mrf.mxu0
  %v3614 = vadd.f32 %v3445, %v3613
  %v3615 = vpop.f32.mrf.mxu0
  %v3616 = vadd.f32 %v3447, %v3615
  %3617 = vmatmul.bf16.gmra.mxu0 %v1461
  %v3618 = vpop.f32.mrf.mxu0
  %v3619 = vadd.f32 %v3450, %v3618
  %v3620 = vpop.f32.mrf.mxu0
  %v3621 = vadd.f32 %v3452, %v3620
  %3622 = vmatmul.bf16.gmra.mxu0 %v1470
  %v3623 = vpop.f32.mrf.mxu0
  %v3624 = vadd.f32 %v3455, %v3623
  %v3625 = vpop.f32.mrf.mxu0
  %v3626 = vadd.f32 %v3457, %v3625
  %3627 = vmatmul.bf16.gmra.mxu0 %v1479
  %v3628 = vpop.f32.mrf.mxu0
  %v3629 = vadd.f32 %v3460, %v3628
  %v3630 = vpop.f32.mrf.mxu0
  %v3631 = vadd.f32 %v3462, %v3630
  %3632 = vmatmul.bf16.gmra.mxu0 %v1488
  %v3633 = vpop.f32.mrf.mxu0
  %v3634 = vadd.f32 %v3465, %v3633
  %v3635 = vpop.f32.mrf.mxu0
  %v3636 = vadd.f32 %v3467, %v3635
  %3637 = vmatmul.bf16.gmra.mxu0 %v1497
  %v3638 = vpop.f32.mrf.mxu0
  %v3639 = vadd.f32 %v3470, %v3638
  %v3640 = vpop.f32.mrf.mxu0
  %v3641 = vadd.f32 %v3472, %v3640
  %3642 = vmatmul.bf16.gmra.mxu0 %v1506
  %v3643 = vpop.f32.mrf.mxu0
  %v3644 = vadd.f32 %v3475, %v3643
  %v3645 = vpop.f32.mrf.mxu0
  %v3646 = vadd.f32 %v3477, %v3645
  %3647 = vmatmul.bf16.gmra.mxu0 %v1515
  %v3648 = vpop.f32.mrf.mxu0
  %v3649 = vadd.f32 %v3480, %v3648
  %v3650 = vpop.f32.mrf.mxu0
  %v3651 = vadd.f32 %v3482, %v3650
  %3652 = vmatmul.bf16.gmra.mxu0 %v1524
  %v3653 = vpop.f32.mrf.mxu0
  %v3654 = vadd.f32 %v3485, %v3653
  %v3655 = vpop.f32.mrf.mxu0
  %v3656 = vadd.f32 %v3487, %v3655
  %3657 = vmatmul.bf16.gmra.mxu0 %v1533
  %v3658 = vpop.f32.mrf.mxu0
  %v3659 = vadd.f32 %v3490, %v3658
  %v3660 = vpop.f32.mrf.mxu0
  %v3661 = vadd.f32 %v3492, %v3660
  %3662 = vmatmul.bf16.gmra.mxu0 %v1542
  %v3663 = vpop.f32.mrf.mxu0
  %v3664 = vadd.f32 %v3495, %v3663
  %v3665 = vpop.f32.mrf.mxu0
  %v3666 = vadd.f32 %v3497, %v3665
  %3667 = vmatmul.bf16.gmra.mxu0 %v1551
  %v3668 = vpop.f32.mrf.mxu0
  %v3669 = vadd.f32 %v3500, %v3668
  %v3670 = vpop.f32.mrf.mxu0
  %v3671 = vadd.f32 %v3502, %v3670
  %3672 = vmatmul.bf16.gmra.mxu0 %v1560
  %v3673 = vpop.f32.mrf.mxu0
  %v3674 = vadd.f32 %v3505, %v3673
  %v3675 = vpop.f32.mrf.mxu0
  %v3676 = vadd.f32 %v3507, %v3675
  %3677 = vmatmul.bf16.gmra.mxu0 %v1569
  %v3678 = vpop.f32.mrf.mxu0
  %v3679 = vadd.f32 %v3510, %v3678
  %v3680 = vpop.f32.mrf.mxu0
  %v3681 = vadd.f32 %v3512, %v3680
  %3682 = vmatmul.bf16.gmra.mxu0 %v1578
  %v3683 = vpop.f32.mrf.mxu0
  %v3684 = vadd.f32 %v3515, %v3683
  %v3685 = vpop.f32.mrf.mxu0
  %v3686 = vadd.f32 %v3517, %v3685
  %3687 = vmatmul.bf16.gmra.mxu0 %v1587
  %v3688 = vpop.f32.mrf.mxu0
  %v3689 = vadd.f32 %v3520, %v3688
  %v3690 = vpop.f32.mrf.mxu0
  %v3691 = vadd.f32 %v3522, %v3690
  %3692 = vmatmul.bf16.gmra.mxu0 %v1596
  %v3693 = vpop.f32.mrf.mxu0
  %v3694 = vadd.f32 %v3525, %v3693
  %v3695 = vpop.f32.mrf.mxu0
  %v3696 = vadd.f32 %v3527, %v3695
  %3697 = vmatmul.bf16.gmra.mxu0 %v1605
  %v3698 = vpop.f32.mrf.mxu0
  %v3699 = vadd.f32 %v3530, %v3698
  %v3700 = vpop.f32.mrf.mxu0
  %v3701 = vadd.f32 %v3532, %v3700
  %3702 = vmatmul.bf16.gmra.mxu0 %v1614
  %v3703 = vpop.f32.mrf.mxu0
  %v3704 = vadd.f32 %v3535, %v3703
  %v3705 = vpop.f32.mrf.mxu0
  %v3706 = vadd.f32 %v3537, %v3705
  %3707 = vmatmul.bf16.gmra.mxu0 %v1623
  %v3708 = vpop.f32.mrf.mxu0
  %v3709 = vadd.f32 %v3540, %v3708
  %v3710 = vpop.f32.mrf.mxu0
  %v3711 = vadd.f32 %v3542, %v3710
  %3712 = vmatmul.bf16.gmra.mxu0 %v1632
  %v3713 = vpop.f32.mrf.mxu0
  %v3714 = vadd.f32 %v3545, %v3713
  %v3715 = vpop.f32.mrf.mxu0
  %v3716 = vadd.f32 %v3547, %v3715
  %3717 = vmatmul.bf16.gmra.mxu0 %v1641
  %v3718 = vpop.f32.mrf.mxu0
  %v3719 = vadd.f32 %v3550, %v3718
  %v3720 = vpop.f32.mrf.mxu0
  %v3721 = vadd.f32 %v3552, %v3720
  %3722 = vmatmul.bf16.gmra.mxu0 %v1650
  %v3723 = vpop.f32.mrf.mxu0
  %v3724 = vadd.f32 %v3555, %v3723
  %v3725 = vpop.f32.mrf.mxu0
  %v3726 = vadd.f32 %v3557, %v3725
  %3727 = vmatmul.bf16.gmra.mxu0 %v1659
  %v3728 = vpop.f32.mrf.mxu0
  %v3729 = vadd.f32 %v3560, %v3728
  %v3730 = vpop.f32.mrf.mxu0
  %v3731 = vadd.f32 %v3562, %v3730
  %3732 = vdwg.mxu0
  %3733 = vmatpush.bf16.msra.mxu0 %v2308
  %3734 = vmatpush.bf16.msra.mxu0 %v2307
  %3735 = vmatpush.bf16.msra.mxu0 %v2306
  %3736 = vmatpush.bf16.msra.mxu0 %v2305
  %3737 = vmatpush.bf16.msra.mxu0 %v2304
  %3738 = vmatpush.bf16.msra.mxu0 %v2303
  %3739 = vmatpush.bf16.msra.mxu0 %v2302
  %3740 = vmatpush.bf16.msra.mxu0 %v2301
  %3741 = vmatmul.bf16.gmra.mxu0 %v1381
  %v3742 = vpop.f32.mrf.mxu0
  %v3743 = vadd.f32 %v3574, %v3742
  %v3744 = vpop.f32.mrf.mxu0
  %v3745 = vadd.f32 %v3576, %v3744
  %3746 = vmatmul.bf16.gmra.mxu0 %v1390
  %v3747 = vpop.f32.mrf.mxu0
  %v3748 = vadd.f32 %v3579, %v3747
  %v3749 = vpop.f32.mrf.mxu0
  %v3750 = vadd.f32 %v3581, %v3749
  %3751 = vmatmul.bf16.gmra.mxu0 %v1399
  %v3752 = vpop.f32.mrf.mxu0
  %v3753 = vadd.f32 %v3584, %v3752
  %v3754 = vpop.f32.mrf.mxu0
  %v3755 = vadd.f32 %v3586, %v3754
  %3756 = vmatmul.bf16.gmra.mxu0 %v1408
  %v3757 = vpop.f32.mrf.mxu0
  %v3758 = vadd.f32 %v3589, %v3757
  %v3759 = vpop.f32.mrf.mxu0
  %v3760 = vadd.f32 %v3591, %v3759
  %3761 = vmatmul.bf16.gmra.mxu0 %v1417
  %v3762 = vpop.f32.mrf.mxu0
  %v3763 = vadd.f32 %v3594, %v3762
  %v3764 = vpop.f32.mrf.mxu0
  %v3765 = vadd.f32 %v3596, %v3764
  %3766 = vmatmul.bf16.gmra.mxu0 %v1426
  %v3767 = vpop.f32.mrf.mxu0
  %v3768 = vadd.f32 %v3599, %v3767
  %v3769 = vpop.f32.mrf.mxu0
  %v3770 = vadd.f32 %v3601, %v3769
  %3771 = vmatmul.bf16.gmra.mxu0 %v1435
  %v3772 = vpop.f32.mrf.mxu0
  %v3773 = vadd.f32 %v3604, %v3772
  %v3774 = vpop.f32.mrf.mxu0
  %v3775 = vadd.f32 %v3606, %v3774
  %3776 = vmatmul.bf16.gmra.mxu0 %v1444
  %v3777 = vpop.f32.mrf.mxu0
  %v3778 = vadd.f32 %v3609, %v3777
  %v3779 = vpop.f32.mrf.mxu0
  %v3780 = vadd.f32 %v3611, %v3779
  %3781 = vmatmul.bf16.gmra.mxu0 %v1453
  %v3782 = vpop.f32.mrf.mxu0
  %v3783 = vadd.f32 %v3614, %v3782
  %v3784 = vpop.f32.mrf.mxu0
  %v3785 = vadd.f32 %v3616, %v3784
  %3786 = vmatmul.bf16.gmra.mxu0 %v1462
  %v3787 = vpop.f32.mrf.mxu0
  %v3788 = vadd.f32 %v3619, %v3787
  %v3789 = vpop.f32.mrf.mxu0
  %v3790 = vadd.f32 %v3621, %v3789
  %3791 = vmatmul.bf16.gmra.mxu0 %v1471
  %v3792 = vpop.f32.mrf.mxu0
  %v3793 = vadd.f32 %v3624, %v3792
  %v3794 = vpop.f32.mrf.mxu0
  %v3795 = vadd.f32 %v3626, %v3794
  %3796 = vmatmul.bf16.gmra.mxu0 %v1480
  %v3797 = vpop.f32.mrf.mxu0
  %v3798 = vadd.f32 %v3629, %v3797
  %v3799 = vpop.f32.mrf.mxu0
  %v3800 = vadd.f32 %v3631, %v3799
  %3801 = vmatmul.bf16.gmra.mxu0 %v1489
  %v3802 = vpop.f32.mrf.mxu0
  %v3803 = vadd.f32 %v3634, %v3802
  %v3804 = vpop.f32.mrf.mxu0
  %v3805 = vadd.f32 %v3636, %v3804
  %3806 = vmatmul.bf16.gmra.mxu0 %v1498
  %v3807 = vpop.f32.mrf.mxu0
  %v3808 = vadd.f32 %v3639, %v3807
  %v3809 = vpop.f32.mrf.mxu0
  %v3810 = vadd.f32 %v3641, %v3809
  %3811 = vmatmul.bf16.gmra.mxu0 %v1507
  %v3812 = vpop.f32.mrf.mxu0
  %v3813 = vadd.f32 %v3644, %v3812
  %v3814 = vpop.f32.mrf.mxu0
  %v3815 = vadd.f32 %v3646, %v3814
  %3816 = vmatmul.bf16.gmra.mxu0 %v1516
  %v3817 = vpop.f32.mrf.mxu0
  %v3818 = vadd.f32 %v3649, %v3817
  %v3819 = vpop.f32.mrf.mxu0
  %v3820 = vadd.f32 %v3651, %v3819
  %3821 = vmatmul.bf16.gmra.mxu0 %v1525
  %v3822 = vpop.f32.mrf.mxu0
  %v3823 = vadd.f32 %v3654, %v3822
  %v3824 = vpop.f32.mrf.mxu0
  %v3825 = vadd.f32 %v3656, %v3824
  %3826 = vmatmul.bf16.gmra.mxu0 %v1534
  %v3827 = vpop.f32.mrf.mxu0
  %v3828 = vadd.f32 %v3659, %v3827
  %v3829 = vpop.f32.mrf.mxu0
  %v3830 = vadd.f32 %v3661, %v3829
  %3831 = vmatmul.bf16.gmra.mxu0 %v1543
  %v3832 = vpop.f32.mrf.mxu0
  %v3833 = vadd.f32 %v3664, %v3832
  %v3834 = vpop.f32.mrf.mxu0
  %v3835 = vadd.f32 %v3666, %v3834
  %3836 = vmatmul.bf16.gmra.mxu0 %v1552
  %v3837 = vpop.f32.mrf.mxu0
  %v3838 = vadd.f32 %v3669, %v3837
  %v3839 = vpop.f32.mrf.mxu0
  %v3840 = vadd.f32 %v3671, %v3839
  %3841 = vmatmul.bf16.gmra.mxu0 %v1561
  %v3842 = vpop.f32.mrf.mxu0
  %v3843 = vadd.f32 %v3674, %v3842
  %v3844 = vpop.f32.mrf.mxu0
  %v3845 = vadd.f32 %v3676, %v3844
  %3846 = vmatmul.bf16.gmra.mxu0 %v1570
  %v3847 = vpop.f32.mrf.mxu0
  %v3848 = vadd.f32 %v3679, %v3847
  %v3849 = vpop.f32.mrf.mxu0
  %v3850 = vadd.f32 %v3681, %v3849
  %3851 = vmatmul.bf16.gmra.mxu0 %v1579
  %v3852 = vpop.f32.mrf.mxu0
  %v3853 = vadd.f32 %v3684, %v3852
  %v3854 = vpop.f32.mrf.mxu0
  %v3855 = vadd.f32 %v3686, %v3854
  %3856 = vmatmul.bf16.gmra.mxu0 %v1588
  %v3857 = vpop.f32.mrf.mxu0
  %v3858 = vadd.f32 %v3689, %v3857
  %v3859 = vpop.f32.mrf.mxu0
  %v3860 = vadd.f32 %v3691, %v3859
  %3861 = vmatmul.bf16.gmra.mxu0 %v1597
  %v3862 = vpop.f32.mrf.mxu0
  %v3863 = vadd.f32 %v3694, %v3862
  %v3864 = vpop.f32.mrf.mxu0
  %v3865 = vadd.f32 %v3696, %v3864
  %3866 = vmatmul.bf16.gmra.mxu0 %v1606
  %v3867 = vpop.f32.mrf.mxu0
  %v3868 = vadd.f32 %v3699, %v3867
  %v3869 = vpop.f32.mrf.mxu0
  %v3870 = vadd.f32 %v3701, %v3869
  %3871 = vmatmul.bf16.gmra.mxu0 %v1615
  %v3872 = vpop.f32.mrf.mxu0
  %v3873 = vadd.f32 %v3704, %v3872
  %v3874 = vpop.f32.mrf.mxu0
  %v3875 = vadd.f32 %v3706, %v3874
  %3876 = vmatmul.bf16.gmra.mxu0 %v1624
  %v3877 = vpop.f32.mrf.mxu0
  %v3878 = vadd.f32 %v3709, %v3877
  %v3879 = vpop.f32.mrf.mxu0
  %v3880 = vadd.f32 %v3711, %v3879
  %3881 = vmatmul.bf16.gmra.mxu0 %v1633
  %v3882 = vpop.f32.mrf.mxu0
  %v3883 = vadd.f32 %v3714, %v3882
  %v3884 = vpop.f32.mrf.mxu0
  %v3885 = vadd.f32 %v3716, %v3884
  %3886 = vmatmul.bf16.gmra.mxu0 %v1642
  %v3887 = vpop.f32.mrf.mxu0
  %v3888 = vadd.f32 %v3719, %v3887
  %v3889 = vpop.f32.mrf.mxu0
  %v3890 = vadd.f32 %v3721, %v3889
  %3891 = vmatmul.bf16.gmra.mxu0 %v1651
  %v3892 = vpop.f32.mrf.mxu0
  %v3893 = vadd.f32 %v3724, %v3892
  %v3894 = vpop.f32.mrf.mxu0
  %v3895 = vadd.f32 %v3726, %v3894
  %3896 = vmatmul.bf16.gmra.mxu0 %v1660
  %v3897 = vpop.f32.mrf.mxu0
  %v3898 = vadd.f32 %v3729, %v3897
  %v3899 = vpop.f32.mrf.mxu0
  %v3900 = vadd.f32 %v3731, %v3899
  %3901 = vdwg.mxu0
  %v3902 = vpack.c.bf16 %v3743, %v3743
  %v3903 = vpack.c.bf16 %v3745, %v3745
  %v3904 = vpack.c.bf16 %v3748, %v3748
  %v3905 = vpack.c.bf16 %v3750, %v3750
  %v3906 = vpack.c.bf16 %v3753, %v3753
  %v3907 = vpack.c.bf16 %v3755, %v3755
  %v3908 = vpack.c.bf16 %v3758, %v3758
  %v3909 = vpack.c.bf16 %v3760, %v3760
  %v3910 = vpack.c.bf16 %v3763, %v3763
  %v3911 = vpack.c.bf16 %v3765, %v3765
  %v3912 = vpack.c.bf16 %v3768, %v3768
  %v3913 = vpack.c.bf16 %v3770, %v3770
  %v3914 = vpack.c.bf16 %v3773, %v3773
  %v3915 = vpack.c.bf16 %v3775, %v3775
  %v3916 = vpack.c.bf16 %v3778, %v3778
  %v3917 = vpack.c.bf16 %v3780, %v3780
  %v3918 = vpack.c.bf16 %v3783, %v3783
  %v3919 = vpack.c.bf16 %v3785, %v3785
  %v3920 = vpack.c.bf16 %v3788, %v3788
  %v3921 = vpack.c.bf16 %v3790, %v3790
  %v3922 = vpack.c.bf16 %v3793, %v3793
  %v3923 = vpack.c.bf16 %v3795, %v3795
  %v3924 = vpack.c.bf16 %v3798, %v3798
  %v3925 = vpack.c.bf16 %v3800, %v3800
  %v3926 = vpack.c.bf16 %v3803, %v3803
  %v3927 = vpack.c.bf16 %v3805, %v3805
  %v3928 = vpack.c.bf16 %v3808, %v3808
  %v3929 = vpack.c.bf16 %v3810, %v3810
  %v3930 = vpack.c.bf16 %v3813, %v3813
  %v3931 = vpack.c.bf16 %v3815, %v3815
  %v3932 = vpack.c.bf16 %v3818, %v3818
  %v3933 = vpack.c.bf16 %v3820, %v3820
  %v3934 = vpack.c.bf16 %v3823, %v3823
  %v3935 = vpack.c.bf16 %v3825, %v3825
  %v3936 = vpack.c.bf16 %v3828, %v3828
  %v3937 = vpack.c.bf16 %v3830, %v3830
  %v3938 = vpack.c.bf16 %v3833, %v3833
  %v3939 = vpack.c.bf16 %v3835, %v3835
  %v3940 = vpack.c.bf16 %v3838, %v3838
  %v3941 = vpack.c.bf16 %v3840, %v3840
  %v3942 = vpack.c.bf16 %v3843, %v3843
  %v3943 = vpack.c.bf16 %v3845, %v3845
  %v3944 = vpack.c.bf16 %v3848, %v3848
  %v3945 = vpack.c.bf16 %v3850, %v3850
  %v3946 = vpack.c.bf16 %v3853, %v3853
  %v3947 = vpack.c.bf16 %v3855, %v3855
  %v3948 = vpack.c.bf16 %v3858, %v3858
  %v3949 = vpack.c.bf16 %v3860, %v3860
  %v3950 = vpack.c.bf16 %v3863, %v3863
  %v3951 = vpack.c.bf16 %v3865, %v3865
  %v3952 = vpack.c.bf16 %v3868, %v3868
  %v3953 = vpack.c.bf16 %v3870, %v3870
  %v3954 = vpack.c.bf16 %v3873, %v3873
  %v3955 = vpack.c.bf16 %v3875, %v3875
  %v3956 = vpack.c.bf16 %v3878, %v3878
  %v3957 = vpack.c.bf16 %v3880, %v3880
  %v3958 = vpack.c.bf16 %v3883, %v3883
  %v3959 = vpack.c.bf16 %v3885, %v3885
  %v3960 = vpack.c.bf16 %v3888, %v3888
  %v3961 = vpack.c.bf16 %v3890, %v3890
  %v3962 = vpack.c.bf16 %v3893, %v3893
  %v3963 = vpack.c.bf16 %v3895, %v3895
  %v3964 = vpack.c.bf16 %v3898, %v3898
  %v3965 = vpack.c.bf16 %v3900, %v3900
  %3966 = vst [vmem:[%s2] sm:$0xf] %v3902
  %3967 = vst [vmem:[%s2 + $0x4] sm:$0xf] %v3903
  %3968 = vst [vmem:[%s2 + $0x8] sm:$0xf] %v3904
  %3969 = vst [vmem:[%s2 + $0xc] sm:$0xf] %v3905
  %3970 = vst [vmem:[%s2 + $0x10] sm:$0xf] %v3906
  %3971 = vst [vmem:[%s2 + $0x14] sm:$0xf] %v3907
  %3972 = vst [vmem:[%s2 + $0x18] sm:$0xf] %v3908
  %3973 = vst [vmem:[%s2 + $0x1c] sm:$0xf] %v3909
  %3974 = vst [vmem:[%s2 + $0x20] sm:$0xf] %v3910
  %3975 = vst [vmem:[%s2 + $0x24] sm:$0xf] %v3911
  %3976 = vst [vmem:[%s2 + $0x28] sm:$0xf] %v3912
  %3977 = vst [vmem:[%s2 + $0x2c] sm:$0xf] %v3913
  %3978 = vst [vmem:[%s2 + $0x30] sm:$0xf] %v3914
  %3979 = vst [vmem:[%s2 + $0x34] sm:$0xf] %v3915
  %3980 = vst [vmem:[%s2 + $0x38] sm:$0xf] %v3916
  %3981 = vst [vmem:[%s2 + $0x3c] sm:$0xf] %v3917
  %3982 = vst [vmem:[%s2 + $0x40] sm:$0xf] %v3918
  %3983 = vst [vmem:[%s2 + $0x44] sm:$0xf] %v3919
  %3984 = vst [vmem:[%s2 + $0x48] sm:$0xf] %v3920
  %3985 = vst [vmem:[%s2 + $0x4c] sm:$0xf] %v3921
  %3986 = vst [vmem:[%s2 + $0x50] sm:$0xf] %v3922
  %3987 = vst [vmem:[%s2 + $0x54] sm:$0xf] %v3923
  %3988 = vst [vmem:[%s2 + $0x58] sm:$0xf] %v3924
  %3989 = vst [vmem:[%s2 + $0x5c] sm:$0xf] %v3925
  %3990 = vst [vmem:[%s2 + $0x60] sm:$0xf] %v3926
  %3991 = vst [vmem:[%s2 + $0x64] sm:$0xf] %v3927
  %3992 = vst [vmem:[%s2 + $0x68] sm:$0xf] %v3928
  %3993 = vst [vmem:[%s2 + $0x6c] sm:$0xf] %v3929
  %3994 = vst [vmem:[%s2 + $0x70] sm:$0xf] %v3930
  %3995 = vst [vmem:[%s2 + $0x74] sm:$0xf] %v3931
  %3996 = vst [vmem:[%s2 + $0x78] sm:$0xf] %v3932
  %3997 = vst [vmem:[%s2 + $0x7c] sm:$0xf] %v3933
  %3998 = vst [vmem:[%s2 + $0x80] sm:$0xf] %v3934
  %3999 = vst [vmem:[%s2 + $0x84] sm:$0xf] %v3935
  %4000 = vst [vmem:[%s2 + $0x88] sm:$0xf] %v3936
  %4001 = vst [vmem:[%s2 + $0x8c] sm:$0xf] %v3937
  %4002 = vst [vmem:[%s2 + $0x90] sm:$0xf] %v3938
  %4003 = vst [vmem:[%s2 + $0x94] sm:$0xf] %v3939
  %4004 = vst [vmem:[%s2 + $0x98] sm:$0xf] %v3940
  %4005 = vst [vmem:[%s2 + $0x9c] sm:$0xf] %v3941
  %4006 = vst [vmem:[%s2 + $0xa0] sm:$0xf] %v3942
  %4007 = vst [vmem:[%s2 + $0xa4] sm:$0xf] %v3943
  %4008 = vst [vmem:[%s2 + $0xa8] sm:$0xf] %v3944
  %4009 = vst [vmem:[%s2 + $0xac] sm:$0xf] %v3945
  %4010 = vst [vmem:[%s2 + $0xb0] sm:$0xf] %v3946
  %4011 = vst [vmem:[%s2 + $0xb4] sm:$0xf] %v3947
  %4012 = vst [vmem:[%s2 + $0xb8] sm:$0xf] %v3948
  %4013 = vst [vmem:[%s2 + $0xbc] sm:$0xf] %v3949
  %4014 = vst [vmem:[%s2 + $0xc0] sm:$0xf] %v3950
  %4015 = vst [vmem:[%s2 + $0xc4] sm:$0xf] %v3951
  %4016 = vst [vmem:[%s2 + $0xc8] sm:$0xf] %v3952
  %4017 = vst [vmem:[%s2 + $0xcc] sm:$0xf] %v3953
  %4018 = vst [vmem:[%s2 + $0xd0] sm:$0xf] %v3954
  %4019 = vst [vmem:[%s2 + $0xd4] sm:$0xf] %v3955
  %4020 = vst [vmem:[%s2 + $0xd8] sm:$0xf] %v3956
  %4021 = vst [vmem:[%s2 + $0xdc] sm:$0xf] %v3957
  %4022 = vst [vmem:[%s2 + $0xe0] sm:$0xf] %v3958
  %4023 = vst [vmem:[%s2 + $0xe4] sm:$0xf] %v3959
  %4024 = vst [vmem:[%s2 + $0xe8] sm:$0xf] %v3960
  %4025 = vst [vmem:[%s2 + $0xec] sm:$0xf] %v3961
  %4026 = vst [vmem:[%s2 + $0xf0] sm:$0xf] %v3962
  %4027 = vst [vmem:[%s2 + $0xf4] sm:$0xf] %v3963
  %4028 = vst [vmem:[%s2 + $0xf8] sm:$0xf] %v3964
  %4029 = vst [vmem:[%s2 + $0xfc] sm:$0xf] %v3965
  %v4030 = vadd.f32 %v3743, %v3745
  %v4031 = vadd.f32 %v4030, %v3748
  %v4032 = vadd.f32 %v4031, %v3750
  %v4033 = vadd.f32 %v4032, %v3753
  %v4034 = vadd.f32 %v4033, %v3755
  %v4035 = vadd.f32 %v4034, %v3758
  %v4036 = vadd.f32 %v4035, %v3760
  %v4037 = vadd.f32 %v4036, %v3763
  %v4038 = vadd.f32 %v4037, %v3765
  %v4039 = vadd.f32 %v4038, %v3768
  %v4040 = vadd.f32 %v4039, %v3770
  %v4041 = vadd.f32 %v4040, %v3773
  %v4042 = vadd.f32 %v4041, %v3775
  %v4043 = vadd.f32 %v4042, %v3778
  %v4044 = vadd.f32 %v4043, %v3780
  %v4045 = vadd.f32 %v4044, %v3783
  %v4046 = vadd.f32 %v4045, %v3785
  %v4047 = vadd.f32 %v4046, %v3788
  %v4048 = vadd.f32 %v4047, %v3790
  %v4049 = vadd.f32 %v4048, %v3793
  %v4050 = vadd.f32 %v4049, %v3795
  %v4051 = vadd.f32 %v4050, %v3798
  %v4052 = vadd.f32 %v4051, %v3800
  %v4053 = vadd.f32 %v4052, %v3803
  %v4054 = vadd.f32 %v4053, %v3805
  %v4055 = vadd.f32 %v4054, %v3808
  %v4056 = vadd.f32 %v4055, %v3810
  %v4057 = vadd.f32 %v4056, %v3813
  %v4058 = vadd.f32 %v4057, %v3815
  %v4059 = vadd.f32 %v4058, %v3818
  %v4060 = vadd.f32 %v4059, %v3820
  %v4061 = vadd.f32 %v4060, %v3823
  %v4062 = vadd.f32 %v4061, %v3825
  %v4063 = vadd.f32 %v4062, %v3828
  %v4064 = vadd.f32 %v4063, %v3830
  %v4065 = vadd.f32 %v4064, %v3833
  %v4066 = vadd.f32 %v4065, %v3835
  %v4067 = vadd.f32 %v4066, %v3838
  %v4068 = vadd.f32 %v4067, %v3840
  %v4069 = vadd.f32 %v4068, %v3843
  %v4070 = vadd.f32 %v4069, %v3845
  %v4071 = vadd.f32 %v4070, %v3848
  %v4072 = vadd.f32 %v4071, %v3850
  %v4073 = vadd.f32 %v4072, %v3853
  %v4074 = vadd.f32 %v4073, %v3855
  %v4075 = vadd.f32 %v4074, %v3858
  %v4076 = vadd.f32 %v4075, %v3860
  %v4077 = vadd.f32 %v4076, %v3863
  %v4078 = vadd.f32 %v4077, %v3865
  %v4079 = vadd.f32 %v4078, %v3868
  %v4080 = vadd.f32 %v4079, %v3870
  %v4081 = vadd.f32 %v4080, %v3873
  %v4082 = vadd.f32 %v4081, %v3875
  %v4083 = vadd.f32 %v4082, %v3878
  %v4084 = vadd.f32 %v4083, %v3880
  %v4085 = vadd.f32 %v4084, %v3883
  %v4086 = vadd.f32 %v4085, %v3885
  %v4087 = vadd.f32 %v4086, %v3888
  %v4088 = vadd.f32 %v4087, %v3890
  %v4089 = vadd.f32 %v4088, %v3893
  %v4090 = vadd.f32 %v4089, %v3895
  %v4091 = vadd.f32 %v4090, %v3898
  %v4092 = vadd.f32 %v4091, %v3900
  %v4093 = vrot.slane %v4092, 4
  %v4094 = vadd.f32 %v4092, %v4093
  %v4095 = vrot.slane %v4094, 2
  %v4096 = vadd.f32 %v4094, %v4095
  %v4097 = vrot.slane %v4096, 1
  %v4098 = vadd.f32 %v4096, %v4097
  %v4099 = vmul.f32 %v3743, %v3743
  %v4100 = vmul.f32 %v3745, %v3745
  %v4101 = vmul.f32 %v3748, %v3748
  %v4102 = vmul.f32 %v3750, %v3750
  %v4103 = vmul.f32 %v3753, %v3753
  %v4104 = vmul.f32 %v3755, %v3755
  %v4105 = vmul.f32 %v3758, %v3758
  %v4106 = vmul.f32 %v3760, %v3760
  %v4107 = vmul.f32 %v3763, %v3763
  %v4108 = vmul.f32 %v3765, %v3765
  %v4109 = vmul.f32 %v3768, %v3768
  %v4110 = vmul.f32 %v3770, %v3770
  %v4111 = vmul.f32 %v3773, %v3773
  %v4112 = vmul.f32 %v3775, %v3775
  %v4113 = vmul.f32 %v3778, %v3778
  %v4114 = vmul.f32 %v3780, %v3780
  %v4115 = vmul.f32 %v3783, %v3783
  %v4116 = vmul.f32 %v3785, %v3785
  %v4117 = vmul.f32 %v3788, %v3788
  %v4118 = vmul.f32 %v3790, %v3790
  %v4119 = vmul.f32 %v3793, %v3793
  %v4120 = vmul.f32 %v3795, %v3795
  %v4121 = vmul.f32 %v3798, %v3798
  %v4122 = vmul.f32 %v3800, %v3800
  %v4123 = vmul.f32 %v3803, %v3803
  %v4124 = vmul.f32 %v3805, %v3805
  %v4125 = vmul.f32 %v3808, %v3808
  %v4126 = vmul.f32 %v3810, %v3810
  %v4127 = vmul.f32 %v3813, %v3813
  %v4128 = vmul.f32 %v3815, %v3815
  %v4129 = vmul.f32 %v3818, %v3818
  %v4130 = vmul.f32 %v3820, %v3820
  %v4131 = vmul.f32 %v3823, %v3823
  %v4132 = vmul.f32 %v3825, %v3825
  %v4133 = vmul.f32 %v3828, %v3828
  %v4134 = vmul.f32 %v3830, %v3830
  %v4135 = vmul.f32 %v3833, %v3833
  %v4136 = vmul.f32 %v3835, %v3835
  %v4137 = vmul.f32 %v3838, %v3838
  %v4138 = vmul.f32 %v3840, %v3840
  %v4139 = vmul.f32 %v3843, %v3843
  %v4140 = vmul.f32 %v3845, %v3845
  %v4141 = vmul.f32 %v3848, %v3848
  %v4142 = vmul.f32 %v3850, %v3850
  %v4143 = vmul.f32 %v3853, %v3853
  %v4144 = vmul.f32 %v3855, %v3855
  %v4145 = vmul.f32 %v3858, %v3858
  %v4146 = vmul.f32 %v3860, %v3860
  %v4147 = vmul.f32 %v3863, %v3863
  %v4148 = vmul.f32 %v3865, %v3865
  %v4149 = vmul.f32 %v3868, %v3868
  %v4150 = vmul.f32 %v3870, %v3870
  %v4151 = vmul.f32 %v3873, %v3873
  %v4152 = vmul.f32 %v3875, %v3875
  %v4153 = vmul.f32 %v3878, %v3878
  %v4154 = vmul.f32 %v3880, %v3880
  %v4155 = vmul.f32 %v3883, %v3883
  %v4156 = vmul.f32 %v3885, %v3885
  %v4157 = vmul.f32 %v3888, %v3888
  %v4158 = vmul.f32 %v3890, %v3890
  %v4159 = vmul.f32 %v3893, %v3893
  %v4160 = vmul.f32 %v3895, %v3895
  %v4161 = vmul.f32 %v3898, %v3898
  %v4162 = vmul.f32 %v3900, %v3900
  %v4163 = vadd.f32 %v4099, %v4100
  %v4164 = vadd.f32 %v4163, %v4101
  %v4165 = vadd.f32 %v4164, %v4102
  %v4166 = vadd.f32 %v4165, %v4103
  %v4167 = vadd.f32 %v4166, %v4104
  %v4168 = vadd.f32 %v4167, %v4105
  %v4169 = vadd.f32 %v4168, %v4106
  %v4170 = vadd.f32 %v4169, %v4107
  %v4171 = vadd.f32 %v4170, %v4108
  %v4172 = vadd.f32 %v4171, %v4109
  %v4173 = vadd.f32 %v4172, %v4110
  %v4174 = vadd.f32 %v4173, %v4111
  %v4175 = vadd.f32 %v4174, %v4112
  %v4176 = vadd.f32 %v4175, %v4113
  %v4177 = vadd.f32 %v4176, %v4114
  %v4178 = vadd.f32 %v4177, %v4115
  %v4179 = vadd.f32 %v4178, %v4116
  %v4180 = vadd.f32 %v4179, %v4117
  %v4181 = vadd.f32 %v4180, %v4118
  %v4182 = vadd.f32 %v4181, %v4119
  %v4183 = vadd.f32 %v4182, %v4120
  %v4184 = vadd.f32 %v4183, %v4121
  %v4185 = vadd.f32 %v4184, %v4122
  %v4186 = vadd.f32 %v4185, %v4123
  %v4187 = vadd.f32 %v4186, %v4124
  %v4188 = vadd.f32 %v4187, %v4125
  %v4189 = vadd.f32 %v4188, %v4126
  %v4190 = vadd.f32 %v4189, %v4127
  %v4191 = vadd.f32 %v4190, %v4128
  %v4192 = vadd.f32 %v4191, %v4129
  %v4193 = vadd.f32 %v4192, %v4130
  %v4194 = vadd.f32 %v4193, %v4131
  %v4195 = vadd.f32 %v4194, %v4132
  %v4196 = vadd.f32 %v4195, %v4133
  %v4197 = vadd.f32 %v4196, %v4134
  %v4198 = vadd.f32 %v4197, %v4135
  %v4199 = vadd.f32 %v4198, %v4136
  %v4200 = vadd.f32 %v4199, %v4137
  %v4201 = vadd.f32 %v4200, %v4138
  %v4202 = vadd.f32 %v4201, %v4139
  %v4203 = vadd.f32 %v4202, %v4140
  %v4204 = vadd.f32 %v4203, %v4141
  %v4205 = vadd.f32 %v4204, %v4142
  %v4206 = vadd.f32 %v4205, %v4143
  %v4207 = vadd.f32 %v4206, %v4144
  %v4208 = vadd.f32 %v4207, %v4145
  %v4209 = vadd.f32 %v4208, %v4146
  %v4210 = vadd.f32 %v4209, %v4147
  %v4211 = vadd.f32 %v4210, %v4148
  %v4212 = vadd.f32 %v4211, %v4149
  %v4213 = vadd.f32 %v4212, %v4150
  %v4214 = vadd.f32 %v4213, %v4151
  %v4215 = vadd.f32 %v4214, %v4152
  %v4216 = vadd.f32 %v4215, %v4153
  %v4217 = vadd.f32 %v4216, %v4154
  %v4218 = vadd.f32 %v4217, %v4155
  %v4219 = vadd.f32 %v4218, %v4156
  %v4220 = vadd.f32 %v4219, %v4157
  %v4221 = vadd.f32 %v4220, %v4158
  %v4222 = vadd.f32 %v4221, %v4159
  %v4223 = vadd.f32 %v4222, %v4160
  %v4224 = vadd.f32 %v4223, %v4161
  %v4225 = vadd.f32 %v4224, %v4162
  %v4226 = vrot.slane %v4225, 4
  %v4227 = vadd.f32 %v4225, %v4226
  %v4228 = vrot.slane %v4227, 2
  %v4229 = vadd.f32 %v4227, %v4228
  %v4230 = vrot.slane %v4229, 1
  %v4231 = vadd.f32 %v4229, %v4230
  %vm4232 = vcmask 1040384
  %v4233 = vsel %vm4232, %v4098, %v4231
  %4234 = vst [vmem:[%s3] sm:$0x3] %v4233
  // Predicated region
  $region10: #{bottleneck_forward.7} parent=0 // pred_check
    _
  $region11: #{bottleneck_forward.7} parent=0 // pred_check_branch
    %4236 = sbr.rel (0) target = $region13
  $region12: #{bottleneck_forward.7} parent=0 // pred_region
    _
  $region13: #{bottleneck_forward.7} parent=0 // pred_fallthru
    _
  // Predicated region
  $region14: #{bottleneck_forward.7} parent=0 // pred_check
    _
  $region15: #{bottleneck_forward.7} parent=0 // pred_check_branch
    %4238 = sbr.rel (0) target = $region17
  $region16: #{bottleneck_forward.7} parent=0 // pred_region
    _
  $region17: #{bottleneck_forward.7} parent=0 // pred_fallthru
    _
  // Predicated region
  $region18: #{bottleneck_forward.7} parent=0 // pred_check
    _
  $region19: #{bottleneck_forward.7} parent=0 // pred_check_branch
    %4240 = sbr.rel (0) target = $region21
  $region20: #{bottleneck_forward.7} parent=0 // pred_region
    _
  $region21: #{bottleneck_forward.7} parent=0 // pred_fallthru
    _
  // Predicated region
  $region22: #{bottleneck_forward.7} parent=0 // pred_check
    _
  $region23: #{bottleneck_forward.7} parent=0 // pred_check_branch
    %4242 = sbr.rel (0) target = $region25
  $region24: #{bottleneck_forward.7} parent=0 // pred_region
    _
  $region25: #{bottleneck_forward.7} parent=0 // pred_fallthru
    _

// kernel: bottleneck_forward.9
$region0: #{bottleneck_forward.9}
  #allocation0 [shape = 'u32[]', space=smem, size = 0x4, offset = 0x4, fixed_abs, tag = 'smem constant byte address 0x4 - core index']
  #allocation1 [shape = 'u32[72,128]{1,0:T(1,128)}', space=vmem, size = 0x9000, scoped, tag = 'internal scratch']
  %s0 = inlined_call_operand.vmem [shape: bf16[512,128], index: 0, kind: input, shape index: {}]
  %s1 = inlined_call_operand.vmem [shape: bf16[512,128], index: 1, kind: input, shape index: {}]
  %s2 = inlined_call_operand.vmem [shape: f32[1,128], index: 2, kind: input, shape index: {}]
  %s3 = inlined_call_operand.vmem [shape: f32[1,128], index: 3, kind: input, shape index: {}]
  %s4 = inlined_call_operand.vmem [shape: f32[1,128], index: 4, kind: input, shape index: {}]
  %s5 = inlined_call_operand.vmem [shape: f32[1,128], index: 5, kind: input, shape index: {}]
  %s6 = inlined_call_operand.vmem [shape: f32[512,128], index: 6, kind: output, shape index: {}]
  %s7 = sld [smem:[#allocation0]]
  $region34: #{bottleneck_forward.9} parent=0
    _
  %s9 = ssub.s32 1, %s7
  %s10 = scalar_select 0, %s9, %s7
  // Predicated region
  $region2: #{bottleneck_forward.9} parent=0 // pred_check
    _
  $region3: #{bottleneck_forward.9} parent=0 // pred_check_branch
    %12 = sbr.rel (0) target = $region5
  $region4: #{bottleneck_forward.9} parent=0 // pred_region
    _
  $region5: #{bottleneck_forward.9} parent=0 // pred_fallthru
    _
  // Predicated region
  $region6: #{bottleneck_forward.9} parent=0 // pred_check
    _
  $region7: #{bottleneck_forward.9} parent=0 // pred_check_branch
    %14 = sbr.rel (0) target = $region9
  $region8: #{bottleneck_forward.9} parent=0 // pred_region
    _
  $region9: #{bottleneck_forward.9} parent=0 // pred_fallthru
    _
  // Predicated region
  $region10: #{bottleneck_forward.9} parent=0 // pred_check
    _
  $region11: #{bottleneck_forward.9} parent=0 // pred_check_branch
    %16 = sbr.rel (0) target = $region13
  $region12: #{bottleneck_forward.9} parent=0 // pred_region
    _
  $region13: #{bottleneck_forward.9} parent=0 // pred_fallthru
    _
  // Predicated region
  $region14: #{bottleneck_forward.9} parent=0 // pred_check
    _
  $region15: #{bottleneck_forward.9} parent=0 // pred_check_branch
    %18 = sbr.rel (0) target = $region17
  $region16: #{bottleneck_forward.9} parent=0 // pred_region
    _
  $region17: #{bottleneck_forward.9} parent=0 // pred_fallthru
    _
  // Predicated region
  $region18: #{bottleneck_forward.9} parent=0 // pred_check
    _
  $region19: #{bottleneck_forward.9} parent=0 // pred_check_branch
    %20 = sbr.rel (0) target = $region21
  $region20: #{bottleneck_forward.9} parent=0 // pred_region
    _
  $region21: #{bottleneck_forward.9} parent=0 // pred_fallthru
    _
  // Predicated region
  $region22: #{bottleneck_forward.9} parent=0 // pred_check
    _
  $region23: #{bottleneck_forward.9} parent=0 // pred_check_branch
    %22 = sbr.rel (0) target = $region25
  $region24: #{bottleneck_forward.9} parent=0 // pred_region
    _
  $region25: #{bottleneck_forward.9} parent=0 // pred_fallthru
    _
  %v23 = vld [vmem:[%s0] sm:$0xf]
  %v24 = vld [vmem:[%s0 + $0x4] sm:$0xf]
  %v25 = vld [vmem:[%s0 + $0x8] sm:$0xf]
  %v26 = vld [vmem:[%s0 + $0xc] sm:$0xf]
  %v27 = vld [vmem:[%s0 + $0x10] sm:$0xf]
  %v28 = vld [vmem:[%s0 + $0x14] sm:$0xf]
  %v29 = vld [vmem:[%s0 + $0x18] sm:$0xf]
  %v30 = vld [vmem:[%s0 + $0x1c] sm:$0xf]
  %v31 = vld [vmem:[%s0 + $0x20] sm:$0xf]
  %v32 = vld [vmem:[%s0 + $0x24] sm:$0xf]
  %v33 = vld [vmem:[%s0 + $0x28] sm:$0xf]
  %v34 = vld [vmem:[%s0 + $0x2c] sm:$0xf]
  %v35 = vld [vmem:[%s0 + $0x30] sm:$0xf]
  %v36 = vld [vmem:[%s0 + $0x34] sm:$0xf]
  %v37 = vld [vmem:[%s0 + $0x38] sm:$0xf]
  %v38 = vld [vmem:[%s0 + $0x3c] sm:$0xf]
  %v39 = vld [vmem:[%s0 + $0x40] sm:$0xf]
  %v40 = vld [vmem:[%s0 + $0x44] sm:$0xf]
  %v41 = vld [vmem:[%s0 + $0x48] sm:$0xf]
  %v42 = vld [vmem:[%s0 + $0x4c] sm:$0xf]
  %v43 = vld [vmem:[%s0 + $0x50] sm:$0xf]
  %v44 = vld [vmem:[%s0 + $0x54] sm:$0xf]
  %v45 = vld [vmem:[%s0 + $0x58] sm:$0xf]
  %v46 = vld [vmem:[%s0 + $0x5c] sm:$0xf]
  %v47 = vld [vmem:[%s0 + $0x60] sm:$0xf]
  %v48 = vld [vmem:[%s0 + $0x64] sm:$0xf]
  %v49 = vld [vmem:[%s0 + $0x68] sm:$0xf]
  %v50 = vld [vmem:[%s0 + $0x6c] sm:$0xf]
  %v51 = vld [vmem:[%s0 + $0x70] sm:$0xf]
  %v52 = vld [vmem:[%s0 + $0x74] sm:$0xf]
  %v53 = vld [vmem:[%s0 + $0x78] sm:$0xf]
  %v54 = vld [vmem:[%s0 + $0x7c] sm:$0xf]
  %v55 = vld [vmem:[%s0 + $0x80] sm:$0xf]
  %v56 = vld [vmem:[%s0 + $0x84] sm:$0xf]
  %v57 = vld [vmem:[%s0 + $0x88] sm:$0xf]
  %v58 = vld [vmem:[%s0 + $0x8c] sm:$0xf]
  %v59 = vld [vmem:[%s0 + $0x90] sm:$0xf]
  %v60 = vld [vmem:[%s0 + $0x94] sm:$0xf]
  %v61 = vld [vmem:[%s0 + $0x98] sm:$0xf]
  %v62 = vld [vmem:[%s0 + $0x9c] sm:$0xf]
  %v63 = vld [vmem:[%s0 + $0xa0] sm:$0xf]
  %v64 = vld [vmem:[%s0 + $0xa4] sm:$0xf]
  %v65 = vld [vmem:[%s0 + $0xa8] sm:$0xf]
  %v66 = vld [vmem:[%s0 + $0xac] sm:$0xf]
  %v67 = vld [vmem:[%s0 + $0xb0] sm:$0xf]
  %v68 = vld [vmem:[%s0 + $0xb4] sm:$0xf]
  %v69 = vld [vmem:[%s0 + $0xb8] sm:$0xf]
  %v70 = vld [vmem:[%s0 + $0xbc] sm:$0xf]
  %v71 = vld [vmem:[%s0 + $0xc0] sm:$0xf]
  %v72 = vld [vmem:[%s0 + $0xc4] sm:$0xf]
  %v73 = vld [vmem:[%s0 + $0xc8] sm:$0xf]
  %v74 = vld [vmem:[%s0 + $0xcc] sm:$0xf]
  %v75 = vld [vmem:[%s0 + $0xd0] sm:$0xf]
  %v76 = vld [vmem:[%s0 + $0xd4] sm:$0xf]
  %v77 = vld [vmem:[%s0 + $0xd8] sm:$0xf]
  %v78 = vld [vmem:[%s0 + $0xdc] sm:$0xf]
  %v79 = vld [vmem:[%s0 + $0xe0] sm:$0xf]
  %v80 = vld [vmem:[%s0 + $0xe4] sm:$0xf]
  %v81 = vld [vmem:[%s0 + $0xe8] sm:$0xf]
  %v82 = vld [vmem:[%s0 + $0xec] sm:$0xf]
  %v83 = vld [vmem:[%s0 + $0xf0] sm:$0xf]
  %v84 = vld [vmem:[%s0 + $0xf4] sm:$0xf]
  %v85 = vld [vmem:[%s0 + $0xf8] sm:$0xf]
  %v86 = vld [vmem:[%s0 + $0xfc] sm:$0xf]
  %v87 = vunpack.c.l.bf16 %v23
  %v88 = vunpack.c.l.bf16 %v24
  %v89 = vunpack.c.l.bf16 %v25
  %v90 = vunpack.c.l.bf16 %v26
  %v91 = vunpack.c.l.bf16 %v27
  %v92 = vunpack.c.l.bf16 %v28
  %v93 = vunpack.c.l.bf16 %v29
  %v94 = vunpack.c.l.bf16 %v30
  %v95 = vunpack.c.l.bf16 %v31
  %v96 = vunpack.c.l.bf16 %v32
  %v97 = vunpack.c.l.bf16 %v33
  %v98 = vunpack.c.l.bf16 %v34
  %v99 = vunpack.c.l.bf16 %v35
  %v100 = vunpack.c.l.bf16 %v36
  %v101 = vunpack.c.l.bf16 %v37
  %v102 = vunpack.c.l.bf16 %v38
  %v103 = vunpack.c.l.bf16 %v39
  %v104 = vunpack.c.l.bf16 %v40
  %v105 = vunpack.c.l.bf16 %v41
  %v106 = vunpack.c.l.bf16 %v42
  %v107 = vunpack.c.l.bf16 %v43
  %v108 = vunpack.c.l.bf16 %v44
  %v109 = vunpack.c.l.bf16 %v45
  %v110 = vunpack.c.l.bf16 %v46
  %v111 = vunpack.c.l.bf16 %v47
  %v112 = vunpack.c.l.bf16 %v48
  %v113 = vunpack.c.l.bf16 %v49
  %v114 = vunpack.c.l.bf16 %v50
  %v115 = vunpack.c.l.bf16 %v51
  %v116 = vunpack.c.l.bf16 %v52
  %v117 = vunpack.c.l.bf16 %v53
  %v118 = vunpack.c.l.bf16 %v54
  %v119 = vunpack.c.l.bf16 %v55
  %v120 = vunpack.c.l.bf16 %v56
  %v121 = vunpack.c.l.bf16 %v57
  %v122 = vunpack.c.l.bf16 %v58
  %v123 = vunpack.c.l.bf16 %v59
  %v124 = vunpack.c.l.bf16 %v60
  %v125 = vunpack.c.l.bf16 %v61
  %v126 = vunpack.c.l.bf16 %v62
  %v127 = vunpack.c.l.bf16 %v63
  %v128 = vunpack.c.l.bf16 %v64
  %v129 = vunpack.c.l.bf16 %v65
  %v130 = vunpack.c.l.bf16 %v66
  %v131 = vunpack.c.l.bf16 %v67
  %v132 = vunpack.c.l.bf16 %v68
  %v133 = vunpack.c.l.bf16 %v69
  %v134 = vunpack.c.l.bf16 %v70
  %v135 = vunpack.c.l.bf16 %v71
  %v136 = vunpack.c.l.bf16 %v72
  %v137 = vunpack.c.l.bf16 %v73
  %v138 = vunpack.c.l.bf16 %v74
  %v139 = vunpack.c.l.bf16 %v75
  %v140 = vunpack.c.l.bf16 %v76
  %v141 = vunpack.c.l.bf16 %v77
  %v142 = vunpack.c.l.bf16 %v78
  %v143 = vunpack.c.l.bf16 %v79
  %v144 = vunpack.c.l.bf16 %v80
  %v145 = vunpack.c.l.bf16 %v81
  %v146 = vunpack.c.l.bf16 %v82
  %v147 = vunpack.c.l.bf16 %v83
  %v148 = vunpack.c.l.bf16 %v84
  %v149 = vunpack.c.l.bf16 %v85
  %v150 = vunpack.c.l.bf16 %v86
  %v151 = vld [vmem:[%s2] sm:$0x1]
  %v153 = vperm.slane %v151, 0
  %v155 = vmul.f32 %v87, %v153
  %v156 = vmul.f32 %v88, %v153
  %v157 = vmul.f32 %v89, %v153
  %v158 = vmul.f32 %v90, %v153
  %v159 = vmul.f32 %v91, %v153
  %v160 = vmul.f32 %v92, %v153
  %v161 = vmul.f32 %v93, %v153
  %v162 = vmul.f32 %v94, %v153
  %v163 = vmul.f32 %v95, %v153
  %v164 = vmul.f32 %v96, %v153
  %v165 = vmul.f32 %v97, %v153
  %v166 = vmul.f32 %v98, %v153
  %v167 = vmul.f32 %v99, %v153
  %v168 = vmul.f32 %v100, %v153
  %v169 = vmul.f32 %v101, %v153
  %v170 = vmul.f32 %v102, %v153
  %v171 = vmul.f32 %v103, %v153
  %v172 = vmul.f32 %v104, %v153
  %v173 = vmul.f32 %v105, %v153
  %v174 = vmul.f32 %v106, %v153
  %v175 = vmul.f32 %v107, %v153
  %v176 = vmul.f32 %v108, %v153
  %v177 = vmul.f32 %v109, %v153
  %v178 = vmul.f32 %v110, %v153
  %v179 = vmul.f32 %v111, %v153
  %v180 = vmul.f32 %v112, %v153
  %v181 = vmul.f32 %v113, %v153
  %v182 = vmul.f32 %v114, %v153
  %v183 = vmul.f32 %v115, %v153
  %v184 = vmul.f32 %v116, %v153
  %v185 = vmul.f32 %v117, %v153
  %v186 = vmul.f32 %v118, %v153
  %v187 = vmul.f32 %v119, %v153
  %v188 = vmul.f32 %v120, %v153
  %v189 = vmul.f32 %v121, %v153
  %v190 = vmul.f32 %v122, %v153
  %v191 = vmul.f32 %v123, %v153
  %v192 = vmul.f32 %v124, %v153
  %v193 = vmul.f32 %v125, %v153
  %v194 = vmul.f32 %v126, %v153
  %v195 = vmul.f32 %v127, %v153
  %v196 = vmul.f32 %v128, %v153
  %v197 = vmul.f32 %v129, %v153
  %v198 = vmul.f32 %v130, %v153
  %v199 = vmul.f32 %v131, %v153
  %v200 = vmul.f32 %v132, %v153
  %v201 = vmul.f32 %v133, %v153
  %v202 = vmul.f32 %v134, %v153
  %v203 = vmul.f32 %v135, %v153
  %v204 = vmul.f32 %v136, %v153
  %v205 = vmul.f32 %v137, %v153
  %v206 = vmul.f32 %v138, %v153
  %v207 = vmul.f32 %v139, %v153
  %v208 = vmul.f32 %v140, %v153
  %v209 = vmul.f32 %v141, %v153
  %v210 = vmul.f32 %v142, %v153
  %v211 = vmul.f32 %v143, %v153
  %v212 = vmul.f32 %v144, %v153
  %v213 = vmul.f32 %v145, %v153
  %v214 = vmul.f32 %v146, %v153
  %v215 = vmul.f32 %v147, %v153
  %v216 = vmul.f32 %v148, %v153
  %v217 = vmul.f32 %v149, %v153
  %v218 = vmul.f32 %v150, %v153
  %v219 = vld [vmem:[%s3] sm:$0x1]
  %v221 = vperm.slane %v219, 0
  %v223 = vadd.f32 %v155, %v221
  %v224 = vadd.f32 %v156, %v221
  %v225 = vadd.f32 %v157, %v221
  %v226 = vadd.f32 %v158, %v221
  %v227 = vadd.f32 %v159, %v221
  %v228 = vadd.f32 %v160, %v221
  %v229 = vadd.f32 %v161, %v221
  %v230 = vadd.f32 %v162, %v221
  %v231 = vadd.f32 %v163, %v221
  %v232 = vadd.f32 %v164, %v221
  %v233 = vadd.f32 %v165, %v221
  %v234 = vadd.f32 %v166, %v221
  %v235 = vadd.f32 %v167, %v221
  %v236 = vadd.f32 %v168, %v221
  %v237 = vadd.f32 %v169, %v221
  %v238 = vadd.f32 %v170, %v221
  %v239 = vadd.f32 %v171, %v221
  %v240 = vadd.f32 %v172, %v221
  %v241 = vadd.f32 %v173, %v221
  %v242 = vadd.f32 %v174, %v221
  %v243 = vadd.f32 %v175, %v221
  %v244 = vadd.f32 %v176, %v221
  %v245 = vadd.f32 %v177, %v221
  %v246 = vadd.f32 %v178, %v221
  %v247 = vadd.f32 %v179, %v221
  %v248 = vadd.f32 %v180, %v221
  %v249 = vadd.f32 %v181, %v221
  %v250 = vadd.f32 %v182, %v221
  %v251 = vadd.f32 %v183, %v221
  %v252 = vadd.f32 %v184, %v221
  %v253 = vadd.f32 %v185, %v221
  %v254 = vadd.f32 %v186, %v221
  %v255 = vadd.f32 %v187, %v221
  %v256 = vadd.f32 %v188, %v221
  %v257 = vadd.f32 %v189, %v221
  %v258 = vadd.f32 %v190, %v221
  %v259 = vadd.f32 %v191, %v221
  %v260 = vadd.f32 %v192, %v221
  %v261 = vadd.f32 %v193, %v221
  %v262 = vadd.f32 %v194, %v221
  %v263 = vadd.f32 %v195, %v221
  %v264 = vadd.f32 %v196, %v221
  %v265 = vadd.f32 %v197, %v221
  %v266 = vadd.f32 %v198, %v221
  %v267 = vadd.f32 %v199, %v221
  %v268 = vadd.f32 %v200, %v221
  %v269 = vadd.f32 %v201, %v221
  %v270 = vadd.f32 %v202, %v221
  %v271 = vadd.f32 %v203, %v221
  %v272 = vadd.f32 %v204, %v221
  %v273 = vadd.f32 %v205, %v221
  %v274 = vadd.f32 %v206, %v221
  %v275 = vadd.f32 %v207, %v221
  %v276 = vadd.f32 %v208, %v221
  %v277 = vadd.f32 %v209, %v221
  %v278 = vadd.f32 %v210, %v221
  %v279 = vadd.f32 %v211, %v221
  %v280 = vadd.f32 %v212, %v221
  %v281 = vadd.f32 %v213, %v221
  %v282 = vadd.f32 %v214, %v221
  %v283 = vadd.f32 %v215, %v221
  %v284 = vadd.f32 %v216, %v221
  %v285 = vadd.f32 %v217, %v221
  %v286 = vadd.f32 %v218, %v221
  %v287 = vld [vmem:[%s1] sm:$0xf]
  %v288 = vld [vmem:[%s1 + $0x4] sm:$0xf]
  %v289 = vld [vmem:[%s1 + $0x8] sm:$0xf]
  %v290 = vld [vmem:[%s1 + $0xc] sm:$0xf]
  %v291 = vld [vmem:[%s1 + $0x10] sm:$0xf]
  %v292 = vld [vmem:[%s1 + $0x14] sm:$0xf]
  %v293 = vld [vmem:[%s1 + $0x18] sm:$0xf]
  %v294 = vld [vmem:[%s1 + $0x1c] sm:$0xf]
  %v295 = vld [vmem:[%s1 + $0x20] sm:$0xf]
  %v296 = vld [vmem:[%s1 + $0x24] sm:$0xf]
  %v297 = vld [vmem:[%s1 + $0x28] sm:$0xf]
  %v298 = vld [vmem:[%s1 + $0x2c] sm:$0xf]
  %v299 = vld [vmem:[%s1 + $0x30] sm:$0xf]
  %v300 = vld [vmem:[%s1 + $0x34] sm:$0xf]
  %v301 = vld [vmem:[%s1 + $0x38] sm:$0xf]
  %v302 = vld [vmem:[%s1 + $0x3c] sm:$0xf]
  %v303 = vld [vmem:[%s1 + $0x40] sm:$0xf]
  %v304 = vld [vmem:[%s1 + $0x44] sm:$0xf]
  %v305 = vld [vmem:[%s1 + $0x48] sm:$0xf]
  %v306 = vld [vmem:[%s1 + $0x4c] sm:$0xf]
  %v307 = vld [vmem:[%s1 + $0x50] sm:$0xf]
  %v308 = vld [vmem:[%s1 + $0x54] sm:$0xf]
  %v309 = vld [vmem:[%s1 + $0x58] sm:$0xf]
  %v310 = vld [vmem:[%s1 + $0x5c] sm:$0xf]
  %v311 = vld [vmem:[%s1 + $0x60] sm:$0xf]
  %v312 = vld [vmem:[%s1 + $0x64] sm:$0xf]
  %v313 = vld [vmem:[%s1 + $0x68] sm:$0xf]
  %v314 = vld [vmem:[%s1 + $0x6c] sm:$0xf]
  %v315 = vld [vmem:[%s1 + $0x70] sm:$0xf]
  %v316 = vld [vmem:[%s1 + $0x74] sm:$0xf]
  %v317 = vld [vmem:[%s1 + $0x78] sm:$0xf]
  %v318 = vld [vmem:[%s1 + $0x7c] sm:$0xf]
  %v319 = vld [vmem:[%s1 + $0x80] sm:$0xf]
  %v320 = vld [vmem:[%s1 + $0x84] sm:$0xf]
  %v321 = vld [vmem:[%s1 + $0x88] sm:$0xf]
  %v322 = vld [vmem:[%s1 + $0x8c] sm:$0xf]
  %v323 = vld [vmem:[%s1 + $0x90] sm:$0xf]
  %v324 = vld [vmem:[%s1 + $0x94] sm:$0xf]
  %v325 = vld [vmem:[%s1 + $0x98] sm:$0xf]
  %v326 = vld [vmem:[%s1 + $0x9c] sm:$0xf]
  %v327 = vld [vmem:[%s1 + $0xa0] sm:$0xf]
  %v328 = vld [vmem:[%s1 + $0xa4] sm:$0xf]
  %v329 = vld [vmem:[%s1 + $0xa8] sm:$0xf]
  %v330 = vld [vmem:[%s1 + $0xac] sm:$0xf]
  %v331 = vld [vmem:[%s1 + $0xb0] sm:$0xf]
  %v332 = vld [vmem:[%s1 + $0xb4] sm:$0xf]
  %v333 = vld [vmem:[%s1 + $0xb8] sm:$0xf]
  %v334 = vld [vmem:[%s1 + $0xbc] sm:$0xf]
  %v335 = vld [vmem:[%s1 + $0xc0] sm:$0xf]
  %v336 = vld [vmem:[%s1 + $0xc4] sm:$0xf]
  %v337 = vld [vmem:[%s1 + $0xc8] sm:$0xf]
  %v338 = vld [vmem:[%s1 + $0xcc] sm:$0xf]
  %v339 = vld [vmem:[%s1 + $0xd0] sm:$0xf]
  %v340 = vld [vmem:[%s1 + $0xd4] sm:$0xf]
  %v341 = vld [vmem:[%s1 + $0xd8] sm:$0xf]
  %v342 = vld [vmem:[%s1 + $0xdc] sm:$0xf]
  %v343 = vld [vmem:[%s1 + $0xe0] sm:$0xf]
  %v344 = vld [vmem:[%s1 + $0xe4] sm:$0xf]
  %v345 = vld [vmem:[%s1 + $0xe8] sm:$0xf]
  %v346 = vld [vmem:[%s1 + $0xec] sm:$0xf]
  %v347 = vld [vmem:[%s1 + $0xf0] sm:$0xf]
  %v348 = vld [vmem:[%s1 + $0xf4] sm:$0xf]
  %v349 = vld [vmem:[%s1 + $0xf8] sm:$0xf]
  %v350 = vld [vmem:[%s1 + $0xfc] sm:$0xf]
  %v351 = vunpack.c.l.bf16 %v287
  %v352 = vunpack.c.l.bf16 %v288
  %v353 = vunpack.c.l.bf16 %v289
  %v354 = vunpack.c.l.bf16 %v290
  %v355 = vunpack.c.l.bf16 %v291
  %v356 = vunpack.c.l.bf16 %v292
  %v357 = vunpack.c.l.bf16 %v293
  %v358 = vunpack.c.l.bf16 %v294
  %v359 = vunpack.c.l.bf16 %v295
  %v360 = vunpack.c.l.bf16 %v296
  %v361 = vunpack.c.l.bf16 %v297
  %v362 = vunpack.c.l.bf16 %v298
  %v363 = vunpack.c.l.bf16 %v299
  %v364 = vunpack.c.l.bf16 %v300
  %v365 = vunpack.c.l.bf16 %v301
  %v366 = vunpack.c.l.bf16 %v302
  %v367 = vunpack.c.l.bf16 %v303
  %v368 = vunpack.c.l.bf16 %v304
  %v369 = vunpack.c.l.bf16 %v305
  %v370 = vunpack.c.l.bf16 %v306
  %v371 = vunpack.c.l.bf16 %v307
  %v372 = vunpack.c.l.bf16 %v308
  %v373 = vunpack.c.l.bf16 %v309
  %v374 = vunpack.c.l.bf16 %v310
  %v375 = vunpack.c.l.bf16 %v311
  %v376 = vunpack.c.l.bf16 %v312
  %v377 = vunpack.c.l.bf16 %v313
  %v378 = vunpack.c.l.bf16 %v314
  %v379 = vunpack.c.l.bf16 %v315
  %v380 = vunpack.c.l.bf16 %v316
  %v381 = vunpack.c.l.bf16 %v317
  %v382 = vunpack.c.l.bf16 %v318
  %v383 = vunpack.c.l.bf16 %v319
  %v384 = vunpack.c.l.bf16 %v320
  %v385 = vunpack.c.l.bf16 %v321
  %v386 = vunpack.c.l.bf16 %v322
  %v387 = vunpack.c.l.bf16 %v323
  %v388 = vunpack.c.l.bf16 %v324
  %v389 = vunpack.c.l.bf16 %v325
  %v390 = vunpack.c.l.bf16 %v326
  %v391 = vunpack.c.l.bf16 %v327
  %v392 = vunpack.c.l.bf16 %v328
  %v393 = vunpack.c.l.bf16 %v329
  %v394 = vunpack.c.l.bf16 %v330
  %v395 = vunpack.c.l.bf16 %v331
  %v396 = vunpack.c.l.bf16 %v332
  %v397 = vunpack.c.l.bf16 %v333
  %v398 = vunpack.c.l.bf16 %v334
  %v399 = vunpack.c.l.bf16 %v335
  %v400 = vunpack.c.l.bf16 %v336
  %v401 = vunpack.c.l.bf16 %v337
  %v402 = vunpack.c.l.bf16 %v338
  %v403 = vunpack.c.l.bf16 %v339
  %v404 = vunpack.c.l.bf16 %v340
  %v405 = vunpack.c.l.bf16 %v341
  %v406 = vunpack.c.l.bf16 %v342
  %v407 = vunpack.c.l.bf16 %v343
  %v408 = vunpack.c.l.bf16 %v344
  %v409 = vunpack.c.l.bf16 %v345
  %v410 = vunpack.c.l.bf16 %v346
  %v411 = vunpack.c.l.bf16 %v347
  %v412 = vunpack.c.l.bf16 %v348
  %v413 = vunpack.c.l.bf16 %v349
  %v414 = vunpack.c.l.bf16 %v350
  %v415 = vld [vmem:[%s4] sm:$0x1]
  %v417 = vperm.slane %v415, 0
  %v419 = vmul.f32 %v351, %v417
  %v420 = vmul.f32 %v352, %v417
  %v421 = vmul.f32 %v353, %v417
  %v422 = vmul.f32 %v354, %v417
  %v423 = vmul.f32 %v355, %v417
  %v424 = vmul.f32 %v356, %v417
  %v425 = vmul.f32 %v357, %v417
  %v426 = vmul.f32 %v358, %v417
  %v427 = vmul.f32 %v359, %v417
  %v428 = vmul.f32 %v360, %v417
  %v429 = vmul.f32 %v361, %v417
  %v430 = vmul.f32 %v362, %v417
  %v431 = vmul.f32 %v363, %v417
  %v432 = vmul.f32 %v364, %v417
  %v433 = vmul.f32 %v365, %v417
  %v434 = vmul.f32 %v366, %v417
  %v435 = vmul.f32 %v367, %v417
  %v436 = vmul.f32 %v368, %v417
  %v437 = vmul.f32 %v369, %v417
  %v438 = vmul.f32 %v370, %v417
  %v439 = vmul.f32 %v371, %v417
  %v440 = vmul.f32 %v372, %v417
  %v441 = vmul.f32 %v373, %v417
  %v442 = vmul.f32 %v374, %v417
  %v443 = vmul.f32 %v375, %v417
  %v444 = vmul.f32 %v376, %v417
  %v445 = vmul.f32 %v377, %v417
  %v446 = vmul.f32 %v378, %v417
  %v447 = vmul.f32 %v379, %v417
  %v448 = vmul.f32 %v380, %v417
  %v449 = vmul.f32 %v381, %v417
  %v450 = vmul.f32 %v382, %v417
  %v451 = vmul.f32 %v383, %v417
  %v452 = vmul.f32 %v384, %v417
  %v453 = vmul.f32 %v385, %v417
  %v454 = vmul.f32 %v386, %v417
  %v455 = vmul.f32 %v387, %v417
  %v456 = vmul.f32 %v388, %v417
  %v457 = vmul.f32 %v389, %v417
  %v458 = vmul.f32 %v390, %v417
  %v459 = vmul.f32 %v391, %v417
  %v460 = vmul.f32 %v392, %v417
  %v461 = vmul.f32 %v393, %v417
  %v462 = vmul.f32 %v394, %v417
  %v463 = vmul.f32 %v395, %v417
  %v464 = vmul.f32 %v396, %v417
  %v465 = vmul.f32 %v397, %v417
  %v466 = vmul.f32 %v398, %v417
  %v467 = vmul.f32 %v399, %v417
  %v468 = vmul.f32 %v400, %v417
  %v469 = vmul.f32 %v401, %v417
  %v470 = vmul.f32 %v402, %v417
  %v471 = vmul.f32 %v403, %v417
  %v472 = vmul.f32 %v404, %v417
  %v473 = vmul.f32 %v405, %v417
  %v474 = vmul.f32 %v406, %v417
  %v475 = vmul.f32 %v407, %v417
  %v476 = vmul.f32 %v408, %v417
  %v477 = vmul.f32 %v409, %v417
  %v478 = vmul.f32 %v410, %v417
  %v479 = vmul.f32 %v411, %v417
  %v480 = vmul.f32 %v412, %v417
  %v481 = vmul.f32 %v413, %v417
  %v482 = vmul.f32 %v414, %v417
  %v483 = vld [vmem:[%s5] sm:$0x1]
  %v485 = vperm.slane %v483, 0
  %v487 = vadd.f32 %v419, %v485
  %v488 = vadd.f32 %v420, %v485
  %v489 = vadd.f32 %v421, %v485
  %v490 = vadd.f32 %v422, %v485
  %v491 = vadd.f32 %v423, %v485
  %v492 = vadd.f32 %v424, %v485
  %v493 = vadd.f32 %v425, %v485
  %v494 = vadd.f32 %v426, %v485
  %v495 = vadd.f32 %v427, %v485
  %v496 = vadd.f32 %v428, %v485
  %v497 = vadd.f32 %v429, %v485
  %v498 = vadd.f32 %v430, %v485
  %v499 = vadd.f32 %v431, %v485
  %v500 = vadd.f32 %v432, %v485
  %v501 = vadd.f32 %v433, %v485
  %v502 = vadd.f32 %v434, %v485
  %v503 = vadd.f32 %v435, %v485
  %v504 = vadd.f32 %v436, %v485
  %v505 = vadd.f32 %v437, %v485
  %v506 = vadd.f32 %v438, %v485
  %v507 = vadd.f32 %v439, %v485
  %v508 = vadd.f32 %v440, %v485
  %v509 = vadd.f32 %v441, %v485
  %v510 = vadd.f32 %v442, %v485
  %v511 = vadd.f32 %v443, %v485
  %v512 = vadd.f32 %v444, %v485
  %v513 = vadd.f32 %v445, %v485
  %v514 = vadd.f32 %v446, %v485
  %v515 = vadd.f32 %v447, %v485
  %v516 = vadd.f32 %v448, %v485
  %v517 = vadd.f32 %v449, %v485
  %v518 = vadd.f32 %v450, %v485
  %v519 = vadd.f32 %v451, %v485
  %v520 = vadd.f32 %v452, %v485
  %v521 = vadd.f32 %v453, %v485
  %v522 = vadd.f32 %v454, %v485
  %v523 = vadd.f32 %v455, %v485
  %v524 = vadd.f32 %v456, %v485
  %v525 = vadd.f32 %v457, %v485
  %v526 = vadd.f32 %v458, %v485
  %v527 = vadd.f32 %v459, %v485
  %v528 = vadd.f32 %v460, %v485
  %v529 = vadd.f32 %v461, %v485
  %v530 = vadd.f32 %v462, %v485
  %v531 = vadd.f32 %v463, %v485
  %v532 = vadd.f32 %v464, %v485
  %v533 = vadd.f32 %v465, %v485
  %v534 = vadd.f32 %v466, %v485
  %v535 = vadd.f32 %v467, %v485
  %v536 = vadd.f32 %v468, %v485
  %v537 = vadd.f32 %v469, %v485
  %v538 = vadd.f32 %v470, %v485
  %v539 = vadd.f32 %v471, %v485
  %v540 = vadd.f32 %v472, %v485
  %v541 = vadd.f32 %v473, %v485
  %v542 = vadd.f32 %v474, %v485
  %v543 = vadd.f32 %v475, %v485
  %v544 = vadd.f32 %v476, %v485
  %v545 = vadd.f32 %v477, %v485
  %v546 = vadd.f32 %v478, %v485
  %v547 = vadd.f32 %v479, %v485
  %v548 = vadd.f32 %v480, %v485
  %v549 = vadd.f32 %v481, %v485
  %v550 = vadd.f32 %v482, %v485
  %v551 = vmax.f32 %v487, 0.0
  %v552 = vmax.f32 %v488, 0.0
  %v553 = vmax.f32 %v489, 0.0
  %v554 = vmax.f32 %v490, 0.0
  %v555 = vmax.f32 %v491, 0.0
  %v556 = vmax.f32 %v492, 0.0
  %v557 = vmax.f32 %v493, 0.0
  %v558 = vmax.f32 %v494, 0.0
  %v559 = vmax.f32 %v495, 0.0
  %v560 = vmax.f32 %v496, 0.0
  %v561 = vmax.f32 %v497, 0.0
  %v562 = vmax.f32 %v498, 0.0
  %v563 = vmax.f32 %v499, 0.0
  %v564 = vmax.f32 %v500, 0.0
  %v565 = vmax.f32 %v501, 0.0
  %v566 = vmax.f32 %v502, 0.0
  %v567 = vmax.f32 %v503, 0.0
  %v568 = vmax.f32 %v504, 0.0
  %v569 = vmax.f32 %v505, 0.0
  %v570 = vmax.f32 %v506, 0.0
  %v571 = vmax.f32 %v507, 0.0
  %v572 = vmax.f32 %v508, 0.0
  %v573 = vmax.f32 %v509, 0.0
  %v574 = vmax.f32 %v510, 0.0
  %v575 = vmax.f32 %v511, 0.0
  %v576 = vmax.f32 %v512, 0.0
  %v577 = vmax.f32 %v513, 0.0
  %v578 = vmax.f32 %v514, 0.0
  %v579 = vmax.f32 %v515, 0.0
  %v580 = vmax.f32 %v516, 0.0
  %v581 = vmax.f32 %v517, 0.0
  %v582 = vmax.f32 %v518, 0.0
  %v583 = vmax.f32 %v519, 0.0
  %v584 = vmax.f32 %v520, 0.0
  %v585 = vmax.f32 %v521, 0.0
  %v586 = vmax.f32 %v522, 0.0
  %v587 = vmax.f32 %v523, 0.0
  %v588 = vmax.f32 %v524, 0.0
  %v589 = vmax.f32 %v525, 0.0
  %v590 = vmax.f32 %v526, 0.0
  %v591 = vmax.f32 %v527, 0.0
  %v592 = vmax.f32 %v528, 0.0
  %v593 = vmax.f32 %v529, 0.0
  %v594 = vmax.f32 %v530, 0.0
  %v595 = vmax.f32 %v531, 0.0
  %v596 = vmax.f32 %v532, 0.0
  %v597 = vmax.f32 %v533, 0.0
  %v598 = vmax.f32 %v534, 0.0
  %v599 = vmax.f32 %v535, 0.0
  %v600 = vmax.f32 %v536, 0.0
  %v601 = vmax.f32 %v537, 0.0
  %v602 = vmax.f32 %v538, 0.0
  %v603 = vmax.f32 %v539, 0.0
  %v604 = vmax.f32 %v540, 0.0
  %v605 = vmax.f32 %v541, 0.0
  %v606 = vmax.f32 %v542, 0.0
  %v607 = vmax.f32 %v543, 0.0
  %v608 = vmax.f32 %v544, 0.0
  %v609 = vmax.f32 %v545, 0.0
  %v610 = vmax.f32 %v546, 0.0
  %v611 = vmax.f32 %v547, 0.0
  %v612 = vmax.f32 %v548, 0.0
  %v613 = vmax.f32 %v549, 0.0
  %v614 = vmax.f32 %v550, 0.0
  %v615 = vadd.f32 %v223, %v551
  %v616 = vadd.f32 %v224, %v552
  %v617 = vadd.f32 %v225, %v553
  %v618 = vadd.f32 %v226, %v554
  %v619 = vadd.f32 %v227, %v555
  %v620 = vadd.f32 %v228, %v556
  %v621 = vadd.f32 %v229, %v557
  %v622 = vadd.f32 %v230, %v558
  %v623 = vadd.f32 %v231, %v559
  %v624 = vadd.f32 %v232, %v560
  %v625 = vadd.f32 %v233, %v561
  %v626 = vadd.f32 %v234, %v562
  %v627 = vadd.f32 %v235, %v563
  %v628 = vadd.f32 %v236, %v564
  %v629 = vadd.f32 %v237, %v565
  %v630 = vadd.f32 %v238, %v566
  %v631 = vadd.f32 %v239, %v567
  %v632 = vadd.f32 %v240, %v568
  %v633 = vadd.f32 %v241, %v569
  %v634 = vadd.f32 %v242, %v570
  %v635 = vadd.f32 %v243, %v571
  %v636 = vadd.f32 %v244, %v572
  %v637 = vadd.f32 %v245, %v573
  %v638 = vadd.f32 %v246, %v574
  %v639 = vadd.f32 %v247, %v575
  %v640 = vadd.f32 %v248, %v576
  %v641 = vadd.f32 %v249, %v577
  %v642 = vadd.f32 %v250, %v578
  %v643 = vadd.f32 %v251, %v579
  %v644 = vadd.f32 %v252, %v580
  %v645 = vadd.f32 %v253, %v581
  %v646 = vadd.f32 %v254, %v582
  %v647 = vadd.f32 %v255, %v583
  %v648 = vadd.f32 %v256, %v584
  %v649 = vadd.f32 %v257, %v585
  %v650 = vadd.f32 %v258, %v586
  %v651 = vadd.f32 %v259, %v587
  %v652 = vadd.f32 %v260, %v588
  %v653 = vadd.f32 %v261, %v589
  %v654 = vadd.f32 %v262, %v590
  %v655 = vadd.f32 %v263, %v591
  %v656 = vadd.f32 %v264, %v592
  %v657 = vadd.f32 %v265, %v593
  %v658 = vadd.f32 %v266, %v594
  %v659 = vadd.f32 %v267, %v595
  %v660 = vadd.f32 %v268, %v596
  %v661 = vadd.f32 %v269, %v597
  %v662 = vadd.f32 %v270, %v598
  %v663 = vadd.f32 %v271, %v599
  %v664 = vadd.f32 %v272, %v600
  %v665 = vadd.f32 %v273, %v601
  %v666 = vadd.f32 %v274, %v602
  %v667 = vadd.f32 %v275, %v603
  %v668 = vadd.f32 %v276, %v604
  %v669 = vadd.f32 %v277, %v605
  %v670 = vadd.f32 %v278, %v606
  %v671 = vadd.f32 %v279, %v607
  %v672 = vadd.f32 %v280, %v608
  %v673 = vadd.f32 %v281, %v609
  %v674 = vadd.f32 %v282, %v610
  %v675 = vadd.f32 %v283, %v611
  %v676 = vadd.f32 %v284, %v612
  %v677 = vadd.f32 %v285, %v613
  %v678 = vadd.f32 %v286, %v614
  %v679 = vmax.f32 %v615, 0.0
  %v680 = vmax.f32 %v616, 0.0
  %v681 = vmax.f32 %v617, 0.0
  %v682 = vmax.f32 %v618, 0.0
  %v683 = vmax.f32 %v619, 0.0
  %v684 = vmax.f32 %v620, 0.0
  %v685 = vmax.f32 %v621, 0.0
  %v686 = vmax.f32 %v622, 0.0
  %v687 = vmax.f32 %v623, 0.0
  %v688 = vmax.f32 %v624, 0.0
  %v689 = vmax.f32 %v625, 0.0
  %v690 = vmax.f32 %v626, 0.0
  %v691 = vmax.f32 %v627, 0.0
  %v692 = vmax.f32 %v628, 0.0
  %v693 = vmax.f32 %v629, 0.0
  %v694 = vmax.f32 %v630, 0.0
  %v695 = vmax.f32 %v631, 0.0
  %v696 = vmax.f32 %v632, 0.0
  %v697 = vmax.f32 %v633, 0.0
  %v698 = vmax.f32 %v634, 0.0
  %v699 = vmax.f32 %v635, 0.0
  %v700 = vmax.f32 %v636, 0.0
  %v701 = vmax.f32 %v637, 0.0
  %v702 = vmax.f32 %v638, 0.0
  %v703 = vmax.f32 %v639, 0.0
  %v704 = vmax.f32 %v640, 0.0
  %v705 = vmax.f32 %v641, 0.0
  %v706 = vmax.f32 %v642, 0.0
  %v707 = vmax.f32 %v643, 0.0
  %v708 = vmax.f32 %v644, 0.0
  %v709 = vmax.f32 %v645, 0.0
  %v710 = vmax.f32 %v646, 0.0
  %v711 = vmax.f32 %v647, 0.0
  %v712 = vmax.f32 %v648, 0.0
  %v713 = vmax.f32 %v649, 0.0
  %v714 = vmax.f32 %v650, 0.0
  %v715 = vmax.f32 %v651, 0.0
  %v716 = vmax.f32 %v652, 0.0
  %v717 = vmax.f32 %v653, 0.0
  %v718 = vmax.f32 %v654, 0.0
  %v719 = vmax.f32 %v655, 0.0
  %v720 = vmax.f32 %v656, 0.0
  %v721 = vmax.f32 %v657, 0.0
  %v722 = vmax.f32 %v658, 0.0
  %v723 = vmax.f32 %v659, 0.0
  %v724 = vmax.f32 %v660, 0.0
  %v725 = vmax.f32 %v661, 0.0
  %v726 = vmax.f32 %v662, 0.0
  %v727 = vmax.f32 %v663, 0.0
  %v728 = vmax.f32 %v664, 0.0
  %v729 = vmax.f32 %v665, 0.0
  %v730 = vmax.f32 %v666, 0.0
  %v731 = vmax.f32 %v667, 0.0
  %v732 = vmax.f32 %v668, 0.0
  %v733 = vmax.f32 %v669, 0.0
  %v734 = vmax.f32 %v670, 0.0
  %v735 = vmax.f32 %v671, 0.0
  %v736 = vmax.f32 %v672, 0.0
  %v737 = vmax.f32 %v673, 0.0
  %v738 = vmax.f32 %v674, 0.0
  %v739 = vmax.f32 %v675, 0.0
  %v740 = vmax.f32 %v676, 0.0
  %v741 = vmax.f32 %v677, 0.0
  %v742 = vmax.f32 %v678, 0.0
  %743 = vst [vmem:[%s6] sm:$0xff] %v679
  %744 = vst [vmem:[%s6 + $0x8] sm:$0xff] %v680
  %745 = vst [vmem:[%s6 + $0x10] sm:$0xff] %v681
  %746 = vst [vmem:[%s6 + $0x18] sm:$0xff] %v682
  %747 = vst [vmem:[%s6 + $0x20] sm:$0xff] %v683
  %748 = vst [vmem:[%s6 + $0x28] sm:$0xff] %v684
  %749 = vst [vmem:[%s6 + $0x30] sm:$0xff] %v685
  %750 = vst [vmem:[%s6 + $0x38] sm:$0xff] %v686
  %751 = vst [vmem:[%s6 + $0x40] sm:$0xff] %v687
  %752 = vst [vmem:[%s6 + $0x48] sm:$0xff] %v688
  %753 = vst [vmem:[%s6 + $0x50] sm:$0xff] %v689
  %754 = vst [vmem:[%s6 + $0x58] sm:$0xff] %v690
  %755 = vst [vmem:[%s6 + $0x60] sm:$0xff] %v691
  %756 = vst [vmem:[%s6 + $0x68] sm:$0xff] %v692
  %757 = vst [vmem:[%s6 + $0x70] sm:$0xff] %v693
  %758 = vst [vmem:[%s6 + $0x78] sm:$0xff] %v694
  %759 = vst [vmem:[%s6 + $0x80] sm:$0xff] %v695
  %760 = vst [vmem:[%s6 + $0x88] sm:$0xff] %v696
  %761 = vst [vmem:[%s6 + $0x90] sm:$0xff] %v697
  %762 = vst [vmem:[%s6 + $0x98] sm:$0xff] %v698
  %763 = vst [vmem:[%s6 + $0xa0] sm:$0xff] %v699
  %764 = vst [vmem:[%s6 + $0xa8] sm:$0xff] %v700
  %765 = vst [vmem:[%s6 + $0xb0] sm:$0xff] %v701
  %766 = vst [vmem:[%s6 + $0xb8] sm:$0xff] %v702
  %767 = vst [vmem:[%s6 + $0xc0] sm:$0xff] %v703
  %768 = vst [vmem:[%s6 + $0xc8] sm:$0xff] %v704
  %769 = vst [vmem:[%s6 + $0xd0] sm:$0xff] %v705
  %770 = vst [vmem:[%s6 + $0xd8] sm:$0xff] %v706
  %771 = vst [vmem:[%s6 + $0xe0] sm:$0xff] %v707
  %772 = vst [vmem:[%s6 + $0xe8] sm:$0xff] %v708
  %773 = vst [vmem:[%s6 + $0xf0] sm:$0xff] %v709
  %774 = vst [vmem:[%s6 + $0xf8] sm:$0xff] %v710
  %775 = vst [vmem:[%s6 + $0x100] sm:$0xff] %v711
  %776 = vst [vmem:[%s6 + $0x108] sm:$0xff] %v712
  %777 = vst [vmem:[%s6 + $0x110] sm:$0xff] %v713
  %778 = vst [vmem:[%s6 + $0x118] sm:$0xff] %v714
  %779 = vst [vmem:[%s6 + $0x120] sm:$0xff] %v715
  %780 = vst [vmem:[%s6 + $0x128] sm:$0xff] %v716
  %781 = vst [vmem:[%s6 + $0x130] sm:$0xff] %v717
  %782 = vst [vmem:[%s6 + $0x138] sm:$0xff] %v718
  %783 = vst [vmem:[%s6 + $0x140] sm:$0xff] %v719
  %784 = vst [vmem:[%s6 + $0x148] sm:$0xff] %v720
  %785 = vst [vmem:[%s6 + $0x150] sm:$0xff] %v721
  %786 = vst [vmem:[%s6 + $0x158] sm:$0xff] %v722
  %787 = vst [vmem:[%s6 + $0x160] sm:$0xff] %v723
  %788 = vst [vmem:[%s6 + $0x168] sm:$0xff] %v724
  %789 = vst [vmem:[%s6 + $0x170] sm:$0xff] %v725
  %790 = vst [vmem:[%s6 + $0x178] sm:$0xff] %v726
  %791 = vst [vmem:[%s6 + $0x180] sm:$0xff] %v727
  %792 = vst [vmem:[%s6 + $0x188] sm:$0xff] %v728
  %793 = vst [vmem:[%s6 + $0x190] sm:$0xff] %v729
  %794 = vst [vmem:[%s6 + $0x198] sm:$0xff] %v730
  %795 = vst [vmem:[%s6 + $0x1a0] sm:$0xff] %v731
  %796 = vst [vmem:[%s6 + $0x1a8] sm:$0xff] %v732
  %797 = vst [vmem:[%s6 + $0x1b0] sm:$0xff] %v733
  %798 = vst [vmem:[%s6 + $0x1b8] sm:$0xff] %v734
  %799 = vst [vmem:[%s6 + $0x1c0] sm:$0xff] %v735
  %800 = vst [vmem:[%s6 + $0x1c8] sm:$0xff] %v736
  %801 = vst [vmem:[%s6 + $0x1d0] sm:$0xff] %v737
  %802 = vst [vmem:[%s6 + $0x1d8] sm:$0xff] %v738
  %803 = vst [vmem:[%s6 + $0x1e0] sm:$0xff] %v739
  %804 = vst [vmem:[%s6 + $0x1e8] sm:$0xff] %v740
  %805 = vst [vmem:[%s6 + $0x1f0] sm:$0xff] %v741
  %806 = vst [vmem:[%s6 + $0x1f8] sm:$0xff] %v742
  // Predicated region
  $region26: #{bottleneck_forward.9} parent=0 // pred_check
    _
  $region27: #{bottleneck_forward.9} parent=0 // pred_check_branch
    %808 = sbr.rel (0) target = $region29
  $region28: #{bottleneck_forward.9} parent=0 // pred_region
    _
  $region29: #{bottleneck_forward.9} parent=0 // pred_fallthru
    _
  // Predicated region
  $region30: #{bottleneck_forward.9} parent=0 // pred_check
    _
  $region31: #{bottleneck_forward.9} parent=0 // pred_check_branch
    %810 = sbr.rel (0) target = $region33
  $region32: #{bottleneck_forward.9} parent=0 // pred_region
    _
  $region33: #{bottleneck_forward.9} parent=0 // pred_fallthru
    _

</llo_original>
